<compile_context>
chip_gen: v7x
topology: tpu7x:2x2x1
jax: 0.10.0
libtpu: 0.0.40
codegen_flags: <defaults>
</compile_context>

<pallas_src>
import numpy as np
import jax
import jax.numpy as jnp
from jax import lax
from jax.experimental import pallas as pl
from jax.experimental.pallas import tpu as pltpu


# ----------------------------------------------------------------------------
# Static problem configuration (small stand-in for the 224x224 model).
# ----------------------------------------------------------------------------
N = 2                      # batch
C_IN = 3
H = W = 16
C1 = 32                    # conv1 out channels
C2 = 128                   # conv2 out channels
H2, W2 = H // 2, W // 2    # after pool1: 8, 8
H4, W4 = H2 // 2, W2 // 2  # after pool2: 4, 4
HID = 512
N_CLASSES = 2

K1 = 9 * C_IN              # 27  : conv1 im2col contraction width
PW2 = W2 + 2               # 10  : padded width of conv2 input grid
P2 = (H2 + 2) * PW2        # 100 : padded conv2 grid rows per image
G2 = 16                    # guard rows above/below conv2 padded grid
C2IN_ROWS = G2 + P2 + 20   # 136 (8-aligned)
C2S_ROWS = 104             # conv2 activation staging (>= P2, 8-aligned)
R_FC = H4 * W4             # 16 spatial positions feeding fc1
FLAT = R_FC * C2           # 2048 flattened features per image

# Guard-row sanity: conv2 tap slices must never read outside the staging
# buffer (no runtime OOB check on VMEM refs).
assert G2 >= PW2 + 1
assert C2IN_ROWS >= G2 + P2 + PW2 + 1


# ----------------------------------------------------------------------------
# Fused Pallas kernel (runs once per image via grid=(N,))
# ----------------------------------------------------------------------------
def _fused_kernel(x_ref, w1_ref, b1_ref, w2_ref, b2_ref,
                  fc1w_ref, fc1b_ref, fc2w_ref, fc2b_ref, out_ref,
                  a1_ref, c2in_ref, c2s_ref, p2_ref):
    f32, bf16 = jnp.float32, jnp.bfloat16

    # Only the conv2 padded-input staging needs zeroing (its zero-padding ring
    # and guard rows); all other scratch is fully overwritten before it's read.
    c2in_ref[...] = jnp.zeros_like(c2in_ref)

    # --- conv1 + bias + ReLU: ONE wide-K MXU dot (K=27 host-built im2col) ----
    a1 = jnp.dot(x_ref[0], w1_ref[...], preferred_element_type=f32)  # (256, 32)
    a1_ref[...] = jnp.maximum(a1 + b1_ref[...], 0.0)

    # --- pool1 (2x2 / stride 2): strided sublane reads, max-of-4, written ----
    # --- straight into the interior of conv2's zero-padded flat grid ---------
    for i2 in range(H2):
        e = (2 * i2) * W            # even input row base (flat)
        o = e + W                   # odd input row base
        va = a1_ref[pl.ds(e,     W2, stride=2), :]
        vb = a1_ref[pl.ds(e + 1, W2, stride=2), :]
        vc = a1_ref[pl.ds(o,     W2, stride=2), :]
        vd = a1_ref[pl.ds(o + 1, W2, stride=2), :]
        pooled = jnp.maximum(jnp.maximum(va, vb), jnp.maximum(vc, vd))  # (8, 32)
        r0 = G2 + (i2 + 1) * PW2 + 1
        c2in_ref[r0:r0 + W2, :] = pooled

    # --- conv2 + bias + ReLU: 9 tap dots chained into a vreg f32 accumulator,
    # --- single writeback (no VMEM read-modify-write per tap) ----------------
    acc2 = jnp.zeros((P2, C2), f32)
    for kh in range(3):
        for kw in range(3):
            d = (kh - 1) * PW2 + (kw - 1)
            xs = c2in_ref[G2 + d:G2 + d + P2, :].astype(bf16)         # (100, 32)
            acc2 = acc2 + jnp.dot(xs, w2_ref[kh * 3 + kw],
                                  preferred_element_type=f32)
    c2s_ref[0:P2, :] = jnp.maximum(acc2 + b2_ref[...], 0.0)

    # --- pool2 (2x2 / stride 2) + flatten: each pooled (1,128) channel row ---
    # --- lands in an aligned 128-lane segment of the (1,2048) feature vector -
    for r in range(R_FC):
        i4, j4 = r // W4, r % W4
        t0 = (2 * i4 + 1) * PW2 + (2 * j4 + 1)     # padded-grid anchor row
        t1 = t0 + PW2
        pr = jnp.maximum(
            jnp.maximum(c2s_ref[t0:t0 + 1, :], c2s_ref[t0 + 1:t0 + 2, :]),
            jnp.maximum(c2s_ref[t1:t1 + 1, :], c2s_ref[t1 + 1:t1 + 2, :]))
        p2_ref[0:1, r * C2:(r + 1) * C2] = pr

    # --- classifier: fc1 as ONE wide-K dot (K=2048) + ReLU, then fc2 ---------
    feats = p2_ref[0:1, :].astype(bf16)                               # (1, 2048)
    y1 = jnp.dot(feats, fc1w_ref[...], preferred_element_type=f32)
    y1 = jnp.maximum(y1 + fc1b_ref[...], 0.0).astype(bf16)            # (1, 512)
    logits = jnp.dot(y1, fc2w_ref[...], preferred_element_type=f32)   # (1, 2)
    out_ref[0] = logits + fc2b_ref[...]


# ----------------------------------------------------------------------------
# Host-side helpers: params (pre-rearranged once), input im2col prep
# ----------------------------------------------------------------------------
def init_params(key):
    ks = jax.random.split(key, 8)
    scale = 0.05
    flat_in = C2 * H4 * W4  # TODO(synk): scaled from 128*56*56 for the small input.
    tp = {
        "conv1_w": scale * jax.random.normal(ks[0], (C1, C_IN, 3, 3), jnp.float32),
        "conv1_b": scale * jax.random.normal(ks[1], (C1,), jnp.float32),
        # TODO(synk): original module declares Conv2d(64, 128); using in_channels=32.
        "conv2_w": scale * jax.random.normal(ks[2], (C2, C1, 3, 3), jnp.float32),
        "conv2_b": scale * jax.random.normal(ks[3], (C2,), jnp.float32),
        "fc1_w": scale * jax.random.normal(ks[4], (HID, flat_in), jnp.float32),
        "fc1_b": scale * jax.random.normal(ks[5], (HID,), jnp.float32),
        "fc2_w": scale * jax.random.normal(ks[6], (N_CLASSES, HID), jnp.float32),
        "fc2_b": scale * jax.random.normal(ks[7], (N_CLASSES,), jnp.float32),
    }
    kp = {
        # conv1: (27, C1), row index = (kh*3+kw)*C_IN + cin (matches im2col order)
        "w1": jnp.transpose(tp["conv1_w"], (2, 3, 1, 0))
                 .reshape(K1, C1).astype(jnp.bfloat16),
        "b1": tp["conv1_b"].reshape(1, C1),
        # conv2 taps: (9, Cin, Cout)
        "w2": jnp.transpose(tp["conv2_w"], (2, 3, 1, 0))
                 .reshape(9, C1, C2).astype(jnp.bfloat16),
        "b2": tp["conv2_b"].reshape(1, C2),
        # fc1: kernel flatten index = r*C2 + c ; torch flatten index = c*R_FC + r.
        "fc1w": jnp.transpose(tp["fc1_w"].reshape(HID, C2, R_FC), (2, 1, 0))
                   .reshape(FLAT, HID).astype(jnp.bfloat16),
        "fc1b": tp["fc1_b"].reshape(1, HID),
        "fc2w": jnp.transpose(tp["fc2_w"]).astype(jnp.bfloat16),
        "fc2b": tp["fc2_b"].reshape(1, N_CLASSES),
    }
    return tp, kp


def _prep_input(x_nchw):
    # Tiny host-side im2col for conv1: (N, H*W, 9*C_IN) bf16 (~27 KB).
    x = jnp.transpose(x_nchw, (0, 2, 3, 1))                 # NHWC
    xp = jnp.pad(x, ((0, 0), (1, 1), (1, 1), (0, 0)))       # spatial zero-pad
    cols = [xp[:, kh:kh + H, kw:kw + W, :]
            for kh in range(3) for kw in range(3)]
    xi = jnp.concatenate(cols, axis=-1)                     # (N, H, W, 27)
    return xi.reshape(N, H * W, K1).astype(jnp.bfloat16)


@jax.jit
def alzheimer_cnn_forward(kernel_params, x_nchw):
    xi = _prep_input(x_nchw)
    kp = kernel_params
    out = pl.pallas_call(
        _fused_kernel,
        out_shape=jax.ShapeDtypeStruct((N, 1, N_CLASSES), jnp.float32),
        grid=(N,),
        in_specs=[
            pl.BlockSpec((1, H * W, K1), lambda n: (n, 0, 0)),   # im2col (per image)
            pl.BlockSpec((K1, C1), lambda n: (0, 0)),            # w1
            pl.BlockSpec((1, C1), lambda n: (0, 0)),             # b1
            pl.BlockSpec((9, C1, C2), lambda n: (0, 0, 0)),      # w2 taps
            pl.BlockSpec((1, C2), lambda n: (0, 0)),             # b2
            pl.BlockSpec((FLAT, HID), lambda n: (0, 0)),         # fc1w
            pl.BlockSpec((1, HID), lambda n: (0, 0)),            # fc1b
            pl.BlockSpec((HID, N_CLASSES), lambda n: (0, 0)),    # fc2w
            pl.BlockSpec((1, N_CLASSES), lambda n: (0, 0)),      # fc2b
        ],
        out_specs=pl.BlockSpec((1, 1, N_CLASSES), lambda n: (n, 0, 0)),
        scratch_shapes=[
            pltpu.VMEM((H * W, C1), jnp.float32),      # conv1 activations (256, 32)
            pltpu.VMEM((C2IN_ROWS, C1), jnp.float32),  # conv2 padded flat input
            pltpu.VMEM((C2S_ROWS, C2), jnp.float32),   # conv2 activations
            pltpu.VMEM((8, FLAT), jnp.float32),        # flattened pooled features
        ],
        compiler_params=pltpu.CompilerParams(
            dimension_semantics=("parallel",)),
    )(xi, kp["w1"], kp["b1"], kp["w2"], kp["b2"],
      kp["fc1w"], kp["fc1b"], kp["fc2w"], kp["fc2b"])
    return out.reshape(N, N_CLASSES)


# ----------------------------------------------------------------------------
# Pure-JAX reference (f32) for a numerical sanity check.
# ----------------------------------------------------------------------------
def reference_forward(tp, x_nchw):
    dn = ("NCHW", "OIHW", "NCHW")
    y = lax.conv_general_dilated(x_nchw, tp["conv1_w"], (1, 1), "SAME",
                                 dimension_numbers=dn)
    y = jnp.maximum(y + tp["conv1_b"][None, :, None, None], 0.0)
    y = lax.reduce_window(y, -jnp.inf, lax.max, (1, 1, 2, 2), (1, 1, 2, 2), "VALID")
    y = lax.conv_general_dilated(y, tp["conv2_w"], (1, 1), "SAME",
                                 dimension_numbers=dn)
    y = jnp.maximum(y + tp["conv2_b"][None, :, None, None], 0.0)
    y = lax.reduce_window(y, -jnp.inf, lax.max, (1, 1, 2, 2), (1, 1, 2, 2), "VALID")
    y = y.reshape(N, -1)                                  # torch NCHW flatten
    y = jnp.maximum(y @ tp["fc1_w"].T + tp["fc1_b"], 0.0)
    return y @ tp["fc2_w"].T + tp["fc2_b"]


if __name__ == "__main__":
    key = jax.random.PRNGKey(0)
    k_x, k_p = jax.random.split(key)

    x = jax.random.normal(k_x, (N, C_IN, H, W), jnp.float32)
    torch_params, kernel_params = init_params(k_p)

    out = jax.block_until_ready(alzheimer_cnn_forward(kernel_params, x))
    assert out.shape == (N, N_CLASSES), out.shape
    assert out.dtype == jnp.float32

    ref = jax.block_until_ready(reference_forward(torch_params, x))
    np.testing.assert_allclose(np.asarray(out), np.asarray(ref),
                               rtol=5e-2, atol=5e-2)
    print("KERNEL_OK")
</pallas_src>

<mosaic_0001>
module attributes {stable_mosaic.version = 11 : i64} {
  func.func @_fused_kernel(%arg0: i32, %arg1: memref<1x256x27xbf16, #tpu.memory_space<vmem>>, %arg2: memref<27x32xbf16, #tpu.memory_space<vmem>>, %arg3: memref<1x32xf32, #tpu.memory_space<vmem>>, %arg4: memref<9x32x128xbf16, #tpu.memory_space<vmem>>, %arg5: memref<1x128xf32, #tpu.memory_space<vmem>>, %arg6: memref<2048x512xbf16, #tpu.memory_space<vmem>>, %arg7: memref<1x512xf32, #tpu.memory_space<vmem>>, %arg8: memref<512x2xbf16, #tpu.memory_space<vmem>>, %arg9: memref<1x2xf32, #tpu.memory_space<vmem>>, %arg10: memref<1x1x2xf32, #tpu.memory_space<vmem>>, %arg11: memref<256x32xf32, #tpu.memory_space<vmem>>, %arg12: memref<136x32xf32, #tpu.memory_space<vmem>>, %arg13: memref<104x128xf32, #tpu.memory_space<vmem>>, %arg14: memref<8x2048xf32, #tpu.memory_space<vmem>>) attributes {dimension_semantics = [#tpu.dimension_semantics<parallel>], iteration_bounds = array<i64: 2>, scalar_prefetch = 0 : i64, scratch_operands = 4 : i64, tpu.core_type = #tpu.core_type<tc>, window_params = [{transform_indices = @transform_0, window_bounds = array<i64: 1, 256, 27>}, {pipeline_mode = #tpu.pipeline_mode<synchronous>, transform_indices = @transform_1, window_bounds = array<i64: 27, 32>}, {pipeline_mode = #tpu.pipeline_mode<synchronous>, transform_indices = @transform_2, window_bounds = array<i64: 1, 32>}, {pipeline_mode = #tpu.pipeline_mode<synchronous>, transform_indices = @transform_3, window_bounds = array<i64: 9, 32, 128>}, {pipeline_mode = #tpu.pipeline_mode<synchronous>, transform_indices = @transform_4, window_bounds = array<i64: 1, 128>}, {pipeline_mode = #tpu.pipeline_mode<synchronous>, transform_indices = @transform_5, window_bounds = array<i64: 2048, 512>}, {pipeline_mode = #tpu.pipeline_mode<synchronous>, transform_indices = @transform_6, window_bounds = array<i64: 1, 512>}, {pipeline_mode = #tpu.pipeline_mode<synchronous>, transform_indices = @transform_7, window_bounds = array<i64: 512, 2>}, {pipeline_mode = #tpu.pipeline_mode<synchronous>, transform_indices = @transform_8, window_bounds = array<i64: 1, 2>}, {transform_indices = @transform_9, window_bounds = array<i64: 1, 1, 2>}]} {
    %cst = arith.constant 0.000000e+00 : f32
    %0 = vector.broadcast %cst : f32 to vector<136x32xf32>
    %c0 = arith.constant 0 : index
    %c0_0 = arith.constant 0 : index
    %1 = vector.load %arg12[%c0, %c0_0] : memref<136x32xf32, #tpu.memory_space<vmem>>, vector<136x32xf32>
    tpu.vector_store %arg12[%c0, %c0_0], %0 {strides = array<i32>} : memref<136x32xf32, #tpu.memory_space<vmem>>, vector<136x32xf32>,
    %c0_1 = arith.constant 0 : index
    %c0_2 = arith.constant 0 : index
    %c0_3 = arith.constant 0 : index
    %2 = vector.load %arg1[%c0_1, %c0_2, %c0_3] : memref<1x256x27xbf16, #tpu.memory_space<vmem>>, vector<1x256x27xbf16>
    %3 = vector.shape_cast %2 : vector<1x256x27xbf16> to vector<256x27xbf16>
    %c0_4 = arith.constant 0 : index
    %c0_5 = arith.constant 0 : index
    %4 = vector.load %arg2[%c0_4, %c0_5] : memref<27x32xbf16, #tpu.memory_space<vmem>>, vector<27x32xbf16>
    %cst_6 = arith.constant dense<0.000000e+00> : vector<256x32xf32>
    %5 = tpu.matmul %3, %4, %cst_6 {dimension_numbers = #tpu.dot_dimension_numbers<[1], [0], [0], [1], [0, 0, 1, 1], [], []>} : vector<256x27xbf16>, vector<27x32xbf16>, vector<256x32xf32> -> vector<256x32xf32>
    %c0_7 = arith.constant 0 : index
    %c0_8 = arith.constant 0 : index
    %6 = vector.load %arg3[%c0_7, %c0_8] : memref<1x32xf32, #tpu.memory_space<vmem>>, vector<1x32xf32>
    %7 = vector.broadcast %6 : vector<1x32xf32> to vector<256x32xf32>
    %8 = arith.addf %5, %7 : vector<256x32xf32>
    %cst_9 = arith.constant 0.000000e+00 : f32
    %9 = vector.broadcast %cst_9 : f32 to vector<256x32xf32>
    %10 = arith.maximumf %8, %9 : vector<256x32xf32>
    %c0_10 = arith.constant 0 : index
    %c0_11 = arith.constant 0 : index
    %11 = vector.load %arg11[%c0_10, %c0_11] : memref<256x32xf32, #tpu.memory_space<vmem>>, vector<256x32xf32>
    tpu.vector_store %arg11[%c0_10, %c0_11], %10 {strides = array<i32>} : memref<256x32xf32, #tpu.memory_space<vmem>>, vector<256x32xf32>,
    %c0_12 = arith.constant 0 : index
    %c0_13 = arith.constant 0 : index
    %12 = tpu.strided_load %arg11[%c0_12, %c0_13] {strides = array<i32: 2, 1>} : memref<256x32xf32, #tpu.memory_space<vmem>>, vector<8x32xf32>
    %c1 = arith.constant 1 : index
    %c0_14 = arith.constant 0 : index
    %13 = tpu.strided_load %arg11[%c1, %c0_14] {strides = array<i32: 2, 1>} : memref<256x32xf32, #tpu.memory_space<vmem>>, vector<8x32xf32>
    %c16 = arith.constant 16 : index
    %c0_15 = arith.constant 0 : index
    %14 = tpu.strided_load %arg11[%c16, %c0_15] {strides = array<i32: 2, 1>} : memref<256x32xf32, #tpu.memory_space<vmem>>, vector<8x32xf32>
    %c17 = arith.constant 17 : index
    %c0_16 = arith.constant 0 : index
    %15 = tpu.strided_load %arg11[%c17, %c0_16] {strides = array<i32: 2, 1>} : memref<256x32xf32, #tpu.memory_space<vmem>>, vector<8x32xf32>
    %16 = arith.maximumf %12, %13 : vector<8x32xf32>
    %17 = arith.maximumf %14, %15 : vector<8x32xf32>
    %18 = arith.maximumf %16, %17 : vector<8x32xf32>
    %c27 = arith.constant 27 : index
    %c0_17 = arith.constant 0 : index
    %19 = vector.load %arg12[%c27, %c0_17] : memref<136x32xf32, #tpu.memory_space<vmem>>, vector<8x32xf32>
    tpu.vector_store %arg12[%c27, %c0_17], %18 {strides = array<i32>} : memref<136x32xf32, #tpu.memory_space<vmem>>, vector<8x32xf32>,
    %c32 = arith.constant 32 : index
    %c0_18 = arith.constant 0 : index
    %20 = tpu.strided_load %arg11[%c32, %c0_18] {strides = array<i32: 2, 1>} : memref<256x32xf32, #tpu.memory_space<vmem>>, vector<8x32xf32>
    %c33 = arith.constant 33 : index
    %c0_19 = arith.constant 0 : index
    %21 = tpu.strided_load %arg11[%c33, %c0_19] {strides = array<i32: 2, 1>} : memref<256x32xf32, #tpu.memory_space<vmem>>, vector<8x32xf32>
    %c48 = arith.constant 48 : index
    %c0_20 = arith.constant 0 : index
    %22 = tpu.strided_load %arg11[%c48, %c0_20] {strides = array<i32: 2, 1>} : memref<256x32xf32, #tpu.memory_space<vmem>>, vector<8x32xf32>
    %c49 = arith.constant 49 : index
    %c0_21 = arith.constant 0 : index
    %23 = tpu.strided_load %arg11[%c49, %c0_21] {strides = array<i32: 2, 1>} : memref<256x32xf32, #tpu.memory_space<vmem>>, vector<8x32xf32>
    %24 = arith.maximumf %20, %21 : vector<8x32xf32>
    %25 = arith.maximumf %22, %23 : vector<8x32xf32>
    %26 = arith.maximumf %24, %25 : vector<8x32xf32>
    %c37 = arith.constant 37 : index
    %c0_22 = arith.constant 0 : index
    %27 = vector.load %arg12[%c37, %c0_22] : memref<136x32xf32, #tpu.memory_space<vmem>>, vector<8x32xf32>
    tpu.vector_store %arg12[%c37, %c0_22], %26 {strides = array<i32>} : memref<136x32xf32, #tpu.memory_space<vmem>>, vector<8x32xf32>,
    %c64 = arith.constant 64 : index
    %c0_23 = arith.constant 0 : index
    %28 = tpu.strided_load %arg11[%c64, %c0_23] {strides = array<i32: 2, 1>} : memref<256x32xf32, #tpu.memory_space<vmem>>, vector<8x32xf32>
    %c65 = arith.constant 65 : index
    %c0_24 = arith.constant 0 : index
    %29 = tpu.strided_load %arg11[%c65, %c0_24] {strides = array<i32: 2, 1>} : memref<256x32xf32, #tpu.memory_space<vmem>>, vector<8x32xf32>
    %c80 = arith.constant 80 : index
    %c0_25 = arith.constant 0 : index
    %30 = tpu.strided_load %arg11[%c80, %c0_25] {strides = array<i32: 2, 1>} : memref<256x32xf32, #tpu.memory_space<vmem>>, vector<8x32xf32>
    %c81 = arith.constant 81 : index
    %c0_26 = arith.constant 0 : index
    %31 = tpu.strided_load %arg11[%c81, %c0_26] {strides = array<i32: 2, 1>} : memref<256x32xf32, #tpu.memory_space<vmem>>, vector<8x32xf32>
    %32 = arith.maximumf %28, %29 : vector<8x32xf32>
    %33 = arith.maximumf %30, %31 : vector<8x32xf32>
    %34 = arith.maximumf %32, %33 : vector<8x32xf32>
    %c47 = arith.constant 47 : index
    %c0_27 = arith.constant 0 : index
    %35 = vector.load %arg12[%c47, %c0_27] : memref<136x32xf32, #tpu.memory_space<vmem>>, vector<8x32xf32>
    tpu.vector_store %arg12[%c47, %c0_27], %34 {strides = array<i32>} : memref<136x32xf32, #tpu.memory_space<vmem>>, vector<8x32xf32>,
    %c96 = arith.constant 96 : index
    %c0_28 = arith.constant 0 : index
    %36 = tpu.strided_load %arg11[%c96, %c0_28] {strides = array<i32: 2, 1>} : memref<256x32xf32, #tpu.memory_space<vmem>>, vector<8x32xf32>
    %c97 = arith.constant 97 : index
    %c0_29 = arith.constant 0 : index
    %37 = tpu.strided_load %arg11[%c97, %c0_29] {strides = array<i32: 2, 1>} : memref<256x32xf32, #tpu.memory_space<vmem>>, vector<8x32xf32>
    %c112 = arith.constant 112 : index
    %c0_30 = arith.constant 0 : index
    %38 = tpu.strided_load %arg11[%c112, %c0_30] {strides = array<i32: 2, 1>} : memref<256x32xf32, #tpu.memory_space<vmem>>, vector<8x32xf32>
    %c113 = arith.constant 113 : index
    %c0_31 = arith.constant 0 : index
    %39 = tpu.strided_load %arg11[%c113, %c0_31] {strides = array<i32: 2, 1>} : memref<256x32xf32, #tpu.memory_space<vmem>>, vector<8x32xf32>
    %40 = arith.maximumf %36, %37 : vector<8x32xf32>
    %41 = arith.maximumf %38, %39 : vector<8x32xf32>
    %42 = arith.maximumf %40, %41 : vector<8x32xf32>
    %c57 = arith.constant 57 : index
    %c0_32 = arith.constant 0 : index
    %43 = vector.load %arg12[%c57, %c0_32] : memref<136x32xf32, #tpu.memory_space<vmem>>, vector<8x32xf32>
    tpu.vector_store %arg12[%c57, %c0_32], %42 {strides = array<i32>} : memref<136x32xf32, #tpu.memory_space<vmem>>, vector<8x32xf32>,
    %c128 = arith.constant 128 : index
    %c0_33 = arith.constant 0 : index
    %44 = tpu.strided_load %arg11[%c128, %c0_33] {strides = array<i32: 2, 1>} : memref<256x32xf32, #tpu.memory_space<vmem>>, vector<8x32xf32>
    %c129 = arith.constant 129 : index
    %c0_34 = arith.constant 0 : index
    %45 = tpu.strided_load %arg11[%c129, %c0_34] {strides = array<i32: 2, 1>} : memref<256x32xf32, #tpu.memory_space<vmem>>, vector<8x32xf32>
    %c144 = arith.constant 144 : index
    %c0_35 = arith.constant 0 : index
    %46 = tpu.strided_load %arg11[%c144, %c0_35] {strides = array<i32: 2, 1>} : memref<256x32xf32, #tpu.memory_space<vmem>>, vector<8x32xf32>
    %c145 = arith.constant 145 : index
    %c0_36 = arith.constant 0 : index
    %47 = tpu.strided_load %arg11[%c145, %c0_36] {strides = array<i32: 2, 1>} : memref<256x32xf32, #tpu.memory_space<vmem>>, vector<8x32xf32>
    %48 = arith.maximumf %44, %45 : vector<8x32xf32>
    %49 = arith.maximumf %46, %47 : vector<8x32xf32>
    %50 = arith.maximumf %48, %49 : vector<8x32xf32>
    %c67 = arith.constant 67 : index
    %c0_37 = arith.constant 0 : index
    %51 = vector.load %arg12[%c67, %c0_37] : memref<136x32xf32, #tpu.memory_space<vmem>>, vector<8x32xf32>
    tpu.vector_store %arg12[%c67, %c0_37], %50 {strides = array<i32>} : memref<136x32xf32, #tpu.memory_space<vmem>>, vector<8x32xf32>,
    %c160 = arith.constant 160 : index
    %c0_38 = arith.constant 0 : index
    %52 = tpu.strided_load %arg11[%c160, %c0_38] {strides = array<i32: 2, 1>} : memref<256x32xf32, #tpu.memory_space<vmem>>, vector<8x32xf32>
    %c161 = arith.constant 161 : index
    %c0_39 = arith.constant 0 : index
    %53 = tpu.strided_load %arg11[%c161, %c0_39] {strides = array<i32: 2, 1>} : memref<256x32xf32, #tpu.memory_space<vmem>>, vector<8x32xf32>
    %c176 = arith.constant 176 : index
    %c0_40 = arith.constant 0 : index
    %54 = tpu.strided_load %arg11[%c176, %c0_40] {strides = array<i32: 2, 1>} : memref<256x32xf32, #tpu.memory_space<vmem>>, vector<8x32xf32>
    %c177 = arith.constant 177 : index
    %c0_41 = arith.constant 0 : index
    %55 = tpu.strided_load %arg11[%c177, %c0_41] {strides = array<i32: 2, 1>} : memref<256x32xf32, #tpu.memory_space<vmem>>, vector<8x32xf32>
    %56 = arith.maximumf %52, %53 : vector<8x32xf32>
    %57 = arith.maximumf %54, %55 : vector<8x32xf32>
    %58 = arith.maximumf %56, %57 : vector<8x32xf32>
    %c77 = arith.constant 77 : index
    %c0_42 = arith.constant 0 : index
    %59 = vector.load %arg12[%c77, %c0_42] : memref<136x32xf32, #tpu.memory_space<vmem>>, vector<8x32xf32>
    tpu.vector_store %arg12[%c77, %c0_42], %58 {strides = array<i32>} : memref<136x32xf32, #tpu.memory_space<vmem>>, vector<8x32xf32>,
    %c192 = arith.constant 192 : index
    %c0_43 = arith.constant 0 : index
    %60 = tpu.strided_load %arg11[%c192, %c0_43] {strides = array<i32: 2, 1>} : memref<256x32xf32, #tpu.memory_space<vmem>>, vector<8x32xf32>
    %c193 = arith.constant 193 : index
    %c0_44 = arith.constant 0 : index
    %61 = tpu.strided_load %arg11[%c193, %c0_44] {strides = array<i32: 2, 1>} : memref<256x32xf32, #tpu.memory_space<vmem>>, vector<8x32xf32>
    %c208 = arith.constant 208 : index
    %c0_45 = arith.constant 0 : index
    %62 = tpu.strided_load %arg11[%c208, %c0_45] {strides = array<i32: 2, 1>} : memref<256x32xf32, #tpu.memory_space<vmem>>, vector<8x32xf32>
    %c209 = arith.constant 209 : index
    %c0_46 = arith.constant 0 : index
    %63 = tpu.strided_load %arg11[%c209, %c0_46] {strides = array<i32: 2, 1>} : memref<256x32xf32, #tpu.memory_space<vmem>>, vector<8x32xf32>
    %64 = arith.maximumf %60, %61 : vector<8x32xf32>
    %65 = arith.maximumf %62, %63 : vector<8x32xf32>
    %66 = arith.maximumf %64, %65 : vector<8x32xf32>
    %c87 = arith.constant 87 : index
    %c0_47 = arith.constant 0 : index
    %67 = vector.load %arg12[%c87, %c0_47] : memref<136x32xf32, #tpu.memory_space<vmem>>, vector<8x32xf32>
    tpu.vector_store %arg12[%c87, %c0_47], %66 {strides = array<i32>} : memref<136x32xf32, #tpu.memory_space<vmem>>, vector<8x32xf32>,
    %c224 = arith.constant 224 : index
    %c0_48 = arith.constant 0 : index
    %68 = tpu.strided_load %arg11[%c224, %c0_48] {strides = array<i32: 2, 1>} : memref<256x32xf32, #tpu.memory_space<vmem>>, vector<8x32xf32>
    %c225 = arith.constant 225 : index
    %c0_49 = arith.constant 0 : index
    %69 = tpu.strided_load %arg11[%c225, %c0_49] {strides = array<i32: 2, 1>} : memref<256x32xf32, #tpu.memory_space<vmem>>, vector<8x32xf32>
    %c240 = arith.constant 240 : index
    %c0_50 = arith.constant 0 : index
    %70 = tpu.strided_load %arg11[%c240, %c0_50] {strides = array<i32: 2, 1>} : memref<256x32xf32, #tpu.memory_space<vmem>>, vector<8x32xf32>
    %c241 = arith.constant 241 : index
    %c0_51 = arith.constant 0 : index
    %71 = tpu.strided_load %arg11[%c241, %c0_51] {strides = array<i32: 2, 1>} : memref<256x32xf32, #tpu.memory_space<vmem>>, vector<8x32xf32>
    %72 = arith.maximumf %68, %69 : vector<8x32xf32>
    %73 = arith.maximumf %70, %71 : vector<8x32xf32>
    %74 = arith.maximumf %72, %73 : vector<8x32xf32>
    %c97_52 = arith.constant 97 : index
    %c0_53 = arith.constant 0 : index
    %75 = vector.load %arg12[%c97_52, %c0_53] : memref<136x32xf32, #tpu.memory_space<vmem>>, vector<8x32xf32>
    tpu.vector_store %arg12[%c97_52, %c0_53], %74 {strides = array<i32>} : memref<136x32xf32, #tpu.memory_space<vmem>>, vector<8x32xf32>,
    %cst_54 = arith.constant 0.000000e+00 : f32
    %76 = vector.broadcast %cst_54 : f32 to vector<100x128xf32>
    %c5 = arith.constant 5 : index
    %c0_55 = arith.constant 0 : index
    %77 = vector.load %arg12[%c5, %c0_55] : memref<136x32xf32, #tpu.memory_space<vmem>>, vector<100x32xf32>
    %78 = arith.truncf %77 : vector<100x32xf32> to vector<100x32xbf16>
    %c0_56 = arith.constant 0 : index
    %c0_57 = arith.constant 0 : index
    %c0_58 = arith.constant 0 : index
    %79 = vector.load %arg4[%c0_56, %c0_57, %c0_58] : memref<9x32x128xbf16, #tpu.memory_space<vmem>>, vector<1x32x128xbf16>
    %80 = vector.shape_cast %79 : vector<1x32x128xbf16> to vector<32x128xbf16>
    %cst_59 = arith.constant dense<0.000000e+00> : vector<100x128xf32>
    %81 = tpu.matmul %78, %80, %cst_59 {dimension_numbers = #tpu.dot_dimension_numbers<[1], [0], [0], [1], [0, 0, 1, 1], [], []>} : vector<100x32xbf16>, vector<32x128xbf16>, vector<100x128xf32> -> vector<100x128xf32>
    %82 = arith.addf %76, %81 : vector<100x128xf32>
    %c6 = arith.constant 6 : index
    %c0_60 = arith.constant 0 : index
    %83 = vector.load %arg12[%c6, %c0_60] : memref<136x32xf32, #tpu.memory_space<vmem>>, vector<100x32xf32>
    %84 = arith.truncf %83 : vector<100x32xf32> to vector<100x32xbf16>
    %c1_61 = arith.constant 1 : index
    %c0_62 = arith.constant 0 : index
    %c0_63 = arith.constant 0 : index
    %85 = vector.load %arg4[%c1_61, %c0_62, %c0_63] : memref<9x32x128xbf16, #tpu.memory_space<vmem>>, vector<1x32x128xbf16>
    %86 = vector.shape_cast %85 : vector<1x32x128xbf16> to vector<32x128xbf16>
    %cst_64 = arith.constant dense<0.000000e+00> : vector<100x128xf32>
    %87 = tpu.matmul %84, %86, %cst_64 {dimension_numbers = #tpu.dot_dimension_numbers<[1], [0], [0], [1], [0, 0, 1, 1], [], []>} : vector<100x32xbf16>, vector<32x128xbf16>, vector<100x128xf32> -> vector<100x128xf32>
    %88 = arith.addf %82, %87 : vector<100x128xf32>
    %c7 = arith.constant 7 : index
    %c0_65 = arith.constant 0 : index
    %89 = vector.load %arg12[%c7, %c0_65] : memref<136x32xf32, #tpu.memory_space<vmem>>, vector<100x32xf32>
    %90 = arith.truncf %89 : vector<100x32xf32> to vector<100x32xbf16>
    %c2 = arith.constant 2 : index
    %c0_66 = arith.constant 0 : index
    %c0_67 = arith.constant 0 : index
    %91 = vector.load %arg4[%c2, %c0_66, %c0_67] : memref<9x32x128xbf16, #tpu.memory_space<vmem>>, vector<1x32x128xbf16>
    %92 = vector.shape_cast %91 : vector<1x32x128xbf16> to vector<32x128xbf16>
    %cst_68 = arith.constant dense<0.000000e+00> : vector<100x128xf32>
    %93 = tpu.matmul %90, %92, %cst_68 {dimension_numbers = #tpu.dot_dimension_numbers<[1], [0], [0], [1], [0, 0, 1, 1], [], []>} : vector<100x32xbf16>, vector<32x128xbf16>, vector<100x128xf32> -> vector<100x128xf32>
    %94 = arith.addf %88, %93 : vector<100x128xf32>
    %c15 = arith.constant 15 : index
    %c0_69 = arith.constant 0 : index
    %95 = vector.load %arg12[%c15, %c0_69] : memref<136x32xf32, #tpu.memory_space<vmem>>, vector<100x32xf32>
    %96 = arith.truncf %95 : vector<100x32xf32> to vector<100x32xbf16>
    %c3 = arith.constant 3 : index
    %c0_70 = arith.constant 0 : index
    %c0_71 = arith.constant 0 : index
    %97 = vector.load %arg4[%c3, %c0_70, %c0_71] : memref<9x32x128xbf16, #tpu.memory_space<vmem>>, vector<1x32x128xbf16>
    %98 = vector.shape_cast %97 : vector<1x32x128xbf16> to vector<32x128xbf16>
    %cst_72 = arith.constant dense<0.000000e+00> : vector<100x128xf32>
    %99 = tpu.matmul %96, %98, %cst_72 {dimension_numbers = #tpu.dot_dimension_numbers<[1], [0], [0], [1], [0, 0, 1, 1], [], []>} : vector<100x32xbf16>, vector<32x128xbf16>, vector<100x128xf32> -> vector<100x128xf32>
    %100 = arith.addf %94, %99 : vector<100x128xf32>
    %c16_73 = arith.constant 16 : index
    %c0_74 = arith.constant 0 : index
    %101 = vector.load %arg12[%c16_73, %c0_74] : memref<136x32xf32, #tpu.memory_space<vmem>>, vector<100x32xf32>
    %102 = arith.truncf %101 : vector<100x32xf32> to vector<100x32xbf16>
    %c4 = arith.constant 4 : index
    %c0_75 = arith.constant 0 : index
    %c0_76 = arith.constant 0 : index
    %103 = vector.load %arg4[%c4, %c0_75, %c0_76] : memref<9x32x128xbf16, #tpu.memory_space<vmem>>, vector<1x32x128xbf16>
    %104 = vector.shape_cast %103 : vector<1x32x128xbf16> to vector<32x128xbf16>
    %cst_77 = arith.constant dense<0.000000e+00> : vector<100x128xf32>
    %105 = tpu.matmul %102, %104, %cst_77 {dimension_numbers = #tpu.dot_dimension_numbers<[1], [0], [0], [1], [0, 0, 1, 1], [], []>} : vector<100x32xbf16>, vector<32x128xbf16>, vector<100x128xf32> -> vector<100x128xf32>
    %106 = arith.addf %100, %105 : vector<100x128xf32>
    %c17_78 = arith.constant 17 : index
    %c0_79 = arith.constant 0 : index
    %107 = vector.load %arg12[%c17_78, %c0_79] : memref<136x32xf32, #tpu.memory_space<vmem>>, vector<100x32xf32>
    %108 = arith.truncf %107 : vector<100x32xf32> to vector<100x32xbf16>
    %c5_80 = arith.constant 5 : index
    %c0_81 = arith.constant 0 : index
    %c0_82 = arith.constant 0 : index
    %109 = vector.load %arg4[%c5_80, %c0_81, %c0_82] : memref<9x32x128xbf16, #tpu.memory_space<vmem>>, vector<1x32x128xbf16>
    %110 = vector.shape_cast %109 : vector<1x32x128xbf16> to vector<32x128xbf16>
    %cst_83 = arith.constant dense<0.000000e+00> : vector<100x128xf32>
    %111 = tpu.matmul %108, %110, %cst_83 {dimension_numbers = #tpu.dot_dimension_numbers<[1], [0], [0], [1], [0, 0, 1, 1], [], []>} : vector<100x32xbf16>, vector<32x128xbf16>, vector<100x128xf32> -> vector<100x128xf32>
    %112 = arith.addf %106, %111 : vector<100x128xf32>
    %c25 = arith.constant 25 : index
    %c0_84 = arith.constant 0 : index
    %113 = vector.load %arg12[%c25, %c0_84] : memref<136x32xf32, #tpu.memory_space<vmem>>, vector<100x32xf32>
    %114 = arith.truncf %113 : vector<100x32xf32> to vector<100x32xbf16>
    %c6_85 = arith.constant 6 : index
    %c0_86 = arith.constant 0 : index
    %c0_87 = arith.constant 0 : index
    %115 = vector.load %arg4[%c6_85, %c0_86, %c0_87] : memref<9x32x128xbf16, #tpu.memory_space<vmem>>, vector<1x32x128xbf16>
    %116 = vector.shape_cast %115 : vector<1x32x128xbf16> to vector<32x128xbf16>
    %cst_88 = arith.constant dense<0.000000e+00> : vector<100x128xf32>
    %117 = tpu.matmul %114, %116, %cst_88 {dimension_numbers = #tpu.dot_dimension_numbers<[1], [0], [0], [1], [0, 0, 1, 1], [], []>} : vector<100x32xbf16>, vector<32x128xbf16>, vector<100x128xf32> -> vector<100x128xf32>
    %118 = arith.addf %112, %117 : vector<100x128xf32>
    %c26 = arith.constant 26 : index
    %c0_89 = arith.constant 0 : index
    %119 = vector.load %arg12[%c26, %c0_89] : memref<136x32xf32, #tpu.memory_space<vmem>>, vector<100x32xf32>
    %120 = arith.truncf %119 : vector<100x32xf32> to vector<100x32xbf16>
    %c7_90 = arith.constant 7 : index
    %c0_91 = arith.constant 0 : index
    %c0_92 = arith.constant 0 : index
    %121 = vector.load %arg4[%c7_90, %c0_91, %c0_92] : memref<9x32x128xbf16, #tpu.memory_space<vmem>>, vector<1x32x128xbf16>
    %122 = vector.shape_cast %121 : vector<1x32x128xbf16> to vector<32x128xbf16>
    %cst_93 = arith.constant dense<0.000000e+00> : vector<100x128xf32>
    %123 = tpu.matmul %120, %122, %cst_93 {dimension_numbers = #tpu.dot_dimension_numbers<[1], [0], [0], [1], [0, 0, 1, 1], [], []>} : vector<100x32xbf16>, vector<32x128xbf16>, vector<100x128xf32> -> vector<100x128xf32>
    %124 = arith.addf %118, %123 : vector<100x128xf32>
    %c27_94 = arith.constant 27 : index
    %c0_95 = arith.constant 0 : index
    %125 = vector.load %arg12[%c27_94, %c0_95] : memref<136x32xf32, #tpu.memory_space<vmem>>, vector<100x32xf32>
    %126 = arith.truncf %125 : vector<100x32xf32> to vector<100x32xbf16>
    %c8 = arith.constant 8 : index
    %c0_96 = arith.constant 0 : index
    %c0_97 = arith.constant 0 : index
    %127 = vector.load %arg4[%c8, %c0_96, %c0_97] : memref<9x32x128xbf16, #tpu.memory_space<vmem>>, vector<1x32x128xbf16>
    %128 = vector.shape_cast %127 : vector<1x32x128xbf16> to vector<32x128xbf16>
    %cst_98 = arith.constant dense<0.000000e+00> : vector<100x128xf32>
    %129 = tpu.matmul %126, %128, %cst_98 {dimension_numbers = #tpu.dot_dimension_numbers<[1], [0], [0], [1], [0, 0, 1, 1], [], []>} : vector<100x32xbf16>, vector<32x128xbf16>, vector<100x128xf32> -> vector<100x128xf32>
    %130 = arith.addf %124, %129 : vector<100x128xf32>
    %c0_99 = arith.constant 0 : index
    %c0_100 = arith.constant 0 : index
    %131 = vector.load %arg5[%c0_99, %c0_100] : memref<1x128xf32, #tpu.memory_space<vmem>>, vector<1x128xf32>
    %132 = vector.broadcast %131 : vector<1x128xf32> to vector<100x128xf32>
    %133 = arith.addf %130, %132 : vector<100x128xf32>
    %cst_101 = arith.constant 0.000000e+00 : f32
    %134 = vector.broadcast %cst_101 : f32 to vector<100x128xf32>
    %135 = arith.maximumf %133, %134 : vector<100x128xf32>
    %c0_102 = arith.constant 0 : index
    %c0_103 = arith.constant 0 : index
    %136 = vector.load %arg13[%c0_102, %c0_103] : memref<104x128xf32, #tpu.memory_space<vmem>>, vector<100x128xf32>
    tpu.vector_store %arg13[%c0_102, %c0_103], %135 {strides = array<i32>} : memref<104x128xf32, #tpu.memory_space<vmem>>, vector<100x128xf32>,
    %c11 = arith.constant 11 : index
    %c0_104 = arith.constant 0 : index
    %137 = vector.load %arg13[%c11, %c0_104] : memref<104x128xf32, #tpu.memory_space<vmem>>, vector<1x128xf32>
    %c12 = arith.constant 12 : index
    %c0_105 = arith.constant 0 : index
    %138 = vector.load %arg13[%c12, %c0_105] : memref<104x128xf32, #tpu.memory_space<vmem>>, vector<1x128xf32>
    %139 = arith.maximumf %137, %138 : vector<1x128xf32>
    %c21 = arith.constant 21 : index
    %c0_106 = arith.constant 0 : index
    %140 = vector.load %arg13[%c21, %c0_106] : memref<104x128xf32, #tpu.memory_space<vmem>>, vector<1x128xf32>
    %c22 = arith.constant 22 : index
    %c0_107 = arith.constant 0 : index
    %141 = vector.load %arg13[%c22, %c0_107] : memref<104x128xf32, #tpu.memory_space<vmem>>, vector<1x128xf32>
    %142 = arith.maximumf %140, %141 : vector<1x128xf32>
    %143 = arith.maximumf %139, %142 : vector<1x128xf32>
    %c0_108 = arith.constant 0 : index
    %c0_109 = arith.constant 0 : index
    %144 = vector.load %arg14[%c0_108, %c0_109] : memref<8x2048xf32, #tpu.memory_space<vmem>>, vector<1x128xf32>
    tpu.vector_store %arg14[%c0_108, %c0_109], %143 {strides = array<i32>} : memref<8x2048xf32, #tpu.memory_space<vmem>>, vector<1x128xf32>,
    %c13 = arith.constant 13 : index
    %c0_110 = arith.constant 0 : index
    %145 = vector.load %arg13[%c13, %c0_110] : memref<104x128xf32, #tpu.memory_space<vmem>>, vector<1x128xf32>
    %c14 = arith.constant 14 : index
    %c0_111 = arith.constant 0 : index
    %146 = vector.load %arg13[%c14, %c0_111] : memref<104x128xf32, #tpu.memory_space<vmem>>, vector<1x128xf32>
    %147 = arith.maximumf %145, %146 : vector<1x128xf32>
    %c23 = arith.constant 23 : index
    %c0_112 = arith.constant 0 : index
    %148 = vector.load %arg13[%c23, %c0_112] : memref<104x128xf32, #tpu.memory_space<vmem>>, vector<1x128xf32>
    %c24 = arith.constant 24 : index
    %c0_113 = arith.constant 0 : index
    %149 = vector.load %arg13[%c24, %c0_113] : memref<104x128xf32, #tpu.memory_space<vmem>>, vector<1x128xf32>
    %150 = arith.maximumf %148, %149 : vector<1x128xf32>
    %151 = arith.maximumf %147, %150 : vector<1x128xf32>
    %c0_114 = arith.constant 0 : index
    %c128_115 = arith.constant 128 : index
    %152 = vector.load %arg14[%c0_114, %c128_115] : memref<8x2048xf32, #tpu.memory_space<vmem>>, vector<1x128xf32>
    tpu.vector_store %arg14[%c0_114, %c128_115], %151 {strides = array<i32>} : memref<8x2048xf32, #tpu.memory_space<vmem>>, vector<1x128xf32>,
    %c15_116 = arith.constant 15 : index
    %c0_117 = arith.constant 0 : index
    %153 = vector.load %arg13[%c15_116, %c0_117] : memref<104x128xf32, #tpu.memory_space<vmem>>, vector<1x128xf32>
    %c16_118 = arith.constant 16 : index
    %c0_119 = arith.constant 0 : index
    %154 = vector.load %arg13[%c16_118, %c0_119] : memref<104x128xf32, #tpu.memory_space<vmem>>, vector<1x128xf32>
    %155 = arith.maximumf %153, %154 : vector<1x128xf32>
    %c25_120 = arith.constant 25 : index
    %c0_121 = arith.constant 0 : index
    %156 = vector.load %arg13[%c25_120, %c0_121] : memref<104x128xf32, #tpu.memory_space<vmem>>, vector<1x128xf32>
    %c26_122 = arith.constant 26 : index
    %c0_123 = arith.constant 0 : index
    %157 = vector.load %arg13[%c26_122, %c0_123] : memref<104x128xf32, #tpu.memory_space<vmem>>, vector<1x128xf32>
    %158 = arith.maximumf %156, %157 : vector<1x128xf32>
    %159 = arith.maximumf %155, %158 : vector<1x128xf32>
    %c0_124 = arith.constant 0 : index
    %c256 = arith.constant 256 : index
    %160 = vector.load %arg14[%c0_124, %c256] : memref<8x2048xf32, #tpu.memory_space<vmem>>, vector<1x128xf32>
    tpu.vector_store %arg14[%c0_124, %c256], %159 {strides = array<i32>} : memref<8x2048xf32, #tpu.memory_space<vmem>>, vector<1x128xf32>,
    %c17_125 = arith.constant 17 : index
    %c0_126 = arith.constant 0 : index
    %161 = vector.load %arg13[%c17_125, %c0_126] : memref<104x128xf32, #tpu.memory_space<vmem>>, vector<1x128xf32>
    %c18 = arith.constant 18 : index
    %c0_127 = arith.constant 0 : index
    %162 = vector.load %arg13[%c18, %c0_127] : memref<104x128xf32, #tpu.memory_space<vmem>>, vector<1x128xf32>
    %163 = arith.maximumf %161, %162 : vector<1x128xf32>
    %c27_128 = arith.constant 27 : index
    %c0_129 = arith.constant 0 : index
    %164 = vector.load %arg13[%c27_128, %c0_129] : memref<104x128xf32, #tpu.memory_space<vmem>>, vector<1x128xf32>
    %c28 = arith.constant 28 : index
    %c0_130 = arith.constant 0 : index
    %165 = vector.load %arg13[%c28, %c0_130] : memref<104x128xf32, #tpu.memory_space<vmem>>, vector<1x128xf32>
    %166 = arith.maximumf %164, %165 : vector<1x128xf32>
    %167 = arith.maximumf %163, %166 : vector<1x128xf32>
    %c0_131 = arith.constant 0 : index
    %c384 = arith.constant 384 : index
    %168 = vector.load %arg14[%c0_131, %c384] : memref<8x2048xf32, #tpu.memory_space<vmem>>, vector<1x128xf32>
    tpu.vector_store %arg14[%c0_131, %c384], %167 {strides = array<i32>} : memref<8x2048xf32, #tpu.memory_space<vmem>>, vector<1x128xf32>,
    %c31 = arith.constant 31 : index
    %c0_132 = arith.constant 0 : index
    %169 = vector.load %arg13[%c31, %c0_132] : memref<104x128xf32, #tpu.memory_space<vmem>>, vector<1x128xf32>
    %c32_133 = arith.constant 32 : index
    %c0_134 = arith.constant 0 : index
    %170 = vector.load %arg13[%c32_133, %c0_134] : memref<104x128xf32, #tpu.memory_space<vmem>>, vector<1x128xf32>
    %171 = arith.maximumf %169, %170 : vector<1x128xf32>
    %c41 = arith.constant 41 : index
    %c0_135 = arith.constant 0 : index
    %172 = vector.load %arg13[%c41, %c0_135] : memref<104x128xf32, #tpu.memory_space<vmem>>, vector<1x128xf32>
    %c42 = arith.constant 42 : index
    %c0_136 = arith.constant 0 : index
    %173 = vector.load %arg13[%c42, %c0_136] : memref<104x128xf32, #tpu.memory_space<vmem>>, vector<1x128xf32>
    %174 = arith.maximumf %172, %173 : vector<1x128xf32>
    %175 = arith.maximumf %171, %174 : vector<1x128xf32>
    %c0_137 = arith.constant 0 : index
    %c512 = arith.constant 512 : index
    %176 = vector.load %arg14[%c0_137, %c512] : memref<8x2048xf32, #tpu.memory_space<vmem>>, vector<1x128xf32>
    tpu.vector_store %arg14[%c0_137, %c512], %175 {strides = array<i32>} : memref<8x2048xf32, #tpu.memory_space<vmem>>, vector<1x128xf32>,
    %c33_138 = arith.constant 33 : index
    %c0_139 = arith.constant 0 : index
    %177 = vector.load %arg13[%c33_138, %c0_139] : memref<104x128xf32, #tpu.memory_space<vmem>>, vector<1x128xf32>
    %c34 = arith.constant 34 : index
    %c0_140 = arith.constant 0 : index
    %178 = vector.load %arg13[%c34, %c0_140] : memref<104x128xf32, #tpu.memory_space<vmem>>, vector<1x128xf32>
    %179 = arith.maximumf %177, %178 : vector<1x128xf32>
    %c43 = arith.constant 43 : index
    %c0_141 = arith.constant 0 : index
    %180 = vector.load %arg13[%c43, %c0_141] : memref<104x128xf32, #tpu.memory_space<vmem>>, vector<1x128xf32>
    %c44 = arith.constant 44 : index
    %c0_142 = arith.constant 0 : index
    %181 = vector.load %arg13[%c44, %c0_142] : memref<104x128xf32, #tpu.memory_space<vmem>>, vector<1x128xf32>
    %182 = arith.maximumf %180, %181 : vector<1x128xf32>
    %183 = arith.maximumf %179, %182 : vector<1x128xf32>
    %c0_143 = arith.constant 0 : index
    %c640 = arith.constant 640 : index
    %184 = vector.load %arg14[%c0_143, %c640] : memref<8x2048xf32, #tpu.memory_space<vmem>>, vector<1x128xf32>
    tpu.vector_store %arg14[%c0_143, %c640], %183 {strides = array<i32>} : memref<8x2048xf32, #tpu.memory_space<vmem>>, vector<1x128xf32>,
    %c35 = arith.constant 35 : index
    %c0_144 = arith.constant 0 : index
    %185 = vector.load %arg13[%c35, %c0_144] : memref<104x128xf32, #tpu.memory_space<vmem>>, vector<1x128xf32>
    %c36 = arith.constant 36 : index
    %c0_145 = arith.constant 0 : index
    %186 = vector.load %arg13[%c36, %c0_145] : memref<104x128xf32, #tpu.memory_space<vmem>>, vector<1x128xf32>
    %187 = arith.maximumf %185, %186 : vector<1x128xf32>
    %c45 = arith.constant 45 : index
    %c0_146 = arith.constant 0 : index
    %188 = vector.load %arg13[%c45, %c0_146] : memref<104x128xf32, #tpu.memory_space<vmem>>, vector<1x128xf32>
    %c46 = arith.constant 46 : index
    %c0_147 = arith.constant 0 : index
    %189 = vector.load %arg13[%c46, %c0_147] : memref<104x128xf32, #tpu.memory_space<vmem>>, vector<1x128xf32>
    %190 = arith.maximumf %188, %189 : vector<1x128xf32>
    %191 = arith.maximumf %187, %190 : vector<1x128xf32>
    %c0_148 = arith.constant 0 : index
    %c768 = arith.constant 768 : index
    %192 = vector.load %arg14[%c0_148, %c768] : memref<8x2048xf32, #tpu.memory_space<vmem>>, vector<1x128xf32>
    tpu.vector_store %arg14[%c0_148, %c768], %191 {strides = array<i32>} : memref<8x2048xf32, #tpu.memory_space<vmem>>, vector<1x128xf32>,
    %c37_149 = arith.constant 37 : index
    %c0_150 = arith.constant 0 : index
    %193 = vector.load %arg13[%c37_149, %c0_150] : memref<104x128xf32, #tpu.memory_space<vmem>>, vector<1x128xf32>
    %c38 = arith.constant 38 : index
    %c0_151 = arith.constant 0 : index
    %194 = vector.load %arg13[%c38, %c0_151] : memref<104x128xf32, #tpu.memory_space<vmem>>, vector<1x128xf32>
    %195 = arith.maximumf %193, %194 : vector<1x128xf32>
    %c47_152 = arith.constant 47 : index
    %c0_153 = arith.constant 0 : index
    %196 = vector.load %arg13[%c47_152, %c0_153] : memref<104x128xf32, #tpu.memory_space<vmem>>, vector<1x128xf32>
    %c48_154 = arith.constant 48 : index
    %c0_155 = arith.constant 0 : index
    %197 = vector.load %arg13[%c48_154, %c0_155] : memref<104x128xf32, #tpu.memory_space<vmem>>, vector<1x128xf32>
    %198 = arith.maximumf %196, %197 : vector<1x128xf32>
    %199 = arith.maximumf %195, %198 : vector<1x128xf32>
    %c0_156 = arith.constant 0 : index
    %c896 = arith.constant 896 : index
    %200 = vector.load %arg14[%c0_156, %c896] : memref<8x2048xf32, #tpu.memory_space<vmem>>, vector<1x128xf32>
    tpu.vector_store %arg14[%c0_156, %c896], %199 {strides = array<i32>} : memref<8x2048xf32, #tpu.memory_space<vmem>>, vector<1x128xf32>,
    %c51 = arith.constant 51 : index
    %c0_157 = arith.constant 0 : index
    %201 = vector.load %arg13[%c51, %c0_157] : memref<104x128xf32, #tpu.memory_space<vmem>>, vector<1x128xf32>
    %c52 = arith.constant 52 : index
    %c0_158 = arith.constant 0 : index
    %202 = vector.load %arg13[%c52, %c0_158] : memref<104x128xf32, #tpu.memory_space<vmem>>, vector<1x128xf32>
    %203 = arith.maximumf %201, %202 : vector<1x128xf32>
    %c61 = arith.constant 61 : index
    %c0_159 = arith.constant 0 : index
    %204 = vector.load %arg13[%c61, %c0_159] : memref<104x128xf32, #tpu.memory_space<vmem>>, vector<1x128xf32>
    %c62 = arith.constant 62 : index
    %c0_160 = arith.constant 0 : index
    %205 = vector.load %arg13[%c62, %c0_160] : memref<104x128xf32, #tpu.memory_space<vmem>>, vector<1x128xf32>
    %206 = arith.maximumf %204, %205 : vector<1x128xf32>
    %207 = arith.maximumf %203, %206 : vector<1x128xf32>
    %c0_161 = arith.constant 0 : index
    %c1024 = arith.constant 1024 : index
    %208 = vector.load %arg14[%c0_161, %c1024] : memref<8x2048xf32, #tpu.memory_space<vmem>>, vector<1x128xf32>
    tpu.vector_store %arg14[%c0_161, %c1024], %207 {strides = array<i32>} : memref<8x2048xf32, #tpu.memory_space<vmem>>, vector<1x128xf32>,
    %c53 = arith.constant 53 : index
    %c0_162 = arith.constant 0 : index
    %209 = vector.load %arg13[%c53, %c0_162] : memref<104x128xf32, #tpu.memory_space<vmem>>, vector<1x128xf32>
    %c54 = arith.constant 54 : index
    %c0_163 = arith.constant 0 : index
    %210 = vector.load %arg13[%c54, %c0_163] : memref<104x128xf32, #tpu.memory_space<vmem>>, vector<1x128xf32>
    %211 = arith.maximumf %209, %210 : vector<1x128xf32>
    %c63 = arith.constant 63 : index
    %c0_164 = arith.constant 0 : index
    %212 = vector.load %arg13[%c63, %c0_164] : memref<104x128xf32, #tpu.memory_space<vmem>>, vector<1x128xf32>
    %c64_165 = arith.constant 64 : index
    %c0_166 = arith.constant 0 : index
    %213 = vector.load %arg13[%c64_165, %c0_166] : memref<104x128xf32, #tpu.memory_space<vmem>>, vector<1x128xf32>
    %214 = arith.maximumf %212, %213 : vector<1x128xf32>
    %215 = arith.maximumf %211, %214 : vector<1x128xf32>
    %c0_167 = arith.constant 0 : index
    %c1152 = arith.constant 1152 : index
    %216 = vector.load %arg14[%c0_167, %c1152] : memref<8x2048xf32, #tpu.memory_space<vmem>>, vector<1x128xf32>
    tpu.vector_store %arg14[%c0_167, %c1152], %215 {strides = array<i32>} : memref<8x2048xf32, #tpu.memory_space<vmem>>, vector<1x128xf32>,
    %c55 = arith.constant 55 : index
    %c0_168 = arith.constant 0 : index
    %217 = vector.load %arg13[%c55, %c0_168] : memref<104x128xf32, #tpu.memory_space<vmem>>, vector<1x128xf32>
    %c56 = arith.constant 56 : index
    %c0_169 = arith.constant 0 : index
    %218 = vector.load %arg13[%c56, %c0_169] : memref<104x128xf32, #tpu.memory_space<vmem>>, vector<1x128xf32>
    %219 = arith.maximumf %217, %218 : vector<1x128xf32>
    %c65_170 = arith.constant 65 : index
    %c0_171 = arith.constant 0 : index
    %220 = vector.load %arg13[%c65_170, %c0_171] : memref<104x128xf32, #tpu.memory_space<vmem>>, vector<1x128xf32>
    %c66 = arith.constant 66 : index
    %c0_172 = arith.constant 0 : index
    %221 = vector.load %arg13[%c66, %c0_172] : memref<104x128xf32, #tpu.memory_space<vmem>>, vector<1x128xf32>
    %222 = arith.maximumf %220, %221 : vector<1x128xf32>
    %223 = arith.maximumf %219, %222 : vector<1x128xf32>
    %c0_173 = arith.constant 0 : index
    %c1280 = arith.constant 1280 : index
    %224 = vector.load %arg14[%c0_173, %c1280] : memref<8x2048xf32, #tpu.memory_space<vmem>>, vector<1x128xf32>
    tpu.vector_store %arg14[%c0_173, %c1280], %223 {strides = array<i32>} : memref<8x2048xf32, #tpu.memory_space<vmem>>, vector<1x128xf32>,
    %c57_174 = arith.constant 57 : index
    %c0_175 = arith.constant 0 : index
    %225 = vector.load %arg13[%c57_174, %c0_175] : memref<104x128xf32, #tpu.memory_space<vmem>>, vector<1x128xf32>
    %c58 = arith.constant 58 : index
    %c0_176 = arith.constant 0 : index
    %226 = vector.load %arg13[%c58, %c0_176] : memref<104x128xf32, #tpu.memory_space<vmem>>, vector<1x128xf32>
    %227 = arith.maximumf %225, %226 : vector<1x128xf32>
    %c67_177 = arith.constant 67 : index
    %c0_178 = arith.constant 0 : index
    %228 = vector.load %arg13[%c67_177, %c0_178] : memref<104x128xf32, #tpu.memory_space<vmem>>, vector<1x128xf32>
    %c68 = arith.constant 68 : index
    %c0_179 = arith.constant 0 : index
    %229 = vector.load %arg13[%c68, %c0_179] : memref<104x128xf32, #tpu.memory_space<vmem>>, vector<1x128xf32>
    %230 = arith.maximumf %228, %229 : vector<1x128xf32>
    %231 = arith.maximumf %227, %230 : vector<1x128xf32>
    %c0_180 = arith.constant 0 : index
    %c1408 = arith.constant 1408 : index
    %232 = vector.load %arg14[%c0_180, %c1408] : memref<8x2048xf32, #tpu.memory_space<vmem>>, vector<1x128xf32>
    tpu.vector_store %arg14[%c0_180, %c1408], %231 {strides = array<i32>} : memref<8x2048xf32, #tpu.memory_space<vmem>>, vector<1x128xf32>,
    %c71 = arith.constant 71 : index
    %c0_181 = arith.constant 0 : index
    %233 = vector.load %arg13[%c71, %c0_181] : memref<104x128xf32, #tpu.memory_space<vmem>>, vector<1x128xf32>
    %c72 = arith.constant 72 : index
    %c0_182 = arith.constant 0 : index
    %234 = vector.load %arg13[%c72, %c0_182] : memref<104x128xf32, #tpu.memory_space<vmem>>, vector<1x128xf32>
    %235 = arith.maximumf %233, %234 : vector<1x128xf32>
    %c81_183 = arith.constant 81 : index
    %c0_184 = arith.constant 0 : index
    %236 = vector.load %arg13[%c81_183, %c0_184] : memref<104x128xf32, #tpu.memory_space<vmem>>, vector<1x128xf32>
    %c82 = arith.constant 82 : index
    %c0_185 = arith.constant 0 : index
    %237 = vector.load %arg13[%c82, %c0_185] : memref<104x128xf32, #tpu.memory_space<vmem>>, vector<1x128xf32>
    %238 = arith.maximumf %236, %237 : vector<1x128xf32>
    %239 = arith.maximumf %235, %238 : vector<1x128xf32>
    %c0_186 = arith.constant 0 : index
    %c1536 = arith.constant 1536 : index
    %240 = vector.load %arg14[%c0_186, %c1536] : memref<8x2048xf32, #tpu.memory_space<vmem>>, vector<1x128xf32>
    tpu.vector_store %arg14[%c0_186, %c1536], %239 {strides = array<i32>} : memref<8x2048xf32, #tpu.memory_space<vmem>>, vector<1x128xf32>,
    %c73 = arith.constant 73 : index
    %c0_187 = arith.constant 0 : index
    %241 = vector.load %arg13[%c73, %c0_187] : memref<104x128xf32, #tpu.memory_space<vmem>>, vector<1x128xf32>
    %c74 = arith.constant 74 : index
    %c0_188 = arith.constant 0 : index
    %242 = vector.load %arg13[%c74, %c0_188] : memref<104x128xf32, #tpu.memory_space<vmem>>, vector<1x128xf32>
    %243 = arith.maximumf %241, %242 : vector<1x128xf32>
    %c83 = arith.constant 83 : index
    %c0_189 = arith.constant 0 : index
    %244 = vector.load %arg13[%c83, %c0_189] : memref<104x128xf32, #tpu.memory_space<vmem>>, vector<1x128xf32>
    %c84 = arith.constant 84 : index
    %c0_190 = arith.constant 0 : index
    %245 = vector.load %arg13[%c84, %c0_190] : memref<104x128xf32, #tpu.memory_space<vmem>>, vector<1x128xf32>
    %246 = arith.maximumf %244, %245 : vector<1x128xf32>
    %247 = arith.maximumf %243, %246 : vector<1x128xf32>
    %c0_191 = arith.constant 0 : index
    %c1664 = arith.constant 1664 : index
    %248 = vector.load %arg14[%c0_191, %c1664] : memref<8x2048xf32, #tpu.memory_space<vmem>>, vector<1x128xf32>
    tpu.vector_store %arg14[%c0_191, %c1664], %247 {strides = array<i32>} : memref<8x2048xf32, #tpu.memory_space<vmem>>, vector<1x128xf32>,
    %c75 = arith.constant 75 : index
    %c0_192 = arith.constant 0 : index
    %249 = vector.load %arg13[%c75, %c0_192] : memref<104x128xf32, #tpu.memory_space<vmem>>, vector<1x128xf32>
    %c76 = arith.constant 76 : index
    %c0_193 = arith.constant 0 : index
    %250 = vector.load %arg13[%c76, %c0_193] : memref<104x128xf32, #tpu.memory_space<vmem>>, vector<1x128xf32>
    %251 = arith.maximumf %249, %250 : vector<1x128xf32>
    %c85 = arith.constant 85 : index
    %c0_194 = arith.constant 0 : index
    %252 = vector.load %arg13[%c85, %c0_194] : memref<104x128xf32, #tpu.memory_space<vmem>>, vector<1x128xf32>
    %c86 = arith.constant 86 : index
    %c0_195 = arith.constant 0 : index
    %253 = vector.load %arg13[%c86, %c0_195] : memref<104x128xf32, #tpu.memory_space<vmem>>, vector<1x128xf32>
    %254 = arith.maximumf %252, %253 : vector<1x128xf32>
    %255 = arith.maximumf %251, %254 : vector<1x128xf32>
    %c0_196 = arith.constant 0 : index
    %c1792 = arith.constant 1792 : index
    %256 = vector.load %arg14[%c0_196, %c1792] : memref<8x2048xf32, #tpu.memory_space<vmem>>, vector<1x128xf32>
    tpu.vector_store %arg14[%c0_196, %c1792], %255 {strides = array<i32>} : memref<8x2048xf32, #tpu.memory_space<vmem>>, vector<1x128xf32>,
    %c77_197 = arith.constant 77 : index
    %c0_198 = arith.constant 0 : index
    %257 = vector.load %arg13[%c77_197, %c0_198] : memref<104x128xf32, #tpu.memory_space<vmem>>, vector<1x128xf32>
    %c78 = arith.constant 78 : index
    %c0_199 = arith.constant 0 : index
    %258 = vector.load %arg13[%c78, %c0_199] : memref<104x128xf32, #tpu.memory_space<vmem>>, vector<1x128xf32>
    %259 = arith.maximumf %257, %258 : vector<1x128xf32>
    %c87_200 = arith.constant 87 : index
    %c0_201 = arith.constant 0 : index
    %260 = vector.load %arg13[%c87_200, %c0_201] : memref<104x128xf32, #tpu.memory_space<vmem>>, vector<1x128xf32>
    %c88 = arith.constant 88 : index
    %c0_202 = arith.constant 0 : index
    %261 = vector.load %arg13[%c88, %c0_202] : memref<104x128xf32, #tpu.memory_space<vmem>>, vector<1x128xf32>
    %262 = arith.maximumf %260, %261 : vector<1x128xf32>
    %263 = arith.maximumf %259, %262 : vector<1x128xf32>
    %c0_203 = arith.constant 0 : index
    %c1920 = arith.constant 1920 : index
    %264 = vector.load %arg14[%c0_203, %c1920] : memref<8x2048xf32, #tpu.memory_space<vmem>>, vector<1x128xf32>
    tpu.vector_store %arg14[%c0_203, %c1920], %263 {strides = array<i32>} : memref<8x2048xf32, #tpu.memory_space<vmem>>, vector<1x128xf32>,
    %c0_204 = arith.constant 0 : index
    %c0_205 = arith.constant 0 : index
    %265 = vector.load %arg14[%c0_204, %c0_205] : memref<8x2048xf32, #tpu.memory_space<vmem>>, vector<1x2048xf32>
    %266 = arith.truncf %265 : vector<1x2048xf32> to vector<1x2048xbf16>
    %c0_206 = arith.constant 0 : index
    %c0_207 = arith.constant 0 : index
    %267 = vector.load %arg6[%c0_206, %c0_207] : memref<2048x512xbf16, #tpu.memory_space<vmem>>, vector<2048x512xbf16>
    %cst_208 = arith.constant dense<0.000000e+00> : vector<1x512xf32>
    %268 = tpu.matmul %266, %267, %cst_208 {dimension_numbers = #tpu.dot_dimension_numbers<[1], [0], [0], [1], [0, 0, 1, 1], [], []>} : vector<1x2048xbf16>, vector<2048x512xbf16>, vector<1x512xf32> -> vector<1x512xf32>
    %c0_209 = arith.constant 0 : index
    %c0_210 = arith.constant 0 : index
    %269 = vector.load %arg7[%c0_209, %c0_210] : memref<1x512xf32, #tpu.memory_space<vmem>>, vector<1x512xf32>
    %270 = arith.addf %268, %269 : vector<1x512xf32>
    %cst_211 = arith.constant 0.000000e+00 : f32
    %271 = vector.broadcast %cst_211 : f32 to vector<1x512xf32>
    %272 = arith.maximumf %270, %271 : vector<1x512xf32>
    %273 = arith.truncf %272 : vector<1x512xf32> to vector<1x512xbf16>
    %c0_212 = arith.constant 0 : index
    %c0_213 = arith.constant 0 : index
    %274 = vector.load %arg8[%c0_212, %c0_213] : memref<512x2xbf16, #tpu.memory_space<vmem>>, vector<512x2xbf16>
    %cst_214 = arith.constant dense<0.000000e+00> : vector<1x2xf32>
    %275 = tpu.matmul %273, %274, %cst_214 {dimension_numbers = #tpu.dot_dimension_numbers<[1], [0], [0], [1], [0, 0, 1, 1], [], []>} : vector<1x512xbf16>, vector<512x2xbf16>, vector<1x2xf32> -> vector<1x2xf32>
    %c0_215 = arith.constant 0 : index
    %c0_216 = arith.constant 0 : index
    %276 = vector.load %arg9[%c0_215, %c0_216] : memref<1x2xf32, #tpu.memory_space<vmem>>, vector<1x2xf32>
    %277 = arith.addf %275, %276 : vector<1x2xf32>
    %c0_217 = arith.constant 0 : index
    %c0_218 = arith.constant 0 : index
    %c0_219 = arith.constant 0 : index
    %278 = vector.load %arg10[%c0_217, %c0_218, %c0_219] : memref<1x1x2xf32, #tpu.memory_space<vmem>>, vector<1x1x2xf32>
    %279 = vector.shape_cast %278 : vector<1x1x2xf32> to vector<1x2xf32>
    %280 = vector.shape_cast %277 : vector<1x2xf32> to vector<1x1x2xf32>
    tpu.vector_store %arg10[%c0_217, %c0_218, %c0_219], %280 {strides = array<i32>} : memref<1x1x2xf32, #tpu.memory_space<vmem>>, vector<1x1x2xf32>,
    return
  }
  func.func @transform_0(%arg0: i32) -> (i32, i32, i32) {
    %c0_i32 = arith.constant 0 : i32
    %c0_i32_0 = arith.constant 0 : i32
    %c0_i32_1 = arith.constant 0 : i32
    return %arg0, %c0_i32, %c0_i32_0 : i32, i32, i32
  }
  func.func @transform_1(%arg0: i32) -> (i32, i32) {
    %c0_i32 = arith.constant 0 : i32
    %c0_i32_0 = arith.constant 0 : i32
    %c0_i32_1 = arith.constant 0 : i32
    return %c0_i32, %c0_i32_0 : i32, i32
  }
  func.func @transform_2(%arg0: i32) -> (i32, i32) {
    %c0_i32 = arith.constant 0 : i32
    %c0_i32_0 = arith.constant 0 : i32
    %c0_i32_1 = arith.constant 0 : i32
    return %c0_i32, %c0_i32_0 : i32, i32
  }
  func.func @transform_3(%arg0: i32) -> (i32, i32, i32) {
    %c0_i32 = arith.constant 0 : i32
    %c0_i32_0 = arith.constant 0 : i32
    %c0_i32_1 = arith.constant 0 : i32
    %c0_i32_2 = arith.constant 0 : i32
    return %c0_i32, %c0_i32_0, %c0_i32_1 : i32, i32, i32
  }
  func.func @transform_4(%arg0: i32) -> (i32, i32) {
    %c0_i32 = arith.constant 0 : i32
    %c0_i32_0 = arith.constant 0 : i32
    %c0_i32_1 = arith.constant 0 : i32
    return %c0_i32, %c0_i32_0 : i32, i32
  }
  func.func @transform_5(%arg0: i32) -> (i32, i32) {
    %c0_i32 = arith.constant 0 : i32
    %c0_i32_0 = arith.constant 0 : i32
    %c0_i32_1 = arith.constant 0 : i32
    return %c0_i32, %c0_i32_0 : i32, i32
  }
  func.func @transform_6(%arg0: i32) -> (i32, i32) {
    %c0_i32 = arith.constant 0 : i32
    %c0_i32_0 = arith.constant 0 : i32
    %c0_i32_1 = arith.constant 0 : i32
    return %c0_i32, %c0_i32_0 : i32, i32
  }
  func.func @transform_7(%arg0: i32) -> (i32, i32) {
    %c0_i32 = arith.constant 0 : i32
    %c0_i32_0 = arith.constant 0 : i32
    %c0_i32_1 = arith.constant 0 : i32
    return %c0_i32, %c0_i32_0 : i32, i32
  }
  func.func @transform_8(%arg0: i32) -> (i32, i32) {
    %c0_i32 = arith.constant 0 : i32
    %c0_i32_0 = arith.constant 0 : i32
    %c0_i32_1 = arith.constant 0 : i32
    return %c0_i32, %c0_i32_0 : i32, i32
  }
  func.func @transform_9(%arg0: i32) -> (i32, i32, i32) {
    %c0_i32 = arith.constant 0 : i32
    %c0_i32_0 = arith.constant 0 : i32
    %c0_i32_1 = arith.constant 0 : i32
    return %arg0, %c0_i32, %c0_i32_0 : i32, i32, i32
  }
}

</mosaic_0001>

<llo_original>
// kernel: alzheimer_cnn_forward.1
$region0: #{alzheimer_cnn_forward.1}
  #allocation0 [shape = 'u32[]', space=smem, size = 0x4, offset = 0x4, fixed_abs, tag = 'smem constant byte address 0x4 - core index']
  #allocation1 [shape = 'u32[144,128]{1,0:T(1,128)}', space=vmem, size = 0x12000, scoped, tag = 'internal scratch']
  #allocation2 [shape = 'f32[256,32]{1,0:T(8,128)}', space=vmem, size = 0x20000, scoped, tag = 'scratch operand']
  #allocation3 [shape = 'f32[136,32]{1,0:T(8,128)}', space=vmem, size = 0x11000, scoped, tag = 'scratch operand']
  #allocation4 [shape = 'f32[104,128]{1,0:T(8,128)}', space=vmem, size = 0xd000, scoped, tag = 'scratch operand']
  #allocation5 [shape = 'f32[8,2048]{1,0:T(8,128)}', space=vmem, size = 0x10000, scoped, tag = 'scratch operand']
  %s0 = inlined_call_operand.vmem [shape: bf16[2,256,27], index: 0, kind: input, shape index: {}]
  %s1 = inlined_call_operand.hbm [shape: bf16[27,32], index: 1, kind: input, shape index: {}]
  %s2 = inlined_call_operand.hbm [shape: f32[1,32], index: 2, kind: input, shape index: {}]
  %s3 = inlined_call_operand.hbm [shape: bf16[9,32,128], index: 3, kind: input, shape index: {}]
  %s4 = inlined_call_operand.hbm [shape: f32[1,128], index: 4, kind: input, shape index: {}]
  %s5 = inlined_call_operand.hbm [shape: bf16[2048,512], index: 5, kind: input, shape index: {}]
  %s6 = inlined_call_operand.hbm [shape: f32[1,512], index: 6, kind: input, shape index: {}]
  %s7 = inlined_call_operand.vmem [shape: bf16[512,2], index: 7, kind: input, shape index: {}]
  %s8 = inlined_call_operand.hbm [shape: f32[1,2], index: 8, kind: input, shape index: {}]
  %s9 = inlined_call_operand.hbm [shape: f32[2,1,2], index: 9, kind: output, shape index: {}]
  %s10 = sld [smem:[#allocation0]]
  $region97: #{alzheimer_cnn_forward.1} parent=0
    _
  %s12 = ssub.s32 1, %s10
  %s13 = scalar_select 0, %s12, %s10
  $region1: #{alzheimer_cnn_forward.1} parent=0
    #allocation6 [shape = 'u8[8192]{0}', space=vmem, size = 0x2000, scoped, tag = 'input window, operand 1, single buffered']
    #allocation7 [shape = 's32[2]{0}', space=sflag, size = 0x8, scoped, tag = 'scoped memory for alzheimer_cnn_forward.1']
    #allocation8 [shape = 's32[2]{0}', space=sflag, size = 0x8, scoped, tag = 'scoped memory for alzheimer_cnn_forward.1']
    #allocation9 [shape = 'u8[512]{0}', space=vmem, size = 0x400, scoped, tag = 'input window, operand 2, single buffered']
    #allocation10 [shape = 's32[1]{0}', space=sflag, size = 0x4, scoped, tag = 'scoped memory for alzheimer_cnn_forward.1']
    #allocation11 [shape = 'u8[73728]{0}', space=vmem, size = 0x12000, scoped, tag = 'input window, operand 3, single buffered']
    #allocation12 [shape = 'u8[512]{0}', space=vmem, size = 0x400, scoped, tag = 'input window, operand 4, single buffered']
    #allocation13 [shape = 's32[1]{0}', space=sflag, size = 0x4, scoped, tag = 'scoped memory for alzheimer_cnn_forward.1']
    #allocation14 [shape = 'u8[2097152]{0}', space=vmem, size = 0x200000, scoped, tag = 'input window, operand 5, single buffered']
    #allocation15 [shape = 'u8[2048]{0}', space=vmem, size = 0x800, scoped, tag = 'input window, operand 6, single buffered']
    #allocation16 [shape = 's32[1]{0}', space=sflag, size = 0x4, scoped, tag = 'scoped memory for alzheimer_cnn_forward.1']
    #allocation17 [shape = 'u8[512]{0}', space=vmem, size = 0x400, scoped, tag = 'input window, operand 8, single buffered']
    #allocation18 [shape = 'u8[1024]{0}', space=vmem, size = 0x400, scoped, tag = 'output window, operand 0']
    %14 = vsyncpa [#allocation7], 0
    %15 = vsyncpa [#allocation10], 0
    %16 = vsyncpa [#allocation13], 0
    %17 = vsyncpa [#allocation16], 0
    %18 = vsyncpa [#allocation8], 0
    %s19 = scalar_lea.sflag [#allocation8], 1
    %20 = vsyncpa %s19, 0
    loop: start=0, step=1, limit=4
    $region2: #{alzheimer_cnn_forward.1} parent=1 // loop_pre_header
      _
    $region3: #{alzheimer_cnn_forward.1} parent=1 // loop_header
      %s22 = sphi 0, %s26
      %p23 = scmp.ge.s32.totalorder %s22, 4
      %s32 = sphi 0, %s34
      %s35 = sphi 0, %s32
      %s36 = sphi 0, %s35
      %s52 = sphi 0, %s36
      %s56 = sphi 0, %s56
      %s58 = sphi 0, %s56
      %s59 = sphi 0, %s58
      %s73 = sphi 0, %s59
      %s77 = sphi 0, %s77
      %s79 = sphi 0, %s77
      %s80 = sphi 0, %s79
      %s94 = sphi 0, %s80
      %s98 = sphi 0, %s98
      %s100 = sphi 0, %s98
      %s101 = sphi 0, %s100
      %s115 = sphi 0, %s101
      %s119 = sphi 0, %s119
      %s121 = sphi 0, %s119
      %s122 = sphi 0, %s121
      %s136 = sphi 0, %s122
      %s140 = sphi 0, %s140
      %s142 = sphi 0, %s140
      %s143 = sphi 0, %s142
      %s157 = sphi 0, %s143
      %s161 = sphi 0, %s161
      %s163 = sphi 0, %s161
      %s164 = sphi 0, %s163
      %s178 = sphi 0, %s164
      %s182 = sphi 0, %s182
      %s184 = sphi 0, %s182
      %s185 = sphi 0, %s184
      %s199 = sphi 0, %s185
      %s203 = sphi 0, %s203
      %s205 = sphi 0, %s203
      %s206 = sphi 0, %s205
      %s220 = sphi 0, %s206
      %s226 = sphi 0, %s228
      %s229 = sphi 0, %s226
      %s230 = sphi 0, %s229
      %s246 = sphi 0, %s230
    $region4: #{alzheimer_cnn_forward.1} parent=1 // loop_header_branch
      %25 = sbr.rel (%p23) target = $region8
    $region5: #{alzheimer_cnn_forward.1} parent=1 // loop_body
      %s27 = ssub.s32 %s22, 1
      %s28 = ssub.s32 %s22, 2
      %s29 = sadd.s32 %s22, 1
      %s30 = ssub.s32 %s22, %s29
      %p31 = scmp.eq.s32.totalorder %s30, 0
      %s33 = sadd.s32 %s32, 1
      %s34 = scalar_select %p31, %s32, %s33
      %p37 = pneg %p31
      %p38 = scmp.eq.s32.totalorder %s22, 1
      %p39 = por %p37, %p38
      %p40 = scmp.ne.s32.totalorder %s32, %s35
      %p41 = scmp.eq.s32.totalorder %s22, 0
      %p42 = por %p40, %p41
      %p43 = scmp.ne.s32.totalorder %s32, %s35
      %p44 = scmp.eq.s32.totalorder %s27, 1
      %p45 = por %p43, %p44
      %p46 = scmp.ne.s32.totalorder %s35, %s36
      %p47 = scmp.eq.s32.totalorder %s27, 0
      %p48 = por %p46, %p47
      %p49 = scmp.ne.s32.totalorder %s35, %s36
      %p50 = scmp.eq.s32.totalorder %s28, 1
      %p51 = por %p49, %p50
      %p53 = scmp.ne.s32.totalorder %s36, %s52
      %p54 = scmp.eq.s32.totalorder %s28, 0
      %p55 = por %p53, %p54
      %s57 = sadd.s32 %s56, 1
      %p60 = scmp.eq.s32.totalorder %s22, 1
      %p61 = scmp.ne.s32.totalorder %s56, %s58
      %p62 = scmp.eq.s32.totalorder %s22, 0
      %p63 = por %p61, %p62
      %p64 = scmp.ne.s32.totalorder %s56, %s58
      %p65 = scmp.eq.s32.totalorder %s27, 1
      %p66 = por %p64, %p65
      %p67 = scmp.ne.s32.totalorder %s58, %s59
      %p68 = scmp.eq.s32.totalorder %s27, 0
      %p69 = por %p67, %p68
      %p70 = scmp.ne.s32.totalorder %s58, %s59
      %p71 = scmp.eq.s32.totalorder %s28, 1
      %p72 = por %p70, %p71
      %p74 = scmp.ne.s32.totalorder %s59, %s73
      %p75 = scmp.eq.s32.totalorder %s28, 0
      %p76 = por %p74, %p75
      %s78 = sadd.s32 %s77, 1
      %p81 = scmp.eq.s32.totalorder %s22, 1
      %p82 = scmp.ne.s32.totalorder %s77, %s79
      %p83 = scmp.eq.s32.totalorder %s22, 0
      %p84 = por %p82, %p83
      %p85 = scmp.ne.s32.totalorder %s77, %s79
      %p86 = scmp.eq.s32.totalorder %s27, 1
      %p87 = por %p85, %p86
      %p88 = scmp.ne.s32.totalorder %s79, %s80
      %p89 = scmp.eq.s32.totalorder %s27, 0
      %p90 = por %p88, %p89
      %p91 = scmp.ne.s32.totalorder %s79, %s80
      %p92 = scmp.eq.s32.totalorder %s28, 1
      %p93 = por %p91, %p92
      %p95 = scmp.ne.s32.totalorder %s80, %s94
      %p96 = scmp.eq.s32.totalorder %s28, 0
      %p97 = por %p95, %p96
      %s99 = sadd.s32 %s98, 1
      %p102 = scmp.eq.s32.totalorder %s22, 1
      %p103 = scmp.ne.s32.totalorder %s98, %s100
      %p104 = scmp.eq.s32.totalorder %s22, 0
      %p105 = por %p103, %p104
      %p106 = scmp.ne.s32.totalorder %s98, %s100
      %p107 = scmp.eq.s32.totalorder %s27, 1
      %p108 = por %p106, %p107
      %p109 = scmp.ne.s32.totalorder %s100, %s101
      %p110 = scmp.eq.s32.totalorder %s27, 0
      %p111 = por %p109, %p110
      %p112 = scmp.ne.s32.totalorder %s100, %s101
      %p113 = scmp.eq.s32.totalorder %s28, 1
      %p114 = por %p112, %p113
      %p116 = scmp.ne.s32.totalorder %s101, %s115
      %p117 = scmp.eq.s32.totalorder %s28, 0
      %p118 = por %p116, %p117
      %s120 = sadd.s32 %s119, 1
      %p123 = scmp.eq.s32.totalorder %s22, 1
      %p124 = scmp.ne.s32.totalorder %s119, %s121
      %p125 = scmp.eq.s32.totalorder %s22, 0
      %p126 = por %p124, %p125
      %p127 = scmp.ne.s32.totalorder %s119, %s121
      %p128 = scmp.eq.s32.totalorder %s27, 1
      %p129 = por %p127, %p128
      %p130 = scmp.ne.s32.totalorder %s121, %s122
      %p131 = scmp.eq.s32.totalorder %s27, 0
      %p132 = por %p130, %p131
      %p133 = scmp.ne.s32.totalorder %s121, %s122
      %p134 = scmp.eq.s32.totalorder %s28, 1
      %p135 = por %p133, %p134
      %p137 = scmp.ne.s32.totalorder %s122, %s136
      %p138 = scmp.eq.s32.totalorder %s28, 0
      %p139 = por %p137, %p138
      %s141 = sadd.s32 %s140, 1
      %p144 = scmp.eq.s32.totalorder %s22, 1
      %p145 = scmp.ne.s32.totalorder %s140, %s142
      %p146 = scmp.eq.s32.totalorder %s22, 0
      %p147 = por %p145, %p146
      %p148 = scmp.ne.s32.totalorder %s140, %s142
      %p149 = scmp.eq.s32.totalorder %s27, 1
      %p150 = por %p148, %p149
      %p151 = scmp.ne.s32.totalorder %s142, %s143
      %p152 = scmp.eq.s32.totalorder %s27, 0
      %p153 = por %p151, %p152
      %p154 = scmp.ne.s32.totalorder %s142, %s143
      %p155 = scmp.eq.s32.totalorder %s28, 1
      %p156 = por %p154, %p155
      %p158 = scmp.ne.s32.totalorder %s143, %s157
      %p159 = scmp.eq.s32.totalorder %s28, 0
      %p160 = por %p158, %p159
      %s162 = sadd.s32 %s161, 1
      %p165 = scmp.eq.s32.totalorder %s22, 1
      %p166 = scmp.ne.s32.totalorder %s161, %s163
      %p167 = scmp.eq.s32.totalorder %s22, 0
      %p168 = por %p166, %p167
      %p169 = scmp.ne.s32.totalorder %s161, %s163
      %p170 = scmp.eq.s32.totalorder %s27, 1
      %p171 = por %p169, %p170
      %p172 = scmp.ne.s32.totalorder %s163, %s164
      %p173 = scmp.eq.s32.totalorder %s27, 0
      %p174 = por %p172, %p173
      %p175 = scmp.ne.s32.totalorder %s163, %s164
      %p176 = scmp.eq.s32.totalorder %s28, 1
      %p177 = por %p175, %p176
      %p179 = scmp.ne.s32.totalorder %s164, %s178
      %p180 = scmp.eq.s32.totalorder %s28, 0
      %p181 = por %p179, %p180
      %s183 = sadd.s32 %s182, 1
      %p186 = scmp.eq.s32.totalorder %s22, 1
      %p187 = scmp.ne.s32.totalorder %s182, %s184
      %p188 = scmp.eq.s32.totalorder %s22, 0
      %p189 = por %p187, %p188
      %p190 = scmp.ne.s32.totalorder %s182, %s184
      %p191 = scmp.eq.s32.totalorder %s27, 1
      %p192 = por %p190, %p191
      %p193 = scmp.ne.s32.totalorder %s184, %s185
      %p194 = scmp.eq.s32.totalorder %s27, 0
      %p195 = por %p193, %p194
      %p196 = scmp.ne.s32.totalorder %s184, %s185
      %p197 = scmp.eq.s32.totalorder %s28, 1
      %p198 = por %p196, %p197
      %p200 = scmp.ne.s32.totalorder %s185, %s199
      %p201 = scmp.eq.s32.totalorder %s28, 0
      %p202 = por %p200, %p201
      %s204 = sadd.s32 %s203, 1
      %p207 = scmp.eq.s32.totalorder %s22, 1
      %p208 = scmp.ne.s32.totalorder %s203, %s205
      %p209 = scmp.eq.s32.totalorder %s22, 0
      %p210 = por %p208, %p209
      %p211 = scmp.ne.s32.totalorder %s203, %s205
      %p212 = scmp.eq.s32.totalorder %s27, 1
      %p213 = por %p211, %p212
      %p214 = scmp.ne.s32.totalorder %s205, %s206
      %p215 = scmp.eq.s32.totalorder %s27, 0
      %p216 = por %p214, %p215
      %p217 = scmp.ne.s32.totalorder %s205, %s206
      %p218 = scmp.eq.s32.totalorder %s28, 1
      %p219 = por %p217, %p218
      %p221 = scmp.ne.s32.totalorder %s206, %s220
      %p222 = scmp.eq.s32.totalorder %s28, 0
      %p223 = por %p221, %p222
      %s224 = ssub.s32 %s22, %s29
      %p225 = scmp.eq.s32.totalorder %s224, 0
      %s227 = sadd.s32 %s226, 1
      %s228 = scalar_select %p225, %s226, %s227
      %p231 = pneg %p225
      %p232 = scmp.eq.s32.totalorder %s22, 1
      %p233 = por %p231, %p232
      %p234 = scmp.ne.s32.totalorder %s226, %s229
      %p235 = scmp.eq.s32.totalorder %s22, 0
      %p236 = por %p234, %p235
      %p237 = scmp.ne.s32.totalorder %s226, %s229
      %p238 = scmp.eq.s32.totalorder %s27, 1
      %p239 = por %p237, %p238
      %p240 = scmp.ne.s32.totalorder %s229, %s230
      %p241 = scmp.eq.s32.totalorder %s27, 0
      %p242 = por %p240, %p241
      %p243 = scmp.ne.s32.totalorder %s229, %s230
      %p244 = scmp.eq.s32.totalorder %s28, 1
      %p245 = por %p243, %p244
      %p247 = scmp.ne.s32.totalorder %s230, %s246
      %p248 = scmp.eq.s32.totalorder %s28, 0
      %p249 = por %p247, %p248
      %p250 = scmp.le.s32.totalorder 1, %s22
      %p251 = scmp.lt.s32.totalorder %s22, 3
      %p252 = pnand %p250, %p251
      %p253 = pneg %p252
      // Predicated region
      $region9: #{alzheimer_cnn_forward.1} parent=5 // pred_check
        _
      $region10: #{alzheimer_cnn_forward.1} parent=5 // pred_check_branch
        %255 = sbr.rel (%p252) target = $region12
      $region11: #{alzheimer_cnn_forward.1} parent=5 // pred_region
        %s256 = ssub.s32 %s22, 1
        // Predicated region
        $region13: #{alzheimer_cnn_forward.1} parent=11 // pred_check
          %p257 = pneg %p69
        $region14: #{alzheimer_cnn_forward.1} parent=11 // pred_check_branch
          %259 = sbr.rel (%p257) target = $region16
        $region15: #{alzheimer_cnn_forward.1} parent=11 // pred_region
          %s261 = ssub.s32 256, 256
          %262 = vsyncadd [#allocation7], %s261
          %s263 = sshll.u32 [#allocation6], 4
          %s264 = int_to_ptr.vmem [resolvable:$true] %s263
          %269 = dma.hbm_to_vmem [thread:$0]  %s1, 256, %s264, [#allocation7], 64, 64, 4
        $region16: #{alzheimer_cnn_forward.1} parent=11 // pred_fallthru
          _
        // Predicated region
        $region17: #{alzheimer_cnn_forward.1} parent=11 // pred_check
          %p270 = pneg %p90
        $region18: #{alzheimer_cnn_forward.1} parent=11 // pred_check_branch
          %272 = sbr.rel (%p270) target = $region20
        $region19: #{alzheimer_cnn_forward.1} parent=11 // pred_region
          %s274 = ssub.s32 16, 16
          %275 = vsyncadd [#allocation10], %s274
          %s277 = sshll.u32 [#allocation9], 4
          %s278 = int_to_ptr.vmem [resolvable:$true] %s277
          %280 = dma.hbm_to_vmem [thread:$0]  %s2, 16, %s278, [#allocation10]
        $region20: #{alzheimer_cnn_forward.1} parent=11 // pred_fallthru
          _
        // Predicated region
        $region21: #{alzheimer_cnn_forward.1} parent=11 // pred_check
          %p281 = pneg %p111
        $region22: #{alzheimer_cnn_forward.1} parent=11 // pred_check_branch
          %283 = sbr.rel (%p281) target = $region24
        $region23: #{alzheimer_cnn_forward.1} parent=11 // pred_region
          %s285 = ssub.s32 2304, 2304
          %286 = vsyncadd [#allocation10], %s285
          %s287 = sshll.u32 [#allocation11], 4
          %s288 = int_to_ptr.vmem [resolvable:$true] %s287
          %293 = dma.hbm_to_vmem [thread:$0]  %s3, 2304, %s288, [#allocation10], 64, 64, 4
        $region24: #{alzheimer_cnn_forward.1} parent=11 // pred_fallthru
          _
        // Predicated region
        $region25: #{alzheimer_cnn_forward.1} parent=11 // pred_check
          %p294 = pneg %p132
        $region26: #{alzheimer_cnn_forward.1} parent=11 // pred_check_branch
          %296 = sbr.rel (%p294) target = $region28
        $region27: #{alzheimer_cnn_forward.1} parent=11 // pred_region
          %s298 = ssub.s32 16, 16
          %299 = vsyncadd [#allocation13], %s298
          %s301 = sshll.u32 [#allocation12], 4
          %s302 = int_to_ptr.vmem [resolvable:$true] %s301
          %304 = dma.hbm_to_vmem [thread:$0]  %s4, 16, %s302, [#allocation13]
        $region28: #{alzheimer_cnn_forward.1} parent=11 // pred_fallthru
          _
        // Predicated region
        $region29: #{alzheimer_cnn_forward.1} parent=11 // pred_check
          %p305 = pneg %p153
        $region30: #{alzheimer_cnn_forward.1} parent=11 // pred_check_branch
          %307 = sbr.rel (%p305) target = $region32
        $region31: #{alzheimer_cnn_forward.1} parent=11 // pred_region
          %s309 = ssub.s32 65536, 65536
          %310 = vsyncadd [#allocation13], %s309
          %s311 = sshll.u32 [#allocation14], 4
          %s312 = int_to_ptr.vmem [resolvable:$true] %s311
          %317 = dma.hbm_to_vmem [thread:$0]  %s5, 65536, %s312, [#allocation13], 256, 256, 16
        $region32: #{alzheimer_cnn_forward.1} parent=11 // pred_fallthru
          _
        // Predicated region
        $region33: #{alzheimer_cnn_forward.1} parent=11 // pred_check
          %p318 = pneg %p174
        $region34: #{alzheimer_cnn_forward.1} parent=11 // pred_check_branch
          %320 = sbr.rel (%p318) target = $region36
        $region35: #{alzheimer_cnn_forward.1} parent=11 // pred_region
          %s322 = ssub.s32 64, 64
          %323 = vsyncadd [#allocation16], %s322
          %s325 = sshll.u32 [#allocation15], 4
          %s326 = int_to_ptr.vmem [resolvable:$true] %s325
          %328 = dma.hbm_to_vmem [thread:$0]  %s6, 64, %s326, [#allocation16]
        $region36: #{alzheimer_cnn_forward.1} parent=11 // pred_fallthru
          _
        // Predicated region
        $region37: #{alzheimer_cnn_forward.1} parent=11 // pred_check
          %p329 = pneg %p195
        $region38: #{alzheimer_cnn_forward.1} parent=11 // pred_check_branch
          %331 = sbr.rel (%p329) target = $region40
        $region39: #{alzheimer_cnn_forward.1} parent=11 // pred_region
          _
        $region40: #{alzheimer_cnn_forward.1} parent=11 // pred_fallthru
          _
        // Predicated region
        $region41: #{alzheimer_cnn_forward.1} parent=11 // pred_check
          %p332 = pneg %p216
        $region42: #{alzheimer_cnn_forward.1} parent=11 // pred_check_branch
          %334 = sbr.rel (%p332) target = $region44
        $region43: #{alzheimer_cnn_forward.1} parent=11 // pred_region
          %s336 = ssub.s32 16, 16
          %337 = vsyncadd [#allocation16], %s336
          %s339 = sshll.u32 [#allocation17], 4
          %s340 = int_to_ptr.vmem [resolvable:$true] %s339
          %342 = dma.hbm_to_vmem [thread:$0]  %s8, 16, %s340, [#allocation16]
        $region44: #{alzheimer_cnn_forward.1} parent=11 // pred_fallthru
          _
      $region12: #{alzheimer_cnn_forward.1} parent=5 // pred_fallthru
        _
      %p343 = scmp.lt.s32.totalorder %s22, 2
      // Predicated region
      $region45: #{alzheimer_cnn_forward.1} parent=5 // pred_check
        %p344 = pneg %p343
      $region46: #{alzheimer_cnn_forward.1} parent=5 // pred_check_branch
        %346 = sbr.rel (%p344) target = $region48
      $region47: #{alzheimer_cnn_forward.1} parent=5 // pred_region
        // Predicated region
        $region49: #{alzheimer_cnn_forward.1} parent=47 // pred_check
          %p347 = pneg %p42
        $region50: #{alzheimer_cnn_forward.1} parent=47 // pred_check_branch
          %349 = sbr.rel (%p347) target = $region52
        $region51: #{alzheimer_cnn_forward.1} parent=47 // pred_region
          %p350 = scmp.lt.s32.totalorder %s22, 1
          %s351 = scalar_select %p350, %s22, 1
          %s352 = smul.addr %s351, 32
          %s353 = smul.addr %s352, 4
          %s354 = scalar_lea.vmem %s0, %s353
        $region52: #{alzheimer_cnn_forward.1} parent=47 // pred_fallthru
          _
      $region48: #{alzheimer_cnn_forward.1} parent=5 // pred_fallthru
        _
      %p355 = scmp.le.s32.totalorder 1, %s22
      %p356 = scmp.lt.s32.totalorder %s22, 3
      %p357 = pnand %p355, %p356
      %p358 = pneg %p357
      // Predicated region
      $region53: #{alzheimer_cnn_forward.1} parent=5 // pred_check
        _
      $region54: #{alzheimer_cnn_forward.1} parent=5 // pred_check_branch
        %360 = sbr.rel (%p357) target = $region56
      $region55: #{alzheimer_cnn_forward.1} parent=5 // pred_region
        %s361 = ssub.s32 %s22, 1
        // Predicated region
        $region57: #{alzheimer_cnn_forward.1} parent=55 // pred_check
          %p362 = pneg %p69
        $region58: #{alzheimer_cnn_forward.1} parent=55 // pred_check_branch
          %364 = sbr.rel (%p362) target = $region60
        $region59: #{alzheimer_cnn_forward.1} parent=55 // pred_region
          %365 = dma.done [#allocation7], 256
        $region60: #{alzheimer_cnn_forward.1} parent=55 // pred_fallthru
          _
        // Predicated region
        $region61: #{alzheimer_cnn_forward.1} parent=55 // pred_check
          %p366 = pneg %p90
        $region62: #{alzheimer_cnn_forward.1} parent=55 // pred_check_branch
          %368 = sbr.rel (%p366) target = $region64
        $region63: #{alzheimer_cnn_forward.1} parent=55 // pred_region
          %369 = dma.done [#allocation10], 16
        $region64: #{alzheimer_cnn_forward.1} parent=55 // pred_fallthru
          _
        // Predicated region
        $region65: #{alzheimer_cnn_forward.1} parent=55 // pred_check
          %p370 = pneg %p111
        $region66: #{alzheimer_cnn_forward.1} parent=55 // pred_check_branch
          %372 = sbr.rel (%p370) target = $region68
        $region67: #{alzheimer_cnn_forward.1} parent=55 // pred_region
          %373 = dma.done [#allocation10], 2304
        $region68: #{alzheimer_cnn_forward.1} parent=55 // pred_fallthru
          _
        // Predicated region
        $region69: #{alzheimer_cnn_forward.1} parent=55 // pred_check
          %p374 = pneg %p132
        $region70: #{alzheimer_cnn_forward.1} parent=55 // pred_check_branch
          %376 = sbr.rel (%p374) target = $region72
        $region71: #{alzheimer_cnn_forward.1} parent=55 // pred_region
          %377 = dma.done [#allocation13], 16
        $region72: #{alzheimer_cnn_forward.1} parent=55 // pred_fallthru
          _
        // Predicated region
        $region73: #{alzheimer_cnn_forward.1} parent=55 // pred_check
          %p378 = pneg %p153
        $region74: #{alzheimer_cnn_forward.1} parent=55 // pred_check_branch
          %380 = sbr.rel (%p378) target = $region76
        $region75: #{alzheimer_cnn_forward.1} parent=55 // pred_region
          %381 = dma.done [#allocation13], 65536
        $region76: #{alzheimer_cnn_forward.1} parent=55 // pred_fallthru
          _
        // Predicated region
        $region77: #{alzheimer_cnn_forward.1} parent=55 // pred_check
          %p382 = pneg %p174
        $region78: #{alzheimer_cnn_forward.1} parent=55 // pred_check_branch
          %384 = sbr.rel (%p382) target = $region80
        $region79: #{alzheimer_cnn_forward.1} parent=55 // pred_region
          %385 = dma.done [#allocation16], 64
        $region80: #{alzheimer_cnn_forward.1} parent=55 // pred_fallthru
          _
        // Predicated region
        $region81: #{alzheimer_cnn_forward.1} parent=55 // pred_check
          %p386 = pneg %p216
        $region82: #{alzheimer_cnn_forward.1} parent=55 // pred_check_branch
          %388 = sbr.rel (%p386) target = $region84
        $region83: #{alzheimer_cnn_forward.1} parent=55 // pred_region
          %389 = dma.done [#allocation16], 16
        $region84: #{alzheimer_cnn_forward.1} parent=55 // pred_fallthru
          _
        %p390 = scmp.lt.s32.totalorder %s27, 1
        %s391 = scalar_select %p390, %s27, 1
        %s392 = smul.addr %s391, 32
        %s393 = smul.addr %s392, 4
        %s394 = scalar_lea.vmem %s0, %s393
        %p395 = pneg %p48
        %p396 = pneg %p45
        %p397 = pneg %p69
        %p398 = pneg %p66
        %p399 = pneg %p90
        %p400 = pneg %p87
        %p401 = pneg %p111
        %p402 = pneg %p108
        %p403 = pneg %p132
        %p404 = pneg %p129
        %p405 = pneg %p153
        %p406 = pneg %p150
        %p407 = pneg %p174
        %p408 = pneg %p171
        %p409 = pneg %p195
        %p410 = pneg %p192
        %p411 = pneg %p216
        %p412 = pneg %p213
        %p413 = pneg %p242
        %p414 = pneg %p239
        %s415 = sand.u32 %s229, 1
        %s416 = scalar_lea.sflag [#allocation8], %s415
        %s417 = sand.u32 %s229, 1
        %s418 = scalar_lea.vmem [#allocation18], %s417
        %p419 = scmp.lt.s32.totalorder %s27, 1
        %s420 = scalar_select %p419, %s27, 1
        %s421 = smul.addr %s420, 32
        %s422 = smul.addr %s421, 4
        %s423 = scalar_lea.vmem %s0, %s422
        %vm425 = vcmask 261120
        %426 = vst.msk [vmem:[#allocation3] sm:$0xff] %vm425, 0.0
        %427 = vst.msk [vmem:[#allocation3 + $0x8] sm:$0xff] %vm425, 0.0
        %428 = vst.msk [vmem:[#allocation3 + $0x10] sm:$0xff] %vm425, 0.0
        %429 = vst.msk [vmem:[#allocation3 + $0x18] sm:$0xff] %vm425, 0.0
        %430 = vst.msk [vmem:[#allocation3 + $0x20] sm:$0xff] %vm425, 0.0
        %431 = vst.msk [vmem:[#allocation3 + $0x28] sm:$0xff] %vm425, 0.0
        %432 = vst.msk [vmem:[#allocation3 + $0x30] sm:$0xff] %vm425, 0.0
        %433 = vst.msk [vmem:[#allocation3 + $0x38] sm:$0xff] %vm425, 0.0
        %434 = vst.msk [vmem:[#allocation3 + $0x40] sm:$0xff] %vm425, 0.0
        %435 = vst.msk [vmem:[#allocation3 + $0x48] sm:$0xff] %vm425, 0.0
        %436 = vst.msk [vmem:[#allocation3 + $0x50] sm:$0xff] %vm425, 0.0
        %437 = vst.msk [vmem:[#allocation3 + $0x58] sm:$0xff] %vm425, 0.0
        %438 = vst.msk [vmem:[#allocation3 + $0x60] sm:$0xff] %vm425, 0.0
        %439 = vst.msk [vmem:[#allocation3 + $0x68] sm:$0xff] %vm425, 0.0
        %440 = vst.msk [vmem:[#allocation3 + $0x70] sm:$0xff] %vm425, 0.0
        %441 = vst.msk [vmem:[#allocation3 + $0x78] sm:$0xff] %vm425, 0.0
        %442 = vst.msk [vmem:[#allocation3 + $0x80] sm:$0xff] %vm425, 0.0
        %v443 = vld [vmem:[%s423] sm:$0xf]
        %v444 = vld [vmem:[%s423 + $0x4] sm:$0xf]
        %v445 = vld [vmem:[%s423 + $0x8] sm:$0xf]
        %v446 = vld [vmem:[%s423 + $0xc] sm:$0xf]
        %v447 = vld [vmem:[%s423 + $0x10] sm:$0xf]
        %v448 = vld [vmem:[%s423 + $0x14] sm:$0xf]
        %v449 = vld [vmem:[%s423 + $0x18] sm:$0xf]
        %v450 = vld [vmem:[%s423 + $0x1c] sm:$0xf]
        %v451 = vld [vmem:[%s423 + $0x20] sm:$0xf]
        %v452 = vld [vmem:[%s423 + $0x24] sm:$0xf]
        %v453 = vld [vmem:[%s423 + $0x28] sm:$0xf]
        %v454 = vld [vmem:[%s423 + $0x2c] sm:$0xf]
        %v455 = vld [vmem:[%s423 + $0x30] sm:$0xf]
        %v456 = vld [vmem:[%s423 + $0x34] sm:$0xf]
        %v457 = vld [vmem:[%s423 + $0x38] sm:$0xf]
        %v458 = vld [vmem:[%s423 + $0x3c] sm:$0xf]
        %v459 = vld [vmem:[%s423 + $0x40] sm:$0xf]
        %v460 = vld [vmem:[%s423 + $0x44] sm:$0xf]
        %v461 = vld [vmem:[%s423 + $0x48] sm:$0xf]
        %v462 = vld [vmem:[%s423 + $0x4c] sm:$0xf]
        %v463 = vld [vmem:[%s423 + $0x50] sm:$0xf]
        %v464 = vld [vmem:[%s423 + $0x54] sm:$0xf]
        %v465 = vld [vmem:[%s423 + $0x58] sm:$0xf]
        %v466 = vld [vmem:[%s423 + $0x5c] sm:$0xf]
        %v467 = vld [vmem:[%s423 + $0x60] sm:$0xf]
        %v468 = vld [vmem:[%s423 + $0x64] sm:$0xf]
        %v469 = vld [vmem:[%s423 + $0x68] sm:$0xf]
        %v470 = vld [vmem:[%s423 + $0x6c] sm:$0xf]
        %v471 = vld [vmem:[%s423 + $0x70] sm:$0xf]
        %v472 = vld [vmem:[%s423 + $0x74] sm:$0xf]
        %v473 = vld [vmem:[%s423 + $0x78] sm:$0xf]
        %v474 = vld [vmem:[%s423 + $0x7c] sm:$0xf]
        %v475 = vld [vmem:[#allocation6] sm:$0xf]
        %v476 = vld [vmem:[#allocation6 + $0x4] sm:$0xf]
        %v477 = vld [vmem:[#allocation6 + $0x8] sm:$0xf]
        %v478 = vld [vmem:[#allocation6 + $0xc] sm:$0x3]
        %v479 = vld [vmem:[#allocation9] sm:$0x1]
        %v481 = vlaneseq
        %v482 = vshrl.u32 %v481, 7
        %v483 = vsub.s32 0, %v482
        %v484 = vrot.slane %v479, %v483
        %v518 = vunpack.c.l.b16 %v443
        %v519 = vunpack.c.l.b16 %v444
        %v520 = vunpack.c.l.b16 %v445
        %v521 = vunpack.c.l.b16 %v446
        %v522 = vunpack.c.l.b16 %v447
        %v523 = vunpack.c.l.b16 %v448
        %v524 = vunpack.c.l.b16 %v449
        %v525 = vunpack.c.l.b16 %v450
        %v526 = vunpack.c.l.b16 %v451
        %v527 = vunpack.c.l.b16 %v452
        %v528 = vunpack.c.l.b16 %v453
        %v529 = vunpack.c.l.b16 %v454
        %v530 = vunpack.c.l.b16 %v455
        %v531 = vunpack.c.l.b16 %v456
        %v532 = vunpack.c.l.b16 %v457
        %v533 = vunpack.c.l.b16 %v458
        %v534 = vunpack.c.l.b16 %v459
        %v535 = vunpack.c.l.b16 %v460
        %v536 = vunpack.c.l.b16 %v461
        %v537 = vunpack.c.l.b16 %v462
        %v538 = vunpack.c.l.b16 %v463
        %v539 = vunpack.c.l.b16 %v464
        %v540 = vunpack.c.l.b16 %v465
        %v541 = vunpack.c.l.b16 %v466
        %v542 = vunpack.c.l.b16 %v467
        %v543 = vunpack.c.l.b16 %v468
        %v544 = vunpack.c.l.b16 %v469
        %v545 = vunpack.c.l.b16 %v470
        %v546 = vunpack.c.l.b16 %v471
        %v547 = vunpack.c.l.b16 %v472
        %v548 = vunpack.c.l.b16 %v473
        %v549 = vunpack.c.l.b16 %v474
        %v550 = vpack.c.b16 %v519, %v518
        %v551 = vpack.c.b16 %v521, %v520
        %v552 = vpack.c.b16 %v523, %v522
        %v553 = vpack.c.b16 %v525, %v524
        %v554 = vpack.c.b16 %v527, %v526
        %v555 = vpack.c.b16 %v529, %v528
        %v556 = vpack.c.b16 %v531, %v530
        %v557 = vpack.c.b16 %v533, %v532
        %v558 = vpack.c.b16 %v535, %v534
        %v559 = vpack.c.b16 %v537, %v536
        %v560 = vpack.c.b16 %v539, %v538
        %v561 = vpack.c.b16 %v541, %v540
        %v562 = vpack.c.b16 %v543, %v542
        %v563 = vpack.c.b16 %v545, %v544
        %v564 = vpack.c.b16 %v547, %v546
        %v565 = vpack.c.b16 %v549, %v548
        %v570 = vunpack.c.l.b16 %v475
        %v571 = vunpack.c.l.b16 %v476
        %v572 = vunpack.c.l.b16 %v477
        %v573 = vunpack.c.l.b16 %v478
        %v574 = vpack.c.b16 %v571, %v570
        %v575 = vpack.c.b16 %v573, %v572
        %vm577 = vcmask 220160
        %v579 = vsel %vm577, %v550, 0
        %v582 = vsel %vm577, %v551, 0
        %v585 = vsel %vm577, %v552, 0
        %v588 = vsel %vm577, %v553, 0
        %v591 = vsel %vm577, %v554, 0
        %v594 = vsel %vm577, %v555, 0
        %v597 = vsel %vm577, %v556, 0
        %v600 = vsel %vm577, %v557, 0
        %v603 = vsel %vm577, %v558, 0
        %v606 = vsel %vm577, %v559, 0
        %v609 = vsel %vm577, %v560, 0
        %v612 = vsel %vm577, %v561, 0
        %v615 = vsel %vm577, %v562, 0
        %v618 = vsel %vm577, %v563, 0
        %v621 = vsel %vm577, %v564, 0
        %v624 = vsel %vm577, %v565, 0
        %vm626 = vcmask 1044480
        %vm627 = vcmask 1045504
        %v628 = vsel %vm626, 4294967295, 65535
        %v629 = vsel %vm627, %v628, 0
        %v631 = vand.u32 %v575, %v629
        %633 = vmatprep.subr.bf16.mxu0 0
        %634 = vmatpush1.bf16.msra.mxu0 %v574
        %635 = vmatprep.subr.bf16.mxu0 0
        %636 = vmatpush1.bf16.msra.mxu0 %v631
        %637 = vmatprep.subr.bf16.mxu0 0
        %638 = vmatpush1.bf16.msra.mxu0 0
        %639 = vmatprep.subr.bf16.mxu0 0
        %640 = vmatpush1.bf16.msra.mxu0 0
        %641 = vmatprep.subr.bf16.mxu0 0
        %642 = vmatpush1.bf16.msra.mxu0 0
        %643 = vmatprep.subr.bf16.mxu0 0
        %644 = vmatpush1.bf16.msra.mxu0 0
        %645 = vmatprep.subr.bf16.mxu0 0
        %646 = vmatpush1.bf16.msra.mxu0 0
        %647 = vmatprep.subr.bf16.mxu0 0
        %648 = vmatpush1.bf16.msra.mxu0 0
        %649 = vmatprep.subr.bf16.mxu0 0
        %650 = vmatpush1.bf16.msra.mxu0 0
        %651 = vmatprep.subr.bf16.mxu0 0
        %652 = vmatpush1.bf16.msra.mxu0 0
        %653 = vmatprep.subr.bf16.mxu0 0
        %654 = vmatpush1.bf16.msra.mxu0 0
        %655 = vmatprep.subr.bf16.mxu0 0
        %656 = vmatpush1.bf16.msra.mxu0 0
        %657 = vmatprep.subr.bf16.mxu0 0
        %658 = vmatpush1.bf16.msra.mxu0 0
        %659 = vmatprep.subr.bf16.mxu0 0
        %660 = vmatpush1.bf16.msra.mxu0 0
        %661 = vmatprep.subr.bf16.mxu0 0
        %662 = vmatpush1.bf16.msra.mxu0 0
        %663 = vmatprep.subr.bf16.mxu0 0
        %664 = vmatpush1.bf16.msra.mxu0 0
        %665 = vmatprep.mubr.bf16.mxu0 0
        %666 = vmatmul.mubr.bf16.gmra.mrb[0].mxu0 %v579
        %v667 = vpop.f32.mrb[0].mxu0
        %v668 = vadd.f32 %v484, %v667
        %v669 = vpop.f32.mrb[0].mxu0
        %v670 = vpop.f32.mrb[0].mxu0
        %v671 = vadd.f32 %v484, %v670
        %v672 = vpop.f32.mrb[0].mxu0
        %673 = vmatprep.mubr.bf16.mxu0 0
        %674 = vmatmul.mubr.bf16.gmra.mrb[0].mxu0 %v582
        %v675 = vpop.f32.mrb[0].mxu0
        %v676 = vadd.f32 %v484, %v675
        %v677 = vpop.f32.mrb[0].mxu0
        %v678 = vpop.f32.mrb[0].mxu0
        %v679 = vadd.f32 %v484, %v678
        %v680 = vpop.f32.mrb[0].mxu0
        %681 = vmatprep.mubr.bf16.mxu0 0
        %682 = vmatmul.mubr.bf16.gmra.mrb[0].mxu0 %v585
        %v683 = vpop.f32.mrb[0].mxu0
        %v684 = vadd.f32 %v484, %v683
        %v685 = vpop.f32.mrb[0].mxu0
        %v686 = vpop.f32.mrb[0].mxu0
        %v687 = vadd.f32 %v484, %v686
        %v688 = vpop.f32.mrb[0].mxu0
        %689 = vmatprep.mubr.bf16.mxu0 0
        %690 = vmatmul.mubr.bf16.gmra.mrb[0].mxu0 %v588
        %v691 = vpop.f32.mrb[0].mxu0
        %v692 = vadd.f32 %v484, %v691
        %v693 = vpop.f32.mrb[0].mxu0
        %v694 = vpop.f32.mrb[0].mxu0
        %v695 = vadd.f32 %v484, %v694
        %v696 = vpop.f32.mrb[0].mxu0
        %697 = vmatprep.mubr.bf16.mxu0 0
        %698 = vmatmul.mubr.bf16.gmra.mrb[0].mxu0 %v591
        %v699 = vpop.f32.mrb[0].mxu0
        %v700 = vadd.f32 %v484, %v699
        %v701 = vpop.f32.mrb[0].mxu0
        %v702 = vpop.f32.mrb[0].mxu0
        %v703 = vadd.f32 %v484, %v702
        %v704 = vpop.f32.mrb[0].mxu0
        %705 = vmatprep.mubr.bf16.mxu0 0
        %706 = vmatmul.mubr.bf16.gmra.mrb[0].mxu0 %v594
        %v707 = vpop.f32.mrb[0].mxu0
        %v708 = vadd.f32 %v484, %v707
        %v709 = vpop.f32.mrb[0].mxu0
        %v710 = vpop.f32.mrb[0].mxu0
        %v711 = vadd.f32 %v484, %v710
        %v712 = vpop.f32.mrb[0].mxu0
        %713 = vmatprep.mubr.bf16.mxu0 0
        %714 = vmatmul.mubr.bf16.gmra.mrb[0].mxu0 %v597
        %v715 = vpop.f32.mrb[0].mxu0
        %v716 = vadd.f32 %v484, %v715
        %v717 = vpop.f32.mrb[0].mxu0
        %v718 = vpop.f32.mrb[0].mxu0
        %v719 = vadd.f32 %v484, %v718
        %v720 = vpop.f32.mrb[0].mxu0
        %721 = vmatprep.mubr.bf16.mxu0 0
        %722 = vmatmul.mubr.bf16.gmra.mrb[0].mxu0 %v600
        %v723 = vpop.f32.mrb[0].mxu0
        %v724 = vadd.f32 %v484, %v723
        %v725 = vpop.f32.mrb[0].mxu0
        %v726 = vpop.f32.mrb[0].mxu0
        %v727 = vadd.f32 %v484, %v726
        %v728 = vpop.f32.mrb[0].mxu0
        %729 = vmatprep.mubr.bf16.mxu0 0
        %730 = vmatmul.mubr.bf16.gmra.mrb[0].mxu0 %v603
        %v731 = vpop.f32.mrb[0].mxu0
        %v732 = vadd.f32 %v484, %v731
        %v733 = vpop.f32.mrb[0].mxu0
        %v734 = vpop.f32.mrb[0].mxu0
        %v735 = vadd.f32 %v484, %v734
        %v736 = vpop.f32.mrb[0].mxu0
        %737 = vmatprep.mubr.bf16.mxu0 0
        %738 = vmatmul.mubr.bf16.gmra.mrb[0].mxu0 %v606
        %v739 = vpop.f32.mrb[0].mxu0
        %v740 = vadd.f32 %v484, %v739
        %v741 = vpop.f32.mrb[0].mxu0
        %v742 = vpop.f32.mrb[0].mxu0
        %v743 = vadd.f32 %v484, %v742
        %v744 = vpop.f32.mrb[0].mxu0
        %745 = vmatprep.mubr.bf16.mxu0 0
        %746 = vmatmul.mubr.bf16.gmra.mrb[0].mxu0 %v609
        %v747 = vpop.f32.mrb[0].mxu0
        %v748 = vadd.f32 %v484, %v747
        %v749 = vpop.f32.mrb[0].mxu0
        %v750 = vpop.f32.mrb[0].mxu0
        %v751 = vadd.f32 %v484, %v750
        %v752 = vpop.f32.mrb[0].mxu0
        %753 = vmatprep.mubr.bf16.mxu0 0
        %754 = vmatmul.mubr.bf16.gmra.mrb[0].mxu0 %v612
        %v755 = vpop.f32.mrb[0].mxu0
        %v756 = vadd.f32 %v484, %v755
        %v757 = vpop.f32.mrb[0].mxu0
        %v758 = vpop.f32.mrb[0].mxu0
        %v759 = vadd.f32 %v484, %v758
        %v760 = vpop.f32.mrb[0].mxu0
        %761 = vmatprep.mubr.bf16.mxu0 0
        %762 = vmatmul.mubr.bf16.gmra.mrb[0].mxu0 %v615
        %v763 = vpop.f32.mrb[0].mxu0
        %v764 = vadd.f32 %v484, %v763
        %v765 = vpop.f32.mrb[0].mxu0
        %v766 = vpop.f32.mrb[0].mxu0
        %v767 = vadd.f32 %v484, %v766
        %v768 = vpop.f32.mrb[0].mxu0
        %769 = vmatprep.mubr.bf16.mxu0 0
        %770 = vmatmul.mubr.bf16.gmra.mrb[0].mxu0 %v618
        %v771 = vpop.f32.mrb[0].mxu0
        %v772 = vadd.f32 %v484, %v771
        %v773 = vpop.f32.mrb[0].mxu0
        %v774 = vpop.f32.mrb[0].mxu0
        %v775 = vadd.f32 %v484, %v774
        %v776 = vpop.f32.mrb[0].mxu0
        %777 = vmatprep.mubr.bf16.mxu0 0
        %778 = vmatmul.mubr.bf16.gmra.mrb[0].mxu0 %v621
        %v779 = vpop.f32.mrb[0].mxu0
        %v780 = vadd.f32 %v484, %v779
        %v781 = vpop.f32.mrb[0].mxu0
        %v782 = vpop.f32.mrb[0].mxu0
        %v783 = vadd.f32 %v484, %v782
        %v784 = vpop.f32.mrb[0].mxu0
        %785 = vmatprep.mubr.bf16.mxu0 0
        %786 = vmatmul.mubr.bf16.gmra.mrb[0].mxu0 %v624
        %v787 = vpop.f32.mrb[0].mxu0
        %v788 = vadd.f32 %v484, %v787
        %v789 = vpop.f32.mrb[0].mxu0
        %v790 = vpop.f32.mrb[0].mxu0
        %v791 = vadd.f32 %v484, %v790
        %v792 = vpop.f32.mrb[0].mxu0
        %793 = vdwg.mxu0
        %v794 = vmax.f32 %v668, 0.0
        %v795 = vmax.f32 %v671, 0.0
        %v796 = vmax.f32 %v676, 0.0
        %v797 = vmax.f32 %v679, 0.0
        %v798 = vmax.f32 %v684, 0.0
        %v799 = vmax.f32 %v687, 0.0
        %v800 = vmax.f32 %v692, 0.0
        %v801 = vmax.f32 %v695, 0.0
        %v802 = vmax.f32 %v700, 0.0
        %v803 = vmax.f32 %v703, 0.0
        %v804 = vmax.f32 %v708, 0.0
        %v805 = vmax.f32 %v711, 0.0
        %v806 = vmax.f32 %v716, 0.0
        %v807 = vmax.f32 %v719, 0.0
        %v808 = vmax.f32 %v724, 0.0
        %v809 = vmax.f32 %v727, 0.0
        %v810 = vmax.f32 %v732, 0.0
        %v811 = vmax.f32 %v735, 0.0
        %v812 = vmax.f32 %v740, 0.0
        %v813 = vmax.f32 %v743, 0.0
        %v814 = vmax.f32 %v748, 0.0
        %v815 = vmax.f32 %v751, 0.0
        %v816 = vmax.f32 %v756, 0.0
        %v817 = vmax.f32 %v759, 0.0
        %v818 = vmax.f32 %v764, 0.0
        %v819 = vmax.f32 %v767, 0.0
        %v820 = vmax.f32 %v772, 0.0
        %v821 = vmax.f32 %v775, 0.0
        %v822 = vmax.f32 %v780, 0.0
        %v823 = vmax.f32 %v783, 0.0
        %v824 = vmax.f32 %v788, 0.0
        %v825 = vmax.f32 %v791, 0.0
        %826 = vst.msk [vmem:[#allocation2] sm:$0xff] %vm425, %v794
        %827 = vst.msk [vmem:[#allocation2 + $0x8] sm:$0xff] %vm425, %v795
        %828 = vst.msk [vmem:[#allocation2 + $0x10] sm:$0xff] %vm425, %v796
        %829 = vst.msk [vmem:[#allocation2 + $0x18] sm:$0xff] %vm425, %v797
        %830 = vst.msk [vmem:[#allocation2 + $0x20] sm:$0xff] %vm425, %v798
        %831 = vst.msk [vmem:[#allocation2 + $0x28] sm:$0xff] %vm425, %v799
        %832 = vst.msk [vmem:[#allocation2 + $0x30] sm:$0xff] %vm425, %v800
        %833 = vst.msk [vmem:[#allocation2 + $0x38] sm:$0xff] %vm425, %v801
        %834 = vst.msk [vmem:[#allocation2 + $0x40] sm:$0xff] %vm425, %v802
        %835 = vst.msk [vmem:[#allocation2 + $0x48] sm:$0xff] %vm425, %v803
        %836 = vst.msk [vmem:[#allocation2 + $0x50] sm:$0xff] %vm425, %v804
        %837 = vst.msk [vmem:[#allocation2 + $0x58] sm:$0xff] %vm425, %v805
        %838 = vst.msk [vmem:[#allocation2 + $0x60] sm:$0xff] %vm425, %v806
        %839 = vst.msk [vmem:[#allocation2 + $0x68] sm:$0xff] %vm425, %v807
        %840 = vst.msk [vmem:[#allocation2 + $0x70] sm:$0xff] %vm425, %v808
        %841 = vst.msk [vmem:[#allocation2 + $0x78] sm:$0xff] %vm425, %v809
        %842 = vst.msk [vmem:[#allocation2 + $0x80] sm:$0xff] %vm425, %v810
        %843 = vst.msk [vmem:[#allocation2 + $0x88] sm:$0xff] %vm425, %v811
        %844 = vst.msk [vmem:[#allocation2 + $0x90] sm:$0xff] %vm425, %v812
        %845 = vst.msk [vmem:[#allocation2 + $0x98] sm:$0xff] %vm425, %v813
        %846 = vst.msk [vmem:[#allocation2 + $0xa0] sm:$0xff] %vm425, %v814
        %847 = vst.msk [vmem:[#allocation2 + $0xa8] sm:$0xff] %vm425, %v815
        %848 = vst.msk [vmem:[#allocation2 + $0xb0] sm:$0xff] %vm425, %v816
        %849 = vst.msk [vmem:[#allocation2 + $0xb8] sm:$0xff] %vm425, %v817
        %850 = vst.msk [vmem:[#allocation2 + $0xc0] sm:$0xff] %vm425, %v818
        %851 = vst.msk [vmem:[#allocation2 + $0xc8] sm:$0xff] %vm425, %v819
        %852 = vst.msk [vmem:[#allocation2 + $0xd0] sm:$0xff] %vm425, %v820
        %853 = vst.msk [vmem:[#allocation2 + $0xd8] sm:$0xff] %vm425, %v821
        %854 = vst.msk [vmem:[#allocation2 + $0xe0] sm:$0xff] %vm425, %v822
        %855 = vst.msk [vmem:[#allocation2 + $0xe8] sm:$0xff] %vm425, %v823
        %856 = vst.msk [vmem:[#allocation2 + $0xf0] sm:$0xff] %vm425, %v824
        %857 = vst.msk [vmem:[#allocation2 + $0xf8] sm:$0xff] %vm425, %v825
        %v858 = vld [vmem:[#allocation2] ss:$2 sm:$0xff]
        %s859 = scalar_lea.vmem [#allocation2], 1
        %v860 = vld [vmem:[%s859] ss:$2 sm:$0xff]
        %s861 = scalar_lea.vmem [#allocation2], 16
        %v862 = vld [vmem:[%s861] ss:$2 sm:$0xff]
        %s863 = scalar_lea.vmem [#allocation2], 17
        %v864 = vld [vmem:[%s863] ss:$2 sm:$0xff]
        %v865 = vmax.f32 %v858, %v860
        %v866 = vmax.f32 %v862, %v864
        %v867 = vmax.f32 %v865, %v866
        %868 = vst.msk [vmem:[#allocation3 + $0x1b] sm:$0xff] %vm425, %v867
        %s869 = scalar_lea.vmem [#allocation2], 32
        %v870 = vld [vmem:[%s869] ss:$2 sm:$0xff]
        %s871 = scalar_lea.vmem [#allocation2], 33
        %v872 = vld [vmem:[%s871] ss:$2 sm:$0xff]
        %s873 = scalar_lea.vmem [#allocation2], 48
        %v874 = vld [vmem:[%s873] ss:$2 sm:$0xff]
        %s875 = scalar_lea.vmem [#allocation2], 49
        %v876 = vld [vmem:[%s875] ss:$2 sm:$0xff]
        %v877 = vmax.f32 %v870, %v872
        %v878 = vmax.f32 %v874, %v876
        %v879 = vmax.f32 %v877, %v878
        %880 = vst.msk [vmem:[#allocation3 + $0x25] sm:$0xff] %vm425, %v879
        %s881 = scalar_lea.vmem [#allocation2], 64
        %v882 = vld [vmem:[%s881] ss:$2 sm:$0xff]
        %s883 = scalar_lea.vmem [#allocation2], 65
        %v884 = vld [vmem:[%s883] ss:$2 sm:$0xff]
        %s885 = scalar_lea.vmem [#allocation2], 80
        %v886 = vld [vmem:[%s885] ss:$2 sm:$0xff]
        %s887 = scalar_lea.vmem [#allocation2], 81
        %v888 = vld [vmem:[%s887] ss:$2 sm:$0xff]
        %v889 = vmax.f32 %v882, %v884
        %v890 = vmax.f32 %v886, %v888
        %v891 = vmax.f32 %v889, %v890
        %892 = vst.msk [vmem:[#allocation3 + $0x2f] sm:$0xff] %vm425, %v891
        %s893 = scalar_lea.vmem [#allocation2], 96
        %v894 = vld [vmem:[%s893] ss:$2 sm:$0xff]
        %s895 = scalar_lea.vmem [#allocation2], 97
        %v896 = vld [vmem:[%s895] ss:$2 sm:$0xff]
        %s897 = scalar_lea.vmem [#allocation2], 112
        %v898 = vld [vmem:[%s897] ss:$2 sm:$0xff]
        %s899 = scalar_lea.vmem [#allocation2], 113
        %v900 = vld [vmem:[%s899] ss:$2 sm:$0xff]
        %v901 = vmax.f32 %v894, %v896
        %v902 = vmax.f32 %v898, %v900
        %v903 = vmax.f32 %v901, %v902
        %904 = vst.msk [vmem:[#allocation3 + $0x39] sm:$0xff] %vm425, %v903
        %s905 = scalar_lea.vmem [#allocation2], 128
        %v906 = vld [vmem:[%s905] ss:$2 sm:$0xff]
        %s907 = scalar_lea.vmem [#allocation2], 129
        %v908 = vld [vmem:[%s907] ss:$2 sm:$0xff]
        %s909 = scalar_lea.vmem [#allocation2], 144
        %v910 = vld [vmem:[%s909] ss:$2 sm:$0xff]
        %s911 = scalar_lea.vmem [#allocation2], 145
        %v912 = vld [vmem:[%s911] ss:$2 sm:$0xff]
        %v913 = vmax.f32 %v906, %v908
        %v914 = vmax.f32 %v910, %v912
        %v915 = vmax.f32 %v913, %v914
        %916 = vst.msk [vmem:[#allocation3 + $0x43] sm:$0xff] %vm425, %v915
        %s917 = scalar_lea.vmem [#allocation2], 160
        %v918 = vld [vmem:[%s917] ss:$2 sm:$0xff]
        %s919 = scalar_lea.vmem [#allocation2], 161
        %v920 = vld [vmem:[%s919] ss:$2 sm:$0xff]
        %s921 = scalar_lea.vmem [#allocation2], 176
        %v922 = vld [vmem:[%s921] ss:$2 sm:$0xff]
        %s923 = scalar_lea.vmem [#allocation2], 177
        %v924 = vld [vmem:[%s923] ss:$2 sm:$0xff]
        %v925 = vmax.f32 %v918, %v920
        %v926 = vmax.f32 %v922, %v924
        %v927 = vmax.f32 %v925, %v926
        %928 = vst.msk [vmem:[#allocation3 + $0x4d] sm:$0xff] %vm425, %v927
        %s929 = scalar_lea.vmem [#allocation2], 192
        %v930 = vld [vmem:[%s929] ss:$2 sm:$0xff]
        %s931 = scalar_lea.vmem [#allocation2], 193
        %v932 = vld [vmem:[%s931] ss:$2 sm:$0xff]
        %s933 = scalar_lea.vmem [#allocation2], 208
        %v934 = vld [vmem:[%s933] ss:$2 sm:$0xff]
        %s935 = scalar_lea.vmem [#allocation2], 209
        %v936 = vld [vmem:[%s935] ss:$2 sm:$0xff]
        %v937 = vmax.f32 %v930, %v932
        %v938 = vmax.f32 %v934, %v936
        %v939 = vmax.f32 %v937, %v938
        %940 = vst.msk [vmem:[#allocation3 + $0x57] sm:$0xff] %vm425, %v939
        %s941 = scalar_lea.vmem [#allocation2], 224
        %v942 = vld [vmem:[%s941] ss:$2 sm:$0xff]
        %s943 = scalar_lea.vmem [#allocation2], 225
        %v944 = vld [vmem:[%s943] ss:$2 sm:$0xff]
        %s945 = scalar_lea.vmem [#allocation2], 240
        %v946 = vld [vmem:[%s945] ss:$2 sm:$0xff]
        %s947 = scalar_lea.vmem [#allocation2], 241
        %v948 = vld [vmem:[%s947] ss:$2 sm:$0xff]
        %v949 = vmax.f32 %v942, %v944
        %v950 = vmax.f32 %v946, %v948
        %v951 = vmax.f32 %v949, %v950
        %952 = vst.msk [vmem:[#allocation3 + $0x61] sm:$0xff] %vm425, %v951
        %v953 = vld [vmem:[#allocation3 + $0x5] sm:$0xff]
        %v954 = vld [vmem:[#allocation3 + $0xd] sm:$0xff]
        %v955 = vld [vmem:[#allocation3 + $0x15] sm:$0xff]
        %v956 = vld [vmem:[#allocation3 + $0x1d] sm:$0xff]
        %v957 = vld [vmem:[#allocation3 + $0x25] sm:$0xff]
        %v958 = vld [vmem:[#allocation3 + $0x2d] sm:$0xff]
        %v959 = vld [vmem:[#allocation3 + $0x35] sm:$0xff]
        %v960 = vld [vmem:[#allocation3 + $0x3d] sm:$0xff]
        %v961 = vld [vmem:[#allocation3 + $0x45] sm:$0xff]
        %v962 = vld [vmem:[#allocation3 + $0x4d] sm:$0xff]
        %v963 = vld [vmem:[#allocation3 + $0x55] sm:$0xff]
        %v964 = vld [vmem:[#allocation3 + $0x5d] sm:$0xff]
        %v965 = vld [vmem:[#allocation3 + $0x65] sm:$0xf]
        %v966 = vpack.c.bf16 %v954, %v953
        %v967 = vpack.c.bf16 %v956, %v955
        %v968 = vpack.c.bf16 %v958, %v957
        %v969 = vpack.c.bf16 %v960, %v959
        %v970 = vpack.c.bf16 %v962, %v961
        %v971 = vpack.c.bf16 %v964, %v963
        %v972 = vpack.c.bf16 %v965, %v965
        %v973 = vld [vmem:[#allocation11] sm:$0xf]
        %v974 = vld [vmem:[#allocation11 + $0x4] sm:$0xf]
        %v975 = vld [vmem:[#allocation11 + $0x8] sm:$0xf]
        %v976 = vld [vmem:[#allocation11 + $0xc] sm:$0xf]
        %v977 = vld [vmem:[#allocation3 + $0x6] sm:$0xff]
        %v978 = vld [vmem:[#allocation3 + $0xe] sm:$0xff]
        %v979 = vld [vmem:[#allocation3 + $0x16] sm:$0xff]
        %v980 = vld [vmem:[#allocation3 + $0x1e] sm:$0xff]
        %v981 = vld [vmem:[#allocation3 + $0x26] sm:$0xff]
        %v982 = vld [vmem:[#allocation3 + $0x2e] sm:$0xff]
        %v983 = vld [vmem:[#allocation3 + $0x36] sm:$0xff]
        %v984 = vld [vmem:[#allocation3 + $0x3e] sm:$0xff]
        %v985 = vld [vmem:[#allocation3 + $0x46] sm:$0xff]
        %v986 = vld [vmem:[#allocation3 + $0x4e] sm:$0xff]
        %v987 = vld [vmem:[#allocation3 + $0x56] sm:$0xff]
        %v988 = vld [vmem:[#allocation3 + $0x5e] sm:$0xff]
        %v989 = vld [vmem:[#allocation3 + $0x66] sm:$0xf]
        %v990 = vpack.c.bf16 %v978, %v977
        %v991 = vpack.c.bf16 %v980, %v979
        %v992 = vpack.c.bf16 %v982, %v981
        %v993 = vpack.c.bf16 %v984, %v983
        %v994 = vpack.c.bf16 %v986, %v985
        %v995 = vpack.c.bf16 %v988, %v987
        %v996 = vpack.c.bf16 %v989, %v989
        %s997 = scalar_lea.vmem [#allocation11], 16
        %v998 = vld [vmem:[%s997] sm:$0xf]
        %v999 = vld [vmem:[%s997 + $0x4] sm:$0xf]
        %v1000 = vld [vmem:[%s997 + $0x8] sm:$0xf]
        %v1001 = vld [vmem:[%s997 + $0xc] sm:$0xf]
        %v1006 = vunpack.c.l.b16 %v998
        %v1007 = vunpack.c.l.b16 %v999
        %v1008 = vunpack.c.l.b16 %v1000
        %v1009 = vunpack.c.l.b16 %v1001
        %v1010 = vpack.c.b16 %v1007, %v1006
        %v1011 = vpack.c.b16 %v1009, %v1008
        %v1015 = vsel %vm425, %v990, 0
        %v1018 = vsel %vm425, %v991, 0
        %v1021 = vsel %vm425, %v992, 0
        %v1024 = vsel %vm425, %v993, 0
        %v1027 = vsel %vm425, %v994, 0
        %v1030 = vsel %vm425, %v995, 0
        %v1033 = vsel %vm425, %v996, 0
        %1035 = vmatprep.subr.bf16.mxu0 0
        %1036 = vmatpush1.bf16.msra.mxu0 %v1010
        %1037 = vmatprep.subr.bf16.mxu0 0
        %1038 = vmatpush1.bf16.msra.mxu0 %v1011
        %1039 = vmatprep.subr.bf16.mxu0 0
        %1040 = vmatpush1.bf16.msra.mxu0 0
        %1041 = vmatprep.subr.bf16.mxu0 0
        %1042 = vmatpush1.bf16.msra.mxu0 0
        %1043 = vmatprep.subr.bf16.mxu0 0
        %1044 = vmatpush1.bf16.msra.mxu0 0
        %1045 = vmatprep.subr.bf16.mxu0 0
        %1046 = vmatpush1.bf16.msra.mxu0 0
        %1047 = vmatprep.subr.bf16.mxu0 0
        %1048 = vmatpush1.bf16.msra.mxu0 0
        %1049 = vmatprep.subr.bf16.mxu0 0
        %1050 = vmatpush1.bf16.msra.mxu0 0
        %1051 = vmatprep.subr.bf16.mxu0 0
        %1052 = vmatpush1.bf16.msra.mxu0 0
        %1053 = vmatprep.subr.bf16.mxu0 0
        %1054 = vmatpush1.bf16.msra.mxu0 0
        %1055 = vmatprep.subr.bf16.mxu0 0
        %1056 = vmatpush1.bf16.msra.mxu0 0
        %1057 = vmatprep.subr.bf16.mxu0 0
        %1058 = vmatpush1.bf16.msra.mxu0 0
        %1059 = vmatprep.subr.bf16.mxu0 0
        %1060 = vmatpush1.bf16.msra.mxu0 0
        %1061 = vmatprep.subr.bf16.mxu0 0
        %1062 = vmatpush1.bf16.msra.mxu0 0
        %1063 = vmatprep.subr.bf16.mxu0 0
        %1064 = vmatpush1.bf16.msra.mxu0 0
        %1065 = vmatprep.subr.bf16.mxu0 0
        %1066 = vmatpush1.bf16.msra.mxu0 0
        %1067 = vmatprep.mubr.bf16.mxu0 0
        %1068 = vmatmul.mubr.bf16.gmra.mrb[0].mxu0 %v1015
        %v1069 = vpop.f32.mrb[0].mxu0
        %v1070 = vadd.f32 0.0, %v1069
        %v1071 = vpop.f32.mrb[0].mxu0
        %v1072 = vpop.f32.mrb[0].mxu0
        %v1073 = vadd.f32 0.0, %v1072
        %v1074 = vpop.f32.mrb[0].mxu0
        %1075 = vmatprep.mubr.bf16.mxu0 0
        %1076 = vmatmul.mubr.bf16.gmra.mrb[0].mxu0 %v1018
        %v1077 = vpop.f32.mrb[0].mxu0
        %v1078 = vadd.f32 0.0, %v1077
        %v1079 = vpop.f32.mrb[0].mxu0
        %v1080 = vpop.f32.mrb[0].mxu0
        %v1081 = vadd.f32 0.0, %v1080
        %v1082 = vpop.f32.mrb[0].mxu0
        %1083 = vmatprep.mubr.bf16.mxu0 0
        %1084 = vmatmul.mubr.bf16.gmra.mrb[0].mxu0 %v1021
        %v1085 = vpop.f32.mrb[0].mxu0
        %v1086 = vadd.f32 0.0, %v1085
        %v1087 = vpop.f32.mrb[0].mxu0
        %v1088 = vpop.f32.mrb[0].mxu0
        %v1089 = vadd.f32 0.0, %v1088
        %v1090 = vpop.f32.mrb[0].mxu0
        %1091 = vmatprep.mubr.bf16.mxu0 0
        %1092 = vmatmul.mubr.bf16.gmra.mrb[0].mxu0 %v1024
        %v1093 = vpop.f32.mrb[0].mxu0
        %v1094 = vadd.f32 0.0, %v1093
        %v1095 = vpop.f32.mrb[0].mxu0
        %v1096 = vpop.f32.mrb[0].mxu0
        %v1097 = vadd.f32 0.0, %v1096
        %v1098 = vpop.f32.mrb[0].mxu0
        %1099 = vmatprep.mubr.bf16.mxu0 0
        %1100 = vmatmul.mubr.bf16.gmra.mrb[0].mxu0 %v1027
        %v1101 = vpop.f32.mrb[0].mxu0
        %v1102 = vadd.f32 0.0, %v1101
        %v1103 = vpop.f32.mrb[0].mxu0
        %v1104 = vpop.f32.mrb[0].mxu0
        %v1105 = vadd.f32 0.0, %v1104
        %v1106 = vpop.f32.mrb[0].mxu0
        %1107 = vmatprep.mubr.bf16.mxu0 0
        %1108 = vmatmul.mubr.bf16.gmra.mrb[0].mxu0 %v1030
        %v1109 = vpop.f32.mrb[0].mxu0
        %v1110 = vadd.f32 0.0, %v1109
        %v1111 = vpop.f32.mrb[0].mxu0
        %v1112 = vpop.f32.mrb[0].mxu0
        %v1113 = vadd.f32 0.0, %v1112
        %v1114 = vpop.f32.mrb[0].mxu0
        %1115 = vmatprep.mubr.bf16.mxu0 0
        %1116 = vmatmul.mubr.bf16.gmra.mrb[0].mxu0 %v1033
        %v1117 = vpop.f32.mrb[0].mxu0
        %v1118 = vadd.f32 0.0, %v1117
        %v1119 = vpop.f32.mrb[0].mxu0
        %v1120 = vpop.f32.mrb[0].mxu0
        %v1121 = vpop.f32.mrb[0].mxu0
        %1122 = vdwg.mxu0
        %v1127 = vunpack.c.l.b16 %v973
        %v1128 = vunpack.c.l.b16 %v974
        %v1129 = vunpack.c.l.b16 %v975
        %v1130 = vunpack.c.l.b16 %v976
        %v1131 = vpack.c.b16 %v1128, %v1127
        %v1132 = vpack.c.b16 %v1130, %v1129
        %v1136 = vsel %vm425, %v966, 0
        %v1139 = vsel %vm425, %v967, 0
        %v1142 = vsel %vm425, %v968, 0
        %v1145 = vsel %vm425, %v969, 0
        %v1148 = vsel %vm425, %v970, 0
        %v1151 = vsel %vm425, %v971, 0
        %v1154 = vsel %vm425, %v972, 0
        %1156 = vmatprep.subr.bf16.mxu0 0
        %1157 = vmatpush1.bf16.msra.mxu0 %v1131
        %1158 = vmatprep.subr.bf16.mxu0 0
        %1159 = vmatpush1.bf16.msra.mxu0 %v1132
        %1160 = vmatprep.subr.bf16.mxu0 0
        %1161 = vmatpush1.bf16.msra.mxu0 0
        %1162 = vmatprep.subr.bf16.mxu0 0
        %1163 = vmatpush1.bf16.msra.mxu0 0
        %1164 = vmatprep.subr.bf16.mxu0 0
        %1165 = vmatpush1.bf16.msra.mxu0 0
        %1166 = vmatprep.subr.bf16.mxu0 0
        %1167 = vmatpush1.bf16.msra.mxu0 0
        %1168 = vmatprep.subr.bf16.mxu0 0
        %1169 = vmatpush1.bf16.msra.mxu0 0
        %1170 = vmatprep.subr.bf16.mxu0 0
        %1171 = vmatpush1.bf16.msra.mxu0 0
        %1172 = vmatprep.subr.bf16.mxu0 0
        %1173 = vmatpush1.bf16.msra.mxu0 0
        %1174 = vmatprep.subr.bf16.mxu0 0
        %1175 = vmatpush1.bf16.msra.mxu0 0
        %1176 = vmatprep.subr.bf16.mxu0 0
        %1177 = vmatpush1.bf16.msra.mxu0 0
        %1178 = vmatprep.subr.bf16.mxu0 0
        %1179 = vmatpush1.bf16.msra.mxu0 0
        %1180 = vmatprep.subr.bf16.mxu0 0
        %1181 = vmatpush1.bf16.msra.mxu0 0
        %1182 = vmatprep.subr.bf16.mxu0 0
        %1183 = vmatpush1.bf16.msra.mxu0 0
        %1184 = vmatprep.subr.bf16.mxu0 0
        %1185 = vmatpush1.bf16.msra.mxu0 0
        %1186 = vmatprep.subr.bf16.mxu0 0
        %1187 = vmatpush1.bf16.msra.mxu0 0
        %1188 = vmatprep.mubr.bf16.mxu0 0
        %1189 = vmatmul.mubr.bf16.gmra.mrb[0].mxu0 %v1136
        %v1190 = vpop.f32.mrb[0].mxu0
        %v1191 = vadd.f32 %v1070, %v1190
        %v1192 = vpop.f32.mrb[0].mxu0
        %v1193 = vpop.f32.mrb[0].mxu0
        %v1194 = vadd.f32 %v1073, %v1193
        %v1195 = vpop.f32.mrb[0].mxu0
        %1196 = vmatprep.mubr.bf16.mxu0 0
        %1197 = vmatmul.mubr.bf16.gmra.mrb[0].mxu0 %v1139
        %v1198 = vpop.f32.mrb[0].mxu0
        %v1199 = vadd.f32 %v1078, %v1198
        %v1200 = vpop.f32.mrb[0].mxu0
        %v1201 = vpop.f32.mrb[0].mxu0
        %v1202 = vadd.f32 %v1081, %v1201
        %v1203 = vpop.f32.mrb[0].mxu0
        %1204 = vmatprep.mubr.bf16.mxu0 0
        %1205 = vmatmul.mubr.bf16.gmra.mrb[0].mxu0 %v1142
        %v1206 = vpop.f32.mrb[0].mxu0
        %v1207 = vadd.f32 %v1086, %v1206
        %v1208 = vpop.f32.mrb[0].mxu0
        %v1209 = vpop.f32.mrb[0].mxu0
        %v1210 = vadd.f32 %v1089, %v1209
        %v1211 = vpop.f32.mrb[0].mxu0
        %1212 = vmatprep.mubr.bf16.mxu0 0
        %1213 = vmatmul.mubr.bf16.gmra.mrb[0].mxu0 %v1145
        %v1214 = vpop.f32.mrb[0].mxu0
        %v1215 = vadd.f32 %v1094, %v1214
        %v1216 = vpop.f32.mrb[0].mxu0
        %v1217 = vpop.f32.mrb[0].mxu0
        %v1218 = vadd.f32 %v1097, %v1217
        %v1219 = vpop.f32.mrb[0].mxu0
        %1220 = vmatprep.mubr.bf16.mxu0 0
        %1221 = vmatmul.mubr.bf16.gmra.mrb[0].mxu0 %v1148
        %v1222 = vpop.f32.mrb[0].mxu0
        %v1223 = vadd.f32 %v1102, %v1222
        %v1224 = vpop.f32.mrb[0].mxu0
        %v1225 = vpop.f32.mrb[0].mxu0
        %v1226 = vadd.f32 %v1105, %v1225
        %v1227 = vpop.f32.mrb[0].mxu0
        %1228 = vmatprep.mubr.bf16.mxu0 0
        %1229 = vmatmul.mubr.bf16.gmra.mrb[0].mxu0 %v1151
        %v1230 = vpop.f32.mrb[0].mxu0
        %v1231 = vadd.f32 %v1110, %v1230
        %v1232 = vpop.f32.mrb[0].mxu0
        %v1233 = vpop.f32.mrb[0].mxu0
        %v1234 = vadd.f32 %v1113, %v1233
        %v1235 = vpop.f32.mrb[0].mxu0
        %1236 = vmatprep.mubr.bf16.mxu0 0
        %1237 = vmatmul.mubr.bf16.gmra.mrb[0].mxu0 %v1154
        %v1238 = vpop.f32.mrb[0].mxu0
        %v1239 = vadd.f32 %v1118, %v1238
        %v1240 = vpop.f32.mrb[0].mxu0
        %v1241 = vpop.f32.mrb[0].mxu0
        %v1242 = vpop.f32.mrb[0].mxu0
        %1243 = vdwg.mxu0
        %v1244 = vld [vmem:[#allocation3 + $0x7] sm:$0xff]
        %v1245 = vld [vmem:[#allocation3 + $0xf] sm:$0xff]
        %v1246 = vld [vmem:[#allocation3 + $0x17] sm:$0xff]
        %v1247 = vld [vmem:[#allocation3 + $0x1f] sm:$0xff]
        %v1248 = vld [vmem:[#allocation3 + $0x27] sm:$0xff]
        %v1249 = vld [vmem:[#allocation3 + $0x2f] sm:$0xff]
        %v1250 = vld [vmem:[#allocation3 + $0x37] sm:$0xff]
        %v1251 = vld [vmem:[#allocation3 + $0x3f] sm:$0xff]
        %v1252 = vld [vmem:[#allocation3 + $0x47] sm:$0xff]
        %v1253 = vld [vmem:[#allocation3 + $0x4f] sm:$0xff]
        %v1254 = vld [vmem:[#allocation3 + $0x57] sm:$0xff]
        %v1255 = vld [vmem:[#allocation3 + $0x5f] sm:$0xff]
        %v1256 = vld [vmem:[#allocation3 + $0x67] sm:$0xf]
        %v1257 = vpack.c.bf16 %v1245, %v1244
        %v1258 = vpack.c.bf16 %v1247, %v1246
        %v1259 = vpack.c.bf16 %v1249, %v1248
        %v1260 = vpack.c.bf16 %v1251, %v1250
        %v1261 = vpack.c.bf16 %v1253, %v1252
        %v1262 = vpack.c.bf16 %v1255, %v1254
        %v1263 = vpack.c.bf16 %v1256, %v1256
        %s1264 = scalar_lea.vmem [#allocation11], 32
        %v1265 = vld [vmem:[%s1264] sm:$0xf]
        %v1266 = vld [vmem:[%s1264 + $0x4] sm:$0xf]
        %v1267 = vld [vmem:[%s1264 + $0x8] sm:$0xf]
        %v1268 = vld [vmem:[%s1264 + $0xc] sm:$0xf]
        %v1273 = vunpack.c.l.b16 %v1265
        %v1274 = vunpack.c.l.b16 %v1266
        %v1275 = vunpack.c.l.b16 %v1267
        %v1276 = vunpack.c.l.b16 %v1268
        %v1277 = vpack.c.b16 %v1274, %v1273
        %v1278 = vpack.c.b16 %v1276, %v1275
        %v1282 = vsel %vm425, %v1257, 0
        %v1285 = vsel %vm425, %v1258, 0
        %v1288 = vsel %vm425, %v1259, 0
        %v1291 = vsel %vm425, %v1260, 0
        %v1294 = vsel %vm425, %v1261, 0
        %v1297 = vsel %vm425, %v1262, 0
        %v1300 = vsel %vm425, %v1263, 0
        %1302 = vmatprep.subr.bf16.mxu0 0
        %1303 = vmatpush1.bf16.msra.mxu0 %v1277
        %1304 = vmatprep.subr.bf16.mxu0 0
        %1305 = vmatpush1.bf16.msra.mxu0 %v1278
        %1306 = vmatprep.subr.bf16.mxu0 0
        %1307 = vmatpush1.bf16.msra.mxu0 0
        %1308 = vmatprep.subr.bf16.mxu0 0
        %1309 = vmatpush1.bf16.msra.mxu0 0
        %1310 = vmatprep.subr.bf16.mxu0 0
        %1311 = vmatpush1.bf16.msra.mxu0 0
        %1312 = vmatprep.subr.bf16.mxu0 0
        %1313 = vmatpush1.bf16.msra.mxu0 0
        %1314 = vmatprep.subr.bf16.mxu0 0
        %1315 = vmatpush1.bf16.msra.mxu0 0
        %1316 = vmatprep.subr.bf16.mxu0 0
        %1317 = vmatpush1.bf16.msra.mxu0 0
        %1318 = vmatprep.subr.bf16.mxu0 0
        %1319 = vmatpush1.bf16.msra.mxu0 0
        %1320 = vmatprep.subr.bf16.mxu0 0
        %1321 = vmatpush1.bf16.msra.mxu0 0
        %1322 = vmatprep.subr.bf16.mxu0 0
        %1323 = vmatpush1.bf16.msra.mxu0 0
        %1324 = vmatprep.subr.bf16.mxu0 0
        %1325 = vmatpush1.bf16.msra.mxu0 0
        %1326 = vmatprep.subr.bf16.mxu0 0
        %1327 = vmatpush1.bf16.msra.mxu0 0
        %1328 = vmatprep.subr.bf16.mxu0 0
        %1329 = vmatpush1.bf16.msra.mxu0 0
        %1330 = vmatprep.subr.bf16.mxu0 0
        %1331 = vmatpush1.bf16.msra.mxu0 0
        %1332 = vmatprep.subr.bf16.mxu0 0
        %1333 = vmatpush1.bf16.msra.mxu0 0
        %1334 = vmatprep.mubr.bf16.mxu0 0
        %1335 = vmatmul.mubr.bf16.gmra.mrb[0].mxu0 %v1282
        %v1336 = vpop.f32.mrb[0].mxu0
        %v1337 = vadd.f32 0.0, %v1336
        %v1338 = vpop.f32.mrb[0].mxu0
        %v1339 = vpop.f32.mrb[0].mxu0
        %v1340 = vadd.f32 0.0, %v1339
        %v1341 = vpop.f32.mrb[0].mxu0
        %1342 = vmatprep.mubr.bf16.mxu0 0
        %1343 = vmatmul.mubr.bf16.gmra.mrb[0].mxu0 %v1285
        %v1344 = vpop.f32.mrb[0].mxu0
        %v1345 = vadd.f32 0.0, %v1344
        %v1346 = vpop.f32.mrb[0].mxu0
        %v1347 = vpop.f32.mrb[0].mxu0
        %v1348 = vadd.f32 0.0, %v1347
        %v1349 = vpop.f32.mrb[0].mxu0
        %1350 = vmatprep.mubr.bf16.mxu0 0
        %1351 = vmatmul.mubr.bf16.gmra.mrb[0].mxu0 %v1288
        %v1352 = vpop.f32.mrb[0].mxu0
        %v1353 = vadd.f32 0.0, %v1352
        %v1354 = vpop.f32.mrb[0].mxu0
        %v1355 = vpop.f32.mrb[0].mxu0
        %v1356 = vadd.f32 0.0, %v1355
        %v1357 = vpop.f32.mrb[0].mxu0
        %1358 = vmatprep.mubr.bf16.mxu0 0
        %1359 = vmatmul.mubr.bf16.gmra.mrb[0].mxu0 %v1291
        %v1360 = vpop.f32.mrb[0].mxu0
        %v1361 = vadd.f32 0.0, %v1360
        %v1362 = vpop.f32.mrb[0].mxu0
        %v1363 = vpop.f32.mrb[0].mxu0
        %v1364 = vadd.f32 0.0, %v1363
        %v1365 = vpop.f32.mrb[0].mxu0
        %1366 = vmatprep.mubr.bf16.mxu0 0
        %1367 = vmatmul.mubr.bf16.gmra.mrb[0].mxu0 %v1294
        %v1368 = vpop.f32.mrb[0].mxu0
        %v1369 = vadd.f32 0.0, %v1368
        %v1370 = vpop.f32.mrb[0].mxu0
        %v1371 = vpop.f32.mrb[0].mxu0
        %v1372 = vadd.f32 0.0, %v1371
        %v1373 = vpop.f32.mrb[0].mxu0
        %1374 = vmatprep.mubr.bf16.mxu0 0
        %1375 = vmatmul.mubr.bf16.gmra.mrb[0].mxu0 %v1297
        %v1376 = vpop.f32.mrb[0].mxu0
        %v1377 = vadd.f32 0.0, %v1376
        %v1378 = vpop.f32.mrb[0].mxu0
        %v1379 = vpop.f32.mrb[0].mxu0
        %v1380 = vadd.f32 0.0, %v1379
        %v1381 = vpop.f32.mrb[0].mxu0
        %1382 = vmatprep.mubr.bf16.mxu0 0
        %1383 = vmatmul.mubr.bf16.gmra.mrb[0].mxu0 %v1300
        %v1384 = vpop.f32.mrb[0].mxu0
        %v1385 = vadd.f32 0.0, %v1384
        %v1386 = vpop.f32.mrb[0].mxu0
        %v1387 = vpop.f32.mrb[0].mxu0
        %v1388 = vpop.f32.mrb[0].mxu0
        %1389 = vdwg.mxu0
        %v1390 = vadd.f32 %v1191, %v1337
        %v1391 = vadd.f32 %v1194, %v1340
        %v1392 = vadd.f32 %v1199, %v1345
        %v1393 = vadd.f32 %v1202, %v1348
        %v1394 = vadd.f32 %v1207, %v1353
        %v1395 = vadd.f32 %v1210, %v1356
        %v1396 = vadd.f32 %v1215, %v1361
        %v1397 = vadd.f32 %v1218, %v1364
        %v1398 = vadd.f32 %v1223, %v1369
        %v1399 = vadd.f32 %v1226, %v1372
        %v1400 = vadd.f32 %v1231, %v1377
        %v1401 = vadd.f32 %v1234, %v1380
        %v1402 = vadd.f32 %v1239, %v1385
        %v1403 = vld [vmem:[#allocation3 + $0xf] sm:$0xff]
        %v1404 = vld [vmem:[#allocation3 + $0x17] sm:$0xff]
        %v1405 = vld [vmem:[#allocation3 + $0x1f] sm:$0xff]
        %v1406 = vld [vmem:[#allocation3 + $0x27] sm:$0xff]
        %v1407 = vld [vmem:[#allocation3 + $0x2f] sm:$0xff]
        %v1408 = vld [vmem:[#allocation3 + $0x37] sm:$0xff]
        %v1409 = vld [vmem:[#allocation3 + $0x3f] sm:$0xff]
        %v1410 = vld [vmem:[#allocation3 + $0x47] sm:$0xff]
        %v1411 = vld [vmem:[#allocation3 + $0x4f] sm:$0xff]
        %v1412 = vld [vmem:[#allocation3 + $0x57] sm:$0xff]
        %v1413 = vld [vmem:[#allocation3 + $0x5f] sm:$0xff]
        %v1414 = vld [vmem:[#allocation3 + $0x67] sm:$0xff]
        %v1415 = vld [vmem:[#allocation3 + $0x6f] sm:$0xf]
        %v1416 = vpack.c.bf16 %v1404, %v1403
        %v1417 = vpack.c.bf16 %v1406, %v1405
        %v1418 = vpack.c.bf16 %v1408, %v1407
        %v1419 = vpack.c.bf16 %v1410, %v1409
        %v1420 = vpack.c.bf16 %v1412, %v1411
        %v1421 = vpack.c.bf16 %v1414, %v1413
        %v1422 = vpack.c.bf16 %v1415, %v1415
        %s1423 = scalar_lea.vmem [#allocation11], 48
        %v1424 = vld [vmem:[%s1423] sm:$0xf]
        %v1425 = vld [vmem:[%s1423 + $0x4] sm:$0xf]
        %v1426 = vld [vmem:[%s1423 + $0x8] sm:$0xf]
        %v1427 = vld [vmem:[%s1423 + $0xc] sm:$0xf]
        %v1432 = vunpack.c.l.b16 %v1424
        %v1433 = vunpack.c.l.b16 %v1425
        %v1434 = vunpack.c.l.b16 %v1426
        %v1435 = vunpack.c.l.b16 %v1427
        %v1436 = vpack.c.b16 %v1433, %v1432
        %v1437 = vpack.c.b16 %v1435, %v1434
        %v1441 = vsel %vm425, %v1416, 0
        %v1444 = vsel %vm425, %v1417, 0
        %v1447 = vsel %vm425, %v1418, 0
        %v1450 = vsel %vm425, %v1419, 0
        %v1453 = vsel %vm425, %v1420, 0
        %v1456 = vsel %vm425, %v1421, 0
        %v1459 = vsel %vm425, %v1422, 0
        %1461 = vmatprep.subr.bf16.mxu0 0
        %1462 = vmatpush1.bf16.msra.mxu0 %v1436
        %1463 = vmatprep.subr.bf16.mxu0 0
        %1464 = vmatpush1.bf16.msra.mxu0 %v1437
        %1465 = vmatprep.subr.bf16.mxu0 0
        %1466 = vmatpush1.bf16.msra.mxu0 0
        %1467 = vmatprep.subr.bf16.mxu0 0
        %1468 = vmatpush1.bf16.msra.mxu0 0
        %1469 = vmatprep.subr.bf16.mxu0 0
        %1470 = vmatpush1.bf16.msra.mxu0 0
        %1471 = vmatprep.subr.bf16.mxu0 0
        %1472 = vmatpush1.bf16.msra.mxu0 0
        %1473 = vmatprep.subr.bf16.mxu0 0
        %1474 = vmatpush1.bf16.msra.mxu0 0
        %1475 = vmatprep.subr.bf16.mxu0 0
        %1476 = vmatpush1.bf16.msra.mxu0 0
        %1477 = vmatprep.subr.bf16.mxu0 0
        %1478 = vmatpush1.bf16.msra.mxu0 0
        %1479 = vmatprep.subr.bf16.mxu0 0
        %1480 = vmatpush1.bf16.msra.mxu0 0
        %1481 = vmatprep.subr.bf16.mxu0 0
        %1482 = vmatpush1.bf16.msra.mxu0 0
        %1483 = vmatprep.subr.bf16.mxu0 0
        %1484 = vmatpush1.bf16.msra.mxu0 0
        %1485 = vmatprep.subr.bf16.mxu0 0
        %1486 = vmatpush1.bf16.msra.mxu0 0
        %1487 = vmatprep.subr.bf16.mxu0 0
        %1488 = vmatpush1.bf16.msra.mxu0 0
        %1489 = vmatprep.subr.bf16.mxu0 0
        %1490 = vmatpush1.bf16.msra.mxu0 0
        %1491 = vmatprep.subr.bf16.mxu0 0
        %1492 = vmatpush1.bf16.msra.mxu0 0
        %1493 = vmatprep.mubr.bf16.mxu0 0
        %1494 = vmatmul.mubr.bf16.gmra.mrb[0].mxu0 %v1441
        %v1495 = vpop.f32.mrb[0].mxu0
        %v1496 = vadd.f32 0.0, %v1495
        %v1497 = vpop.f32.mrb[0].mxu0
        %v1498 = vpop.f32.mrb[0].mxu0
        %v1499 = vadd.f32 0.0, %v1498
        %v1500 = vpop.f32.mrb[0].mxu0
        %1501 = vmatprep.mubr.bf16.mxu0 0
        %1502 = vmatmul.mubr.bf16.gmra.mrb[0].mxu0 %v1444
        %v1503 = vpop.f32.mrb[0].mxu0
        %v1504 = vadd.f32 0.0, %v1503
        %v1505 = vpop.f32.mrb[0].mxu0
        %v1506 = vpop.f32.mrb[0].mxu0
        %v1507 = vadd.f32 0.0, %v1506
        %v1508 = vpop.f32.mrb[0].mxu0
        %1509 = vmatprep.mubr.bf16.mxu0 0
        %1510 = vmatmul.mubr.bf16.gmra.mrb[0].mxu0 %v1447
        %v1511 = vpop.f32.mrb[0].mxu0
        %v1512 = vadd.f32 0.0, %v1511
        %v1513 = vpop.f32.mrb[0].mxu0
        %v1514 = vpop.f32.mrb[0].mxu0
        %v1515 = vadd.f32 0.0, %v1514
        %v1516 = vpop.f32.mrb[0].mxu0
        %1517 = vmatprep.mubr.bf16.mxu0 0
        %1518 = vmatmul.mubr.bf16.gmra.mrb[0].mxu0 %v1450
        %v1519 = vpop.f32.mrb[0].mxu0
        %v1520 = vadd.f32 0.0, %v1519
        %v1521 = vpop.f32.mrb[0].mxu0
        %v1522 = vpop.f32.mrb[0].mxu0
        %v1523 = vadd.f32 0.0, %v1522
        %v1524 = vpop.f32.mrb[0].mxu0
        %1525 = vmatprep.mubr.bf16.mxu0 0
        %1526 = vmatmul.mubr.bf16.gmra.mrb[0].mxu0 %v1453
        %v1527 = vpop.f32.mrb[0].mxu0
        %v1528 = vadd.f32 0.0, %v1527
        %v1529 = vpop.f32.mrb[0].mxu0
        %v1530 = vpop.f32.mrb[0].mxu0
        %v1531 = vadd.f32 0.0, %v1530
        %v1532 = vpop.f32.mrb[0].mxu0
        %1533 = vmatprep.mubr.bf16.mxu0 0
        %1534 = vmatmul.mubr.bf16.gmra.mrb[0].mxu0 %v1456
        %v1535 = vpop.f32.mrb[0].mxu0
        %v1536 = vadd.f32 0.0, %v1535
        %v1537 = vpop.f32.mrb[0].mxu0
        %v1538 = vpop.f32.mrb[0].mxu0
        %v1539 = vadd.f32 0.0, %v1538
        %v1540 = vpop.f32.mrb[0].mxu0
        %1541 = vmatprep.mubr.bf16.mxu0 0
        %1542 = vmatmul.mubr.bf16.gmra.mrb[0].mxu0 %v1459
        %v1543 = vpop.f32.mrb[0].mxu0
        %v1544 = vadd.f32 0.0, %v1543
        %v1545 = vpop.f32.mrb[0].mxu0
        %v1546 = vpop.f32.mrb[0].mxu0
        %v1547 = vpop.f32.mrb[0].mxu0
        %1548 = vdwg.mxu0
        %v1549 = vadd.f32 %v1390, %v1496
        %v1550 = vadd.f32 %v1391, %v1499
        %v1551 = vadd.f32 %v1392, %v1504
        %v1552 = vadd.f32 %v1393, %v1507
        %v1553 = vadd.f32 %v1394, %v1512
        %v1554 = vadd.f32 %v1395, %v1515
        %v1555 = vadd.f32 %v1396, %v1520
        %v1556 = vadd.f32 %v1397, %v1523
        %v1557 = vadd.f32 %v1398, %v1528
        %v1558 = vadd.f32 %v1399, %v1531
        %v1559 = vadd.f32 %v1400, %v1536
        %v1560 = vadd.f32 %v1401, %v1539
        %v1561 = vadd.f32 %v1402, %v1544
        %v1562 = vld [vmem:[#allocation3 + $0x10] sm:$0xff]
        %v1563 = vld [vmem:[#allocation3 + $0x18] sm:$0xff]
        %v1564 = vld [vmem:[#allocation3 + $0x20] sm:$0xff]
        %v1565 = vld [vmem:[#allocation3 + $0x28] sm:$0xff]
        %v1566 = vld [vmem:[#allocation3 + $0x30] sm:$0xff]
        %v1567 = vld [vmem:[#allocation3 + $0x38] sm:$0xff]
        %v1568 = vld [vmem:[#allocation3 + $0x40] sm:$0xff]
        %v1569 = vld [vmem:[#allocation3 + $0x48] sm:$0xff]
        %v1570 = vld [vmem:[#allocation3 + $0x50] sm:$0xff]
        %v1571 = vld [vmem:[#allocation3 + $0x58] sm:$0xff]
        %v1572 = vld [vmem:[#allocation3 + $0x60] sm:$0xff]
        %v1573 = vld [vmem:[#allocation3 + $0x68] sm:$0xff]
        %v1574 = vld [vmem:[#allocation3 + $0x70] sm:$0xf]
        %v1575 = vpack.c.bf16 %v1563, %v1562
        %v1576 = vpack.c.bf16 %v1565, %v1564
        %v1577 = vpack.c.bf16 %v1567, %v1566
        %v1578 = vpack.c.bf16 %v1569, %v1568
        %v1579 = vpack.c.bf16 %v1571, %v1570
        %v1580 = vpack.c.bf16 %v1573, %v1572
        %v1581 = vpack.c.bf16 %v1574, %v1574
        %s1582 = scalar_lea.vmem [#allocation11], 64
        %v1583 = vld [vmem:[%s1582] sm:$0xf]
        %v1584 = vld [vmem:[%s1582 + $0x4] sm:$0xf]
        %v1585 = vld [vmem:[%s1582 + $0x8] sm:$0xf]
        %v1586 = vld [vmem:[%s1582 + $0xc] sm:$0xf]
        %v1591 = vunpack.c.l.b16 %v1583
        %v1592 = vunpack.c.l.b16 %v1584
        %v1593 = vunpack.c.l.b16 %v1585
        %v1594 = vunpack.c.l.b16 %v1586
        %v1595 = vpack.c.b16 %v1592, %v1591
        %v1596 = vpack.c.b16 %v1594, %v1593
        %v1600 = vsel %vm425, %v1575, 0
        %v1603 = vsel %vm425, %v1576, 0
        %v1606 = vsel %vm425, %v1577, 0
        %v1609 = vsel %vm425, %v1578, 0
        %v1612 = vsel %vm425, %v1579, 0
        %v1615 = vsel %vm425, %v1580, 0
        %v1618 = vsel %vm425, %v1581, 0
        %1620 = vmatprep.subr.bf16.mxu0 0
        %1621 = vmatpush1.bf16.msra.mxu0 %v1595
        %1622 = vmatprep.subr.bf16.mxu0 0
        %1623 = vmatpush1.bf16.msra.mxu0 %v1596
        %1624 = vmatprep.subr.bf16.mxu0 0
        %1625 = vmatpush1.bf16.msra.mxu0 0
        %1626 = vmatprep.subr.bf16.mxu0 0
        %1627 = vmatpush1.bf16.msra.mxu0 0
        %1628 = vmatprep.subr.bf16.mxu0 0
        %1629 = vmatpush1.bf16.msra.mxu0 0
        %1630 = vmatprep.subr.bf16.mxu0 0
        %1631 = vmatpush1.bf16.msra.mxu0 0
        %1632 = vmatprep.subr.bf16.mxu0 0
        %1633 = vmatpush1.bf16.msra.mxu0 0
        %1634 = vmatprep.subr.bf16.mxu0 0
        %1635 = vmatpush1.bf16.msra.mxu0 0
        %1636 = vmatprep.subr.bf16.mxu0 0
        %1637 = vmatpush1.bf16.msra.mxu0 0
        %1638 = vmatprep.subr.bf16.mxu0 0
        %1639 = vmatpush1.bf16.msra.mxu0 0
        %1640 = vmatprep.subr.bf16.mxu0 0
        %1641 = vmatpush1.bf16.msra.mxu0 0
        %1642 = vmatprep.subr.bf16.mxu0 0
        %1643 = vmatpush1.bf16.msra.mxu0 0
        %1644 = vmatprep.subr.bf16.mxu0 0
        %1645 = vmatpush1.bf16.msra.mxu0 0
        %1646 = vmatprep.subr.bf16.mxu0 0
        %1647 = vmatpush1.bf16.msra.mxu0 0
        %1648 = vmatprep.subr.bf16.mxu0 0
        %1649 = vmatpush1.bf16.msra.mxu0 0
        %1650 = vmatprep.subr.bf16.mxu0 0
        %1651 = vmatpush1.bf16.msra.mxu0 0
        %1652 = vmatprep.mubr.bf16.mxu0 0
        %1653 = vmatmul.mubr.bf16.gmra.mrb[0].mxu0 %v1600
        %v1654 = vpop.f32.mrb[0].mxu0
        %v1655 = vadd.f32 0.0, %v1654
        %v1656 = vpop.f32.mrb[0].mxu0
        %v1657 = vpop.f32.mrb[0].mxu0
        %v1658 = vadd.f32 0.0, %v1657
        %v1659 = vpop.f32.mrb[0].mxu0
        %1660 = vmatprep.mubr.bf16.mxu0 0
        %1661 = vmatmul.mubr.bf16.gmra.mrb[0].mxu0 %v1603
        %v1662 = vpop.f32.mrb[0].mxu0
        %v1663 = vadd.f32 0.0, %v1662
        %v1664 = vpop.f32.mrb[0].mxu0
        %v1665 = vpop.f32.mrb[0].mxu0
        %v1666 = vadd.f32 0.0, %v1665
        %v1667 = vpop.f32.mrb[0].mxu0
        %1668 = vmatprep.mubr.bf16.mxu0 0
        %1669 = vmatmul.mubr.bf16.gmra.mrb[0].mxu0 %v1606
        %v1670 = vpop.f32.mrb[0].mxu0
        %v1671 = vadd.f32 0.0, %v1670
        %v1672 = vpop.f32.mrb[0].mxu0
        %v1673 = vpop.f32.mrb[0].mxu0
        %v1674 = vadd.f32 0.0, %v1673
        %v1675 = vpop.f32.mrb[0].mxu0
        %1676 = vmatprep.mubr.bf16.mxu0 0
        %1677 = vmatmul.mubr.bf16.gmra.mrb[0].mxu0 %v1609
        %v1678 = vpop.f32.mrb[0].mxu0
        %v1679 = vadd.f32 0.0, %v1678
        %v1680 = vpop.f32.mrb[0].mxu0
        %v1681 = vpop.f32.mrb[0].mxu0
        %v1682 = vadd.f32 0.0, %v1681
        %v1683 = vpop.f32.mrb[0].mxu0
        %1684 = vmatprep.mubr.bf16.mxu0 0
        %1685 = vmatmul.mubr.bf16.gmra.mrb[0].mxu0 %v1612
        %v1686 = vpop.f32.mrb[0].mxu0
        %v1687 = vadd.f32 0.0, %v1686
        %v1688 = vpop.f32.mrb[0].mxu0
        %v1689 = vpop.f32.mrb[0].mxu0
        %v1690 = vadd.f32 0.0, %v1689
        %v1691 = vpop.f32.mrb[0].mxu0
        %1692 = vmatprep.mubr.bf16.mxu0 0
        %1693 = vmatmul.mubr.bf16.gmra.mrb[0].mxu0 %v1615
        %v1694 = vpop.f32.mrb[0].mxu0
        %v1695 = vadd.f32 0.0, %v1694
        %v1696 = vpop.f32.mrb[0].mxu0
        %v1697 = vpop.f32.mrb[0].mxu0
        %v1698 = vadd.f32 0.0, %v1697
        %v1699 = vpop.f32.mrb[0].mxu0
        %1700 = vmatprep.mubr.bf16.mxu0 0
        %1701 = vmatmul.mubr.bf16.gmra.mrb[0].mxu0 %v1618
        %v1702 = vpop.f32.mrb[0].mxu0
        %v1703 = vadd.f32 0.0, %v1702
        %v1704 = vpop.f32.mrb[0].mxu0
        %v1705 = vpop.f32.mrb[0].mxu0
        %v1706 = vpop.f32.mrb[0].mxu0
        %1707 = vdwg.mxu0
        %v1708 = vadd.f32 %v1549, %v1655
        %v1709 = vadd.f32 %v1550, %v1658
        %v1710 = vadd.f32 %v1551, %v1663
        %v1711 = vadd.f32 %v1552, %v1666
        %v1712 = vadd.f32 %v1553, %v1671
        %v1713 = vadd.f32 %v1554, %v1674
        %v1714 = vadd.f32 %v1555, %v1679
        %v1715 = vadd.f32 %v1556, %v1682
        %v1716 = vadd.f32 %v1557, %v1687
        %v1717 = vadd.f32 %v1558, %v1690
        %v1718 = vadd.f32 %v1559, %v1695
        %v1719 = vadd.f32 %v1560, %v1698
        %v1720 = vadd.f32 %v1561, %v1703
        %v1721 = vld [vmem:[#allocation3 + $0x11] sm:$0xff]
        %v1722 = vld [vmem:[#allocation3 + $0x19] sm:$0xff]
        %v1723 = vld [vmem:[#allocation3 + $0x21] sm:$0xff]
        %v1724 = vld [vmem:[#allocation3 + $0x29] sm:$0xff]
        %v1725 = vld [vmem:[#allocation3 + $0x31] sm:$0xff]
        %v1726 = vld [vmem:[#allocation3 + $0x39] sm:$0xff]
        %v1727 = vld [vmem:[#allocation3 + $0x41] sm:$0xff]
        %v1728 = vld [vmem:[#allocation3 + $0x49] sm:$0xff]
        %v1729 = vld [vmem:[#allocation3 + $0x51] sm:$0xff]
        %v1730 = vld [vmem:[#allocation3 + $0x59] sm:$0xff]
        %v1731 = vld [vmem:[#allocation3 + $0x61] sm:$0xff]
        %v1732 = vld [vmem:[#allocation3 + $0x69] sm:$0xff]
        %v1733 = vld [vmem:[#allocation3 + $0x71] sm:$0xf]
        %v1734 = vpack.c.bf16 %v1722, %v1721
        %v1735 = vpack.c.bf16 %v1724, %v1723
        %v1736 = vpack.c.bf16 %v1726, %v1725
        %v1737 = vpack.c.bf16 %v1728, %v1727
        %v1738 = vpack.c.bf16 %v1730, %v1729
        %v1739 = vpack.c.bf16 %v1732, %v1731
        %v1740 = vpack.c.bf16 %v1733, %v1733
        %s1741 = scalar_lea.vmem [#allocation11], 80
        %v1742 = vld [vmem:[%s1741] sm:$0xf]
        %v1743 = vld [vmem:[%s1741 + $0x4] sm:$0xf]
        %v1744 = vld [vmem:[%s1741 + $0x8] sm:$0xf]
        %v1745 = vld [vmem:[%s1741 + $0xc] sm:$0xf]
        %v1750 = vunpack.c.l.b16 %v1742
        %v1751 = vunpack.c.l.b16 %v1743
        %v1752 = vunpack.c.l.b16 %v1744
        %v1753 = vunpack.c.l.b16 %v1745
        %v1754 = vpack.c.b16 %v1751, %v1750
        %v1755 = vpack.c.b16 %v1753, %v1752
        %v1759 = vsel %vm425, %v1734, 0
        %v1762 = vsel %vm425, %v1735, 0
        %v1765 = vsel %vm425, %v1736, 0
        %v1768 = vsel %vm425, %v1737, 0
        %v1771 = vsel %vm425, %v1738, 0
        %v1774 = vsel %vm425, %v1739, 0
        %v1777 = vsel %vm425, %v1740, 0
        %1779 = vmatprep.subr.bf16.mxu0 0
        %1780 = vmatpush1.bf16.msra.mxu0 %v1754
        %1781 = vmatprep.subr.bf16.mxu0 0
        %1782 = vmatpush1.bf16.msra.mxu0 %v1755
        %1783 = vmatprep.subr.bf16.mxu0 0
        %1784 = vmatpush1.bf16.msra.mxu0 0
        %1785 = vmatprep.subr.bf16.mxu0 0
        %1786 = vmatpush1.bf16.msra.mxu0 0
        %1787 = vmatprep.subr.bf16.mxu0 0
        %1788 = vmatpush1.bf16.msra.mxu0 0
        %1789 = vmatprep.subr.bf16.mxu0 0
        %1790 = vmatpush1.bf16.msra.mxu0 0
        %1791 = vmatprep.subr.bf16.mxu0 0
        %1792 = vmatpush1.bf16.msra.mxu0 0
        %1793 = vmatprep.subr.bf16.mxu0 0
        %1794 = vmatpush1.bf16.msra.mxu0 0
        %1795 = vmatprep.subr.bf16.mxu0 0
        %1796 = vmatpush1.bf16.msra.mxu0 0
        %1797 = vmatprep.subr.bf16.mxu0 0
        %1798 = vmatpush1.bf16.msra.mxu0 0
        %1799 = vmatprep.subr.bf16.mxu0 0
        %1800 = vmatpush1.bf16.msra.mxu0 0
        %1801 = vmatprep.subr.bf16.mxu0 0
        %1802 = vmatpush1.bf16.msra.mxu0 0
        %1803 = vmatprep.subr.bf16.mxu0 0
        %1804 = vmatpush1.bf16.msra.mxu0 0
        %1805 = vmatprep.subr.bf16.mxu0 0
        %1806 = vmatpush1.bf16.msra.mxu0 0
        %1807 = vmatprep.subr.bf16.mxu0 0
        %1808 = vmatpush1.bf16.msra.mxu0 0
        %1809 = vmatprep.subr.bf16.mxu0 0
        %1810 = vmatpush1.bf16.msra.mxu0 0
        %1811 = vmatprep.mubr.bf16.mxu0 0
        %1812 = vmatmul.mubr.bf16.gmra.mrb[0].mxu0 %v1759
        %v1813 = vpop.f32.mrb[0].mxu0
        %v1814 = vadd.f32 0.0, %v1813
        %v1815 = vpop.f32.mrb[0].mxu0
        %v1816 = vpop.f32.mrb[0].mxu0
        %v1817 = vadd.f32 0.0, %v1816
        %v1818 = vpop.f32.mrb[0].mxu0
        %1819 = vmatprep.mubr.bf16.mxu0 0
        %1820 = vmatmul.mubr.bf16.gmra.mrb[0].mxu0 %v1762
        %v1821 = vpop.f32.mrb[0].mxu0
        %v1822 = vadd.f32 0.0, %v1821
        %v1823 = vpop.f32.mrb[0].mxu0
        %v1824 = vpop.f32.mrb[0].mxu0
        %v1825 = vadd.f32 0.0, %v1824
        %v1826 = vpop.f32.mrb[0].mxu0
        %1827 = vmatprep.mubr.bf16.mxu0 0
        %1828 = vmatmul.mubr.bf16.gmra.mrb[0].mxu0 %v1765
        %v1829 = vpop.f32.mrb[0].mxu0
        %v1830 = vadd.f32 0.0, %v1829
        %v1831 = vpop.f32.mrb[0].mxu0
        %v1832 = vpop.f32.mrb[0].mxu0
        %v1833 = vadd.f32 0.0, %v1832
        %v1834 = vpop.f32.mrb[0].mxu0
        %1835 = vmatprep.mubr.bf16.mxu0 0
        %1836 = vmatmul.mubr.bf16.gmra.mrb[0].mxu0 %v1768
        %v1837 = vpop.f32.mrb[0].mxu0
        %v1838 = vadd.f32 0.0, %v1837
        %v1839 = vpop.f32.mrb[0].mxu0
        %v1840 = vpop.f32.mrb[0].mxu0
        %v1841 = vadd.f32 0.0, %v1840
        %v1842 = vpop.f32.mrb[0].mxu0
        %1843 = vmatprep.mubr.bf16.mxu0 0
        %1844 = vmatmul.mubr.bf16.gmra.mrb[0].mxu0 %v1771
        %v1845 = vpop.f32.mrb[0].mxu0
        %v1846 = vadd.f32 0.0, %v1845
        %v1847 = vpop.f32.mrb[0].mxu0
        %v1848 = vpop.f32.mrb[0].mxu0
        %v1849 = vadd.f32 0.0, %v1848
        %v1850 = vpop.f32.mrb[0].mxu0
        %1851 = vmatprep.mubr.bf16.mxu0 0
        %1852 = vmatmul.mubr.bf16.gmra.mrb[0].mxu0 %v1774
        %v1853 = vpop.f32.mrb[0].mxu0
        %v1854 = vadd.f32 0.0, %v1853
        %v1855 = vpop.f32.mrb[0].mxu0
        %v1856 = vpop.f32.mrb[0].mxu0
        %v1857 = vadd.f32 0.0, %v1856
        %v1858 = vpop.f32.mrb[0].mxu0
        %1859 = vmatprep.mubr.bf16.mxu0 0
        %1860 = vmatmul.mubr.bf16.gmra.mrb[0].mxu0 %v1777
        %v1861 = vpop.f32.mrb[0].mxu0
        %v1862 = vadd.f32 0.0, %v1861
        %v1863 = vpop.f32.mrb[0].mxu0
        %v1864 = vpop.f32.mrb[0].mxu0
        %v1865 = vpop.f32.mrb[0].mxu0
        %1866 = vdwg.mxu0
        %v1867 = vadd.f32 %v1708, %v1814
        %v1868 = vadd.f32 %v1709, %v1817
        %v1869 = vadd.f32 %v1710, %v1822
        %v1870 = vadd.f32 %v1711, %v1825
        %v1871 = vadd.f32 %v1712, %v1830
        %v1872 = vadd.f32 %v1713, %v1833
        %v1873 = vadd.f32 %v1714, %v1838
        %v1874 = vadd.f32 %v1715, %v1841
        %v1875 = vadd.f32 %v1716, %v1846
        %v1876 = vadd.f32 %v1717, %v1849
        %v1877 = vadd.f32 %v1718, %v1854
        %v1878 = vadd.f32 %v1719, %v1857
        %v1879 = vadd.f32 %v1720, %v1862
        %v1880 = vld [vmem:[#allocation3 + $0x19] sm:$0xff]
        %v1881 = vld [vmem:[#allocation3 + $0x21] sm:$0xff]
        %v1882 = vld [vmem:[#allocation3 + $0x29] sm:$0xff]
        %v1883 = vld [vmem:[#allocation3 + $0x31] sm:$0xff]
        %v1884 = vld [vmem:[#allocation3 + $0x39] sm:$0xff]
        %v1885 = vld [vmem:[#allocation3 + $0x41] sm:$0xff]
        %v1886 = vld [vmem:[#allocation3 + $0x49] sm:$0xff]
        %v1887 = vld [vmem:[#allocation3 + $0x51] sm:$0xff]
        %v1888 = vld [vmem:[#allocation3 + $0x59] sm:$0xff]
        %v1889 = vld [vmem:[#allocation3 + $0x61] sm:$0xff]
        %v1890 = vld [vmem:[#allocation3 + $0x69] sm:$0xff]
        %v1891 = vld [vmem:[#allocation3 + $0x71] sm:$0xff]
        %v1892 = vld [vmem:[#allocation3 + $0x79] sm:$0xf]
        %v1893 = vpack.c.bf16 %v1881, %v1880
        %v1894 = vpack.c.bf16 %v1883, %v1882
        %v1895 = vpack.c.bf16 %v1885, %v1884
        %v1896 = vpack.c.bf16 %v1887, %v1886
        %v1897 = vpack.c.bf16 %v1889, %v1888
        %v1898 = vpack.c.bf16 %v1891, %v1890
        %v1899 = vpack.c.bf16 %v1892, %v1892
        %s1900 = scalar_lea.vmem [#allocation11], 96
        %v1901 = vld [vmem:[%s1900] sm:$0xf]
        %v1902 = vld [vmem:[%s1900 + $0x4] sm:$0xf]
        %v1903 = vld [vmem:[%s1900 + $0x8] sm:$0xf]
        %v1904 = vld [vmem:[%s1900 + $0xc] sm:$0xf]
        %v1909 = vunpack.c.l.b16 %v1901
        %v1910 = vunpack.c.l.b16 %v1902
        %v1911 = vunpack.c.l.b16 %v1903
        %v1912 = vunpack.c.l.b16 %v1904
        %v1913 = vpack.c.b16 %v1910, %v1909
        %v1914 = vpack.c.b16 %v1912, %v1911
        %v1918 = vsel %vm425, %v1893, 0
        %v1921 = vsel %vm425, %v1894, 0
        %v1924 = vsel %vm425, %v1895, 0
        %v1927 = vsel %vm425, %v1896, 0
        %v1930 = vsel %vm425, %v1897, 0
        %v1933 = vsel %vm425, %v1898, 0
        %v1936 = vsel %vm425, %v1899, 0
        %1938 = vmatprep.subr.bf16.mxu0 0
        %1939 = vmatpush1.bf16.msra.mxu0 %v1913
        %1940 = vmatprep.subr.bf16.mxu0 0
        %1941 = vmatpush1.bf16.msra.mxu0 %v1914
        %1942 = vmatprep.subr.bf16.mxu0 0
        %1943 = vmatpush1.bf16.msra.mxu0 0
        %1944 = vmatprep.subr.bf16.mxu0 0
        %1945 = vmatpush1.bf16.msra.mxu0 0
        %1946 = vmatprep.subr.bf16.mxu0 0
        %1947 = vmatpush1.bf16.msra.mxu0 0
        %1948 = vmatprep.subr.bf16.mxu0 0
        %1949 = vmatpush1.bf16.msra.mxu0 0
        %1950 = vmatprep.subr.bf16.mxu0 0
        %1951 = vmatpush1.bf16.msra.mxu0 0
        %1952 = vmatprep.subr.bf16.mxu0 0
        %1953 = vmatpush1.bf16.msra.mxu0 0
        %1954 = vmatprep.subr.bf16.mxu0 0
        %1955 = vmatpush1.bf16.msra.mxu0 0
        %1956 = vmatprep.subr.bf16.mxu0 0
        %1957 = vmatpush1.bf16.msra.mxu0 0
        %1958 = vmatprep.subr.bf16.mxu0 0
        %1959 = vmatpush1.bf16.msra.mxu0 0
        %1960 = vmatprep.subr.bf16.mxu0 0
        %1961 = vmatpush1.bf16.msra.mxu0 0
        %1962 = vmatprep.subr.bf16.mxu0 0
        %1963 = vmatpush1.bf16.msra.mxu0 0
        %1964 = vmatprep.subr.bf16.mxu0 0
        %1965 = vmatpush1.bf16.msra.mxu0 0
        %1966 = vmatprep.subr.bf16.mxu0 0
        %1967 = vmatpush1.bf16.msra.mxu0 0
        %1968 = vmatprep.subr.bf16.mxu0 0
        %1969 = vmatpush1.bf16.msra.mxu0 0
        %1970 = vmatprep.mubr.bf16.mxu0 0
        %1971 = vmatmul.mubr.bf16.gmra.mrb[0].mxu0 %v1918
        %v1972 = vpop.f32.mrb[0].mxu0
        %v1973 = vadd.f32 0.0, %v1972
        %v1974 = vpop.f32.mrb[0].mxu0
        %v1975 = vpop.f32.mrb[0].mxu0
        %v1976 = vadd.f32 0.0, %v1975
        %v1977 = vpop.f32.mrb[0].mxu0
        %1978 = vmatprep.mubr.bf16.mxu0 0
        %1979 = vmatmul.mubr.bf16.gmra.mrb[0].mxu0 %v1921
        %v1980 = vpop.f32.mrb[0].mxu0
        %v1981 = vadd.f32 0.0, %v1980
        %v1982 = vpop.f32.mrb[0].mxu0
        %v1983 = vpop.f32.mrb[0].mxu0
        %v1984 = vadd.f32 0.0, %v1983
        %v1985 = vpop.f32.mrb[0].mxu0
        %1986 = vmatprep.mubr.bf16.mxu0 0
        %1987 = vmatmul.mubr.bf16.gmra.mrb[0].mxu0 %v1924
        %v1988 = vpop.f32.mrb[0].mxu0
        %v1989 = vadd.f32 0.0, %v1988
        %v1990 = vpop.f32.mrb[0].mxu0
        %v1991 = vpop.f32.mrb[0].mxu0
        %v1992 = vadd.f32 0.0, %v1991
        %v1993 = vpop.f32.mrb[0].mxu0
        %1994 = vmatprep.mubr.bf16.mxu0 0
        %1995 = vmatmul.mubr.bf16.gmra.mrb[0].mxu0 %v1927
        %v1996 = vpop.f32.mrb[0].mxu0
        %v1997 = vadd.f32 0.0, %v1996
        %v1998 = vpop.f32.mrb[0].mxu0
        %v1999 = vpop.f32.mrb[0].mxu0
        %v2000 = vadd.f32 0.0, %v1999
        %v2001 = vpop.f32.mrb[0].mxu0
        %2002 = vmatprep.mubr.bf16.mxu0 0
        %2003 = vmatmul.mubr.bf16.gmra.mrb[0].mxu0 %v1930
        %v2004 = vpop.f32.mrb[0].mxu0
        %v2005 = vadd.f32 0.0, %v2004
        %v2006 = vpop.f32.mrb[0].mxu0
        %v2007 = vpop.f32.mrb[0].mxu0
        %v2008 = vadd.f32 0.0, %v2007
        %v2009 = vpop.f32.mrb[0].mxu0
        %2010 = vmatprep.mubr.bf16.mxu0 0
        %2011 = vmatmul.mubr.bf16.gmra.mrb[0].mxu0 %v1933
        %v2012 = vpop.f32.mrb[0].mxu0
        %v2013 = vadd.f32 0.0, %v2012
        %v2014 = vpop.f32.mrb[0].mxu0
        %v2015 = vpop.f32.mrb[0].mxu0
        %v2016 = vadd.f32 0.0, %v2015
        %v2017 = vpop.f32.mrb[0].mxu0
        %2018 = vmatprep.mubr.bf16.mxu0 0
        %2019 = vmatmul.mubr.bf16.gmra.mrb[0].mxu0 %v1936
        %v2020 = vpop.f32.mrb[0].mxu0
        %v2021 = vadd.f32 0.0, %v2020
        %v2022 = vpop.f32.mrb[0].mxu0
        %v2023 = vpop.f32.mrb[0].mxu0
        %v2024 = vpop.f32.mrb[0].mxu0
        %2025 = vdwg.mxu0
        %v2026 = vadd.f32 %v1867, %v1973
        %v2027 = vadd.f32 %v1868, %v1976
        %v2028 = vadd.f32 %v1869, %v1981
        %v2029 = vadd.f32 %v1870, %v1984
        %v2030 = vadd.f32 %v1871, %v1989
        %v2031 = vadd.f32 %v1872, %v1992
        %v2032 = vadd.f32 %v1873, %v1997
        %v2033 = vadd.f32 %v1874, %v2000
        %v2034 = vadd.f32 %v1875, %v2005
        %v2035 = vadd.f32 %v1876, %v2008
        %v2036 = vadd.f32 %v1877, %v2013
        %v2037 = vadd.f32 %v1878, %v2016
        %v2038 = vadd.f32 %v1879, %v2021
        %v2039 = vld [vmem:[#allocation3 + $0x1a] sm:$0xff]
        %v2040 = vld [vmem:[#allocation3 + $0x22] sm:$0xff]
        %v2041 = vld [vmem:[#allocation3 + $0x2a] sm:$0xff]
        %v2042 = vld [vmem:[#allocation3 + $0x32] sm:$0xff]
        %v2043 = vld [vmem:[#allocation3 + $0x3a] sm:$0xff]
        %v2044 = vld [vmem:[#allocation3 + $0x42] sm:$0xff]
        %v2045 = vld [vmem:[#allocation3 + $0x4a] sm:$0xff]
        %v2046 = vld [vmem:[#allocation3 + $0x52] sm:$0xff]
        %v2047 = vld [vmem:[#allocation3 + $0x5a] sm:$0xff]
        %v2048 = vld [vmem:[#allocation3 + $0x62] sm:$0xff]
        %v2049 = vld [vmem:[#allocation3 + $0x6a] sm:$0xff]
        %v2050 = vld [vmem:[#allocation3 + $0x72] sm:$0xff]
        %v2051 = vld [vmem:[#allocation3 + $0x7a] sm:$0xf]
        %v2052 = vpack.c.bf16 %v2040, %v2039
        %v2053 = vpack.c.bf16 %v2042, %v2041
        %v2054 = vpack.c.bf16 %v2044, %v2043
        %v2055 = vpack.c.bf16 %v2046, %v2045
        %v2056 = vpack.c.bf16 %v2048, %v2047
        %v2057 = vpack.c.bf16 %v2050, %v2049
        %v2058 = vpack.c.bf16 %v2051, %v2051
        %s2059 = scalar_lea.vmem [#allocation11], 112
        %v2060 = vld [vmem:[%s2059] sm:$0xf]
        %v2061 = vld [vmem:[%s2059 + $0x4] sm:$0xf]
        %v2062 = vld [vmem:[%s2059 + $0x8] sm:$0xf]
        %v2063 = vld [vmem:[%s2059 + $0xc] sm:$0xf]
        %v2068 = vunpack.c.l.b16 %v2060
        %v2069 = vunpack.c.l.b16 %v2061
        %v2070 = vunpack.c.l.b16 %v2062
        %v2071 = vunpack.c.l.b16 %v2063
        %v2072 = vpack.c.b16 %v2069, %v2068
        %v2073 = vpack.c.b16 %v2071, %v2070
        %v2077 = vsel %vm425, %v2052, 0
        %v2080 = vsel %vm425, %v2053, 0
        %v2083 = vsel %vm425, %v2054, 0
        %v2086 = vsel %vm425, %v2055, 0
        %v2089 = vsel %vm425, %v2056, 0
        %v2092 = vsel %vm425, %v2057, 0
        %v2095 = vsel %vm425, %v2058, 0
        %2097 = vmatprep.subr.bf16.mxu0 0
        %2098 = vmatpush1.bf16.msra.mxu0 %v2072
        %2099 = vmatprep.subr.bf16.mxu0 0
        %2100 = vmatpush1.bf16.msra.mxu0 %v2073
        %2101 = vmatprep.subr.bf16.mxu0 0
        %2102 = vmatpush1.bf16.msra.mxu0 0
        %2103 = vmatprep.subr.bf16.mxu0 0
        %2104 = vmatpush1.bf16.msra.mxu0 0
        %2105 = vmatprep.subr.bf16.mxu0 0
        %2106 = vmatpush1.bf16.msra.mxu0 0
        %2107 = vmatprep.subr.bf16.mxu0 0
        %2108 = vmatpush1.bf16.msra.mxu0 0
        %2109 = vmatprep.subr.bf16.mxu0 0
        %2110 = vmatpush1.bf16.msra.mxu0 0
        %2111 = vmatprep.subr.bf16.mxu0 0
        %2112 = vmatpush1.bf16.msra.mxu0 0
        %2113 = vmatprep.subr.bf16.mxu0 0
        %2114 = vmatpush1.bf16.msra.mxu0 0
        %2115 = vmatprep.subr.bf16.mxu0 0
        %2116 = vmatpush1.bf16.msra.mxu0 0
        %2117 = vmatprep.subr.bf16.mxu0 0
        %2118 = vmatpush1.bf16.msra.mxu0 0
        %2119 = vmatprep.subr.bf16.mxu0 0
        %2120 = vmatpush1.bf16.msra.mxu0 0
        %2121 = vmatprep.subr.bf16.mxu0 0
        %2122 = vmatpush1.bf16.msra.mxu0 0
        %2123 = vmatprep.subr.bf16.mxu0 0
        %2124 = vmatpush1.bf16.msra.mxu0 0
        %2125 = vmatprep.subr.bf16.mxu0 0
        %2126 = vmatpush1.bf16.msra.mxu0 0
        %2127 = vmatprep.subr.bf16.mxu0 0
        %2128 = vmatpush1.bf16.msra.mxu0 0
        %2129 = vmatprep.mubr.bf16.mxu0 0
        %2130 = vmatmul.mubr.bf16.gmra.mrb[0].mxu0 %v2077
        %v2131 = vpop.f32.mrb[0].mxu0
        %v2132 = vadd.f32 0.0, %v2131
        %v2133 = vpop.f32.mrb[0].mxu0
        %v2134 = vpop.f32.mrb[0].mxu0
        %v2135 = vadd.f32 0.0, %v2134
        %v2136 = vpop.f32.mrb[0].mxu0
        %2137 = vmatprep.mubr.bf16.mxu0 0
        %2138 = vmatmul.mubr.bf16.gmra.mrb[0].mxu0 %v2080
        %v2139 = vpop.f32.mrb[0].mxu0
        %v2140 = vadd.f32 0.0, %v2139
        %v2141 = vpop.f32.mrb[0].mxu0
        %v2142 = vpop.f32.mrb[0].mxu0
        %v2143 = vadd.f32 0.0, %v2142
        %v2144 = vpop.f32.mrb[0].mxu0
        %2145 = vmatprep.mubr.bf16.mxu0 0
        %2146 = vmatmul.mubr.bf16.gmra.mrb[0].mxu0 %v2083
        %v2147 = vpop.f32.mrb[0].mxu0
        %v2148 = vadd.f32 0.0, %v2147
        %v2149 = vpop.f32.mrb[0].mxu0
        %v2150 = vpop.f32.mrb[0].mxu0
        %v2151 = vadd.f32 0.0, %v2150
        %v2152 = vpop.f32.mrb[0].mxu0
        %2153 = vmatprep.mubr.bf16.mxu0 0
        %2154 = vmatmul.mubr.bf16.gmra.mrb[0].mxu0 %v2086
        %v2155 = vpop.f32.mrb[0].mxu0
        %v2156 = vadd.f32 0.0, %v2155
        %v2157 = vpop.f32.mrb[0].mxu0
        %v2158 = vpop.f32.mrb[0].mxu0
        %v2159 = vadd.f32 0.0, %v2158
        %v2160 = vpop.f32.mrb[0].mxu0
        %2161 = vmatprep.mubr.bf16.mxu0 0
        %2162 = vmatmul.mubr.bf16.gmra.mrb[0].mxu0 %v2089
        %v2163 = vpop.f32.mrb[0].mxu0
        %v2164 = vadd.f32 0.0, %v2163
        %v2165 = vpop.f32.mrb[0].mxu0
        %v2166 = vpop.f32.mrb[0].mxu0
        %v2167 = vadd.f32 0.0, %v2166
        %v2168 = vpop.f32.mrb[0].mxu0
        %2169 = vmatprep.mubr.bf16.mxu0 0
        %2170 = vmatmul.mubr.bf16.gmra.mrb[0].mxu0 %v2092
        %v2171 = vpop.f32.mrb[0].mxu0
        %v2172 = vadd.f32 0.0, %v2171
        %v2173 = vpop.f32.mrb[0].mxu0
        %v2174 = vpop.f32.mrb[0].mxu0
        %v2175 = vadd.f32 0.0, %v2174
        %v2176 = vpop.f32.mrb[0].mxu0
        %2177 = vmatprep.mubr.bf16.mxu0 0
        %2178 = vmatmul.mubr.bf16.gmra.mrb[0].mxu0 %v2095
        %v2179 = vpop.f32.mrb[0].mxu0
        %v2180 = vadd.f32 0.0, %v2179
        %v2181 = vpop.f32.mrb[0].mxu0
        %v2182 = vpop.f32.mrb[0].mxu0
        %v2183 = vpop.f32.mrb[0].mxu0
        %2184 = vdwg.mxu0
        %v2185 = vadd.f32 %v2026, %v2132
        %v2186 = vadd.f32 %v2027, %v2135
        %v2187 = vadd.f32 %v2028, %v2140
        %v2188 = vadd.f32 %v2029, %v2143
        %v2189 = vadd.f32 %v2030, %v2148
        %v2190 = vadd.f32 %v2031, %v2151
        %v2191 = vadd.f32 %v2032, %v2156
        %v2192 = vadd.f32 %v2033, %v2159
        %v2193 = vadd.f32 %v2034, %v2164
        %v2194 = vadd.f32 %v2035, %v2167
        %v2195 = vadd.f32 %v2036, %v2172
        %v2196 = vadd.f32 %v2037, %v2175
        %v2197 = vadd.f32 %v2038, %v2180
        %v2198 = vld [vmem:[#allocation3 + $0x1b] sm:$0xff]
        %v2199 = vld [vmem:[#allocation3 + $0x23] sm:$0xff]
        %v2200 = vld [vmem:[#allocation3 + $0x2b] sm:$0xff]
        %v2201 = vld [vmem:[#allocation3 + $0x33] sm:$0xff]
        %v2202 = vld [vmem:[#allocation3 + $0x3b] sm:$0xff]
        %v2203 = vld [vmem:[#allocation3 + $0x43] sm:$0xff]
        %v2204 = vld [vmem:[#allocation3 + $0x4b] sm:$0xff]
        %v2205 = vld [vmem:[#allocation3 + $0x53] sm:$0xff]
        %v2206 = vld [vmem:[#allocation3 + $0x5b] sm:$0xff]
        %v2207 = vld [vmem:[#allocation3 + $0x63] sm:$0xff]
        %v2208 = vld [vmem:[#allocation3 + $0x6b] sm:$0xff]
        %v2209 = vld [vmem:[#allocation3 + $0x73] sm:$0xff]
        %v2210 = vld [vmem:[#allocation3 + $0x7b] sm:$0xf]
        %v2211 = vpack.c.bf16 %v2199, %v2198
        %v2212 = vpack.c.bf16 %v2201, %v2200
        %v2213 = vpack.c.bf16 %v2203, %v2202
        %v2214 = vpack.c.bf16 %v2205, %v2204
        %v2215 = vpack.c.bf16 %v2207, %v2206
        %v2216 = vpack.c.bf16 %v2209, %v2208
        %v2217 = vpack.c.bf16 %v2210, %v2210
        %s2218 = scalar_lea.vmem [#allocation11], 128
        %v2219 = vld [vmem:[%s2218] sm:$0xf]
        %v2220 = vld [vmem:[%s2218 + $0x4] sm:$0xf]
        %v2221 = vld [vmem:[%s2218 + $0x8] sm:$0xf]
        %v2222 = vld [vmem:[%s2218 + $0xc] sm:$0xf]
        %v2227 = vunpack.c.l.b16 %v2219
        %v2228 = vunpack.c.l.b16 %v2220
        %v2229 = vunpack.c.l.b16 %v2221
        %v2230 = vunpack.c.l.b16 %v2222
        %v2231 = vpack.c.b16 %v2228, %v2227
        %v2232 = vpack.c.b16 %v2230, %v2229
        %v2236 = vsel %vm425, %v2211, 0
        %v2239 = vsel %vm425, %v2212, 0
        %v2242 = vsel %vm425, %v2213, 0
        %v2245 = vsel %vm425, %v2214, 0
        %v2248 = vsel %vm425, %v2215, 0
        %v2251 = vsel %vm425, %v2216, 0
        %v2254 = vsel %vm425, %v2217, 0
        %2256 = vmatprep.subr.bf16.mxu0 0
        %2257 = vmatpush1.bf16.msra.mxu0 %v2231
        %2258 = vmatprep.subr.bf16.mxu0 0
        %2259 = vmatpush1.bf16.msra.mxu0 %v2232
        %2260 = vmatprep.subr.bf16.mxu0 0
        %2261 = vmatpush1.bf16.msra.mxu0 0
        %2262 = vmatprep.subr.bf16.mxu0 0
        %2263 = vmatpush1.bf16.msra.mxu0 0
        %2264 = vmatprep.subr.bf16.mxu0 0
        %2265 = vmatpush1.bf16.msra.mxu0 0
        %2266 = vmatprep.subr.bf16.mxu0 0
        %2267 = vmatpush1.bf16.msra.mxu0 0
        %2268 = vmatprep.subr.bf16.mxu0 0
        %2269 = vmatpush1.bf16.msra.mxu0 0
        %2270 = vmatprep.subr.bf16.mxu0 0
        %2271 = vmatpush1.bf16.msra.mxu0 0
        %2272 = vmatprep.subr.bf16.mxu0 0
        %2273 = vmatpush1.bf16.msra.mxu0 0
        %2274 = vmatprep.subr.bf16.mxu0 0
        %2275 = vmatpush1.bf16.msra.mxu0 0
        %2276 = vmatprep.subr.bf16.mxu0 0
        %2277 = vmatpush1.bf16.msra.mxu0 0
        %2278 = vmatprep.subr.bf16.mxu0 0
        %2279 = vmatpush1.bf16.msra.mxu0 0
        %2280 = vmatprep.subr.bf16.mxu0 0
        %2281 = vmatpush1.bf16.msra.mxu0 0
        %2282 = vmatprep.subr.bf16.mxu0 0
        %2283 = vmatpush1.bf16.msra.mxu0 0
        %2284 = vmatprep.subr.bf16.mxu0 0
        %2285 = vmatpush1.bf16.msra.mxu0 0
        %2286 = vmatprep.subr.bf16.mxu0 0
        %2287 = vmatpush1.bf16.msra.mxu0 0
        %2288 = vmatprep.mubr.bf16.mxu0 0
        %2289 = vmatmul.mubr.bf16.gmra.mrb[0].mxu0 %v2236
        %v2290 = vpop.f32.mrb[0].mxu0
        %v2291 = vadd.f32 0.0, %v2290
        %v2292 = vpop.f32.mrb[0].mxu0
        %v2293 = vpop.f32.mrb[0].mxu0
        %v2294 = vadd.f32 0.0, %v2293
        %v2295 = vpop.f32.mrb[0].mxu0
        %2296 = vmatprep.mubr.bf16.mxu0 0
        %2297 = vmatmul.mubr.bf16.gmra.mrb[0].mxu0 %v2239
        %v2298 = vpop.f32.mrb[0].mxu0
        %v2299 = vadd.f32 0.0, %v2298
        %v2300 = vpop.f32.mrb[0].mxu0
        %v2301 = vpop.f32.mrb[0].mxu0
        %v2302 = vadd.f32 0.0, %v2301
        %v2303 = vpop.f32.mrb[0].mxu0
        %2304 = vmatprep.mubr.bf16.mxu0 0
        %2305 = vmatmul.mubr.bf16.gmra.mrb[0].mxu0 %v2242
        %v2306 = vpop.f32.mrb[0].mxu0
        %v2307 = vadd.f32 0.0, %v2306
        %v2308 = vpop.f32.mrb[0].mxu0
        %v2309 = vpop.f32.mrb[0].mxu0
        %v2310 = vadd.f32 0.0, %v2309
        %v2311 = vpop.f32.mrb[0].mxu0
        %2312 = vmatprep.mubr.bf16.mxu0 0
        %2313 = vmatmul.mubr.bf16.gmra.mrb[0].mxu0 %v2245
        %v2314 = vpop.f32.mrb[0].mxu0
        %v2315 = vadd.f32 0.0, %v2314
        %v2316 = vpop.f32.mrb[0].mxu0
        %v2317 = vpop.f32.mrb[0].mxu0
        %v2318 = vadd.f32 0.0, %v2317
        %v2319 = vpop.f32.mrb[0].mxu0
        %2320 = vmatprep.mubr.bf16.mxu0 0
        %2321 = vmatmul.mubr.bf16.gmra.mrb[0].mxu0 %v2248
        %v2322 = vpop.f32.mrb[0].mxu0
        %v2323 = vadd.f32 0.0, %v2322
        %v2324 = vpop.f32.mrb[0].mxu0
        %v2325 = vpop.f32.mrb[0].mxu0
        %v2326 = vadd.f32 0.0, %v2325
        %v2327 = vpop.f32.mrb[0].mxu0
        %2328 = vmatprep.mubr.bf16.mxu0 0
        %2329 = vmatmul.mubr.bf16.gmra.mrb[0].mxu0 %v2251
        %v2330 = vpop.f32.mrb[0].mxu0
        %v2331 = vadd.f32 0.0, %v2330
        %v2332 = vpop.f32.mrb[0].mxu0
        %v2333 = vpop.f32.mrb[0].mxu0
        %v2334 = vadd.f32 0.0, %v2333
        %v2335 = vpop.f32.mrb[0].mxu0
        %2336 = vmatprep.mubr.bf16.mxu0 0
        %2337 = vmatmul.mubr.bf16.gmra.mrb[0].mxu0 %v2254
        %v2338 = vpop.f32.mrb[0].mxu0
        %v2339 = vadd.f32 0.0, %v2338
        %v2340 = vpop.f32.mrb[0].mxu0
        %v2341 = vpop.f32.mrb[0].mxu0
        %v2342 = vpop.f32.mrb[0].mxu0
        %2343 = vdwg.mxu0
        %v2344 = vadd.f32 %v2185, %v2291
        %v2345 = vadd.f32 %v2186, %v2294
        %v2346 = vadd.f32 %v2187, %v2299
        %v2347 = vadd.f32 %v2188, %v2302
        %v2348 = vadd.f32 %v2189, %v2307
        %v2349 = vadd.f32 %v2190, %v2310
        %v2350 = vadd.f32 %v2191, %v2315
        %v2351 = vadd.f32 %v2192, %v2318
        %v2352 = vadd.f32 %v2193, %v2323
        %v2353 = vadd.f32 %v2194, %v2326
        %v2354 = vadd.f32 %v2195, %v2331
        %v2355 = vadd.f32 %v2196, %v2334
        %v2356 = vadd.f32 %v2197, %v2339
        %v2357 = vld [vmem:[#allocation12] sm:$0x1]
        %v2359 = vlaneseq
        %v2360 = vshrl.u32 %v2359, 7
        %v2361 = vsub.s32 0, %v2360
        %v2362 = vrot.slane %v2357, %v2361
        %v2364 = vadd.f32 %v2344, %v2362
        %v2365 = vadd.f32 %v2345, %v2362
        %v2366 = vadd.f32 %v2346, %v2362
        %v2367 = vadd.f32 %v2347, %v2362
        %v2368 = vadd.f32 %v2348, %v2362
        %v2369 = vadd.f32 %v2349, %v2362
        %v2370 = vadd.f32 %v2350, %v2362
        %v2371 = vadd.f32 %v2351, %v2362
        %v2372 = vadd.f32 %v2352, %v2362
        %v2373 = vadd.f32 %v2353, %v2362
        %v2374 = vadd.f32 %v2354, %v2362
        %v2375 = vadd.f32 %v2355, %v2362
        %v2376 = vadd.f32 %v2356, %v2362
        %v2377 = vmax.f32 %v2364, 0.0
        %v2378 = vmax.f32 %v2365, 0.0
        %v2379 = vmax.f32 %v2366, 0.0
        %v2380 = vmax.f32 %v2367, 0.0
        %v2381 = vmax.f32 %v2368, 0.0
        %v2382 = vmax.f32 %v2369, 0.0
        %v2383 = vmax.f32 %v2370, 0.0
        %v2384 = vmax.f32 %v2371, 0.0
        %v2385 = vmax.f32 %v2372, 0.0
        %v2386 = vmax.f32 %v2373, 0.0
        %v2387 = vmax.f32 %v2374, 0.0
        %v2388 = vmax.f32 %v2375, 0.0
        %v2389 = vmax.f32 %v2376, 0.0
        %2390 = vst [vmem:[#allocation4] sm:$0xff] %v2377
        %2391 = vst [vmem:[#allocation4 + $0x8] sm:$0xff] %v2378
        %2392 = vst [vmem:[#allocation4 + $0x10] sm:$0xff] %v2379
        %2393 = vst [vmem:[#allocation4 + $0x18] sm:$0xff] %v2380
        %2394 = vst [vmem:[#allocation4 + $0x20] sm:$0xff] %v2381
        %2395 = vst [vmem:[#allocation4 + $0x28] sm:$0xff] %v2382
        %2396 = vst [vmem:[#allocation4 + $0x30] sm:$0xff] %v2383
        %2397 = vst [vmem:[#allocation4 + $0x38] sm:$0xff] %v2384
        %2398 = vst [vmem:[#allocation4 + $0x40] sm:$0xff] %v2385
        %2399 = vst [vmem:[#allocation4 + $0x48] sm:$0xff] %v2386
        %2400 = vst [vmem:[#allocation4 + $0x50] sm:$0xff] %v2387
        %2401 = vst [vmem:[#allocation4 + $0x58] sm:$0xff] %v2388
        %2402 = vst [vmem:[#allocation4 + $0x60] sm:$0xf] %v2389
        %v2403 = vld [vmem:[#allocation4 + $0xb] sm:$0x1]
        %v2404 = vld [vmem:[#allocation4 + $0xc] sm:$0x1]
        %v2405 = vmax.f32 %v2403, %v2404
        %v2406 = vld [vmem:[#allocation4 + $0x15] sm:$0x1]
        %v2407 = vld [vmem:[#allocation4 + $0x16] sm:$0x1]
        %v2408 = vmax.f32 %v2406, %v2407
        %v2409 = vmax.f32 %v2405, %v2408
        %2410 = vst [vmem:[#allocation5] sm:$0x1] %v2409
        %v2411 = vld [vmem:[#allocation4 + $0xd] sm:$0x1]
        %v2412 = vld [vmem:[#allocation4 + $0xe] sm:$0x1]
        %v2413 = vmax.f32 %v2411, %v2412
        %v2414 = vld [vmem:[#allocation4 + $0x17] sm:$0x1]
        %v2415 = vld [vmem:[#allocation4 + $0x18] sm:$0x1]
        %v2416 = vmax.f32 %v2414, %v2415
        %v2417 = vmax.f32 %v2413, %v2416
        %2418 = vst [vmem:[#allocation5 + $0x8] sm:$0x1] %v2417
        %v2419 = vld [vmem:[#allocation4 + $0xf] sm:$0x1]
        %v2420 = vld [vmem:[#allocation4 + $0x10] sm:$0x1]
        %v2421 = vmax.f32 %v2419, %v2420
        %v2422 = vld [vmem:[#allocation4 + $0x19] sm:$0x1]
        %v2423 = vld [vmem:[#allocation4 + $0x1a] sm:$0x1]
        %v2424 = vmax.f32 %v2422, %v2423
        %v2425 = vmax.f32 %v2421, %v2424
        %2426 = vst [vmem:[#allocation5 + $0x10] sm:$0x1] %v2425
        %v2427 = vld [vmem:[#allocation4 + $0x11] sm:$0x1]
        %v2428 = vld [vmem:[#allocation4 + $0x12] sm:$0x1]
        %v2429 = vmax.f32 %v2427, %v2428
        %v2430 = vld [vmem:[#allocation4 + $0x1b] sm:$0x1]
        %v2431 = vld [vmem:[#allocation4 + $0x1c] sm:$0x1]
        %v2432 = vmax.f32 %v2430, %v2431
        %v2433 = vmax.f32 %v2429, %v2432
        %2434 = vst [vmem:[#allocation5 + $0x18] sm:$0x1] %v2433
        %v2435 = vld [vmem:[#allocation4 + $0x1f] sm:$0x1]
        %v2436 = vld [vmem:[#allocation4 + $0x20] sm:$0x1]
        %v2437 = vmax.f32 %v2435, %v2436
        %v2438 = vld [vmem:[#allocation4 + $0x29] sm:$0x1]
        %v2439 = vld [vmem:[#allocation4 + $0x2a] sm:$0x1]
        %v2440 = vmax.f32 %v2438, %v2439
        %v2441 = vmax.f32 %v2437, %v2440
        %2442 = vst [vmem:[#allocation5 + $0x20] sm:$0x1] %v2441
        %v2443 = vld [vmem:[#allocation4 + $0x21] sm:$0x1]
        %v2444 = vld [vmem:[#allocation4 + $0x22] sm:$0x1]
        %v2445 = vmax.f32 %v2443, %v2444
        %v2446 = vld [vmem:[#allocation4 + $0x2b] sm:$0x1]
        %v2447 = vld [vmem:[#allocation4 + $0x2c] sm:$0x1]
        %v2448 = vmax.f32 %v2446, %v2447
        %v2449 = vmax.f32 %v2445, %v2448
        %2450 = vst [vmem:[#allocation5 + $0x28] sm:$0x1] %v2449
        %v2451 = vld [vmem:[#allocation4 + $0x23] sm:$0x1]
        %v2452 = vld [vmem:[#allocation4 + $0x24] sm:$0x1]
        %v2453 = vmax.f32 %v2451, %v2452
        %v2454 = vld [vmem:[#allocation4 + $0x2d] sm:$0x1]
        %v2455 = vld [vmem:[#allocation4 + $0x2e] sm:$0x1]
        %v2456 = vmax.f32 %v2454, %v2455
        %v2457 = vmax.f32 %v2453, %v2456
        %2458 = vst [vmem:[#allocation5 + $0x30] sm:$0x1] %v2457
        %v2459 = vld [vmem:[#allocation4 + $0x25] sm:$0x1]
        %v2460 = vld [vmem:[#allocation4 + $0x26] sm:$0x1]
        %v2461 = vmax.f32 %v2459, %v2460
        %v2462 = vld [vmem:[#allocation4 + $0x2f] sm:$0x1]
        %v2463 = vld [vmem:[#allocation4 + $0x30] sm:$0x1]
        %v2464 = vmax.f32 %v2462, %v2463
        %v2465 = vmax.f32 %v2461, %v2464
        %2466 = vst [vmem:[#allocation5 + $0x38] sm:$0x1] %v2465
        %v2467 = vld [vmem:[#allocation4 + $0x33] sm:$0x1]
        %v2468 = vld [vmem:[#allocation4 + $0x34] sm:$0x1]
        %v2469 = vmax.f32 %v2467, %v2468
        %v2470 = vld [vmem:[#allocation4 + $0x3d] sm:$0x1]
        %v2471 = vld [vmem:[#allocation4 + $0x3e] sm:$0x1]
        %v2472 = vmax.f32 %v2470, %v2471
        %v2473 = vmax.f32 %v2469, %v2472
        %2474 = vst [vmem:[#allocation5 + $0x40] sm:$0x1] %v2473
        %v2475 = vld [vmem:[#allocation4 + $0x35] sm:$0x1]
        %v2476 = vld [vmem:[#allocation4 + $0x36] sm:$0x1]
        %v2477 = vmax.f32 %v2475, %v2476
        %v2478 = vld [vmem:[#allocation4 + $0x3f] sm:$0x1]
        %v2479 = vld [vmem:[#allocation4 + $0x40] sm:$0x1]
        %v2480 = vmax.f32 %v2478, %v2479
        %v2481 = vmax.f32 %v2477, %v2480
        %2482 = vst [vmem:[#allocation5 + $0x48] sm:$0x1] %v2481
        %v2483 = vld [vmem:[#allocation4 + $0x37] sm:$0x1]
        %v2484 = vld [vmem:[#allocation4 + $0x38] sm:$0x1]
        %v2485 = vmax.f32 %v2483, %v2484
        %v2486 = vld [vmem:[#allocation4 + $0x41] sm:$0x1]
        %v2487 = vld [vmem:[#allocation4 + $0x42] sm:$0x1]
        %v2488 = vmax.f32 %v2486, %v2487
        %v2489 = vmax.f32 %v2485, %v2488
        %2490 = vst [vmem:[#allocation5 + $0x50] sm:$0x1] %v2489
        %v2491 = vld [vmem:[#allocation4 + $0x39] sm:$0x1]
        %v2492 = vld [vmem:[#allocation4 + $0x3a] sm:$0x1]
        %v2493 = vmax.f32 %v2491, %v2492
        %v2494 = vld [vmem:[#allocation4 + $0x43] sm:$0x1]
        %v2495 = vld [vmem:[#allocation4 + $0x44] sm:$0x1]
        %v2496 = vmax.f32 %v2494, %v2495
        %v2497 = vmax.f32 %v2493, %v2496
        %2498 = vst [vmem:[#allocation5 + $0x58] sm:$0x1] %v2497
        %v2499 = vld [vmem:[#allocation4 + $0x47] sm:$0x1]
        %v2500 = vld [vmem:[#allocation4 + $0x48] sm:$0x1]
        %v2501 = vmax.f32 %v2499, %v2500
        %v2502 = vld [vmem:[#allocation4 + $0x51] sm:$0x1]
        %v2503 = vld [vmem:[#allocation4 + $0x52] sm:$0x1]
        %v2504 = vmax.f32 %v2502, %v2503
        %v2505 = vmax.f32 %v2501, %v2504
        %2506 = vst [vmem:[#allocation5 + $0x60] sm:$0x1] %v2505
        %v2507 = vld [vmem:[#allocation4 + $0x49] sm:$0x1]
        %v2508 = vld [vmem:[#allocation4 + $0x4a] sm:$0x1]
        %v2509 = vmax.f32 %v2507, %v2508
        %v2510 = vld [vmem:[#allocation4 + $0x53] sm:$0x1]
        %v2511 = vld [vmem:[#allocation4 + $0x54] sm:$0x1]
        %v2512 = vmax.f32 %v2510, %v2511
        %v2513 = vmax.f32 %v2509, %v2512
        %2514 = vst [vmem:[#allocation5 + $0x68] sm:$0x1] %v2513
        %v2515 = vld [vmem:[#allocation4 + $0x4b] sm:$0x1]
        %v2516 = vld [vmem:[#allocation4 + $0x4c] sm:$0x1]
        %v2517 = vmax.f32 %v2515, %v2516
        %v2518 = vld [vmem:[#allocation4 + $0x55] sm:$0x1]
        %v2519 = vld [vmem:[#allocation4 + $0x56] sm:$0x1]
        %v2520 = vmax.f32 %v2518, %v2519
        %v2521 = vmax.f32 %v2517, %v2520
        %2522 = vst [vmem:[#allocation5 + $0x70] sm:$0x1] %v2521
        %v2523 = vld [vmem:[#allocation4 + $0x4d] sm:$0x1]
        %v2524 = vld [vmem:[#allocation4 + $0x4e] sm:$0x1]
        %v2525 = vmax.f32 %v2523, %v2524
        %v2526 = vld [vmem:[#allocation4 + $0x57] sm:$0x1]
        %v2527 = vld [vmem:[#allocation4 + $0x58] sm:$0x1]
        %v2528 = vmax.f32 %v2526, %v2527
        %v2529 = vmax.f32 %v2525, %v2528
        %2530 = vst [vmem:[#allocation5 + $0x78] sm:$0x1] %v2529
        %v2531 = vld [vmem:[#allocation5] ss:$8 sm:$0xf]
        %v2532 = vld [vmem:[#allocation5] ss:$8 sm:$0xf0]
        %v2533 = vor.u32 %v2531, %v2532
        %s2534 = scalar_lea.vmem [#allocation5], 64
        %v2535 = vld [vmem:[%s2534] ss:$8 sm:$0xf]
        %v2536 = vld [vmem:[%s2534] ss:$8 sm:$0xf0]
        %v2537 = vor.u32 %v2535, %v2536
        %v2540 = vlaneseq
        %v2541 = vshrl.u32 %v2540, 7
        %v2542 = vsub.s32 0, %v2541
        %v2543 = vrot.slane %v2533, %v2542
        %v2544 = vlaneseq
        %v2545 = vshrl.u32 %v2544, 7
        %v2546 = vsub.s32 1, %v2545
        %v2547 = vrot.slane %v2533, %v2546
        %v2548 = vlaneseq
        %v2549 = vshrl.u32 %v2548, 7
        %v2550 = vsub.s32 2, %v2549
        %v2551 = vrot.slane %v2533, %v2550
        %v2552 = vlaneseq
        %v2553 = vshrl.u32 %v2552, 7
        %v2554 = vsub.s32 3, %v2553
        %v2555 = vrot.slane %v2533, %v2554
        %v2556 = vlaneseq
        %v2557 = vshrl.u32 %v2556, 7
        %v2558 = vsub.s32 4, %v2557
        %v2559 = vrot.slane %v2533, %v2558
        %v2560 = vlaneseq
        %v2561 = vshrl.u32 %v2560, 7
        %v2562 = vsub.s32 5, %v2561
        %v2563 = vrot.slane %v2533, %v2562
        %v2564 = vlaneseq
        %v2565 = vshrl.u32 %v2564, 7
        %v2566 = vsub.s32 6, %v2565
        %v2567 = vrot.slane %v2533, %v2566
        %v2568 = vlaneseq
        %v2569 = vshrl.u32 %v2568, 7
        %v2570 = vsub.s32 7, %v2569
        %v2571 = vrot.slane %v2533, %v2570
        %v2572 = vlaneseq
        %v2573 = vshrl.u32 %v2572, 7
        %v2574 = vsub.s32 0, %v2573
        %v2575 = vrot.slane %v2537, %v2574
        %v2576 = vlaneseq
        %v2577 = vshrl.u32 %v2576, 7
        %v2578 = vsub.s32 1, %v2577
        %v2579 = vrot.slane %v2537, %v2578
        %v2580 = vlaneseq
        %v2581 = vshrl.u32 %v2580, 7
        %v2582 = vsub.s32 2, %v2581
        %v2583 = vrot.slane %v2537, %v2582
        %v2584 = vlaneseq
        %v2585 = vshrl.u32 %v2584, 7
        %v2586 = vsub.s32 3, %v2585
        %v2587 = vrot.slane %v2537, %v2586
        %v2588 = vlaneseq
        %v2589 = vshrl.u32 %v2588, 7
        %v2590 = vsub.s32 4, %v2589
        %v2591 = vrot.slane %v2537, %v2590
        %v2592 = vlaneseq
        %v2593 = vshrl.u32 %v2592, 7
        %v2594 = vsub.s32 5, %v2593
        %v2595 = vrot.slane %v2537, %v2594
        %v2596 = vlaneseq
        %v2597 = vshrl.u32 %v2596, 7
        %v2598 = vsub.s32 6, %v2597
        %v2599 = vrot.slane %v2537, %v2598
        %v2600 = vlaneseq
        %v2601 = vshrl.u32 %v2600, 7
        %v2602 = vsub.s32 7, %v2601
        %v2603 = vrot.slane %v2537, %v2602
        %v2620 = vpack.c.bf16 %v2543, %v2543
        %v2621 = vpack.c.bf16 %v2547, %v2547
        %v2622 = vpack.c.bf16 %v2551, %v2551
        %v2623 = vpack.c.bf16 %v2555, %v2555
        %v2624 = vpack.c.bf16 %v2559, %v2559
        %v2625 = vpack.c.bf16 %v2563, %v2563
        %v2626 = vpack.c.bf16 %v2567, %v2567
        %v2627 = vpack.c.bf16 %v2571, %v2571
        %v2628 = vpack.c.bf16 %v2575, %v2575
        %v2629 = vpack.c.bf16 %v2579, %v2579
        %v2630 = vpack.c.bf16 %v2583, %v2583
        %v2631 = vpack.c.bf16 %v2587, %v2587
        %v2632 = vpack.c.bf16 %v2591, %v2591
        %v2633 = vpack.c.bf16 %v2595, %v2595
        %v2634 = vpack.c.bf16 %v2599, %v2599
        %v2635 = vpack.c.bf16 %v2603, %v2603
        %v2636 = vld [vmem:[#allocation14] sm:$0xff]
        %v2637 = vld [vmem:[#allocation14 + $0x8] sm:$0xff]
        %v2638 = vld [vmem:[#allocation14 + $0x10] sm:$0xff]
        %v2639 = vld [vmem:[#allocation14 + $0x18] sm:$0xff]
        %v2640 = vld [vmem:[#allocation14 + $0x20] sm:$0xff]
        %v2641 = vld [vmem:[#allocation14 + $0x28] sm:$0xff]
        %v2642 = vld [vmem:[#allocation14 + $0x30] sm:$0xff]
        %v2643 = vld [vmem:[#allocation14 + $0x38] sm:$0xff]
        %v2644 = vld [vmem:[#allocation14 + $0x40] sm:$0xff]
        %v2645 = vld [vmem:[#allocation14 + $0x48] sm:$0xff]
        %v2646 = vld [vmem:[#allocation14 + $0x50] sm:$0xff]
        %v2647 = vld [vmem:[#allocation14 + $0x58] sm:$0xff]
        %v2648 = vld [vmem:[#allocation14 + $0x60] sm:$0xff]
        %v2649 = vld [vmem:[#allocation14 + $0x68] sm:$0xff]
        %v2650 = vld [vmem:[#allocation14 + $0x70] sm:$0xff]
        %v2651 = vld [vmem:[#allocation14 + $0x78] sm:$0xff]
        %v2652 = vld [vmem:[#allocation14 + $0x80] sm:$0xff]
        %v2653 = vld [vmem:[#allocation14 + $0x88] sm:$0xff]
        %v2654 = vld [vmem:[#allocation14 + $0x90] sm:$0xff]
        %v2655 = vld [vmem:[#allocation14 + $0x98] sm:$0xff]
        %v2656 = vld [vmem:[#allocation14 + $0xa0] sm:$0xff]
        %v2657 = vld [vmem:[#allocation14 + $0xa8] sm:$0xff]
        %v2658 = vld [vmem:[#allocation14 + $0xb0] sm:$0xff]
        %v2659 = vld [vmem:[#allocation14 + $0xb8] sm:$0xff]
        %v2660 = vld [vmem:[#allocation14 + $0xc0] sm:$0xff]
        %v2661 = vld [vmem:[#allocation14 + $0xc8] sm:$0xff]
        %v2662 = vld [vmem:[#allocation14 + $0xd0] sm:$0xff]
        %v2663 = vld [vmem:[#allocation14 + $0xd8] sm:$0xff]
        %v2664 = vld [vmem:[#allocation14 + $0xe0] sm:$0xff]
        %v2665 = vld [vmem:[#allocation14 + $0xe8] sm:$0xff]
        %v2666 = vld [vmem:[#allocation14 + $0xf0] sm:$0xff]
        %v2667 = vld [vmem:[#allocation14 + $0xf8] sm:$0xff]
        %v2668 = vld [vmem:[#allocation14 + $0x100] sm:$0xff]
        %v2669 = vld [vmem:[#allocation14 + $0x108] sm:$0xff]
        %v2670 = vld [vmem:[#allocation14 + $0x110] sm:$0xff]
        %v2671 = vld [vmem:[#allocation14 + $0x118] sm:$0xff]
        %v2672 = vld [vmem:[#allocation14 + $0x120] sm:$0xff]
        %v2673 = vld [vmem:[#allocation14 + $0x128] sm:$0xff]
        %v2674 = vld [vmem:[#allocation14 + $0x130] sm:$0xff]
        %v2675 = vld [vmem:[#allocation14 + $0x138] sm:$0xff]
        %v2676 = vld [vmem:[#allocation14 + $0x140] sm:$0xff]
        %v2677 = vld [vmem:[#allocation14 + $0x148] sm:$0xff]
        %v2678 = vld [vmem:[#allocation14 + $0x150] sm:$0xff]
        %v2679 = vld [vmem:[#allocation14 + $0x158] sm:$0xff]
        %v2680 = vld [vmem:[#allocation14 + $0x160] sm:$0xff]
        %v2681 = vld [vmem:[#allocation14 + $0x168] sm:$0xff]
        %v2682 = vld [vmem:[#allocation14 + $0x170] sm:$0xff]
        %v2683 = vld [vmem:[#allocation14 + $0x178] sm:$0xff]
        %v2684 = vld [vmem:[#allocation14 + $0x180] sm:$0xff]
        %v2685 = vld [vmem:[#allocation14 + $0x188] sm:$0xff]
        %v2686 = vld [vmem:[#allocation14 + $0x190] sm:$0xff]
        %v2687 = vld [vmem:[#allocation14 + $0x198] sm:$0xff]
        %v2688 = vld [vmem:[#allocation14 + $0x1a0] sm:$0xff]
        %v2689 = vld [vmem:[#allocation14 + $0x1a8] sm:$0xff]
        %v2690 = vld [vmem:[#allocation14 + $0x1b0] sm:$0xff]
        %v2691 = vld [vmem:[#allocation14 + $0x1b8] sm:$0xff]
        %v2692 = vld [vmem:[#allocation14 + $0x1c0] sm:$0xff]
        %v2693 = vld [vmem:[#allocation14 + $0x1c8] sm:$0xff]
        %v2694 = vld [vmem:[#allocation14 + $0x1d0] sm:$0xff]
        %v2695 = vld [vmem:[#allocation14 + $0x1d8] sm:$0xff]
        %v2696 = vld [vmem:[#allocation14 + $0x1e0] sm:$0xff]
        %v2697 = vld [vmem:[#allocation14 + $0x1e8] sm:$0xff]
        %v2698 = vld [vmem:[#allocation14 + $0x1f0] sm:$0xff]
        %v2699 = vld [vmem:[#allocation14 + $0x1f8] sm:$0xff]
        %v2700 = vld [vmem:[#allocation14 + $0x200] sm:$0xff]
        %v2701 = vld [vmem:[#allocation14 + $0x208] sm:$0xff]
        %v2702 = vld [vmem:[#allocation14 + $0x210] sm:$0xff]
        %v2703 = vld [vmem:[#allocation14 + $0x218] sm:$0xff]
        %v2704 = vld [vmem:[#allocation14 + $0x220] sm:$0xff]
        %v2705 = vld [vmem:[#allocation14 + $0x228] sm:$0xff]
        %v2706 = vld [vmem:[#allocation14 + $0x230] sm:$0xff]
        %v2707 = vld [vmem:[#allocation14 + $0x238] sm:$0xff]
        %v2708 = vld [vmem:[#allocation14 + $0x240] sm:$0xff]
        %v2709 = vld [vmem:[#allocation14 + $0x248] sm:$0xff]
        %v2710 = vld [vmem:[#allocation14 + $0x250] sm:$0xff]
        %v2711 = vld [vmem:[#allocation14 + $0x258] sm:$0xff]
        %v2712 = vld [vmem:[#allocation14 + $0x260] sm:$0xff]
        %v2713 = vld [vmem:[#allocation14 + $0x268] sm:$0xff]
        %v2714 = vld [vmem:[#allocation14 + $0x270] sm:$0xff]
        %v2715 = vld [vmem:[#allocation14 + $0x278] sm:$0xff]
        %v2716 = vld [vmem:[#allocation14 + $0x280] sm:$0xff]
        %v2717 = vld [vmem:[#allocation14 + $0x288] sm:$0xff]
        %v2718 = vld [vmem:[#allocation14 + $0x290] sm:$0xff]
        %v2719 = vld [vmem:[#allocation14 + $0x298] sm:$0xff]
        %v2720 = vld [vmem:[#allocation14 + $0x2a0] sm:$0xff]
        %v2721 = vld [vmem:[#allocation14 + $0x2a8] sm:$0xff]
        %v2722 = vld [vmem:[#allocation14 + $0x2b0] sm:$0xff]
        %v2723 = vld [vmem:[#allocation14 + $0x2b8] sm:$0xff]
        %v2724 = vld [vmem:[#allocation14 + $0x2c0] sm:$0xff]
        %v2725 = vld [vmem:[#allocation14 + $0x2c8] sm:$0xff]
        %v2726 = vld [vmem:[#allocation14 + $0x2d0] sm:$0xff]
        %v2727 = vld [vmem:[#allocation14 + $0x2d8] sm:$0xff]
        %v2728 = vld [vmem:[#allocation14 + $0x2e0] sm:$0xff]
        %v2729 = vld [vmem:[#allocation14 + $0x2e8] sm:$0xff]
        %v2730 = vld [vmem:[#allocation14 + $0x2f0] sm:$0xff]
        %v2731 = vld [vmem:[#allocation14 + $0x2f8] sm:$0xff]
        %v2732 = vld [vmem:[#allocation14 + $0x300] sm:$0xff]
        %v2733 = vld [vmem:[#allocation14 + $0x308] sm:$0xff]
        %v2734 = vld [vmem:[#allocation14 + $0x310] sm:$0xff]
        %v2735 = vld [vmem:[#allocation14 + $0x318] sm:$0xff]
        %v2736 = vld [vmem:[#allocation14 + $0x320] sm:$0xff]
        %v2737 = vld [vmem:[#allocation14 + $0x328] sm:$0xff]
        %v2738 = vld [vmem:[#allocation14 + $0x330] sm:$0xff]
        %v2739 = vld [vmem:[#allocation14 + $0x338] sm:$0xff]
        %v2740 = vld [vmem:[#allocation14 + $0x340] sm:$0xff]
        %v2741 = vld [vmem:[#allocation14 + $0x348] sm:$0xff]
        %v2742 = vld [vmem:[#allocation14 + $0x350] sm:$0xff]
        %v2743 = vld [vmem:[#allocation14 + $0x358] sm:$0xff]
        %v2744 = vld [vmem:[#allocation14 + $0x360] sm:$0xff]
        %v2745 = vld [vmem:[#allocation14 + $0x368] sm:$0xff]
        %v2746 = vld [vmem:[#allocation14 + $0x370] sm:$0xff]
        %v2747 = vld [vmem:[#allocation14 + $0x378] sm:$0xff]
        %v2748 = vld [vmem:[#allocation14 + $0x380] sm:$0xff]
        %v2749 = vld [vmem:[#allocation14 + $0x388] sm:$0xff]
        %v2750 = vld [vmem:[#allocation14 + $0x390] sm:$0xff]
        %v2751 = vld [vmem:[#allocation14 + $0x398] sm:$0xff]
        %v2752 = vld [vmem:[#allocation14 + $0x3a0] sm:$0xff]
        %v2753 = vld [vmem:[#allocation14 + $0x3a8] sm:$0xff]
        %v2754 = vld [vmem:[#allocation14 + $0x3b0] sm:$0xff]
        %v2755 = vld [vmem:[#allocation14 + $0x3b8] sm:$0xff]
        %v2756 = vld [vmem:[#allocation14 + $0x3c0] sm:$0xff]
        %v2757 = vld [vmem:[#allocation14 + $0x3c8] sm:$0xff]
        %v2758 = vld [vmem:[#allocation14 + $0x3d0] sm:$0xff]
        %v2759 = vld [vmem:[#allocation14 + $0x3d8] sm:$0xff]
        %v2760 = vld [vmem:[#allocation14 + $0x3e0] sm:$0xff]
        %v2761 = vld [vmem:[#allocation14 + $0x3e8] sm:$0xff]
        %v2762 = vld [vmem:[#allocation14 + $0x3f0] sm:$0xff]
        %v2763 = vld [vmem:[#allocation14 + $0x3f8] sm:$0xff]
        %v2764 = vld [vmem:[#allocation14 + $0x400] sm:$0xff]
        %v2765 = vld [vmem:[#allocation14 + $0x408] sm:$0xff]
        %v2766 = vld [vmem:[#allocation14 + $0x410] sm:$0xff]
        %v2767 = vld [vmem:[#allocation14 + $0x418] sm:$0xff]
        %v2768 = vld [vmem:[#allocation14 + $0x420] sm:$0xff]
        %v2769 = vld [vmem:[#allocation14 + $0x428] sm:$0xff]
        %v2770 = vld [vmem:[#allocation14 + $0x430] sm:$0xff]
        %v2771 = vld [vmem:[#allocation14 + $0x438] sm:$0xff]
        %v2772 = vld [vmem:[#allocation14 + $0x440] sm:$0xff]
        %v2773 = vld [vmem:[#allocation14 + $0x448] sm:$0xff]
        %v2774 = vld [vmem:[#allocation14 + $0x450] sm:$0xff]
        %v2775 = vld [vmem:[#allocation14 + $0x458] sm:$0xff]
        %v2776 = vld [vmem:[#allocation14 + $0x460] sm:$0xff]
        %v2777 = vld [vmem:[#allocation14 + $0x468] sm:$0xff]
        %v2778 = vld [vmem:[#allocation14 + $0x470] sm:$0xff]
        %v2779 = vld [vmem:[#allocation14 + $0x478] sm:$0xff]
        %v2780 = vld [vmem:[#allocation14 + $0x480] sm:$0xff]
        %v2781 = vld [vmem:[#allocation14 + $0x488] sm:$0xff]
        %v2782 = vld [vmem:[#allocation14 + $0x490] sm:$0xff]
        %v2783 = vld [vmem:[#allocation14 + $0x498] sm:$0xff]
        %v2784 = vld [vmem:[#allocation14 + $0x4a0] sm:$0xff]
        %v2785 = vld [vmem:[#allocation14 + $0x4a8] sm:$0xff]
        %v2786 = vld [vmem:[#allocation14 + $0x4b0] sm:$0xff]
        %v2787 = vld [vmem:[#allocation14 + $0x4b8] sm:$0xff]
        %v2788 = vld [vmem:[#allocation14 + $0x4c0] sm:$0xff]
        %v2789 = vld [vmem:[#allocation14 + $0x4c8] sm:$0xff]
        %v2790 = vld [vmem:[#allocation14 + $0x4d0] sm:$0xff]
        %v2791 = vld [vmem:[#allocation14 + $0x4d8] sm:$0xff]
        %v2792 = vld [vmem:[#allocation14 + $0x4e0] sm:$0xff]
        %v2793 = vld [vmem:[#allocation14 + $0x4e8] sm:$0xff]
        %v2794 = vld [vmem:[#allocation14 + $0x4f0] sm:$0xff]
        %v2795 = vld [vmem:[#allocation14 + $0x4f8] sm:$0xff]
        %v2796 = vld [vmem:[#allocation14 + $0x500] sm:$0xff]
        %v2797 = vld [vmem:[#allocation14 + $0x508] sm:$0xff]
        %v2798 = vld [vmem:[#allocation14 + $0x510] sm:$0xff]
        %v2799 = vld [vmem:[#allocation14 + $0x518] sm:$0xff]
        %v2800 = vld [vmem:[#allocation14 + $0x520] sm:$0xff]
        %v2801 = vld [vmem:[#allocation14 + $0x528] sm:$0xff]
        %v2802 = vld [vmem:[#allocation14 + $0x530] sm:$0xff]
        %v2803 = vld [vmem:[#allocation14 + $0x538] sm:$0xff]
        %v2804 = vld [vmem:[#allocation14 + $0x540] sm:$0xff]
        %v2805 = vld [vmem:[#allocation14 + $0x548] sm:$0xff]
        %v2806 = vld [vmem:[#allocation14 + $0x550] sm:$0xff]
        %v2807 = vld [vmem:[#allocation14 + $0x558] sm:$0xff]
        %v2808 = vld [vmem:[#allocation14 + $0x560] sm:$0xff]
        %v2809 = vld [vmem:[#allocation14 + $0x568] sm:$0xff]
        %v2810 = vld [vmem:[#allocation14 + $0x570] sm:$0xff]
        %v2811 = vld [vmem:[#allocation14 + $0x578] sm:$0xff]
        %v2812 = vld [vmem:[#allocation14 + $0x580] sm:$0xff]
        %v2813 = vld [vmem:[#allocation14 + $0x588] sm:$0xff]
        %v2814 = vld [vmem:[#allocation14 + $0x590] sm:$0xff]
        %v2815 = vld [vmem:[#allocation14 + $0x598] sm:$0xff]
        %v2816 = vld [vmem:[#allocation14 + $0x5a0] sm:$0xff]
        %v2817 = vld [vmem:[#allocation14 + $0x5a8] sm:$0xff]
        %v2818 = vld [vmem:[#allocation14 + $0x5b0] sm:$0xff]
        %v2819 = vld [vmem:[#allocation14 + $0x5b8] sm:$0xff]
        %v2820 = vld [vmem:[#allocation14 + $0x5c0] sm:$0xff]
        %v2821 = vld [vmem:[#allocation14 + $0x5c8] sm:$0xff]
        %v2822 = vld [vmem:[#allocation14 + $0x5d0] sm:$0xff]
        %v2823 = vld [vmem:[#allocation14 + $0x5d8] sm:$0xff]
        %v2824 = vld [vmem:[#allocation14 + $0x5e0] sm:$0xff]
        %v2825 = vld [vmem:[#allocation14 + $0x5e8] sm:$0xff]
        %v2826 = vld [vmem:[#allocation14 + $0x5f0] sm:$0xff]
        %v2827 = vld [vmem:[#allocation14 + $0x5f8] sm:$0xff]
        %v2828 = vld [vmem:[#allocation14 + $0x600] sm:$0xff]
        %v2829 = vld [vmem:[#allocation14 + $0x608] sm:$0xff]
        %v2830 = vld [vmem:[#allocation14 + $0x610] sm:$0xff]
        %v2831 = vld [vmem:[#allocation14 + $0x618] sm:$0xff]
        %v2832 = vld [vmem:[#allocation14 + $0x620] sm:$0xff]
        %v2833 = vld [vmem:[#allocation14 + $0x628] sm:$0xff]
        %v2834 = vld [vmem:[#allocation14 + $0x630] sm:$0xff]
        %v2835 = vld [vmem:[#allocation14 + $0x638] sm:$0xff]
        %v2836 = vld [vmem:[#allocation14 + $0x640] sm:$0xff]
        %v2837 = vld [vmem:[#allocation14 + $0x648] sm:$0xff]
        %v2838 = vld [vmem:[#allocation14 + $0x650] sm:$0xff]
        %v2839 = vld [vmem:[#allocation14 + $0x658] sm:$0xff]
        %v2840 = vld [vmem:[#allocation14 + $0x660] sm:$0xff]
        %v2841 = vld [vmem:[#allocation14 + $0x668] sm:$0xff]
        %v2842 = vld [vmem:[#allocation14 + $0x670] sm:$0xff]
        %v2843 = vld [vmem:[#allocation14 + $0x678] sm:$0xff]
        %v2844 = vld [vmem:[#allocation14 + $0x680] sm:$0xff]
        %v2845 = vld [vmem:[#allocation14 + $0x688] sm:$0xff]
        %v2846 = vld [vmem:[#allocation14 + $0x690] sm:$0xff]
        %v2847 = vld [vmem:[#allocation14 + $0x698] sm:$0xff]
        %v2848 = vld [vmem:[#allocation14 + $0x6a0] sm:$0xff]
        %v2849 = vld [vmem:[#allocation14 + $0x6a8] sm:$0xff]
        %v2850 = vld [vmem:[#allocation14 + $0x6b0] sm:$0xff]
        %v2851 = vld [vmem:[#allocation14 + $0x6b8] sm:$0xff]
        %v2852 = vld [vmem:[#allocation14 + $0x6c0] sm:$0xff]
        %v2853 = vld [vmem:[#allocation14 + $0x6c8] sm:$0xff]
        %v2854 = vld [vmem:[#allocation14 + $0x6d0] sm:$0xff]
        %v2855 = vld [vmem:[#allocation14 + $0x6d8] sm:$0xff]
        %v2856 = vld [vmem:[#allocation14 + $0x6e0] sm:$0xff]
        %v2857 = vld [vmem:[#allocation14 + $0x6e8] sm:$0xff]
        %v2858 = vld [vmem:[#allocation14 + $0x6f0] sm:$0xff]
        %v2859 = vld [vmem:[#allocation14 + $0x6f8] sm:$0xff]
        %v2860 = vld [vmem:[#allocation14 + $0x700] sm:$0xff]
        %v2861 = vld [vmem:[#allocation14 + $0x708] sm:$0xff]
        %v2862 = vld [vmem:[#allocation14 + $0x710] sm:$0xff]
        %v2863 = vld [vmem:[#allocation14 + $0x718] sm:$0xff]
        %v2864 = vld [vmem:[#allocation14 + $0x720] sm:$0xff]
        %v2865 = vld [vmem:[#allocation14 + $0x728] sm:$0xff]
        %v2866 = vld [vmem:[#allocation14 + $0x730] sm:$0xff]
        %v2867 = vld [vmem:[#allocation14 + $0x738] sm:$0xff]
        %v2868 = vld [vmem:[#allocation14 + $0x740] sm:$0xff]
        %v2869 = vld [vmem:[#allocation14 + $0x748] sm:$0xff]
        %v2870 = vld [vmem:[#allocation14 + $0x750] sm:$0xff]
        %v2871 = vld [vmem:[#allocation14 + $0x758] sm:$0xff]
        %v2872 = vld [vmem:[#allocation14 + $0x760] sm:$0xff]
        %v2873 = vld [vmem:[#allocation14 + $0x768] sm:$0xff]
        %v2874 = vld [vmem:[#allocation14 + $0x770] sm:$0xff]
        %v2875 = vld [vmem:[#allocation14 + $0x778] sm:$0xff]
        %v2876 = vld [vmem:[#allocation14 + $0x780] sm:$0xff]
        %v2877 = vld [vmem:[#allocation14 + $0x788] sm:$0xff]
        %v2878 = vld [vmem:[#allocation14 + $0x790] sm:$0xff]
        %v2879 = vld [vmem:[#allocation14 + $0x798] sm:$0xff]
        %v2880 = vld [vmem:[#allocation14 + $0x7a0] sm:$0xff]
        %v2881 = vld [vmem:[#allocation14 + $0x7a8] sm:$0xff]
        %v2882 = vld [vmem:[#allocation14 + $0x7b0] sm:$0xff]
        %v2883 = vld [vmem:[#allocation14 + $0x7b8] sm:$0xff]
        %v2884 = vld [vmem:[#allocation14 + $0x7c0] sm:$0xff]
        %v2885 = vld [vmem:[#allocation14 + $0x7c8] sm:$0xff]
        %v2886 = vld [vmem:[#allocation14 + $0x7d0] sm:$0xff]
        %v2887 = vld [vmem:[#allocation14 + $0x7d8] sm:$0xff]
        %v2888 = vld [vmem:[#allocation14 + $0x7e0] sm:$0xff]
        %v2889 = vld [vmem:[#allocation14 + $0x7e8] sm:$0xff]
        %v2890 = vld [vmem:[#allocation14 + $0x7f0] sm:$0xff]
        %v2891 = vld [vmem:[#allocation14 + $0x7f8] sm:$0xff]
        %v2892 = vld [vmem:[#allocation14 + $0x800] sm:$0xff]
        %v2893 = vld [vmem:[#allocation14 + $0x808] sm:$0xff]
        %v2894 = vld [vmem:[#allocation14 + $0x810] sm:$0xff]
        %v2895 = vld [vmem:[#allocation14 + $0x818] sm:$0xff]
        %v2896 = vld [vmem:[#allocation14 + $0x820] sm:$0xff]
        %v2897 = vld [vmem:[#allocation14 + $0x828] sm:$0xff]
        %v2898 = vld [vmem:[#allocation14 + $0x830] sm:$0xff]
        %v2899 = vld [vmem:[#allocation14 + $0x838] sm:$0xff]
        %v2900 = vld [vmem:[#allocation14 + $0x840] sm:$0xff]
        %v2901 = vld [vmem:[#allocation14 + $0x848] sm:$0xff]
        %v2902 = vld [vmem:[#allocation14 + $0x850] sm:$0xff]
        %v2903 = vld [vmem:[#allocation14 + $0x858] sm:$0xff]
        %v2904 = vld [vmem:[#allocation14 + $0x860] sm:$0xff]
        %v2905 = vld [vmem:[#allocation14 + $0x868] sm:$0xff]
        %v2906 = vld [vmem:[#allocation14 + $0x870] sm:$0xff]
        %v2907 = vld [vmem:[#allocation14 + $0x878] sm:$0xff]
        %v2908 = vld [vmem:[#allocation14 + $0x880] sm:$0xff]
        %v2909 = vld [vmem:[#allocation14 + $0x888] sm:$0xff]
        %v2910 = vld [vmem:[#allocation14 + $0x890] sm:$0xff]
        %v2911 = vld [vmem:[#allocation14 + $0x898] sm:$0xff]
        %v2912 = vld [vmem:[#allocation14 + $0x8a0] sm:$0xff]
        %v2913 = vld [vmem:[#allocation14 + $0x8a8] sm:$0xff]
        %v2914 = vld [vmem:[#allocation14 + $0x8b0] sm:$0xff]
        %v2915 = vld [vmem:[#allocation14 + $0x8b8] sm:$0xff]
        %v2916 = vld [vmem:[#allocation14 + $0x8c0] sm:$0xff]
        %v2917 = vld [vmem:[#allocation14 + $0x8c8] sm:$0xff]
        %v2918 = vld [vmem:[#allocation14 + $0x8d0] sm:$0xff]
        %v2919 = vld [vmem:[#allocation14 + $0x8d8] sm:$0xff]
        %v2920 = vld [vmem:[#allocation14 + $0x8e0] sm:$0xff]
        %v2921 = vld [vmem:[#allocation14 + $0x8e8] sm:$0xff]
        %v2922 = vld [vmem:[#allocation14 + $0x8f0] sm:$0xff]
        %v2923 = vld [vmem:[#allocation14 + $0x8f8] sm:$0xff]
        %v2924 = vld [vmem:[#allocation14 + $0x900] sm:$0xff]
        %v2925 = vld [vmem:[#allocation14 + $0x908] sm:$0xff]
        %v2926 = vld [vmem:[#allocation14 + $0x910] sm:$0xff]
        %v2927 = vld [vmem:[#allocation14 + $0x918] sm:$0xff]
        %v2928 = vld [vmem:[#allocation14 + $0x920] sm:$0xff]
        %v2929 = vld [vmem:[#allocation14 + $0x928] sm:$0xff]
        %v2930 = vld [vmem:[#allocation14 + $0x930] sm:$0xff]
        %v2931 = vld [vmem:[#allocation14 + $0x938] sm:$0xff]
        %v2932 = vld [vmem:[#allocation14 + $0x940] sm:$0xff]
        %v2933 = vld [vmem:[#allocation14 + $0x948] sm:$0xff]
        %v2934 = vld [vmem:[#allocation14 + $0x950] sm:$0xff]
        %v2935 = vld [vmem:[#allocation14 + $0x958] sm:$0xff]
        %v2936 = vld [vmem:[#allocation14 + $0x960] sm:$0xff]
        %v2937 = vld [vmem:[#allocation14 + $0x968] sm:$0xff]
        %v2938 = vld [vmem:[#allocation14 + $0x970] sm:$0xff]
        %v2939 = vld [vmem:[#allocation14 + $0x978] sm:$0xff]
        %v2940 = vld [vmem:[#allocation14 + $0x980] sm:$0xff]
        %v2941 = vld [vmem:[#allocation14 + $0x988] sm:$0xff]
        %v2942 = vld [vmem:[#allocation14 + $0x990] sm:$0xff]
        %v2943 = vld [vmem:[#allocation14 + $0x998] sm:$0xff]
        %v2944 = vld [vmem:[#allocation14 + $0x9a0] sm:$0xff]
        %v2945 = vld [vmem:[#allocation14 + $0x9a8] sm:$0xff]
        %v2946 = vld [vmem:[#allocation14 + $0x9b0] sm:$0xff]
        %v2947 = vld [vmem:[#allocation14 + $0x9b8] sm:$0xff]
        %v2948 = vld [vmem:[#allocation14 + $0x9c0] sm:$0xff]
        %v2949 = vld [vmem:[#allocation14 + $0x9c8] sm:$0xff]
        %v2950 = vld [vmem:[#allocation14 + $0x9d0] sm:$0xff]
        %v2951 = vld [vmem:[#allocation14 + $0x9d8] sm:$0xff]
        %v2952 = vld [vmem:[#allocation14 + $0x9e0] sm:$0xff]
        %v2953 = vld [vmem:[#allocation14 + $0x9e8] sm:$0xff]
        %v2954 = vld [vmem:[#allocation14 + $0x9f0] sm:$0xff]
        %v2955 = vld [vmem:[#allocation14 + $0x9f8] sm:$0xff]
        %v2956 = vld [vmem:[#allocation14 + $0xa00] sm:$0xff]
        %v2957 = vld [vmem:[#allocation14 + $0xa08] sm:$0xff]
        %v2958 = vld [vmem:[#allocation14 + $0xa10] sm:$0xff]
        %v2959 = vld [vmem:[#allocation14 + $0xa18] sm:$0xff]
        %v2960 = vld [vmem:[#allocation14 + $0xa20] sm:$0xff]
        %v2961 = vld [vmem:[#allocation14 + $0xa28] sm:$0xff]
        %v2962 = vld [vmem:[#allocation14 + $0xa30] sm:$0xff]
        %v2963 = vld [vmem:[#allocation14 + $0xa38] sm:$0xff]
        %v2964 = vld [vmem:[#allocation14 + $0xa40] sm:$0xff]
        %v2965 = vld [vmem:[#allocation14 + $0xa48] sm:$0xff]
        %v2966 = vld [vmem:[#allocation14 + $0xa50] sm:$0xff]
        %v2967 = vld [vmem:[#allocation14 + $0xa58] sm:$0xff]
        %v2968 = vld [vmem:[#allocation14 + $0xa60] sm:$0xff]
        %v2969 = vld [vmem:[#allocation14 + $0xa68] sm:$0xff]
        %v2970 = vld [vmem:[#allocation14 + $0xa70] sm:$0xff]
        %v2971 = vld [vmem:[#allocation14 + $0xa78] sm:$0xff]
        %v2972 = vld [vmem:[#allocation14 + $0xa80] sm:$0xff]
        %v2973 = vld [vmem:[#allocation14 + $0xa88] sm:$0xff]
        %v2974 = vld [vmem:[#allocation14 + $0xa90] sm:$0xff]
        %v2975 = vld [vmem:[#allocation14 + $0xa98] sm:$0xff]
        %v2976 = vld [vmem:[#allocation14 + $0xaa0] sm:$0xff]
        %v2977 = vld [vmem:[#allocation14 + $0xaa8] sm:$0xff]
        %v2978 = vld [vmem:[#allocation14 + $0xab0] sm:$0xff]
        %v2979 = vld [vmem:[#allocation14 + $0xab8] sm:$0xff]
        %v2980 = vld [vmem:[#allocation14 + $0xac0] sm:$0xff]
        %v2981 = vld [vmem:[#allocation14 + $0xac8] sm:$0xff]
        %v2982 = vld [vmem:[#allocation14 + $0xad0] sm:$0xff]
        %v2983 = vld [vmem:[#allocation14 + $0xad8] sm:$0xff]
        %v2984 = vld [vmem:[#allocation14 + $0xae0] sm:$0xff]
        %v2985 = vld [vmem:[#allocation14 + $0xae8] sm:$0xff]
        %v2986 = vld [vmem:[#allocation14 + $0xaf0] sm:$0xff]
        %v2987 = vld [vmem:[#allocation14 + $0xaf8] sm:$0xff]
        %v2988 = vld [vmem:[#allocation14 + $0xb00] sm:$0xff]
        %v2989 = vld [vmem:[#allocation14 + $0xb08] sm:$0xff]
        %v2990 = vld [vmem:[#allocation14 + $0xb10] sm:$0xff]
        %v2991 = vld [vmem:[#allocation14 + $0xb18] sm:$0xff]
        %v2992 = vld [vmem:[#allocation14 + $0xb20] sm:$0xff]
        %v2993 = vld [vmem:[#allocation14 + $0xb28] sm:$0xff]
        %v2994 = vld [vmem:[#allocation14 + $0xb30] sm:$0xff]
        %v2995 = vld [vmem:[#allocation14 + $0xb38] sm:$0xff]
        %v2996 = vld [vmem:[#allocation14 + $0xb40] sm:$0xff]
        %v2997 = vld [vmem:[#allocation14 + $0xb48] sm:$0xff]
        %v2998 = vld [vmem:[#allocation14 + $0xb50] sm:$0xff]
        %v2999 = vld [vmem:[#allocation14 + $0xb58] sm:$0xff]
        %v3000 = vld [vmem:[#allocation14 + $0xb60] sm:$0xff]
        %v3001 = vld [vmem:[#allocation14 + $0xb68] sm:$0xff]
        %v3002 = vld [vmem:[#allocation14 + $0xb70] sm:$0xff]
        %v3003 = vld [vmem:[#allocation14 + $0xb78] sm:$0xff]
        %v3004 = vld [vmem:[#allocation14 + $0xb80] sm:$0xff]
        %v3005 = vld [vmem:[#allocation14 + $0xb88] sm:$0xff]
        %v3006 = vld [vmem:[#allocation14 + $0xb90] sm:$0xff]
        %v3007 = vld [vmem:[#allocation14 + $0xb98] sm:$0xff]
        %v3008 = vld [vmem:[#allocation14 + $0xba0] sm:$0xff]
        %v3009 = vld [vmem:[#allocation14 + $0xba8] sm:$0xff]
        %v3010 = vld [vmem:[#allocation14 + $0xbb0] sm:$0xff]
        %v3011 = vld [vmem:[#allocation14 + $0xbb8] sm:$0xff]
        %v3012 = vld [vmem:[#allocation14 + $0xbc0] sm:$0xff]
        %v3013 = vld [vmem:[#allocation14 + $0xbc8] sm:$0xff]
        %v3014 = vld [vmem:[#allocation14 + $0xbd0] sm:$0xff]
        %v3015 = vld [vmem:[#allocation14 + $0xbd8] sm:$0xff]
        %v3016 = vld [vmem:[#allocation14 + $0xbe0] sm:$0xff]
        %v3017 = vld [vmem:[#allocation14 + $0xbe8] sm:$0xff]
        %v3018 = vld [vmem:[#allocation14 + $0xbf0] sm:$0xff]
        %v3019 = vld [vmem:[#allocation14 + $0xbf8] sm:$0xff]
        %v3020 = vld [vmem:[#allocation14 + $0xc00] sm:$0xff]
        %v3021 = vld [vmem:[#allocation14 + $0xc08] sm:$0xff]
        %v3022 = vld [vmem:[#allocation14 + $0xc10] sm:$0xff]
        %v3023 = vld [vmem:[#allocation14 + $0xc18] sm:$0xff]
        %v3024 = vld [vmem:[#allocation14 + $0xc20] sm:$0xff]
        %v3025 = vld [vmem:[#allocation14 + $0xc28] sm:$0xff]
        %v3026 = vld [vmem:[#allocation14 + $0xc30] sm:$0xff]
        %v3027 = vld [vmem:[#allocation14 + $0xc38] sm:$0xff]
        %v3028 = vld [vmem:[#allocation14 + $0xc40] sm:$0xff]
        %v3029 = vld [vmem:[#allocation14 + $0xc48] sm:$0xff]
        %v3030 = vld [vmem:[#allocation14 + $0xc50] sm:$0xff]
        %v3031 = vld [vmem:[#allocation14 + $0xc58] sm:$0xff]
        %v3032 = vld [vmem:[#allocation14 + $0xc60] sm:$0xff]
        %v3033 = vld [vmem:[#allocation14 + $0xc68] sm:$0xff]
        %v3034 = vld [vmem:[#allocation14 + $0xc70] sm:$0xff]
        %v3035 = vld [vmem:[#allocation14 + $0xc78] sm:$0xff]
        %v3036 = vld [vmem:[#allocation14 + $0xc80] sm:$0xff]
        %v3037 = vld [vmem:[#allocation14 + $0xc88] sm:$0xff]
        %v3038 = vld [vmem:[#allocation14 + $0xc90] sm:$0xff]
        %v3039 = vld [vmem:[#allocation14 + $0xc98] sm:$0xff]
        %v3040 = vld [vmem:[#allocation14 + $0xca0] sm:$0xff]
        %v3041 = vld [vmem:[#allocation14 + $0xca8] sm:$0xff]
        %v3042 = vld [vmem:[#allocation14 + $0xcb0] sm:$0xff]
        %v3043 = vld [vmem:[#allocation14 + $0xcb8] sm:$0xff]
        %v3044 = vld [vmem:[#allocation14 + $0xcc0] sm:$0xff]
        %v3045 = vld [vmem:[#allocation14 + $0xcc8] sm:$0xff]
        %v3046 = vld [vmem:[#allocation14 + $0xcd0] sm:$0xff]
        %v3047 = vld [vmem:[#allocation14 + $0xcd8] sm:$0xff]
        %v3048 = vld [vmem:[#allocation14 + $0xce0] sm:$0xff]
        %v3049 = vld [vmem:[#allocation14 + $0xce8] sm:$0xff]
        %v3050 = vld [vmem:[#allocation14 + $0xcf0] sm:$0xff]
        %v3051 = vld [vmem:[#allocation14 + $0xcf8] sm:$0xff]
        %v3052 = vld [vmem:[#allocation14 + $0xd00] sm:$0xff]
        %v3053 = vld [vmem:[#allocation14 + $0xd08] sm:$0xff]
        %v3054 = vld [vmem:[#allocation14 + $0xd10] sm:$0xff]
        %v3055 = vld [vmem:[#allocation14 + $0xd18] sm:$0xff]
        %v3056 = vld [vmem:[#allocation14 + $0xd20] sm:$0xff]
        %v3057 = vld [vmem:[#allocation14 + $0xd28] sm:$0xff]
        %v3058 = vld [vmem:[#allocation14 + $0xd30] sm:$0xff]
        %v3059 = vld [vmem:[#allocation14 + $0xd38] sm:$0xff]
        %v3060 = vld [vmem:[#allocation14 + $0xd40] sm:$0xff]
        %v3061 = vld [vmem:[#allocation14 + $0xd48] sm:$0xff]
        %v3062 = vld [vmem:[#allocation14 + $0xd50] sm:$0xff]
        %v3063 = vld [vmem:[#allocation14 + $0xd58] sm:$0xff]
        %v3064 = vld [vmem:[#allocation14 + $0xd60] sm:$0xff]
        %v3065 = vld [vmem:[#allocation14 + $0xd68] sm:$0xff]
        %v3066 = vld [vmem:[#allocation14 + $0xd70] sm:$0xff]
        %v3067 = vld [vmem:[#allocation14 + $0xd78] sm:$0xff]
        %v3068 = vld [vmem:[#allocation14 + $0xd80] sm:$0xff]
        %v3069 = vld [vmem:[#allocation14 + $0xd88] sm:$0xff]
        %v3070 = vld [vmem:[#allocation14 + $0xd90] sm:$0xff]
        %v3071 = vld [vmem:[#allocation14 + $0xd98] sm:$0xff]
        %v3072 = vld [vmem:[#allocation14 + $0xda0] sm:$0xff]
        %v3073 = vld [vmem:[#allocation14 + $0xda8] sm:$0xff]
        %v3074 = vld [vmem:[#allocation14 + $0xdb0] sm:$0xff]
        %v3075 = vld [vmem:[#allocation14 + $0xdb8] sm:$0xff]
        %v3076 = vld [vmem:[#allocation14 + $0xdc0] sm:$0xff]
        %v3077 = vld [vmem:[#allocation14 + $0xdc8] sm:$0xff]
        %v3078 = vld [vmem:[#allocation14 + $0xdd0] sm:$0xff]
        %v3079 = vld [vmem:[#allocation14 + $0xdd8] sm:$0xff]
        %v3080 = vld [vmem:[#allocation14 + $0xde0] sm:$0xff]
        %v3081 = vld [vmem:[#allocation14 + $0xde8] sm:$0xff]
        %v3082 = vld [vmem:[#allocation14 + $0xdf0] sm:$0xff]
        %v3083 = vld [vmem:[#allocation14 + $0xdf8] sm:$0xff]
        %v3084 = vld [vmem:[#allocation14 + $0xe00] sm:$0xff]
        %v3085 = vld [vmem:[#allocation14 + $0xe08] sm:$0xff]
        %v3086 = vld [vmem:[#allocation14 + $0xe10] sm:$0xff]
        %v3087 = vld [vmem:[#allocation14 + $0xe18] sm:$0xff]
        %v3088 = vld [vmem:[#allocation14 + $0xe20] sm:$0xff]
        %v3089 = vld [vmem:[#allocation14 + $0xe28] sm:$0xff]
        %v3090 = vld [vmem:[#allocation14 + $0xe30] sm:$0xff]
        %v3091 = vld [vmem:[#allocation14 + $0xe38] sm:$0xff]
        %v3092 = vld [vmem:[#allocation14 + $0xe40] sm:$0xff]
        %v3093 = vld [vmem:[#allocation14 + $0xe48] sm:$0xff]
        %v3094 = vld [vmem:[#allocation14 + $0xe50] sm:$0xff]
        %v3095 = vld [vmem:[#allocation14 + $0xe58] sm:$0xff]
        %v3096 = vld [vmem:[#allocation14 + $0xe60] sm:$0xff]
        %v3097 = vld [vmem:[#allocation14 + $0xe68] sm:$0xff]
        %v3098 = vld [vmem:[#allocation14 + $0xe70] sm:$0xff]
        %v3099 = vld [vmem:[#allocation14 + $0xe78] sm:$0xff]
        %v3100 = vld [vmem:[#allocation14 + $0xe80] sm:$0xff]
        %v3101 = vld [vmem:[#allocation14 + $0xe88] sm:$0xff]
        %v3102 = vld [vmem:[#allocation14 + $0xe90] sm:$0xff]
        %v3103 = vld [vmem:[#allocation14 + $0xe98] sm:$0xff]
        %v3104 = vld [vmem:[#allocation14 + $0xea0] sm:$0xff]
        %v3105 = vld [vmem:[#allocation14 + $0xea8] sm:$0xff]
        %v3106 = vld [vmem:[#allocation14 + $0xeb0] sm:$0xff]
        %v3107 = vld [vmem:[#allocation14 + $0xeb8] sm:$0xff]
        %v3108 = vld [vmem:[#allocation14 + $0xec0] sm:$0xff]
        %v3109 = vld [vmem:[#allocation14 + $0xec8] sm:$0xff]
        %v3110 = vld [vmem:[#allocation14 + $0xed0] sm:$0xff]
        %v3111 = vld [vmem:[#allocation14 + $0xed8] sm:$0xff]
        %v3112 = vld [vmem:[#allocation14 + $0xee0] sm:$0xff]
        %v3113 = vld [vmem:[#allocation14 + $0xee8] sm:$0xff]
        %v3114 = vld [vmem:[#allocation14 + $0xef0] sm:$0xff]
        %v3115 = vld [vmem:[#allocation14 + $0xef8] sm:$0xff]
        %v3116 = vld [vmem:[#allocation14 + $0xf00] sm:$0xff]
        %v3117 = vld [vmem:[#allocation14 + $0xf08] sm:$0xff]
        %v3118 = vld [vmem:[#allocation14 + $0xf10] sm:$0xff]
        %v3119 = vld [vmem:[#allocation14 + $0xf18] sm:$0xff]
        %v3120 = vld [vmem:[#allocation14 + $0xf20] sm:$0xff]
        %v3121 = vld [vmem:[#allocation14 + $0xf28] sm:$0xff]
        %v3122 = vld [vmem:[#allocation14 + $0xf30] sm:$0xff]
        %v3123 = vld [vmem:[#allocation14 + $0xf38] sm:$0xff]
        %v3124 = vld [vmem:[#allocation14 + $0xf40] sm:$0xff]
        %v3125 = vld [vmem:[#allocation14 + $0xf48] sm:$0xff]
        %v3126 = vld [vmem:[#allocation14 + $0xf50] sm:$0xff]
        %v3127 = vld [vmem:[#allocation14 + $0xf58] sm:$0xff]
        %v3128 = vld [vmem:[#allocation14 + $0xf60] sm:$0xff]
        %v3129 = vld [vmem:[#allocation14 + $0xf68] sm:$0xff]
        %v3130 = vld [vmem:[#allocation14 + $0xf70] sm:$0xff]
        %v3131 = vld [vmem:[#allocation14 + $0xf78] sm:$0xff]
        %v3132 = vld [vmem:[#allocation14 + $0xf80] sm:$0xff]
        %v3133 = vld [vmem:[#allocation14 + $0xf88] sm:$0xff]
        %v3134 = vld [vmem:[#allocation14 + $0xf90] sm:$0xff]
        %v3135 = vld [vmem:[#allocation14 + $0xf98] sm:$0xff]
        %v3136 = vld [vmem:[#allocation14 + $0xfa0] sm:$0xff]
        %v3137 = vld [vmem:[#allocation14 + $0xfa8] sm:$0xff]
        %v3138 = vld [vmem:[#allocation14 + $0xfb0] sm:$0xff]
        %v3139 = vld [vmem:[#allocation14 + $0xfb8] sm:$0xff]
        %v3140 = vld [vmem:[#allocation14 + $0xfc0] sm:$0xff]
        %v3141 = vld [vmem:[#allocation14 + $0xfc8] sm:$0xff]
        %v3142 = vld [vmem:[#allocation14 + $0xfd0] sm:$0xff]
        %v3143 = vld [vmem:[#allocation14 + $0xfd8] sm:$0xff]
        %v3144 = vld [vmem:[#allocation14 + $0xfe0] sm:$0xff]
        %v3145 = vld [vmem:[#allocation14 + $0xfe8] sm:$0xff]
        %v3146 = vld [vmem:[#allocation14 + $0xff0] sm:$0xff]
        %v3147 = vld [vmem:[#allocation14 + $0xff8] sm:$0xff]
        %v3148 = vld [vmem:[#allocation15] sm:$0xf]
        %v3661 = vunpack.c.l.b16 %v2636
        %v3662 = vunpack.c.h.b16 %v2636
        %v3663 = vunpack.c.l.b16 %v2637
        %v3664 = vunpack.c.h.b16 %v2637
        %v3665 = vunpack.c.l.b16 %v2638
        %v3666 = vunpack.c.h.b16 %v2638
        %v3667 = vunpack.c.l.b16 %v2639
        %v3668 = vunpack.c.h.b16 %v2639
        %v3669 = vunpack.c.l.b16 %v2640
        %v3670 = vunpack.c.h.b16 %v2640
        %v3671 = vunpack.c.l.b16 %v2641
        %v3672 = vunpack.c.h.b16 %v2641
        %v3673 = vunpack.c.l.b16 %v2642
        %v3674 = vunpack.c.h.b16 %v2642
        %v3675 = vunpack.c.l.b16 %v2643
        %v3676 = vunpack.c.h.b16 %v2643
        %v3677 = vunpack.c.l.b16 %v2644
        %v3678 = vunpack.c.h.b16 %v2644
        %v3679 = vunpack.c.l.b16 %v2645
        %v3680 = vunpack.c.h.b16 %v2645
        %v3681 = vunpack.c.l.b16 %v2646
        %v3682 = vunpack.c.h.b16 %v2646
        %v3683 = vunpack.c.l.b16 %v2647
        %v3684 = vunpack.c.h.b16 %v2647
        %v3685 = vunpack.c.l.b16 %v2648
        %v3686 = vunpack.c.h.b16 %v2648
        %v3687 = vunpack.c.l.b16 %v2649
        %v3688 = vunpack.c.h.b16 %v2649
        %v3689 = vunpack.c.l.b16 %v2650
        %v3690 = vunpack.c.h.b16 %v2650
        %v3691 = vunpack.c.l.b16 %v2651
        %v3692 = vunpack.c.h.b16 %v2651
        %v3693 = vunpack.c.l.b16 %v2652
        %v3694 = vunpack.c.h.b16 %v2652
        %v3695 = vunpack.c.l.b16 %v2653
        %v3696 = vunpack.c.h.b16 %v2653
        %v3697 = vunpack.c.l.b16 %v2654
        %v3698 = vunpack.c.h.b16 %v2654
        %v3699 = vunpack.c.l.b16 %v2655
        %v3700 = vunpack.c.h.b16 %v2655
        %v3701 = vunpack.c.l.b16 %v2656
        %v3702 = vunpack.c.h.b16 %v2656
        %v3703 = vunpack.c.l.b16 %v2657
        %v3704 = vunpack.c.h.b16 %v2657
        %v3705 = vunpack.c.l.b16 %v2658
        %v3706 = vunpack.c.h.b16 %v2658
        %v3707 = vunpack.c.l.b16 %v2659
        %v3708 = vunpack.c.h.b16 %v2659
        %v3709 = vunpack.c.l.b16 %v2660
        %v3710 = vunpack.c.h.b16 %v2660
        %v3711 = vunpack.c.l.b16 %v2661
        %v3712 = vunpack.c.h.b16 %v2661
        %v3713 = vunpack.c.l.b16 %v2662
        %v3714 = vunpack.c.h.b16 %v2662
        %v3715 = vunpack.c.l.b16 %v2663
        %v3716 = vunpack.c.h.b16 %v2663
        %v3717 = vunpack.c.l.b16 %v2664
        %v3718 = vunpack.c.h.b16 %v2664
        %v3719 = vunpack.c.l.b16 %v2665
        %v3720 = vunpack.c.h.b16 %v2665
        %v3721 = vunpack.c.l.b16 %v2666
        %v3722 = vunpack.c.h.b16 %v2666
        %v3723 = vunpack.c.l.b16 %v2667
        %v3724 = vunpack.c.h.b16 %v2667
        %v3725 = vunpack.c.l.b16 %v2668
        %v3726 = vunpack.c.h.b16 %v2668
        %v3727 = vunpack.c.l.b16 %v2669
        %v3728 = vunpack.c.h.b16 %v2669
        %v3729 = vunpack.c.l.b16 %v2670
        %v3730 = vunpack.c.h.b16 %v2670
        %v3731 = vunpack.c.l.b16 %v2671
        %v3732 = vunpack.c.h.b16 %v2671
        %v3733 = vunpack.c.l.b16 %v2672
        %v3734 = vunpack.c.h.b16 %v2672
        %v3735 = vunpack.c.l.b16 %v2673
        %v3736 = vunpack.c.h.b16 %v2673
        %v3737 = vunpack.c.l.b16 %v2674
        %v3738 = vunpack.c.h.b16 %v2674
        %v3739 = vunpack.c.l.b16 %v2675
        %v3740 = vunpack.c.h.b16 %v2675
        %v3741 = vunpack.c.l.b16 %v2676
        %v3742 = vunpack.c.h.b16 %v2676
        %v3743 = vunpack.c.l.b16 %v2677
        %v3744 = vunpack.c.h.b16 %v2677
        %v3745 = vunpack.c.l.b16 %v2678
        %v3746 = vunpack.c.h.b16 %v2678
        %v3747 = vunpack.c.l.b16 %v2679
        %v3748 = vunpack.c.h.b16 %v2679
        %v3749 = vunpack.c.l.b16 %v2680
        %v3750 = vunpack.c.h.b16 %v2680
        %v3751 = vunpack.c.l.b16 %v2681
        %v3752 = vunpack.c.h.b16 %v2681
        %v3753 = vunpack.c.l.b16 %v2682
        %v3754 = vunpack.c.h.b16 %v2682
        %v3755 = vunpack.c.l.b16 %v2683
        %v3756 = vunpack.c.h.b16 %v2683
        %v3757 = vunpack.c.l.b16 %v2684
        %v3758 = vunpack.c.h.b16 %v2684
        %v3759 = vunpack.c.l.b16 %v2685
        %v3760 = vunpack.c.h.b16 %v2685
        %v3761 = vunpack.c.l.b16 %v2686
        %v3762 = vunpack.c.h.b16 %v2686
        %v3763 = vunpack.c.l.b16 %v2687
        %v3764 = vunpack.c.h.b16 %v2687
        %v3765 = vunpack.c.l.b16 %v2688
        %v3766 = vunpack.c.h.b16 %v2688
        %v3767 = vunpack.c.l.b16 %v2689
        %v3768 = vunpack.c.h.b16 %v2689
        %v3769 = vunpack.c.l.b16 %v2690
        %v3770 = vunpack.c.h.b16 %v2690
        %v3771 = vunpack.c.l.b16 %v2691
        %v3772 = vunpack.c.h.b16 %v2691
        %v3773 = vunpack.c.l.b16 %v2692
        %v3774 = vunpack.c.h.b16 %v2692
        %v3775 = vunpack.c.l.b16 %v2693
        %v3776 = vunpack.c.h.b16 %v2693
        %v3777 = vunpack.c.l.b16 %v2694
        %v3778 = vunpack.c.h.b16 %v2694
        %v3779 = vunpack.c.l.b16 %v2695
        %v3780 = vunpack.c.h.b16 %v2695
        %v3781 = vunpack.c.l.b16 %v2696
        %v3782 = vunpack.c.h.b16 %v2696
        %v3783 = vunpack.c.l.b16 %v2697
        %v3784 = vunpack.c.h.b16 %v2697
        %v3785 = vunpack.c.l.b16 %v2698
        %v3786 = vunpack.c.h.b16 %v2698
        %v3787 = vunpack.c.l.b16 %v2699
        %v3788 = vunpack.c.h.b16 %v2699
        %v3789 = vunpack.c.l.b16 %v2700
        %v3790 = vunpack.c.h.b16 %v2700
        %v3791 = vunpack.c.l.b16 %v2701
        %v3792 = vunpack.c.h.b16 %v2701
        %v3793 = vunpack.c.l.b16 %v2702
        %v3794 = vunpack.c.h.b16 %v2702
        %v3795 = vunpack.c.l.b16 %v2703
        %v3796 = vunpack.c.h.b16 %v2703
        %v3797 = vunpack.c.l.b16 %v2704
        %v3798 = vunpack.c.h.b16 %v2704
        %v3799 = vunpack.c.l.b16 %v2705
        %v3800 = vunpack.c.h.b16 %v2705
        %v3801 = vunpack.c.l.b16 %v2706
        %v3802 = vunpack.c.h.b16 %v2706
        %v3803 = vunpack.c.l.b16 %v2707
        %v3804 = vunpack.c.h.b16 %v2707
        %v3805 = vunpack.c.l.b16 %v2708
        %v3806 = vunpack.c.h.b16 %v2708
        %v3807 = vunpack.c.l.b16 %v2709
        %v3808 = vunpack.c.h.b16 %v2709
        %v3809 = vunpack.c.l.b16 %v2710
        %v3810 = vunpack.c.h.b16 %v2710
        %v3811 = vunpack.c.l.b16 %v2711
        %v3812 = vunpack.c.h.b16 %v2711
        %v3813 = vunpack.c.l.b16 %v2712
        %v3814 = vunpack.c.h.b16 %v2712
        %v3815 = vunpack.c.l.b16 %v2713
        %v3816 = vunpack.c.h.b16 %v2713
        %v3817 = vunpack.c.l.b16 %v2714
        %v3818 = vunpack.c.h.b16 %v2714
        %v3819 = vunpack.c.l.b16 %v2715
        %v3820 = vunpack.c.h.b16 %v2715
        %v3821 = vunpack.c.l.b16 %v2716
        %v3822 = vunpack.c.h.b16 %v2716
        %v3823 = vunpack.c.l.b16 %v2717
        %v3824 = vunpack.c.h.b16 %v2717
        %v3825 = vunpack.c.l.b16 %v2718
        %v3826 = vunpack.c.h.b16 %v2718
        %v3827 = vunpack.c.l.b16 %v2719
        %v3828 = vunpack.c.h.b16 %v2719
        %v3829 = vunpack.c.l.b16 %v2720
        %v3830 = vunpack.c.h.b16 %v2720
        %v3831 = vunpack.c.l.b16 %v2721
        %v3832 = vunpack.c.h.b16 %v2721
        %v3833 = vunpack.c.l.b16 %v2722
        %v3834 = vunpack.c.h.b16 %v2722
        %v3835 = vunpack.c.l.b16 %v2723
        %v3836 = vunpack.c.h.b16 %v2723
        %v3837 = vunpack.c.l.b16 %v2724
        %v3838 = vunpack.c.h.b16 %v2724
        %v3839 = vunpack.c.l.b16 %v2725
        %v3840 = vunpack.c.h.b16 %v2725
        %v3841 = vunpack.c.l.b16 %v2726
        %v3842 = vunpack.c.h.b16 %v2726
        %v3843 = vunpack.c.l.b16 %v2727
        %v3844 = vunpack.c.h.b16 %v2727
        %v3845 = vunpack.c.l.b16 %v2728
        %v3846 = vunpack.c.h.b16 %v2728
        %v3847 = vunpack.c.l.b16 %v2729
        %v3848 = vunpack.c.h.b16 %v2729
        %v3849 = vunpack.c.l.b16 %v2730
        %v3850 = vunpack.c.h.b16 %v2730
        %v3851 = vunpack.c.l.b16 %v2731
        %v3852 = vunpack.c.h.b16 %v2731
        %v3853 = vunpack.c.l.b16 %v2732
        %v3854 = vunpack.c.h.b16 %v2732
        %v3855 = vunpack.c.l.b16 %v2733
        %v3856 = vunpack.c.h.b16 %v2733
        %v3857 = vunpack.c.l.b16 %v2734
        %v3858 = vunpack.c.h.b16 %v2734
        %v3859 = vunpack.c.l.b16 %v2735
        %v3860 = vunpack.c.h.b16 %v2735
        %v3861 = vunpack.c.l.b16 %v2736
        %v3862 = vunpack.c.h.b16 %v2736
        %v3863 = vunpack.c.l.b16 %v2737
        %v3864 = vunpack.c.h.b16 %v2737
        %v3865 = vunpack.c.l.b16 %v2738
        %v3866 = vunpack.c.h.b16 %v2738
        %v3867 = vunpack.c.l.b16 %v2739
        %v3868 = vunpack.c.h.b16 %v2739
        %v3869 = vunpack.c.l.b16 %v2740
        %v3870 = vunpack.c.h.b16 %v2740
        %v3871 = vunpack.c.l.b16 %v2741
        %v3872 = vunpack.c.h.b16 %v2741
        %v3873 = vunpack.c.l.b16 %v2742
        %v3874 = vunpack.c.h.b16 %v2742
        %v3875 = vunpack.c.l.b16 %v2743
        %v3876 = vunpack.c.h.b16 %v2743
        %v3877 = vunpack.c.l.b16 %v2744
        %v3878 = vunpack.c.h.b16 %v2744
        %v3879 = vunpack.c.l.b16 %v2745
        %v3880 = vunpack.c.h.b16 %v2745
        %v3881 = vunpack.c.l.b16 %v2746
        %v3882 = vunpack.c.h.b16 %v2746
        %v3883 = vunpack.c.l.b16 %v2747
        %v3884 = vunpack.c.h.b16 %v2747
        %v3885 = vunpack.c.l.b16 %v2748
        %v3886 = vunpack.c.h.b16 %v2748
        %v3887 = vunpack.c.l.b16 %v2749
        %v3888 = vunpack.c.h.b16 %v2749
        %v3889 = vunpack.c.l.b16 %v2750
        %v3890 = vunpack.c.h.b16 %v2750
        %v3891 = vunpack.c.l.b16 %v2751
        %v3892 = vunpack.c.h.b16 %v2751
        %v3893 = vunpack.c.l.b16 %v2752
        %v3894 = vunpack.c.h.b16 %v2752
        %v3895 = vunpack.c.l.b16 %v2753
        %v3896 = vunpack.c.h.b16 %v2753
        %v3897 = vunpack.c.l.b16 %v2754
        %v3898 = vunpack.c.h.b16 %v2754
        %v3899 = vunpack.c.l.b16 %v2755
        %v3900 = vunpack.c.h.b16 %v2755
        %v3901 = vunpack.c.l.b16 %v2756
        %v3902 = vunpack.c.h.b16 %v2756
        %v3903 = vunpack.c.l.b16 %v2757
        %v3904 = vunpack.c.h.b16 %v2757
        %v3905 = vunpack.c.l.b16 %v2758
        %v3906 = vunpack.c.h.b16 %v2758
        %v3907 = vunpack.c.l.b16 %v2759
        %v3908 = vunpack.c.h.b16 %v2759
        %v3909 = vunpack.c.l.b16 %v2760
        %v3910 = vunpack.c.h.b16 %v2760
        %v3911 = vunpack.c.l.b16 %v2761
        %v3912 = vunpack.c.h.b16 %v2761
        %v3913 = vunpack.c.l.b16 %v2762
        %v3914 = vunpack.c.h.b16 %v2762
        %v3915 = vunpack.c.l.b16 %v2763
        %v3916 = vunpack.c.h.b16 %v2763
        %v3917 = vunpack.c.l.b16 %v2764
        %v3918 = vunpack.c.h.b16 %v2764
        %v3919 = vunpack.c.l.b16 %v2765
        %v3920 = vunpack.c.h.b16 %v2765
        %v3921 = vunpack.c.l.b16 %v2766
        %v3922 = vunpack.c.h.b16 %v2766
        %v3923 = vunpack.c.l.b16 %v2767
        %v3924 = vunpack.c.h.b16 %v2767
        %v3925 = vunpack.c.l.b16 %v2768
        %v3926 = vunpack.c.h.b16 %v2768
        %v3927 = vunpack.c.l.b16 %v2769
        %v3928 = vunpack.c.h.b16 %v2769
        %v3929 = vunpack.c.l.b16 %v2770
        %v3930 = vunpack.c.h.b16 %v2770
        %v3931 = vunpack.c.l.b16 %v2771
        %v3932 = vunpack.c.h.b16 %v2771
        %v3933 = vunpack.c.l.b16 %v2772
        %v3934 = vunpack.c.h.b16 %v2772
        %v3935 = vunpack.c.l.b16 %v2773
        %v3936 = vunpack.c.h.b16 %v2773
        %v3937 = vunpack.c.l.b16 %v2774
        %v3938 = vunpack.c.h.b16 %v2774
        %v3939 = vunpack.c.l.b16 %v2775
        %v3940 = vunpack.c.h.b16 %v2775
        %v3941 = vunpack.c.l.b16 %v2776
        %v3942 = vunpack.c.h.b16 %v2776
        %v3943 = vunpack.c.l.b16 %v2777
        %v3944 = vunpack.c.h.b16 %v2777
        %v3945 = vunpack.c.l.b16 %v2778
        %v3946 = vunpack.c.h.b16 %v2778
        %v3947 = vunpack.c.l.b16 %v2779
        %v3948 = vunpack.c.h.b16 %v2779
        %v3949 = vunpack.c.l.b16 %v2780
        %v3950 = vunpack.c.h.b16 %v2780
        %v3951 = vunpack.c.l.b16 %v2781
        %v3952 = vunpack.c.h.b16 %v2781
        %v3953 = vunpack.c.l.b16 %v2782
        %v3954 = vunpack.c.h.b16 %v2782
        %v3955 = vunpack.c.l.b16 %v2783
        %v3956 = vunpack.c.h.b16 %v2783
        %v3957 = vunpack.c.l.b16 %v2784
        %v3958 = vunpack.c.h.b16 %v2784
        %v3959 = vunpack.c.l.b16 %v2785
        %v3960 = vunpack.c.h.b16 %v2785
        %v3961 = vunpack.c.l.b16 %v2786
        %v3962 = vunpack.c.h.b16 %v2786
        %v3963 = vunpack.c.l.b16 %v2787
        %v3964 = vunpack.c.h.b16 %v2787
        %v3965 = vunpack.c.l.b16 %v2788
        %v3966 = vunpack.c.h.b16 %v2788
        %v3967 = vunpack.c.l.b16 %v2789
        %v3968 = vunpack.c.h.b16 %v2789
        %v3969 = vunpack.c.l.b16 %v2790
        %v3970 = vunpack.c.h.b16 %v2790
        %v3971 = vunpack.c.l.b16 %v2791
        %v3972 = vunpack.c.h.b16 %v2791
        %v3973 = vunpack.c.l.b16 %v2792
        %v3974 = vunpack.c.h.b16 %v2792
        %v3975 = vunpack.c.l.b16 %v2793
        %v3976 = vunpack.c.h.b16 %v2793
        %v3977 = vunpack.c.l.b16 %v2794
        %v3978 = vunpack.c.h.b16 %v2794
        %v3979 = vunpack.c.l.b16 %v2795
        %v3980 = vunpack.c.h.b16 %v2795
        %v3981 = vunpack.c.l.b16 %v2796
        %v3982 = vunpack.c.h.b16 %v2796
        %v3983 = vunpack.c.l.b16 %v2797
        %v3984 = vunpack.c.h.b16 %v2797
        %v3985 = vunpack.c.l.b16 %v2798
        %v3986 = vunpack.c.h.b16 %v2798
        %v3987 = vunpack.c.l.b16 %v2799
        %v3988 = vunpack.c.h.b16 %v2799
        %v3989 = vunpack.c.l.b16 %v2800
        %v3990 = vunpack.c.h.b16 %v2800
        %v3991 = vunpack.c.l.b16 %v2801
        %v3992 = vunpack.c.h.b16 %v2801
        %v3993 = vunpack.c.l.b16 %v2802
        %v3994 = vunpack.c.h.b16 %v2802
        %v3995 = vunpack.c.l.b16 %v2803
        %v3996 = vunpack.c.h.b16 %v2803
        %v3997 = vunpack.c.l.b16 %v2804
        %v3998 = vunpack.c.h.b16 %v2804
        %v3999 = vunpack.c.l.b16 %v2805
        %v4000 = vunpack.c.h.b16 %v2805
        %v4001 = vunpack.c.l.b16 %v2806
        %v4002 = vunpack.c.h.b16 %v2806
        %v4003 = vunpack.c.l.b16 %v2807
        %v4004 = vunpack.c.h.b16 %v2807
        %v4005 = vunpack.c.l.b16 %v2808
        %v4006 = vunpack.c.h.b16 %v2808
        %v4007 = vunpack.c.l.b16 %v2809
        %v4008 = vunpack.c.h.b16 %v2809
        %v4009 = vunpack.c.l.b16 %v2810
        %v4010 = vunpack.c.h.b16 %v2810
        %v4011 = vunpack.c.l.b16 %v2811
        %v4012 = vunpack.c.h.b16 %v2811
        %v4013 = vunpack.c.l.b16 %v2812
        %v4014 = vunpack.c.h.b16 %v2812
        %v4015 = vunpack.c.l.b16 %v2813
        %v4016 = vunpack.c.h.b16 %v2813
        %v4017 = vunpack.c.l.b16 %v2814
        %v4018 = vunpack.c.h.b16 %v2814
        %v4019 = vunpack.c.l.b16 %v2815
        %v4020 = vunpack.c.h.b16 %v2815
        %v4021 = vunpack.c.l.b16 %v2816
        %v4022 = vunpack.c.h.b16 %v2816
        %v4023 = vunpack.c.l.b16 %v2817
        %v4024 = vunpack.c.h.b16 %v2817
        %v4025 = vunpack.c.l.b16 %v2818
        %v4026 = vunpack.c.h.b16 %v2818
        %v4027 = vunpack.c.l.b16 %v2819
        %v4028 = vunpack.c.h.b16 %v2819
        %v4029 = vunpack.c.l.b16 %v2820
        %v4030 = vunpack.c.h.b16 %v2820
        %v4031 = vunpack.c.l.b16 %v2821
        %v4032 = vunpack.c.h.b16 %v2821
        %v4033 = vunpack.c.l.b16 %v2822
        %v4034 = vunpack.c.h.b16 %v2822
        %v4035 = vunpack.c.l.b16 %v2823
        %v4036 = vunpack.c.h.b16 %v2823
        %v4037 = vunpack.c.l.b16 %v2824
        %v4038 = vunpack.c.h.b16 %v2824
        %v4039 = vunpack.c.l.b16 %v2825
        %v4040 = vunpack.c.h.b16 %v2825
        %v4041 = vunpack.c.l.b16 %v2826
        %v4042 = vunpack.c.h.b16 %v2826
        %v4043 = vunpack.c.l.b16 %v2827
        %v4044 = vunpack.c.h.b16 %v2827
        %v4045 = vunpack.c.l.b16 %v2828
        %v4046 = vunpack.c.h.b16 %v2828
        %v4047 = vunpack.c.l.b16 %v2829
        %v4048 = vunpack.c.h.b16 %v2829
        %v4049 = vunpack.c.l.b16 %v2830
        %v4050 = vunpack.c.h.b16 %v2830
        %v4051 = vunpack.c.l.b16 %v2831
        %v4052 = vunpack.c.h.b16 %v2831
        %v4053 = vunpack.c.l.b16 %v2832
        %v4054 = vunpack.c.h.b16 %v2832
        %v4055 = vunpack.c.l.b16 %v2833
        %v4056 = vunpack.c.h.b16 %v2833
        %v4057 = vunpack.c.l.b16 %v2834
        %v4058 = vunpack.c.h.b16 %v2834
        %v4059 = vunpack.c.l.b16 %v2835
        %v4060 = vunpack.c.h.b16 %v2835
        %v4061 = vunpack.c.l.b16 %v2836
        %v4062 = vunpack.c.h.b16 %v2836
        %v4063 = vunpack.c.l.b16 %v2837
        %v4064 = vunpack.c.h.b16 %v2837
        %v4065 = vunpack.c.l.b16 %v2838
        %v4066 = vunpack.c.h.b16 %v2838
        %v4067 = vunpack.c.l.b16 %v2839
        %v4068 = vunpack.c.h.b16 %v2839
        %v4069 = vunpack.c.l.b16 %v2840
        %v4070 = vunpack.c.h.b16 %v2840
        %v4071 = vunpack.c.l.b16 %v2841
        %v4072 = vunpack.c.h.b16 %v2841
        %v4073 = vunpack.c.l.b16 %v2842
        %v4074 = vunpack.c.h.b16 %v2842
        %v4075 = vunpack.c.l.b16 %v2843
        %v4076 = vunpack.c.h.b16 %v2843
        %v4077 = vunpack.c.l.b16 %v2844
        %v4078 = vunpack.c.h.b16 %v2844
        %v4079 = vunpack.c.l.b16 %v2845
        %v4080 = vunpack.c.h.b16 %v2845
        %v4081 = vunpack.c.l.b16 %v2846
        %v4082 = vunpack.c.h.b16 %v2846
        %v4083 = vunpack.c.l.b16 %v2847
        %v4084 = vunpack.c.h.b16 %v2847
        %v4085 = vunpack.c.l.b16 %v2848
        %v4086 = vunpack.c.h.b16 %v2848
        %v4087 = vunpack.c.l.b16 %v2849
        %v4088 = vunpack.c.h.b16 %v2849
        %v4089 = vunpack.c.l.b16 %v2850
        %v4090 = vunpack.c.h.b16 %v2850
        %v4091 = vunpack.c.l.b16 %v2851
        %v4092 = vunpack.c.h.b16 %v2851
        %v4093 = vunpack.c.l.b16 %v2852
        %v4094 = vunpack.c.h.b16 %v2852
        %v4095 = vunpack.c.l.b16 %v2853
        %v4096 = vunpack.c.h.b16 %v2853
        %v4097 = vunpack.c.l.b16 %v2854
        %v4098 = vunpack.c.h.b16 %v2854
        %v4099 = vunpack.c.l.b16 %v2855
        %v4100 = vunpack.c.h.b16 %v2855
        %v4101 = vunpack.c.l.b16 %v2856
        %v4102 = vunpack.c.h.b16 %v2856
        %v4103 = vunpack.c.l.b16 %v2857
        %v4104 = vunpack.c.h.b16 %v2857
        %v4105 = vunpack.c.l.b16 %v2858
        %v4106 = vunpack.c.h.b16 %v2858
        %v4107 = vunpack.c.l.b16 %v2859
        %v4108 = vunpack.c.h.b16 %v2859
        %v4109 = vunpack.c.l.b16 %v2860
        %v4110 = vunpack.c.h.b16 %v2860
        %v4111 = vunpack.c.l.b16 %v2861
        %v4112 = vunpack.c.h.b16 %v2861
        %v4113 = vunpack.c.l.b16 %v2862
        %v4114 = vunpack.c.h.b16 %v2862
        %v4115 = vunpack.c.l.b16 %v2863
        %v4116 = vunpack.c.h.b16 %v2863
        %v4117 = vunpack.c.l.b16 %v2864
        %v4118 = vunpack.c.h.b16 %v2864
        %v4119 = vunpack.c.l.b16 %v2865
        %v4120 = vunpack.c.h.b16 %v2865
        %v4121 = vunpack.c.l.b16 %v2866
        %v4122 = vunpack.c.h.b16 %v2866
        %v4123 = vunpack.c.l.b16 %v2867
        %v4124 = vunpack.c.h.b16 %v2867
        %v4125 = vunpack.c.l.b16 %v2868
        %v4126 = vunpack.c.h.b16 %v2868
        %v4127 = vunpack.c.l.b16 %v2869
        %v4128 = vunpack.c.h.b16 %v2869
        %v4129 = vunpack.c.l.b16 %v2870
        %v4130 = vunpack.c.h.b16 %v2870
        %v4131 = vunpack.c.l.b16 %v2871
        %v4132 = vunpack.c.h.b16 %v2871
        %v4133 = vunpack.c.l.b16 %v2872
        %v4134 = vunpack.c.h.b16 %v2872
        %v4135 = vunpack.c.l.b16 %v2873
        %v4136 = vunpack.c.h.b16 %v2873
        %v4137 = vunpack.c.l.b16 %v2874
        %v4138 = vunpack.c.h.b16 %v2874
        %v4139 = vunpack.c.l.b16 %v2875
        %v4140 = vunpack.c.h.b16 %v2875
        %v4141 = vunpack.c.l.b16 %v2876
        %v4142 = vunpack.c.h.b16 %v2876
        %v4143 = vunpack.c.l.b16 %v2877
        %v4144 = vunpack.c.h.b16 %v2877
        %v4145 = vunpack.c.l.b16 %v2878
        %v4146 = vunpack.c.h.b16 %v2878
        %v4147 = vunpack.c.l.b16 %v2879
        %v4148 = vunpack.c.h.b16 %v2879
        %v4149 = vunpack.c.l.b16 %v2880
        %v4150 = vunpack.c.h.b16 %v2880
        %v4151 = vunpack.c.l.b16 %v2881
        %v4152 = vunpack.c.h.b16 %v2881
        %v4153 = vunpack.c.l.b16 %v2882
        %v4154 = vunpack.c.h.b16 %v2882
        %v4155 = vunpack.c.l.b16 %v2883
        %v4156 = vunpack.c.h.b16 %v2883
        %v4157 = vunpack.c.l.b16 %v2884
        %v4158 = vunpack.c.h.b16 %v2884
        %v4159 = vunpack.c.l.b16 %v2885
        %v4160 = vunpack.c.h.b16 %v2885
        %v4161 = vunpack.c.l.b16 %v2886
        %v4162 = vunpack.c.h.b16 %v2886
        %v4163 = vunpack.c.l.b16 %v2887
        %v4164 = vunpack.c.h.b16 %v2887
        %v4165 = vunpack.c.l.b16 %v2888
        %v4166 = vunpack.c.h.b16 %v2888
        %v4167 = vunpack.c.l.b16 %v2889
        %v4168 = vunpack.c.h.b16 %v2889
        %v4169 = vunpack.c.l.b16 %v2890
        %v4170 = vunpack.c.h.b16 %v2890
        %v4171 = vunpack.c.l.b16 %v2891
        %v4172 = vunpack.c.h.b16 %v2891
        %v4173 = vunpack.c.l.b16 %v2892
        %v4174 = vunpack.c.h.b16 %v2892
        %v4175 = vunpack.c.l.b16 %v2893
        %v4176 = vunpack.c.h.b16 %v2893
        %v4177 = vunpack.c.l.b16 %v2894
        %v4178 = vunpack.c.h.b16 %v2894
        %v4179 = vunpack.c.l.b16 %v2895
        %v4180 = vunpack.c.h.b16 %v2895
        %v4181 = vunpack.c.l.b16 %v2896
        %v4182 = vunpack.c.h.b16 %v2896
        %v4183 = vunpack.c.l.b16 %v2897
        %v4184 = vunpack.c.h.b16 %v2897
        %v4185 = vunpack.c.l.b16 %v2898
        %v4186 = vunpack.c.h.b16 %v2898
        %v4187 = vunpack.c.l.b16 %v2899
        %v4188 = vunpack.c.h.b16 %v2899
        %v4189 = vunpack.c.l.b16 %v2900
        %v4190 = vunpack.c.h.b16 %v2900
        %v4191 = vunpack.c.l.b16 %v2901
        %v4192 = vunpack.c.h.b16 %v2901
        %v4193 = vunpack.c.l.b16 %v2902
        %v4194 = vunpack.c.h.b16 %v2902
        %v4195 = vunpack.c.l.b16 %v2903
        %v4196 = vunpack.c.h.b16 %v2903
        %v4197 = vunpack.c.l.b16 %v2904
        %v4198 = vunpack.c.h.b16 %v2904
        %v4199 = vunpack.c.l.b16 %v2905
        %v4200 = vunpack.c.h.b16 %v2905
        %v4201 = vunpack.c.l.b16 %v2906
        %v4202 = vunpack.c.h.b16 %v2906
        %v4203 = vunpack.c.l.b16 %v2907
        %v4204 = vunpack.c.h.b16 %v2907
        %v4205 = vunpack.c.l.b16 %v2908
        %v4206 = vunpack.c.h.b16 %v2908
        %v4207 = vunpack.c.l.b16 %v2909
        %v4208 = vunpack.c.h.b16 %v2909
        %v4209 = vunpack.c.l.b16 %v2910
        %v4210 = vunpack.c.h.b16 %v2910
        %v4211 = vunpack.c.l.b16 %v2911
        %v4212 = vunpack.c.h.b16 %v2911
        %v4213 = vunpack.c.l.b16 %v2912
        %v4214 = vunpack.c.h.b16 %v2912
        %v4215 = vunpack.c.l.b16 %v2913
        %v4216 = vunpack.c.h.b16 %v2913
        %v4217 = vunpack.c.l.b16 %v2914
        %v4218 = vunpack.c.h.b16 %v2914
        %v4219 = vunpack.c.l.b16 %v2915
        %v4220 = vunpack.c.h.b16 %v2915
        %v4221 = vunpack.c.l.b16 %v2916
        %v4222 = vunpack.c.h.b16 %v2916
        %v4223 = vunpack.c.l.b16 %v2917
        %v4224 = vunpack.c.h.b16 %v2917
        %v4225 = vunpack.c.l.b16 %v2918
        %v4226 = vunpack.c.h.b16 %v2918
        %v4227 = vunpack.c.l.b16 %v2919
        %v4228 = vunpack.c.h.b16 %v2919
        %v4229 = vunpack.c.l.b16 %v2920
        %v4230 = vunpack.c.h.b16 %v2920
        %v4231 = vunpack.c.l.b16 %v2921
        %v4232 = vunpack.c.h.b16 %v2921
        %v4233 = vunpack.c.l.b16 %v2922
        %v4234 = vunpack.c.h.b16 %v2922
        %v4235 = vunpack.c.l.b16 %v2923
        %v4236 = vunpack.c.h.b16 %v2923
        %v4237 = vunpack.c.l.b16 %v2924
        %v4238 = vunpack.c.h.b16 %v2924
        %v4239 = vunpack.c.l.b16 %v2925
        %v4240 = vunpack.c.h.b16 %v2925
        %v4241 = vunpack.c.l.b16 %v2926
        %v4242 = vunpack.c.h.b16 %v2926
        %v4243 = vunpack.c.l.b16 %v2927
        %v4244 = vunpack.c.h.b16 %v2927
        %v4245 = vunpack.c.l.b16 %v2928
        %v4246 = vunpack.c.h.b16 %v2928
        %v4247 = vunpack.c.l.b16 %v2929
        %v4248 = vunpack.c.h.b16 %v2929
        %v4249 = vunpack.c.l.b16 %v2930
        %v4250 = vunpack.c.h.b16 %v2930
        %v4251 = vunpack.c.l.b16 %v2931
        %v4252 = vunpack.c.h.b16 %v2931
        %v4253 = vunpack.c.l.b16 %v2932
        %v4254 = vunpack.c.h.b16 %v2932
        %v4255 = vunpack.c.l.b16 %v2933
        %v4256 = vunpack.c.h.b16 %v2933
        %v4257 = vunpack.c.l.b16 %v2934
        %v4258 = vunpack.c.h.b16 %v2934
        %v4259 = vunpack.c.l.b16 %v2935
        %v4260 = vunpack.c.h.b16 %v2935
        %v4261 = vunpack.c.l.b16 %v2936
        %v4262 = vunpack.c.h.b16 %v2936
        %v4263 = vunpack.c.l.b16 %v2937
        %v4264 = vunpack.c.h.b16 %v2937
        %v4265 = vunpack.c.l.b16 %v2938
        %v4266 = vunpack.c.h.b16 %v2938
        %v4267 = vunpack.c.l.b16 %v2939
        %v4268 = vunpack.c.h.b16 %v2939
        %v4269 = vunpack.c.l.b16 %v2940
        %v4270 = vunpack.c.h.b16 %v2940
        %v4271 = vunpack.c.l.b16 %v2941
        %v4272 = vunpack.c.h.b16 %v2941
        %v4273 = vunpack.c.l.b16 %v2942
        %v4274 = vunpack.c.h.b16 %v2942
        %v4275 = vunpack.c.l.b16 %v2943
        %v4276 = vunpack.c.h.b16 %v2943
        %v4277 = vunpack.c.l.b16 %v2944
        %v4278 = vunpack.c.h.b16 %v2944
        %v4279 = vunpack.c.l.b16 %v2945
        %v4280 = vunpack.c.h.b16 %v2945
        %v4281 = vunpack.c.l.b16 %v2946
        %v4282 = vunpack.c.h.b16 %v2946
        %v4283 = vunpack.c.l.b16 %v2947
        %v4284 = vunpack.c.h.b16 %v2947
        %v4285 = vunpack.c.l.b16 %v2948
        %v4286 = vunpack.c.h.b16 %v2948
        %v4287 = vunpack.c.l.b16 %v2949
        %v4288 = vunpack.c.h.b16 %v2949
        %v4289 = vunpack.c.l.b16 %v2950
        %v4290 = vunpack.c.h.b16 %v2950
        %v4291 = vunpack.c.l.b16 %v2951
        %v4292 = vunpack.c.h.b16 %v2951
        %v4293 = vunpack.c.l.b16 %v2952
        %v4294 = vunpack.c.h.b16 %v2952
        %v4295 = vunpack.c.l.b16 %v2953
        %v4296 = vunpack.c.h.b16 %v2953
        %v4297 = vunpack.c.l.b16 %v2954
        %v4298 = vunpack.c.h.b16 %v2954
        %v4299 = vunpack.c.l.b16 %v2955
        %v4300 = vunpack.c.h.b16 %v2955
        %v4301 = vunpack.c.l.b16 %v2956
        %v4302 = vunpack.c.h.b16 %v2956
        %v4303 = vunpack.c.l.b16 %v2957
        %v4304 = vunpack.c.h.b16 %v2957
        %v4305 = vunpack.c.l.b16 %v2958
        %v4306 = vunpack.c.h.b16 %v2958
        %v4307 = vunpack.c.l.b16 %v2959
        %v4308 = vunpack.c.h.b16 %v2959
        %v4309 = vunpack.c.l.b16 %v2960
        %v4310 = vunpack.c.h.b16 %v2960
        %v4311 = vunpack.c.l.b16 %v2961
        %v4312 = vunpack.c.h.b16 %v2961
        %v4313 = vunpack.c.l.b16 %v2962
        %v4314 = vunpack.c.h.b16 %v2962
        %v4315 = vunpack.c.l.b16 %v2963
        %v4316 = vunpack.c.h.b16 %v2963
        %v4317 = vunpack.c.l.b16 %v2964
        %v4318 = vunpack.c.h.b16 %v2964
        %v4319 = vunpack.c.l.b16 %v2965
        %v4320 = vunpack.c.h.b16 %v2965
        %v4321 = vunpack.c.l.b16 %v2966
        %v4322 = vunpack.c.h.b16 %v2966
        %v4323 = vunpack.c.l.b16 %v2967
        %v4324 = vunpack.c.h.b16 %v2967
        %v4325 = vunpack.c.l.b16 %v2968
        %v4326 = vunpack.c.h.b16 %v2968
        %v4327 = vunpack.c.l.b16 %v2969
        %v4328 = vunpack.c.h.b16 %v2969
        %v4329 = vunpack.c.l.b16 %v2970
        %v4330 = vunpack.c.h.b16 %v2970
        %v4331 = vunpack.c.l.b16 %v2971
        %v4332 = vunpack.c.h.b16 %v2971
        %v4333 = vunpack.c.l.b16 %v2972
        %v4334 = vunpack.c.h.b16 %v2972
        %v4335 = vunpack.c.l.b16 %v2973
        %v4336 = vunpack.c.h.b16 %v2973
        %v4337 = vunpack.c.l.b16 %v2974
        %v4338 = vunpack.c.h.b16 %v2974
        %v4339 = vunpack.c.l.b16 %v2975
        %v4340 = vunpack.c.h.b16 %v2975
        %v4341 = vunpack.c.l.b16 %v2976
        %v4342 = vunpack.c.h.b16 %v2976
        %v4343 = vunpack.c.l.b16 %v2977
        %v4344 = vunpack.c.h.b16 %v2977
        %v4345 = vunpack.c.l.b16 %v2978
        %v4346 = vunpack.c.h.b16 %v2978
        %v4347 = vunpack.c.l.b16 %v2979
        %v4348 = vunpack.c.h.b16 %v2979
        %v4349 = vunpack.c.l.b16 %v2980
        %v4350 = vunpack.c.h.b16 %v2980
        %v4351 = vunpack.c.l.b16 %v2981
        %v4352 = vunpack.c.h.b16 %v2981
        %v4353 = vunpack.c.l.b16 %v2982
        %v4354 = vunpack.c.h.b16 %v2982
        %v4355 = vunpack.c.l.b16 %v2983
        %v4356 = vunpack.c.h.b16 %v2983
        %v4357 = vunpack.c.l.b16 %v2984
        %v4358 = vunpack.c.h.b16 %v2984
        %v4359 = vunpack.c.l.b16 %v2985
        %v4360 = vunpack.c.h.b16 %v2985
        %v4361 = vunpack.c.l.b16 %v2986
        %v4362 = vunpack.c.h.b16 %v2986
        %v4363 = vunpack.c.l.b16 %v2987
        %v4364 = vunpack.c.h.b16 %v2987
        %v4365 = vunpack.c.l.b16 %v2988
        %v4366 = vunpack.c.h.b16 %v2988
        %v4367 = vunpack.c.l.b16 %v2989
        %v4368 = vunpack.c.h.b16 %v2989
        %v4369 = vunpack.c.l.b16 %v2990
        %v4370 = vunpack.c.h.b16 %v2990
        %v4371 = vunpack.c.l.b16 %v2991
        %v4372 = vunpack.c.h.b16 %v2991
        %v4373 = vunpack.c.l.b16 %v2992
        %v4374 = vunpack.c.h.b16 %v2992
        %v4375 = vunpack.c.l.b16 %v2993
        %v4376 = vunpack.c.h.b16 %v2993
        %v4377 = vunpack.c.l.b16 %v2994
        %v4378 = vunpack.c.h.b16 %v2994
        %v4379 = vunpack.c.l.b16 %v2995
        %v4380 = vunpack.c.h.b16 %v2995
        %v4381 = vunpack.c.l.b16 %v2996
        %v4382 = vunpack.c.h.b16 %v2996
        %v4383 = vunpack.c.l.b16 %v2997
        %v4384 = vunpack.c.h.b16 %v2997
        %v4385 = vunpack.c.l.b16 %v2998
        %v4386 = vunpack.c.h.b16 %v2998
        %v4387 = vunpack.c.l.b16 %v2999
        %v4388 = vunpack.c.h.b16 %v2999
        %v4389 = vunpack.c.l.b16 %v3000
        %v4390 = vunpack.c.h.b16 %v3000
        %v4391 = vunpack.c.l.b16 %v3001
        %v4392 = vunpack.c.h.b16 %v3001
        %v4393 = vunpack.c.l.b16 %v3002
        %v4394 = vunpack.c.h.b16 %v3002
        %v4395 = vunpack.c.l.b16 %v3003
        %v4396 = vunpack.c.h.b16 %v3003
        %v4397 = vunpack.c.l.b16 %v3004
        %v4398 = vunpack.c.h.b16 %v3004
        %v4399 = vunpack.c.l.b16 %v3005
        %v4400 = vunpack.c.h.b16 %v3005
        %v4401 = vunpack.c.l.b16 %v3006
        %v4402 = vunpack.c.h.b16 %v3006
        %v4403 = vunpack.c.l.b16 %v3007
        %v4404 = vunpack.c.h.b16 %v3007
        %v4405 = vunpack.c.l.b16 %v3008
        %v4406 = vunpack.c.h.b16 %v3008
        %v4407 = vunpack.c.l.b16 %v3009
        %v4408 = vunpack.c.h.b16 %v3009
        %v4409 = vunpack.c.l.b16 %v3010
        %v4410 = vunpack.c.h.b16 %v3010
        %v4411 = vunpack.c.l.b16 %v3011
        %v4412 = vunpack.c.h.b16 %v3011
        %v4413 = vunpack.c.l.b16 %v3012
        %v4414 = vunpack.c.h.b16 %v3012
        %v4415 = vunpack.c.l.b16 %v3013
        %v4416 = vunpack.c.h.b16 %v3013
        %v4417 = vunpack.c.l.b16 %v3014
        %v4418 = vunpack.c.h.b16 %v3014
        %v4419 = vunpack.c.l.b16 %v3015
        %v4420 = vunpack.c.h.b16 %v3015
        %v4421 = vunpack.c.l.b16 %v3016
        %v4422 = vunpack.c.h.b16 %v3016
        %v4423 = vunpack.c.l.b16 %v3017
        %v4424 = vunpack.c.h.b16 %v3017
        %v4425 = vunpack.c.l.b16 %v3018
        %v4426 = vunpack.c.h.b16 %v3018
        %v4427 = vunpack.c.l.b16 %v3019
        %v4428 = vunpack.c.h.b16 %v3019
        %v4429 = vunpack.c.l.b16 %v3020
        %v4430 = vunpack.c.h.b16 %v3020
        %v4431 = vunpack.c.l.b16 %v3021
        %v4432 = vunpack.c.h.b16 %v3021
        %v4433 = vunpack.c.l.b16 %v3022
        %v4434 = vunpack.c.h.b16 %v3022
        %v4435 = vunpack.c.l.b16 %v3023
        %v4436 = vunpack.c.h.b16 %v3023
        %v4437 = vunpack.c.l.b16 %v3024
        %v4438 = vunpack.c.h.b16 %v3024
        %v4439 = vunpack.c.l.b16 %v3025
        %v4440 = vunpack.c.h.b16 %v3025
        %v4441 = vunpack.c.l.b16 %v3026
        %v4442 = vunpack.c.h.b16 %v3026
        %v4443 = vunpack.c.l.b16 %v3027
        %v4444 = vunpack.c.h.b16 %v3027
        %v4445 = vunpack.c.l.b16 %v3028
        %v4446 = vunpack.c.h.b16 %v3028
        %v4447 = vunpack.c.l.b16 %v3029
        %v4448 = vunpack.c.h.b16 %v3029
        %v4449 = vunpack.c.l.b16 %v3030
        %v4450 = vunpack.c.h.b16 %v3030
        %v4451 = vunpack.c.l.b16 %v3031
        %v4452 = vunpack.c.h.b16 %v3031
        %v4453 = vunpack.c.l.b16 %v3032
        %v4454 = vunpack.c.h.b16 %v3032
        %v4455 = vunpack.c.l.b16 %v3033
        %v4456 = vunpack.c.h.b16 %v3033
        %v4457 = vunpack.c.l.b16 %v3034
        %v4458 = vunpack.c.h.b16 %v3034
        %v4459 = vunpack.c.l.b16 %v3035
        %v4460 = vunpack.c.h.b16 %v3035
        %v4461 = vunpack.c.l.b16 %v3036
        %v4462 = vunpack.c.h.b16 %v3036
        %v4463 = vunpack.c.l.b16 %v3037
        %v4464 = vunpack.c.h.b16 %v3037
        %v4465 = vunpack.c.l.b16 %v3038
        %v4466 = vunpack.c.h.b16 %v3038
        %v4467 = vunpack.c.l.b16 %v3039
        %v4468 = vunpack.c.h.b16 %v3039
        %v4469 = vunpack.c.l.b16 %v3040
        %v4470 = vunpack.c.h.b16 %v3040
        %v4471 = vunpack.c.l.b16 %v3041
        %v4472 = vunpack.c.h.b16 %v3041
        %v4473 = vunpack.c.l.b16 %v3042
        %v4474 = vunpack.c.h.b16 %v3042
        %v4475 = vunpack.c.l.b16 %v3043
        %v4476 = vunpack.c.h.b16 %v3043
        %v4477 = vunpack.c.l.b16 %v3044
        %v4478 = vunpack.c.h.b16 %v3044
        %v4479 = vunpack.c.l.b16 %v3045
        %v4480 = vunpack.c.h.b16 %v3045
        %v4481 = vunpack.c.l.b16 %v3046
        %v4482 = vunpack.c.h.b16 %v3046
        %v4483 = vunpack.c.l.b16 %v3047
        %v4484 = vunpack.c.h.b16 %v3047
        %v4485 = vunpack.c.l.b16 %v3048
        %v4486 = vunpack.c.h.b16 %v3048
        %v4487 = vunpack.c.l.b16 %v3049
        %v4488 = vunpack.c.h.b16 %v3049
        %v4489 = vunpack.c.l.b16 %v3050
        %v4490 = vunpack.c.h.b16 %v3050
        %v4491 = vunpack.c.l.b16 %v3051
        %v4492 = vunpack.c.h.b16 %v3051
        %v4493 = vunpack.c.l.b16 %v3052
        %v4494 = vunpack.c.h.b16 %v3052
        %v4495 = vunpack.c.l.b16 %v3053
        %v4496 = vunpack.c.h.b16 %v3053
        %v4497 = vunpack.c.l.b16 %v3054
        %v4498 = vunpack.c.h.b16 %v3054
        %v4499 = vunpack.c.l.b16 %v3055
        %v4500 = vunpack.c.h.b16 %v3055
        %v4501 = vunpack.c.l.b16 %v3056
        %v4502 = vunpack.c.h.b16 %v3056
        %v4503 = vunpack.c.l.b16 %v3057
        %v4504 = vunpack.c.h.b16 %v3057
        %v4505 = vunpack.c.l.b16 %v3058
        %v4506 = vunpack.c.h.b16 %v3058
        %v4507 = vunpack.c.l.b16 %v3059
        %v4508 = vunpack.c.h.b16 %v3059
        %v4509 = vunpack.c.l.b16 %v3060
        %v4510 = vunpack.c.h.b16 %v3060
        %v4511 = vunpack.c.l.b16 %v3061
        %v4512 = vunpack.c.h.b16 %v3061
        %v4513 = vunpack.c.l.b16 %v3062
        %v4514 = vunpack.c.h.b16 %v3062
        %v4515 = vunpack.c.l.b16 %v3063
        %v4516 = vunpack.c.h.b16 %v3063
        %v4517 = vunpack.c.l.b16 %v3064
        %v4518 = vunpack.c.h.b16 %v3064
        %v4519 = vunpack.c.l.b16 %v3065
        %v4520 = vunpack.c.h.b16 %v3065
        %v4521 = vunpack.c.l.b16 %v3066
        %v4522 = vunpack.c.h.b16 %v3066
        %v4523 = vunpack.c.l.b16 %v3067
        %v4524 = vunpack.c.h.b16 %v3067
        %v4525 = vunpack.c.l.b16 %v3068
        %v4526 = vunpack.c.h.b16 %v3068
        %v4527 = vunpack.c.l.b16 %v3069
        %v4528 = vunpack.c.h.b16 %v3069
        %v4529 = vunpack.c.l.b16 %v3070
        %v4530 = vunpack.c.h.b16 %v3070
        %v4531 = vunpack.c.l.b16 %v3071
        %v4532 = vunpack.c.h.b16 %v3071
        %v4533 = vunpack.c.l.b16 %v3072
        %v4534 = vunpack.c.h.b16 %v3072
        %v4535 = vunpack.c.l.b16 %v3073
        %v4536 = vunpack.c.h.b16 %v3073
        %v4537 = vunpack.c.l.b16 %v3074
        %v4538 = vunpack.c.h.b16 %v3074
        %v4539 = vunpack.c.l.b16 %v3075
        %v4540 = vunpack.c.h.b16 %v3075
        %v4541 = vunpack.c.l.b16 %v3076
        %v4542 = vunpack.c.h.b16 %v3076
        %v4543 = vunpack.c.l.b16 %v3077
        %v4544 = vunpack.c.h.b16 %v3077
        %v4545 = vunpack.c.l.b16 %v3078
        %v4546 = vunpack.c.h.b16 %v3078
        %v4547 = vunpack.c.l.b16 %v3079
        %v4548 = vunpack.c.h.b16 %v3079
        %v4549 = vunpack.c.l.b16 %v3080
        %v4550 = vunpack.c.h.b16 %v3080
        %v4551 = vunpack.c.l.b16 %v3081
        %v4552 = vunpack.c.h.b16 %v3081
        %v4553 = vunpack.c.l.b16 %v3082
        %v4554 = vunpack.c.h.b16 %v3082
        %v4555 = vunpack.c.l.b16 %v3083
        %v4556 = vunpack.c.h.b16 %v3083
        %v4557 = vunpack.c.l.b16 %v3084
        %v4558 = vunpack.c.h.b16 %v3084
        %v4559 = vunpack.c.l.b16 %v3085
        %v4560 = vunpack.c.h.b16 %v3085
        %v4561 = vunpack.c.l.b16 %v3086
        %v4562 = vunpack.c.h.b16 %v3086
        %v4563 = vunpack.c.l.b16 %v3087
        %v4564 = vunpack.c.h.b16 %v3087
        %v4565 = vunpack.c.l.b16 %v3088
        %v4566 = vunpack.c.h.b16 %v3088
        %v4567 = vunpack.c.l.b16 %v3089
        %v4568 = vunpack.c.h.b16 %v3089
        %v4569 = vunpack.c.l.b16 %v3090
        %v4570 = vunpack.c.h.b16 %v3090
        %v4571 = vunpack.c.l.b16 %v3091
        %v4572 = vunpack.c.h.b16 %v3091
        %v4573 = vunpack.c.l.b16 %v3092
        %v4574 = vunpack.c.h.b16 %v3092
        %v4575 = vunpack.c.l.b16 %v3093
        %v4576 = vunpack.c.h.b16 %v3093
        %v4577 = vunpack.c.l.b16 %v3094
        %v4578 = vunpack.c.h.b16 %v3094
        %v4579 = vunpack.c.l.b16 %v3095
        %v4580 = vunpack.c.h.b16 %v3095
        %v4581 = vunpack.c.l.b16 %v3096
        %v4582 = vunpack.c.h.b16 %v3096
        %v4583 = vunpack.c.l.b16 %v3097
        %v4584 = vunpack.c.h.b16 %v3097
        %v4585 = vunpack.c.l.b16 %v3098
        %v4586 = vunpack.c.h.b16 %v3098
        %v4587 = vunpack.c.l.b16 %v3099
        %v4588 = vunpack.c.h.b16 %v3099
        %v4589 = vunpack.c.l.b16 %v3100
        %v4590 = vunpack.c.h.b16 %v3100
        %v4591 = vunpack.c.l.b16 %v3101
        %v4592 = vunpack.c.h.b16 %v3101
        %v4593 = vunpack.c.l.b16 %v3102
        %v4594 = vunpack.c.h.b16 %v3102
        %v4595 = vunpack.c.l.b16 %v3103
        %v4596 = vunpack.c.h.b16 %v3103
        %v4597 = vunpack.c.l.b16 %v3104
        %v4598 = vunpack.c.h.b16 %v3104
        %v4599 = vunpack.c.l.b16 %v3105
        %v4600 = vunpack.c.h.b16 %v3105
        %v4601 = vunpack.c.l.b16 %v3106
        %v4602 = vunpack.c.h.b16 %v3106
        %v4603 = vunpack.c.l.b16 %v3107
        %v4604 = vunpack.c.h.b16 %v3107
        %v4605 = vunpack.c.l.b16 %v3108
        %v4606 = vunpack.c.h.b16 %v3108
        %v4607 = vunpack.c.l.b16 %v3109
        %v4608 = vunpack.c.h.b16 %v3109
        %v4609 = vunpack.c.l.b16 %v3110
        %v4610 = vunpack.c.h.b16 %v3110
        %v4611 = vunpack.c.l.b16 %v3111
        %v4612 = vunpack.c.h.b16 %v3111
        %v4613 = vunpack.c.l.b16 %v3112
        %v4614 = vunpack.c.h.b16 %v3112
        %v4615 = vunpack.c.l.b16 %v3113
        %v4616 = vunpack.c.h.b16 %v3113
        %v4617 = vunpack.c.l.b16 %v3114
        %v4618 = vunpack.c.h.b16 %v3114
        %v4619 = vunpack.c.l.b16 %v3115
        %v4620 = vunpack.c.h.b16 %v3115
        %v4621 = vunpack.c.l.b16 %v3116
        %v4622 = vunpack.c.h.b16 %v3116
        %v4623 = vunpack.c.l.b16 %v3117
        %v4624 = vunpack.c.h.b16 %v3117
        %v4625 = vunpack.c.l.b16 %v3118
        %v4626 = vunpack.c.h.b16 %v3118
        %v4627 = vunpack.c.l.b16 %v3119
        %v4628 = vunpack.c.h.b16 %v3119
        %v4629 = vunpack.c.l.b16 %v3120
        %v4630 = vunpack.c.h.b16 %v3120
        %v4631 = vunpack.c.l.b16 %v3121
        %v4632 = vunpack.c.h.b16 %v3121
        %v4633 = vunpack.c.l.b16 %v3122
        %v4634 = vunpack.c.h.b16 %v3122
        %v4635 = vunpack.c.l.b16 %v3123
        %v4636 = vunpack.c.h.b16 %v3123
        %v4637 = vunpack.c.l.b16 %v3124
        %v4638 = vunpack.c.h.b16 %v3124
        %v4639 = vunpack.c.l.b16 %v3125
        %v4640 = vunpack.c.h.b16 %v3125
        %v4641 = vunpack.c.l.b16 %v3126
        %v4642 = vunpack.c.h.b16 %v3126
        %v4643 = vunpack.c.l.b16 %v3127
        %v4644 = vunpack.c.h.b16 %v3127
        %v4645 = vunpack.c.l.b16 %v3128
        %v4646 = vunpack.c.h.b16 %v3128
        %v4647 = vunpack.c.l.b16 %v3129
        %v4648 = vunpack.c.h.b16 %v3129
        %v4649 = vunpack.c.l.b16 %v3130
        %v4650 = vunpack.c.h.b16 %v3130
        %v4651 = vunpack.c.l.b16 %v3131
        %v4652 = vunpack.c.h.b16 %v3131
        %v4653 = vunpack.c.l.b16 %v3132
        %v4654 = vunpack.c.h.b16 %v3132
        %v4655 = vunpack.c.l.b16 %v3133
        %v4656 = vunpack.c.h.b16 %v3133
        %v4657 = vunpack.c.l.b16 %v3134
        %v4658 = vunpack.c.h.b16 %v3134
        %v4659 = vunpack.c.l.b16 %v3135
        %v4660 = vunpack.c.h.b16 %v3135
        %v4661 = vunpack.c.l.b16 %v3136
        %v4662 = vunpack.c.h.b16 %v3136
        %v4663 = vunpack.c.l.b16 %v3137
        %v4664 = vunpack.c.h.b16 %v3137
        %v4665 = vunpack.c.l.b16 %v3138
        %v4666 = vunpack.c.h.b16 %v3138
        %v4667 = vunpack.c.l.b16 %v3139
        %v4668 = vunpack.c.h.b16 %v3139
        %v4669 = vunpack.c.l.b16 %v3140
        %v4670 = vunpack.c.h.b16 %v3140
        %v4671 = vunpack.c.l.b16 %v3141
        %v4672 = vunpack.c.h.b16 %v3141
        %v4673 = vunpack.c.l.b16 %v3142
        %v4674 = vunpack.c.h.b16 %v3142
        %v4675 = vunpack.c.l.b16 %v3143
        %v4676 = vunpack.c.h.b16 %v3143
        %v4677 = vunpack.c.l.b16 %v3144
        %v4678 = vunpack.c.h.b16 %v3144
        %v4679 = vunpack.c.l.b16 %v3145
        %v4680 = vunpack.c.h.b16 %v3145
        %v4681 = vunpack.c.l.b16 %v3146
        %v4682 = vunpack.c.h.b16 %v3146
        %v4683 = vunpack.c.l.b16 %v3147
        %v4684 = vunpack.c.h.b16 %v3147
        %v4685 = vpack.c.b16 %v3665, %v3661
        %v4686 = vpack.c.b16 %v3666, %v3662
        %v4687 = vpack.c.b16 %v3667, %v3663
        %v4688 = vpack.c.b16 %v3668, %v3664
        %v4689 = vpack.c.b16 %v3673, %v3669
        %v4690 = vpack.c.b16 %v3674, %v3670
        %v4691 = vpack.c.b16 %v3675, %v3671
        %v4692 = vpack.c.b16 %v3676, %v3672
        %v4693 = vpack.c.b16 %v3681, %v3677
        %v4694 = vpack.c.b16 %v3682, %v3678
        %v4695 = vpack.c.b16 %v3683, %v3679
        %v4696 = vpack.c.b16 %v3684, %v3680
        %v4697 = vpack.c.b16 %v3689, %v3685
        %v4698 = vpack.c.b16 %v3690, %v3686
        %v4699 = vpack.c.b16 %v3691, %v3687
        %v4700 = vpack.c.b16 %v3692, %v3688
        %v4701 = vpack.c.b16 %v3697, %v3693
        %v4702 = vpack.c.b16 %v3698, %v3694
        %v4703 = vpack.c.b16 %v3699, %v3695
        %v4704 = vpack.c.b16 %v3700, %v3696
        %v4705 = vpack.c.b16 %v3705, %v3701
        %v4706 = vpack.c.b16 %v3706, %v3702
        %v4707 = vpack.c.b16 %v3707, %v3703
        %v4708 = vpack.c.b16 %v3708, %v3704
        %v4709 = vpack.c.b16 %v3713, %v3709
        %v4710 = vpack.c.b16 %v3714, %v3710
        %v4711 = vpack.c.b16 %v3715, %v3711
        %v4712 = vpack.c.b16 %v3716, %v3712
        %v4713 = vpack.c.b16 %v3721, %v3717
        %v4714 = vpack.c.b16 %v3722, %v3718
        %v4715 = vpack.c.b16 %v3723, %v3719
        %v4716 = vpack.c.b16 %v3724, %v3720
        %v4717 = vpack.c.b16 %v3729, %v3725
        %v4718 = vpack.c.b16 %v3730, %v3726
        %v4719 = vpack.c.b16 %v3731, %v3727
        %v4720 = vpack.c.b16 %v3732, %v3728
        %v4721 = vpack.c.b16 %v3737, %v3733
        %v4722 = vpack.c.b16 %v3738, %v3734
        %v4723 = vpack.c.b16 %v3739, %v3735
        %v4724 = vpack.c.b16 %v3740, %v3736
        %v4725 = vpack.c.b16 %v3745, %v3741
        %v4726 = vpack.c.b16 %v3746, %v3742
        %v4727 = vpack.c.b16 %v3747, %v3743
        %v4728 = vpack.c.b16 %v3748, %v3744
        %v4729 = vpack.c.b16 %v3753, %v3749
        %v4730 = vpack.c.b16 %v3754, %v3750
        %v4731 = vpack.c.b16 %v3755, %v3751
        %v4732 = vpack.c.b16 %v3756, %v3752
        %v4733 = vpack.c.b16 %v3761, %v3757
        %v4734 = vpack.c.b16 %v3762, %v3758
        %v4735 = vpack.c.b16 %v3763, %v3759
        %v4736 = vpack.c.b16 %v3764, %v3760
        %v4737 = vpack.c.b16 %v3769, %v3765
        %v4738 = vpack.c.b16 %v3770, %v3766
        %v4739 = vpack.c.b16 %v3771, %v3767
        %v4740 = vpack.c.b16 %v3772, %v3768
        %v4741 = vpack.c.b16 %v3777, %v3773
        %v4742 = vpack.c.b16 %v3778, %v3774
        %v4743 = vpack.c.b16 %v3779, %v3775
        %v4744 = vpack.c.b16 %v3780, %v3776
        %v4745 = vpack.c.b16 %v3785, %v3781
        %v4746 = vpack.c.b16 %v3786, %v3782
        %v4747 = vpack.c.b16 %v3787, %v3783
        %v4748 = vpack.c.b16 %v3788, %v3784
        %v4749 = vpack.c.b16 %v3793, %v3789
        %v4750 = vpack.c.b16 %v3794, %v3790
        %v4751 = vpack.c.b16 %v3795, %v3791
        %v4752 = vpack.c.b16 %v3796, %v3792
        %v4753 = vpack.c.b16 %v3801, %v3797
        %v4754 = vpack.c.b16 %v3802, %v3798
        %v4755 = vpack.c.b16 %v3803, %v3799
        %v4756 = vpack.c.b16 %v3804, %v3800
        %v4757 = vpack.c.b16 %v3809, %v3805
        %v4758 = vpack.c.b16 %v3810, %v3806
        %v4759 = vpack.c.b16 %v3811, %v3807
        %v4760 = vpack.c.b16 %v3812, %v3808
        %v4761 = vpack.c.b16 %v3817, %v3813
        %v4762 = vpack.c.b16 %v3818, %v3814
        %v4763 = vpack.c.b16 %v3819, %v3815
        %v4764 = vpack.c.b16 %v3820, %v3816
        %v4765 = vpack.c.b16 %v3825, %v3821
        %v4766 = vpack.c.b16 %v3826, %v3822
        %v4767 = vpack.c.b16 %v3827, %v3823
        %v4768 = vpack.c.b16 %v3828, %v3824
        %v4769 = vpack.c.b16 %v3833, %v3829
        %v4770 = vpack.c.b16 %v3834, %v3830
        %v4771 = vpack.c.b16 %v3835, %v3831
        %v4772 = vpack.c.b16 %v3836, %v3832
        %v4773 = vpack.c.b16 %v3841, %v3837
        %v4774 = vpack.c.b16 %v3842, %v3838
        %v4775 = vpack.c.b16 %v3843, %v3839
        %v4776 = vpack.c.b16 %v3844, %v3840
        %v4777 = vpack.c.b16 %v3849, %v3845
        %v4778 = vpack.c.b16 %v3850, %v3846
        %v4779 = vpack.c.b16 %v3851, %v3847
        %v4780 = vpack.c.b16 %v3852, %v3848
        %v4781 = vpack.c.b16 %v3857, %v3853
        %v4782 = vpack.c.b16 %v3858, %v3854
        %v4783 = vpack.c.b16 %v3859, %v3855
        %v4784 = vpack.c.b16 %v3860, %v3856
        %v4785 = vpack.c.b16 %v3865, %v3861
        %v4786 = vpack.c.b16 %v3866, %v3862
        %v4787 = vpack.c.b16 %v3867, %v3863
        %v4788 = vpack.c.b16 %v3868, %v3864
        %v4789 = vpack.c.b16 %v3873, %v3869
        %v4790 = vpack.c.b16 %v3874, %v3870
        %v4791 = vpack.c.b16 %v3875, %v3871
        %v4792 = vpack.c.b16 %v3876, %v3872
        %v4793 = vpack.c.b16 %v3881, %v3877
        %v4794 = vpack.c.b16 %v3882, %v3878
        %v4795 = vpack.c.b16 %v3883, %v3879
        %v4796 = vpack.c.b16 %v3884, %v3880
        %v4797 = vpack.c.b16 %v3889, %v3885
        %v4798 = vpack.c.b16 %v3890, %v3886
        %v4799 = vpack.c.b16 %v3891, %v3887
        %v4800 = vpack.c.b16 %v3892, %v3888
        %v4801 = vpack.c.b16 %v3897, %v3893
        %v4802 = vpack.c.b16 %v3898, %v3894
        %v4803 = vpack.c.b16 %v3899, %v3895
        %v4804 = vpack.c.b16 %v3900, %v3896
        %v4805 = vpack.c.b16 %v3905, %v3901
        %v4806 = vpack.c.b16 %v3906, %v3902
        %v4807 = vpack.c.b16 %v3907, %v3903
        %v4808 = vpack.c.b16 %v3908, %v3904
        %v4809 = vpack.c.b16 %v3913, %v3909
        %v4810 = vpack.c.b16 %v3914, %v3910
        %v4811 = vpack.c.b16 %v3915, %v3911
        %v4812 = vpack.c.b16 %v3916, %v3912
        %v4813 = vpack.c.b16 %v3921, %v3917
        %v4814 = vpack.c.b16 %v3922, %v3918
        %v4815 = vpack.c.b16 %v3923, %v3919
        %v4816 = vpack.c.b16 %v3924, %v3920
        %v4817 = vpack.c.b16 %v3929, %v3925
        %v4818 = vpack.c.b16 %v3930, %v3926
        %v4819 = vpack.c.b16 %v3931, %v3927
        %v4820 = vpack.c.b16 %v3932, %v3928
        %v4821 = vpack.c.b16 %v3937, %v3933
        %v4822 = vpack.c.b16 %v3938, %v3934
        %v4823 = vpack.c.b16 %v3939, %v3935
        %v4824 = vpack.c.b16 %v3940, %v3936
        %v4825 = vpack.c.b16 %v3945, %v3941
        %v4826 = vpack.c.b16 %v3946, %v3942
        %v4827 = vpack.c.b16 %v3947, %v3943
        %v4828 = vpack.c.b16 %v3948, %v3944
        %v4829 = vpack.c.b16 %v3953, %v3949
        %v4830 = vpack.c.b16 %v3954, %v3950
        %v4831 = vpack.c.b16 %v3955, %v3951
        %v4832 = vpack.c.b16 %v3956, %v3952
        %v4833 = vpack.c.b16 %v3961, %v3957
        %v4834 = vpack.c.b16 %v3962, %v3958
        %v4835 = vpack.c.b16 %v3963, %v3959
        %v4836 = vpack.c.b16 %v3964, %v3960
        %v4837 = vpack.c.b16 %v3969, %v3965
        %v4838 = vpack.c.b16 %v3970, %v3966
        %v4839 = vpack.c.b16 %v3971, %v3967
        %v4840 = vpack.c.b16 %v3972, %v3968
        %v4841 = vpack.c.b16 %v3977, %v3973
        %v4842 = vpack.c.b16 %v3978, %v3974
        %v4843 = vpack.c.b16 %v3979, %v3975
        %v4844 = vpack.c.b16 %v3980, %v3976
        %v4845 = vpack.c.b16 %v3985, %v3981
        %v4846 = vpack.c.b16 %v3986, %v3982
        %v4847 = vpack.c.b16 %v3987, %v3983
        %v4848 = vpack.c.b16 %v3988, %v3984
        %v4849 = vpack.c.b16 %v3993, %v3989
        %v4850 = vpack.c.b16 %v3994, %v3990
        %v4851 = vpack.c.b16 %v3995, %v3991
        %v4852 = vpack.c.b16 %v3996, %v3992
        %v4853 = vpack.c.b16 %v4001, %v3997
        %v4854 = vpack.c.b16 %v4002, %v3998
        %v4855 = vpack.c.b16 %v4003, %v3999
        %v4856 = vpack.c.b16 %v4004, %v4000
        %v4857 = vpack.c.b16 %v4009, %v4005
        %v4858 = vpack.c.b16 %v4010, %v4006
        %v4859 = vpack.c.b16 %v4011, %v4007
        %v4860 = vpack.c.b16 %v4012, %v4008
        %v4861 = vpack.c.b16 %v4017, %v4013
        %v4862 = vpack.c.b16 %v4018, %v4014
        %v4863 = vpack.c.b16 %v4019, %v4015
        %v4864 = vpack.c.b16 %v4020, %v4016
        %v4865 = vpack.c.b16 %v4025, %v4021
        %v4866 = vpack.c.b16 %v4026, %v4022
        %v4867 = vpack.c.b16 %v4027, %v4023
        %v4868 = vpack.c.b16 %v4028, %v4024
        %v4869 = vpack.c.b16 %v4033, %v4029
        %v4870 = vpack.c.b16 %v4034, %v4030
        %v4871 = vpack.c.b16 %v4035, %v4031
        %v4872 = vpack.c.b16 %v4036, %v4032
        %v4873 = vpack.c.b16 %v4041, %v4037
        %v4874 = vpack.c.b16 %v4042, %v4038
        %v4875 = vpack.c.b16 %v4043, %v4039
        %v4876 = vpack.c.b16 %v4044, %v4040
        %v4877 = vpack.c.b16 %v4049, %v4045
        %v4878 = vpack.c.b16 %v4050, %v4046
        %v4879 = vpack.c.b16 %v4051, %v4047
        %v4880 = vpack.c.b16 %v4052, %v4048
        %v4881 = vpack.c.b16 %v4057, %v4053
        %v4882 = vpack.c.b16 %v4058, %v4054
        %v4883 = vpack.c.b16 %v4059, %v4055
        %v4884 = vpack.c.b16 %v4060, %v4056
        %v4885 = vpack.c.b16 %v4065, %v4061
        %v4886 = vpack.c.b16 %v4066, %v4062
        %v4887 = vpack.c.b16 %v4067, %v4063
        %v4888 = vpack.c.b16 %v4068, %v4064
        %v4889 = vpack.c.b16 %v4073, %v4069
        %v4890 = vpack.c.b16 %v4074, %v4070
        %v4891 = vpack.c.b16 %v4075, %v4071
        %v4892 = vpack.c.b16 %v4076, %v4072
        %v4893 = vpack.c.b16 %v4081, %v4077
        %v4894 = vpack.c.b16 %v4082, %v4078
        %v4895 = vpack.c.b16 %v4083, %v4079
        %v4896 = vpack.c.b16 %v4084, %v4080
        %v4897 = vpack.c.b16 %v4089, %v4085
        %v4898 = vpack.c.b16 %v4090, %v4086
        %v4899 = vpack.c.b16 %v4091, %v4087
        %v4900 = vpack.c.b16 %v4092, %v4088
        %v4901 = vpack.c.b16 %v4097, %v4093
        %v4902 = vpack.c.b16 %v4098, %v4094
        %v4903 = vpack.c.b16 %v4099, %v4095
        %v4904 = vpack.c.b16 %v4100, %v4096
        %v4905 = vpack.c.b16 %v4105, %v4101
        %v4906 = vpack.c.b16 %v4106, %v4102
        %v4907 = vpack.c.b16 %v4107, %v4103
        %v4908 = vpack.c.b16 %v4108, %v4104
        %v4909 = vpack.c.b16 %v4113, %v4109
        %v4910 = vpack.c.b16 %v4114, %v4110
        %v4911 = vpack.c.b16 %v4115, %v4111
        %v4912 = vpack.c.b16 %v4116, %v4112
        %v4913 = vpack.c.b16 %v4121, %v4117
        %v4914 = vpack.c.b16 %v4122, %v4118
        %v4915 = vpack.c.b16 %v4123, %v4119
        %v4916 = vpack.c.b16 %v4124, %v4120
        %v4917 = vpack.c.b16 %v4129, %v4125
        %v4918 = vpack.c.b16 %v4130, %v4126
        %v4919 = vpack.c.b16 %v4131, %v4127
        %v4920 = vpack.c.b16 %v4132, %v4128
        %v4921 = vpack.c.b16 %v4137, %v4133
        %v4922 = vpack.c.b16 %v4138, %v4134
        %v4923 = vpack.c.b16 %v4139, %v4135
        %v4924 = vpack.c.b16 %v4140, %v4136
        %v4925 = vpack.c.b16 %v4145, %v4141
        %v4926 = vpack.c.b16 %v4146, %v4142
        %v4927 = vpack.c.b16 %v4147, %v4143
        %v4928 = vpack.c.b16 %v4148, %v4144
        %v4929 = vpack.c.b16 %v4153, %v4149
        %v4930 = vpack.c.b16 %v4154, %v4150
        %v4931 = vpack.c.b16 %v4155, %v4151
        %v4932 = vpack.c.b16 %v4156, %v4152
        %v4933 = vpack.c.b16 %v4161, %v4157
        %v4934 = vpack.c.b16 %v4162, %v4158
        %v4935 = vpack.c.b16 %v4163, %v4159
        %v4936 = vpack.c.b16 %v4164, %v4160
        %v4937 = vpack.c.b16 %v4169, %v4165
        %v4938 = vpack.c.b16 %v4170, %v4166
        %v4939 = vpack.c.b16 %v4171, %v4167
        %v4940 = vpack.c.b16 %v4172, %v4168
        %v4941 = vpack.c.b16 %v4177, %v4173
        %v4942 = vpack.c.b16 %v4178, %v4174
        %v4943 = vpack.c.b16 %v4179, %v4175
        %v4944 = vpack.c.b16 %v4180, %v4176
        %v4945 = vpack.c.b16 %v4185, %v4181
        %v4946 = vpack.c.b16 %v4186, %v4182
        %v4947 = vpack.c.b16 %v4187, %v4183
        %v4948 = vpack.c.b16 %v4188, %v4184
        %v4949 = vpack.c.b16 %v4193, %v4189
        %v4950 = vpack.c.b16 %v4194, %v4190
        %v4951 = vpack.c.b16 %v4195, %v4191
        %v4952 = vpack.c.b16 %v4196, %v4192
        %v4953 = vpack.c.b16 %v4201, %v4197
        %v4954 = vpack.c.b16 %v4202, %v4198
        %v4955 = vpack.c.b16 %v4203, %v4199
        %v4956 = vpack.c.b16 %v4204, %v4200
        %v4957 = vpack.c.b16 %v4209, %v4205
        %v4958 = vpack.c.b16 %v4210, %v4206
        %v4959 = vpack.c.b16 %v4211, %v4207
        %v4960 = vpack.c.b16 %v4212, %v4208
        %v4961 = vpack.c.b16 %v4217, %v4213
        %v4962 = vpack.c.b16 %v4218, %v4214
        %v4963 = vpack.c.b16 %v4219, %v4215
        %v4964 = vpack.c.b16 %v4220, %v4216
        %v4965 = vpack.c.b16 %v4225, %v4221
        %v4966 = vpack.c.b16 %v4226, %v4222
        %v4967 = vpack.c.b16 %v4227, %v4223
        %v4968 = vpack.c.b16 %v4228, %v4224
        %v4969 = vpack.c.b16 %v4233, %v4229
        %v4970 = vpack.c.b16 %v4234, %v4230
        %v4971 = vpack.c.b16 %v4235, %v4231
        %v4972 = vpack.c.b16 %v4236, %v4232
        %v4973 = vpack.c.b16 %v4241, %v4237
        %v4974 = vpack.c.b16 %v4242, %v4238
        %v4975 = vpack.c.b16 %v4243, %v4239
        %v4976 = vpack.c.b16 %v4244, %v4240
        %v4977 = vpack.c.b16 %v4249, %v4245
        %v4978 = vpack.c.b16 %v4250, %v4246
        %v4979 = vpack.c.b16 %v4251, %v4247
        %v4980 = vpack.c.b16 %v4252, %v4248
        %v4981 = vpack.c.b16 %v4257, %v4253
        %v4982 = vpack.c.b16 %v4258, %v4254
        %v4983 = vpack.c.b16 %v4259, %v4255
        %v4984 = vpack.c.b16 %v4260, %v4256
        %v4985 = vpack.c.b16 %v4265, %v4261
        %v4986 = vpack.c.b16 %v4266, %v4262
        %v4987 = vpack.c.b16 %v4267, %v4263
        %v4988 = vpack.c.b16 %v4268, %v4264
        %v4989 = vpack.c.b16 %v4273, %v4269
        %v4990 = vpack.c.b16 %v4274, %v4270
        %v4991 = vpack.c.b16 %v4275, %v4271
        %v4992 = vpack.c.b16 %v4276, %v4272
        %v4993 = vpack.c.b16 %v4281, %v4277
        %v4994 = vpack.c.b16 %v4282, %v4278
        %v4995 = vpack.c.b16 %v4283, %v4279
        %v4996 = vpack.c.b16 %v4284, %v4280
        %v4997 = vpack.c.b16 %v4289, %v4285
        %v4998 = vpack.c.b16 %v4290, %v4286
        %v4999 = vpack.c.b16 %v4291, %v4287
        %v5000 = vpack.c.b16 %v4292, %v4288
        %v5001 = vpack.c.b16 %v4297, %v4293
        %v5002 = vpack.c.b16 %v4298, %v4294
        %v5003 = vpack.c.b16 %v4299, %v4295
        %v5004 = vpack.c.b16 %v4300, %v4296
        %v5005 = vpack.c.b16 %v4305, %v4301
        %v5006 = vpack.c.b16 %v4306, %v4302
        %v5007 = vpack.c.b16 %v4307, %v4303
        %v5008 = vpack.c.b16 %v4308, %v4304
        %v5009 = vpack.c.b16 %v4313, %v4309
        %v5010 = vpack.c.b16 %v4314, %v4310
        %v5011 = vpack.c.b16 %v4315, %v4311
        %v5012 = vpack.c.b16 %v4316, %v4312
        %v5013 = vpack.c.b16 %v4321, %v4317
        %v5014 = vpack.c.b16 %v4322, %v4318
        %v5015 = vpack.c.b16 %v4323, %v4319
        %v5016 = vpack.c.b16 %v4324, %v4320
        %v5017 = vpack.c.b16 %v4329, %v4325
        %v5018 = vpack.c.b16 %v4330, %v4326
        %v5019 = vpack.c.b16 %v4331, %v4327
        %v5020 = vpack.c.b16 %v4332, %v4328
        %v5021 = vpack.c.b16 %v4337, %v4333
        %v5022 = vpack.c.b16 %v4338, %v4334
        %v5023 = vpack.c.b16 %v4339, %v4335
        %v5024 = vpack.c.b16 %v4340, %v4336
        %v5025 = vpack.c.b16 %v4345, %v4341
        %v5026 = vpack.c.b16 %v4346, %v4342
        %v5027 = vpack.c.b16 %v4347, %v4343
        %v5028 = vpack.c.b16 %v4348, %v4344
        %v5029 = vpack.c.b16 %v4353, %v4349
        %v5030 = vpack.c.b16 %v4354, %v4350
        %v5031 = vpack.c.b16 %v4355, %v4351
        %v5032 = vpack.c.b16 %v4356, %v4352
        %v5033 = vpack.c.b16 %v4361, %v4357
        %v5034 = vpack.c.b16 %v4362, %v4358
        %v5035 = vpack.c.b16 %v4363, %v4359
        %v5036 = vpack.c.b16 %v4364, %v4360
        %v5037 = vpack.c.b16 %v4369, %v4365
        %v5038 = vpack.c.b16 %v4370, %v4366
        %v5039 = vpack.c.b16 %v4371, %v4367
        %v5040 = vpack.c.b16 %v4372, %v4368
        %v5041 = vpack.c.b16 %v4377, %v4373
        %v5042 = vpack.c.b16 %v4378, %v4374
        %v5043 = vpack.c.b16 %v4379, %v4375
        %v5044 = vpack.c.b16 %v4380, %v4376
        %v5045 = vpack.c.b16 %v4385, %v4381
        %v5046 = vpack.c.b16 %v4386, %v4382
        %v5047 = vpack.c.b16 %v4387, %v4383
        %v5048 = vpack.c.b16 %v4388, %v4384
        %v5049 = vpack.c.b16 %v4393, %v4389
        %v5050 = vpack.c.b16 %v4394, %v4390
        %v5051 = vpack.c.b16 %v4395, %v4391
        %v5052 = vpack.c.b16 %v4396, %v4392
        %v5053 = vpack.c.b16 %v4401, %v4397
        %v5054 = vpack.c.b16 %v4402, %v4398
        %v5055 = vpack.c.b16 %v4403, %v4399
        %v5056 = vpack.c.b16 %v4404, %v4400
        %v5057 = vpack.c.b16 %v4409, %v4405
        %v5058 = vpack.c.b16 %v4410, %v4406
        %v5059 = vpack.c.b16 %v4411, %v4407
        %v5060 = vpack.c.b16 %v4412, %v4408
        %v5061 = vpack.c.b16 %v4417, %v4413
        %v5062 = vpack.c.b16 %v4418, %v4414
        %v5063 = vpack.c.b16 %v4419, %v4415
        %v5064 = vpack.c.b16 %v4420, %v4416
        %v5065 = vpack.c.b16 %v4425, %v4421
        %v5066 = vpack.c.b16 %v4426, %v4422
        %v5067 = vpack.c.b16 %v4427, %v4423
        %v5068 = vpack.c.b16 %v4428, %v4424
        %v5069 = vpack.c.b16 %v4433, %v4429
        %v5070 = vpack.c.b16 %v4434, %v4430
        %v5071 = vpack.c.b16 %v4435, %v4431
        %v5072 = vpack.c.b16 %v4436, %v4432
        %v5073 = vpack.c.b16 %v4441, %v4437
        %v5074 = vpack.c.b16 %v4442, %v4438
        %v5075 = vpack.c.b16 %v4443, %v4439
        %v5076 = vpack.c.b16 %v4444, %v4440
        %v5077 = vpack.c.b16 %v4449, %v4445
        %v5078 = vpack.c.b16 %v4450, %v4446
        %v5079 = vpack.c.b16 %v4451, %v4447
        %v5080 = vpack.c.b16 %v4452, %v4448
        %v5081 = vpack.c.b16 %v4457, %v4453
        %v5082 = vpack.c.b16 %v4458, %v4454
        %v5083 = vpack.c.b16 %v4459, %v4455
        %v5084 = vpack.c.b16 %v4460, %v4456
        %v5085 = vpack.c.b16 %v4465, %v4461
        %v5086 = vpack.c.b16 %v4466, %v4462
        %v5087 = vpack.c.b16 %v4467, %v4463
        %v5088 = vpack.c.b16 %v4468, %v4464
        %v5089 = vpack.c.b16 %v4473, %v4469
        %v5090 = vpack.c.b16 %v4474, %v4470
        %v5091 = vpack.c.b16 %v4475, %v4471
        %v5092 = vpack.c.b16 %v4476, %v4472
        %v5093 = vpack.c.b16 %v4481, %v4477
        %v5094 = vpack.c.b16 %v4482, %v4478
        %v5095 = vpack.c.b16 %v4483, %v4479
        %v5096 = vpack.c.b16 %v4484, %v4480
        %v5097 = vpack.c.b16 %v4489, %v4485
        %v5098 = vpack.c.b16 %v4490, %v4486
        %v5099 = vpack.c.b16 %v4491, %v4487
        %v5100 = vpack.c.b16 %v4492, %v4488
        %v5101 = vpack.c.b16 %v4497, %v4493
        %v5102 = vpack.c.b16 %v4498, %v4494
        %v5103 = vpack.c.b16 %v4499, %v4495
        %v5104 = vpack.c.b16 %v4500, %v4496
        %v5105 = vpack.c.b16 %v4505, %v4501
        %v5106 = vpack.c.b16 %v4506, %v4502
        %v5107 = vpack.c.b16 %v4507, %v4503
        %v5108 = vpack.c.b16 %v4508, %v4504
        %v5109 = vpack.c.b16 %v4513, %v4509
        %v5110 = vpack.c.b16 %v4514, %v4510
        %v5111 = vpack.c.b16 %v4515, %v4511
        %v5112 = vpack.c.b16 %v4516, %v4512
        %v5113 = vpack.c.b16 %v4521, %v4517
        %v5114 = vpack.c.b16 %v4522, %v4518
        %v5115 = vpack.c.b16 %v4523, %v4519
        %v5116 = vpack.c.b16 %v4524, %v4520
        %v5117 = vpack.c.b16 %v4529, %v4525
        %v5118 = vpack.c.b16 %v4530, %v4526
        %v5119 = vpack.c.b16 %v4531, %v4527
        %v5120 = vpack.c.b16 %v4532, %v4528
        %v5121 = vpack.c.b16 %v4537, %v4533
        %v5122 = vpack.c.b16 %v4538, %v4534
        %v5123 = vpack.c.b16 %v4539, %v4535
        %v5124 = vpack.c.b16 %v4540, %v4536
        %v5125 = vpack.c.b16 %v4545, %v4541
        %v5126 = vpack.c.b16 %v4546, %v4542
        %v5127 = vpack.c.b16 %v4547, %v4543
        %v5128 = vpack.c.b16 %v4548, %v4544
        %v5129 = vpack.c.b16 %v4553, %v4549
        %v5130 = vpack.c.b16 %v4554, %v4550
        %v5131 = vpack.c.b16 %v4555, %v4551
        %v5132 = vpack.c.b16 %v4556, %v4552
        %v5133 = vpack.c.b16 %v4561, %v4557
        %v5134 = vpack.c.b16 %v4562, %v4558
        %v5135 = vpack.c.b16 %v4563, %v4559
        %v5136 = vpack.c.b16 %v4564, %v4560
        %v5137 = vpack.c.b16 %v4569, %v4565
        %v5138 = vpack.c.b16 %v4570, %v4566
        %v5139 = vpack.c.b16 %v4571, %v4567
        %v5140 = vpack.c.b16 %v4572, %v4568
        %v5141 = vpack.c.b16 %v4577, %v4573
        %v5142 = vpack.c.b16 %v4578, %v4574
        %v5143 = vpack.c.b16 %v4579, %v4575
        %v5144 = vpack.c.b16 %v4580, %v4576
        %v5145 = vpack.c.b16 %v4585, %v4581
        %v5146 = vpack.c.b16 %v4586, %v4582
        %v5147 = vpack.c.b16 %v4587, %v4583
        %v5148 = vpack.c.b16 %v4588, %v4584
        %v5149 = vpack.c.b16 %v4593, %v4589
        %v5150 = vpack.c.b16 %v4594, %v4590
        %v5151 = vpack.c.b16 %v4595, %v4591
        %v5152 = vpack.c.b16 %v4596, %v4592
        %v5153 = vpack.c.b16 %v4601, %v4597
        %v5154 = vpack.c.b16 %v4602, %v4598
        %v5155 = vpack.c.b16 %v4603, %v4599
        %v5156 = vpack.c.b16 %v4604, %v4600
        %v5157 = vpack.c.b16 %v4609, %v4605
        %v5158 = vpack.c.b16 %v4610, %v4606
        %v5159 = vpack.c.b16 %v4611, %v4607
        %v5160 = vpack.c.b16 %v4612, %v4608
        %v5161 = vpack.c.b16 %v4617, %v4613
        %v5162 = vpack.c.b16 %v4618, %v4614
        %v5163 = vpack.c.b16 %v4619, %v4615
        %v5164 = vpack.c.b16 %v4620, %v4616
        %v5165 = vpack.c.b16 %v4625, %v4621
        %v5166 = vpack.c.b16 %v4626, %v4622
        %v5167 = vpack.c.b16 %v4627, %v4623
        %v5168 = vpack.c.b16 %v4628, %v4624
        %v5169 = vpack.c.b16 %v4633, %v4629
        %v5170 = vpack.c.b16 %v4634, %v4630
        %v5171 = vpack.c.b16 %v4635, %v4631
        %v5172 = vpack.c.b16 %v4636, %v4632
        %v5173 = vpack.c.b16 %v4641, %v4637
        %v5174 = vpack.c.b16 %v4642, %v4638
        %v5175 = vpack.c.b16 %v4643, %v4639
        %v5176 = vpack.c.b16 %v4644, %v4640
        %v5177 = vpack.c.b16 %v4649, %v4645
        %v5178 = vpack.c.b16 %v4650, %v4646
        %v5179 = vpack.c.b16 %v4651, %v4647
        %v5180 = vpack.c.b16 %v4652, %v4648
        %v5181 = vpack.c.b16 %v4657, %v4653
        %v5182 = vpack.c.b16 %v4658, %v4654
        %v5183 = vpack.c.b16 %v4659, %v4655
        %v5184 = vpack.c.b16 %v4660, %v4656
        %v5185 = vpack.c.b16 %v4665, %v4661
        %v5186 = vpack.c.b16 %v4666, %v4662
        %v5187 = vpack.c.b16 %v4667, %v4663
        %v5188 = vpack.c.b16 %v4668, %v4664
        %v5189 = vpack.c.b16 %v4673, %v4669
        %v5190 = vpack.c.b16 %v4674, %v4670
        %v5191 = vpack.c.b16 %v4675, %v4671
        %v5192 = vpack.c.b16 %v4676, %v4672
        %v5193 = vpack.c.b16 %v4681, %v4677
        %v5194 = vpack.c.b16 %v4682, %v4678
        %v5195 = vpack.c.b16 %v4683, %v4679
        %v5196 = vpack.c.b16 %v4684, %v4680
        %v5710 = vlaneseq
        %v5711 = vshrl.u32 %v5710, 7
        %v5712 = vsub.s32 0, %v5711
        %v5713 = vrot.slane %v3148, %v5712
        %v5714 = vlaneseq
        %v5715 = vshrl.u32 %v5714, 7
        %v5716 = vsub.s32 1, %v5715
        %v5717 = vrot.slane %v3148, %v5716
        %v5718 = vlaneseq
        %v5719 = vshrl.u32 %v5718, 7
        %v5720 = vsub.s32 2, %v5719
        %v5721 = vrot.slane %v3148, %v5720
        %v5722 = vlaneseq
        %v5723 = vshrl.u32 %v5722, 7
        %v5724 = vsub.s32 3, %v5723
        %v5725 = vrot.slane %v3148, %v5724
        %5730 = vmatprep.subr.bf16.mxu0 %v4686
        %5731 = vmatpush1.bf16.msra.mxu0 %v4685
        %5732 = vmatprep.subr.bf16.mxu0 %v4690
        %5733 = vmatpush1.bf16.msra.mxu0 %v4689
        %5734 = vmatprep.subr.bf16.mxu0 %v4694
        %5735 = vmatpush1.bf16.msra.mxu0 %v4693
        %5736 = vmatprep.subr.bf16.mxu0 %v4698
        %5737 = vmatpush1.bf16.msra.mxu0 %v4697
        %5738 = vmatprep.subr.bf16.mxu0 %v4702
        %5739 = vmatpush1.bf16.msra.mxu0 %v4701
        %5740 = vmatprep.subr.bf16.mxu0 %v4706
        %5741 = vmatpush1.bf16.msra.mxu0 %v4705
        %5742 = vmatprep.subr.bf16.mxu0 %v4710
        %5743 = vmatpush1.bf16.msra.mxu0 %v4709
        %5744 = vmatprep.subr.bf16.mxu0 %v4714
        %5745 = vmatpush1.bf16.msra.mxu0 %v4713
        %5746 = vmatprep.subr.bf16.mxu0 %v4718
        %5747 = vmatpush1.bf16.msra.mxu0 %v4717
        %5748 = vmatprep.subr.bf16.mxu0 %v4722
        %5749 = vmatpush1.bf16.msra.mxu0 %v4721
        %5750 = vmatprep.subr.bf16.mxu0 %v4726
        %5751 = vmatpush1.bf16.msra.mxu0 %v4725
        %5752 = vmatprep.subr.bf16.mxu0 %v4730
        %5753 = vmatpush1.bf16.msra.mxu0 %v4729
        %5754 = vmatprep.subr.bf16.mxu0 %v4734
        %5755 = vmatpush1.bf16.msra.mxu0 %v4733
        %5756 = vmatprep.subr.bf16.mxu0 %v4738
        %5757 = vmatpush1.bf16.msra.mxu0 %v4737
        %5758 = vmatprep.subr.bf16.mxu0 %v4742
        %5759 = vmatpush1.bf16.msra.mxu0 %v4741
        %5760 = vmatprep.subr.bf16.mxu0 %v4746
        %5761 = vmatpush1.bf16.msra.mxu0 %v4745
        %5762 = vmatprep.mubr.bf16.mxu0 %v2621
        %5763 = vmatmul.mubr.bf16.gmra.mrb[0].mxu0 %v2620
        %v5764 = vpop.f32.mrb[0].mxu0
        %v5765 = vadd.f32 %v5713, %v5764
        %v5766 = vpop.f32.mrb[0].mxu0
        %v5767 = vadd.f32 %v5717, %v5766
        %v5768 = vpop.f32.mrb[0].mxu0
        %v5769 = vpop.f32.mrb[0].mxu0
        %5770 = vdwg.mxu0
        %5771 = vmatprep.subr.bf16.mxu0 %v4750
        %5772 = vmatpush1.bf16.msra.mxu0 %v4749
        %5773 = vmatprep.subr.bf16.mxu0 %v4754
        %5774 = vmatpush1.bf16.msra.mxu0 %v4753
        %5775 = vmatprep.subr.bf16.mxu0 %v4758
        %5776 = vmatpush1.bf16.msra.mxu0 %v4757
        %5777 = vmatprep.subr.bf16.mxu0 %v4762
        %5778 = vmatpush1.bf16.msra.mxu0 %v4761
        %5779 = vmatprep.subr.bf16.mxu0 %v4766
        %5780 = vmatpush1.bf16.msra.mxu0 %v4765
        %5781 = vmatprep.subr.bf16.mxu0 %v4770
        %5782 = vmatpush1.bf16.msra.mxu0 %v4769
        %5783 = vmatprep.subr.bf16.mxu0 %v4774
        %5784 = vmatpush1.bf16.msra.mxu0 %v4773
        %5785 = vmatprep.subr.bf16.mxu0 %v4778
        %5786 = vmatpush1.bf16.msra.mxu0 %v4777
        %5787 = vmatprep.subr.bf16.mxu0 %v4782
        %5788 = vmatpush1.bf16.msra.mxu0 %v4781
        %5789 = vmatprep.subr.bf16.mxu0 %v4786
        %5790 = vmatpush1.bf16.msra.mxu0 %v4785
        %5791 = vmatprep.subr.bf16.mxu0 %v4790
        %5792 = vmatpush1.bf16.msra.mxu0 %v4789
        %5793 = vmatprep.subr.bf16.mxu0 %v4794
        %5794 = vmatpush1.bf16.msra.mxu0 %v4793
        %5795 = vmatprep.subr.bf16.mxu0 %v4798
        %5796 = vmatpush1.bf16.msra.mxu0 %v4797
        %5797 = vmatprep.subr.bf16.mxu0 %v4802
        %5798 = vmatpush1.bf16.msra.mxu0 %v4801
        %5799 = vmatprep.subr.bf16.mxu0 %v4806
        %5800 = vmatpush1.bf16.msra.mxu0 %v4805
        %5801 = vmatprep.subr.bf16.mxu0 %v4810
        %5802 = vmatpush1.bf16.msra.mxu0 %v4809
        %5803 = vmatprep.mubr.bf16.mxu0 %v2623
        %5804 = vmatmul.mubr.bf16.gmra.mrb[0].mxu0 %v2622
        %v5805 = vpop.f32.mrb[0].mxu0
        %v5806 = vadd.f32 %v5765, %v5805
        %v5807 = vpop.f32.mrb[0].mxu0
        %v5808 = vadd.f32 %v5767, %v5807
        %v5809 = vpop.f32.mrb[0].mxu0
        %v5810 = vpop.f32.mrb[0].mxu0
        %5811 = vdwg.mxu0
        %5812 = vmatprep.subr.bf16.mxu0 %v4814
        %5813 = vmatpush1.bf16.msra.mxu0 %v4813
        %5814 = vmatprep.subr.bf16.mxu0 %v4818
        %5815 = vmatpush1.bf16.msra.mxu0 %v4817
        %5816 = vmatprep.subr.bf16.mxu0 %v4822
        %5817 = vmatpush1.bf16.msra.mxu0 %v4821
        %5818 = vmatprep.subr.bf16.mxu0 %v4826
        %5819 = vmatpush1.bf16.msra.mxu0 %v4825
        %5820 = vmatprep.subr.bf16.mxu0 %v4830
        %5821 = vmatpush1.bf16.msra.mxu0 %v4829
        %5822 = vmatprep.subr.bf16.mxu0 %v4834
        %5823 = vmatpush1.bf16.msra.mxu0 %v4833
        %5824 = vmatprep.subr.bf16.mxu0 %v4838
        %5825 = vmatpush1.bf16.msra.mxu0 %v4837
        %5826 = vmatprep.subr.bf16.mxu0 %v4842
        %5827 = vmatpush1.bf16.msra.mxu0 %v4841
        %5828 = vmatprep.subr.bf16.mxu0 %v4846
        %5829 = vmatpush1.bf16.msra.mxu0 %v4845
        %5830 = vmatprep.subr.bf16.mxu0 %v4850
        %5831 = vmatpush1.bf16.msra.mxu0 %v4849
        %5832 = vmatprep.subr.bf16.mxu0 %v4854
        %5833 = vmatpush1.bf16.msra.mxu0 %v4853
        %5834 = vmatprep.subr.bf16.mxu0 %v4858
        %5835 = vmatpush1.bf16.msra.mxu0 %v4857
        %5836 = vmatprep.subr.bf16.mxu0 %v4862
        %5837 = vmatpush1.bf16.msra.mxu0 %v4861
        %5838 = vmatprep.subr.bf16.mxu0 %v4866
        %5839 = vmatpush1.bf16.msra.mxu0 %v4865
        %5840 = vmatprep.subr.bf16.mxu0 %v4870
        %5841 = vmatpush1.bf16.msra.mxu0 %v4869
        %5842 = vmatprep.subr.bf16.mxu0 %v4874
        %5843 = vmatpush1.bf16.msra.mxu0 %v4873
        %5844 = vmatprep.mubr.bf16.mxu0 %v2625
        %5845 = vmatmul.mubr.bf16.gmra.mrb[0].mxu0 %v2624
        %v5846 = vpop.f32.mrb[0].mxu0
        %v5847 = vadd.f32 %v5806, %v5846
        %v5848 = vpop.f32.mrb[0].mxu0
        %v5849 = vadd.f32 %v5808, %v5848
        %v5850 = vpop.f32.mrb[0].mxu0
        %v5851 = vpop.f32.mrb[0].mxu0
        %5852 = vdwg.mxu0
        %5853 = vmatprep.subr.bf16.mxu0 %v4878
        %5854 = vmatpush1.bf16.msra.mxu0 %v4877
        %5855 = vmatprep.subr.bf16.mxu0 %v4882
        %5856 = vmatpush1.bf16.msra.mxu0 %v4881
        %5857 = vmatprep.subr.bf16.mxu0 %v4886
        %5858 = vmatpush1.bf16.msra.mxu0 %v4885
        %5859 = vmatprep.subr.bf16.mxu0 %v4890
        %5860 = vmatpush1.bf16.msra.mxu0 %v4889
        %5861 = vmatprep.subr.bf16.mxu0 %v4894
        %5862 = vmatpush1.bf16.msra.mxu0 %v4893
        %5863 = vmatprep.subr.bf16.mxu0 %v4898
        %5864 = vmatpush1.bf16.msra.mxu0 %v4897
        %5865 = vmatprep.subr.bf16.mxu0 %v4902
        %5866 = vmatpush1.bf16.msra.mxu0 %v4901
        %5867 = vmatprep.subr.bf16.mxu0 %v4906
        %5868 = vmatpush1.bf16.msra.mxu0 %v4905
        %5869 = vmatprep.subr.bf16.mxu0 %v4910
        %5870 = vmatpush1.bf16.msra.mxu0 %v4909
        %5871 = vmatprep.subr.bf16.mxu0 %v4914
        %5872 = vmatpush1.bf16.msra.mxu0 %v4913
        %5873 = vmatprep.subr.bf16.mxu0 %v4918
        %5874 = vmatpush1.bf16.msra.mxu0 %v4917
        %5875 = vmatprep.subr.bf16.mxu0 %v4922
        %5876 = vmatpush1.bf16.msra.mxu0 %v4921
        %5877 = vmatprep.subr.bf16.mxu0 %v4926
        %5878 = vmatpush1.bf16.msra.mxu0 %v4925
        %5879 = vmatprep.subr.bf16.mxu0 %v4930
        %5880 = vmatpush1.bf16.msra.mxu0 %v4929
        %5881 = vmatprep.subr.bf16.mxu0 %v4934
        %5882 = vmatpush1.bf16.msra.mxu0 %v4933
        %5883 = vmatprep.subr.bf16.mxu0 %v4938
        %5884 = vmatpush1.bf16.msra.mxu0 %v4937
        %5885 = vmatprep.mubr.bf16.mxu0 %v2627
        %5886 = vmatmul.mubr.bf16.gmra.mrb[0].mxu0 %v2626
        %v5887 = vpop.f32.mrb[0].mxu0
        %v5888 = vadd.f32 %v5847, %v5887
        %v5889 = vpop.f32.mrb[0].mxu0
        %v5890 = vadd.f32 %v5849, %v5889
        %v5891 = vpop.f32.mrb[0].mxu0
        %v5892 = vpop.f32.mrb[0].mxu0
        %5893 = vdwg.mxu0
        %5894 = vmatprep.subr.bf16.mxu0 %v4942
        %5895 = vmatpush1.bf16.msra.mxu0 %v4941
        %5896 = vmatprep.subr.bf16.mxu0 %v4946
        %5897 = vmatpush1.bf16.msra.mxu0 %v4945
        %5898 = vmatprep.subr.bf16.mxu0 %v4950
        %5899 = vmatpush1.bf16.msra.mxu0 %v4949
        %5900 = vmatprep.subr.bf16.mxu0 %v4954
        %5901 = vmatpush1.bf16.msra.mxu0 %v4953
        %5902 = vmatprep.subr.bf16.mxu0 %v4958
        %5903 = vmatpush1.bf16.msra.mxu0 %v4957
        %5904 = vmatprep.subr.bf16.mxu0 %v4962
        %5905 = vmatpush1.bf16.msra.mxu0 %v4961
        %5906 = vmatprep.subr.bf16.mxu0 %v4966
        %5907 = vmatpush1.bf16.msra.mxu0 %v4965
        %5908 = vmatprep.subr.bf16.mxu0 %v4970
        %5909 = vmatpush1.bf16.msra.mxu0 %v4969
        %5910 = vmatprep.subr.bf16.mxu0 %v4974
        %5911 = vmatpush1.bf16.msra.mxu0 %v4973
        %5912 = vmatprep.subr.bf16.mxu0 %v4978
        %5913 = vmatpush1.bf16.msra.mxu0 %v4977
        %5914 = vmatprep.subr.bf16.mxu0 %v4982
        %5915 = vmatpush1.bf16.msra.mxu0 %v4981
        %5916 = vmatprep.subr.bf16.mxu0 %v4986
        %5917 = vmatpush1.bf16.msra.mxu0 %v4985
        %5918 = vmatprep.subr.bf16.mxu0 %v4990
        %5919 = vmatpush1.bf16.msra.mxu0 %v4989
        %5920 = vmatprep.subr.bf16.mxu0 %v4994
        %5921 = vmatpush1.bf16.msra.mxu0 %v4993
        %5922 = vmatprep.subr.bf16.mxu0 %v4998
        %5923 = vmatpush1.bf16.msra.mxu0 %v4997
        %5924 = vmatprep.subr.bf16.mxu0 %v5002
        %5925 = vmatpush1.bf16.msra.mxu0 %v5001
        %5926 = vmatprep.mubr.bf16.mxu0 %v2629
        %5927 = vmatmul.mubr.bf16.gmra.mrb[0].mxu0 %v2628
        %v5928 = vpop.f32.mrb[0].mxu0
        %v5929 = vadd.f32 %v5888, %v5928
        %v5930 = vpop.f32.mrb[0].mxu0
        %v5931 = vadd.f32 %v5890, %v5930
        %v5932 = vpop.f32.mrb[0].mxu0
        %v5933 = vpop.f32.mrb[0].mxu0
        %5934 = vdwg.mxu0
        %5935 = vmatprep.subr.bf16.mxu0 %v5006
        %5936 = vmatpush1.bf16.msra.mxu0 %v5005
        %5937 = vmatprep.subr.bf16.mxu0 %v5010
        %5938 = vmatpush1.bf16.msra.mxu0 %v5009
        %5939 = vmatprep.subr.bf16.mxu0 %v5014
        %5940 = vmatpush1.bf16.msra.mxu0 %v5013
        %5941 = vmatprep.subr.bf16.mxu0 %v5018
        %5942 = vmatpush1.bf16.msra.mxu0 %v5017
        %5943 = vmatprep.subr.bf16.mxu0 %v5022
        %5944 = vmatpush1.bf16.msra.mxu0 %v5021
        %5945 = vmatprep.subr.bf16.mxu0 %v5026
        %5946 = vmatpush1.bf16.msra.mxu0 %v5025
        %5947 = vmatprep.subr.bf16.mxu0 %v5030
        %5948 = vmatpush1.bf16.msra.mxu0 %v5029
        %5949 = vmatprep.subr.bf16.mxu0 %v5034
        %5950 = vmatpush1.bf16.msra.mxu0 %v5033
        %5951 = vmatprep.subr.bf16.mxu0 %v5038
        %5952 = vmatpush1.bf16.msra.mxu0 %v5037
        %5953 = vmatprep.subr.bf16.mxu0 %v5042
        %5954 = vmatpush1.bf16.msra.mxu0 %v5041
        %5955 = vmatprep.subr.bf16.mxu0 %v5046
        %5956 = vmatpush1.bf16.msra.mxu0 %v5045
        %5957 = vmatprep.subr.bf16.mxu0 %v5050
        %5958 = vmatpush1.bf16.msra.mxu0 %v5049
        %5959 = vmatprep.subr.bf16.mxu0 %v5054
        %5960 = vmatpush1.bf16.msra.mxu0 %v5053
        %5961 = vmatprep.subr.bf16.mxu0 %v5058
        %5962 = vmatpush1.bf16.msra.mxu0 %v5057
        %5963 = vmatprep.subr.bf16.mxu0 %v5062
        %5964 = vmatpush1.bf16.msra.mxu0 %v5061
        %5965 = vmatprep.subr.bf16.mxu0 %v5066
        %5966 = vmatpush1.bf16.msra.mxu0 %v5065
        %5967 = vmatprep.mubr.bf16.mxu0 %v2631
        %5968 = vmatmul.mubr.bf16.gmra.mrb[0].mxu0 %v2630
        %v5969 = vpop.f32.mrb[0].mxu0
        %v5970 = vadd.f32 %v5929, %v5969
        %v5971 = vpop.f32.mrb[0].mxu0
        %v5972 = vadd.f32 %v5931, %v5971
        %v5973 = vpop.f32.mrb[0].mxu0
        %v5974 = vpop.f32.mrb[0].mxu0
        %5975 = vdwg.mxu0
        %5976 = vmatprep.subr.bf16.mxu0 %v5070
        %5977 = vmatpush1.bf16.msra.mxu0 %v5069
        %5978 = vmatprep.subr.bf16.mxu0 %v5074
        %5979 = vmatpush1.bf16.msra.mxu0 %v5073
        %5980 = vmatprep.subr.bf16.mxu0 %v5078
        %5981 = vmatpush1.bf16.msra.mxu0 %v5077
        %5982 = vmatprep.subr.bf16.mxu0 %v5082
        %5983 = vmatpush1.bf16.msra.mxu0 %v5081
        %5984 = vmatprep.subr.bf16.mxu0 %v5086
        %5985 = vmatpush1.bf16.msra.mxu0 %v5085
        %5986 = vmatprep.subr.bf16.mxu0 %v5090
        %5987 = vmatpush1.bf16.msra.mxu0 %v5089
        %5988 = vmatprep.subr.bf16.mxu0 %v5094
        %5989 = vmatpush1.bf16.msra.mxu0 %v5093
        %5990 = vmatprep.subr.bf16.mxu0 %v5098
        %5991 = vmatpush1.bf16.msra.mxu0 %v5097
        %5992 = vmatprep.subr.bf16.mxu0 %v5102
        %5993 = vmatpush1.bf16.msra.mxu0 %v5101
        %5994 = vmatprep.subr.bf16.mxu0 %v5106
        %5995 = vmatpush1.bf16.msra.mxu0 %v5105
        %5996 = vmatprep.subr.bf16.mxu0 %v5110
        %5997 = vmatpush1.bf16.msra.mxu0 %v5109
        %5998 = vmatprep.subr.bf16.mxu0 %v5114
        %5999 = vmatpush1.bf16.msra.mxu0 %v5113
        %6000 = vmatprep.subr.bf16.mxu0 %v5118
        %6001 = vmatpush1.bf16.msra.mxu0 %v5117
        %6002 = vmatprep.subr.bf16.mxu0 %v5122
        %6003 = vmatpush1.bf16.msra.mxu0 %v5121
        %6004 = vmatprep.subr.bf16.mxu0 %v5126
        %6005 = vmatpush1.bf16.msra.mxu0 %v5125
        %6006 = vmatprep.subr.bf16.mxu0 %v5130
        %6007 = vmatpush1.bf16.msra.mxu0 %v5129
        %6008 = vmatprep.mubr.bf16.mxu0 %v2633
        %6009 = vmatmul.mubr.bf16.gmra.mrb[0].mxu0 %v2632
        %v6010 = vpop.f32.mrb[0].mxu0
        %v6011 = vadd.f32 %v5970, %v6010
        %v6012 = vpop.f32.mrb[0].mxu0
        %v6013 = vadd.f32 %v5972, %v6012
        %v6014 = vpop.f32.mrb[0].mxu0
        %v6015 = vpop.f32.mrb[0].mxu0
        %6016 = vdwg.mxu0
        %6017 = vmatprep.subr.bf16.mxu0 %v5134
        %6018 = vmatpush1.bf16.msra.mxu0 %v5133
        %6019 = vmatprep.subr.bf16.mxu0 %v5138
        %6020 = vmatpush1.bf16.msra.mxu0 %v5137
        %6021 = vmatprep.subr.bf16.mxu0 %v5142
        %6022 = vmatpush1.bf16.msra.mxu0 %v5141
        %6023 = vmatprep.subr.bf16.mxu0 %v5146
        %6024 = vmatpush1.bf16.msra.mxu0 %v5145
        %6025 = vmatprep.subr.bf16.mxu0 %v5150
        %6026 = vmatpush1.bf16.msra.mxu0 %v5149
        %6027 = vmatprep.subr.bf16.mxu0 %v5154
        %6028 = vmatpush1.bf16.msra.mxu0 %v5153
        %6029 = vmatprep.subr.bf16.mxu0 %v5158
        %6030 = vmatpush1.bf16.msra.mxu0 %v5157
        %6031 = vmatprep.subr.bf16.mxu0 %v5162
        %6032 = vmatpush1.bf16.msra.mxu0 %v5161
        %6033 = vmatprep.subr.bf16.mxu0 %v5166
        %6034 = vmatpush1.bf16.msra.mxu0 %v5165
        %6035 = vmatprep.subr.bf16.mxu0 %v5170
        %6036 = vmatpush1.bf16.msra.mxu0 %v5169
        %6037 = vmatprep.subr.bf16.mxu0 %v5174
        %6038 = vmatpush1.bf16.msra.mxu0 %v5173
        %6039 = vmatprep.subr.bf16.mxu0 %v5178
        %6040 = vmatpush1.bf16.msra.mxu0 %v5177
        %6041 = vmatprep.subr.bf16.mxu0 %v5182
        %6042 = vmatpush1.bf16.msra.mxu0 %v5181
        %6043 = vmatprep.subr.bf16.mxu0 %v5186
        %6044 = vmatpush1.bf16.msra.mxu0 %v5185
        %6045 = vmatprep.subr.bf16.mxu0 %v5190
        %6046 = vmatpush1.bf16.msra.mxu0 %v5189
        %6047 = vmatprep.subr.bf16.mxu0 %v5194
        %6048 = vmatpush1.bf16.msra.mxu0 %v5193
        %6049 = vmatprep.mubr.bf16.mxu0 %v2635
        %6050 = vmatmul.mubr.bf16.gmra.mrb[0].mxu0 %v2634
        %v6051 = vpop.f32.mrb[0].mxu0
        %v6052 = vadd.f32 %v6011, %v6051
        %v6053 = vpop.f32.mrb[0].mxu0
        %v6054 = vadd.f32 %v6013, %v6053
        %v6055 = vpop.f32.mrb[0].mxu0
        %v6056 = vpop.f32.mrb[0].mxu0
        %6057 = vdwg.mxu0
        %6058 = vmatprep.subr.bf16.mxu0 %v4688
        %6059 = vmatpush1.bf16.msra.mxu0 %v4687
        %6060 = vmatprep.subr.bf16.mxu0 %v4692
        %6061 = vmatpush1.bf16.msra.mxu0 %v4691
        %6062 = vmatprep.subr.bf16.mxu0 %v4696
        %6063 = vmatpush1.bf16.msra.mxu0 %v4695
        %6064 = vmatprep.subr.bf16.mxu0 %v4700
        %6065 = vmatpush1.bf16.msra.mxu0 %v4699
        %6066 = vmatprep.subr.bf16.mxu0 %v4704
        %6067 = vmatpush1.bf16.msra.mxu0 %v4703
        %6068 = vmatprep.subr.bf16.mxu0 %v4708
        %6069 = vmatpush1.bf16.msra.mxu0 %v4707
        %6070 = vmatprep.subr.bf16.mxu0 %v4712
        %6071 = vmatpush1.bf16.msra.mxu0 %v4711
        %6072 = vmatprep.subr.bf16.mxu0 %v4716
        %6073 = vmatpush1.bf16.msra.mxu0 %v4715
        %6074 = vmatprep.subr.bf16.mxu0 %v4720
        %6075 = vmatpush1.bf16.msra.mxu0 %v4719
        %6076 = vmatprep.subr.bf16.mxu0 %v4724
        %6077 = vmatpush1.bf16.msra.mxu0 %v4723
        %6078 = vmatprep.subr.bf16.mxu0 %v4728
        %6079 = vmatpush1.bf16.msra.mxu0 %v4727
        %6080 = vmatprep.subr.bf16.mxu0 %v4732
        %6081 = vmatpush1.bf16.msra.mxu0 %v4731
        %6082 = vmatprep.subr.bf16.mxu0 %v4736
        %6083 = vmatpush1.bf16.msra.mxu0 %v4735
        %6084 = vmatprep.subr.bf16.mxu0 %v4740
        %6085 = vmatpush1.bf16.msra.mxu0 %v4739
        %6086 = vmatprep.subr.bf16.mxu0 %v4744
        %6087 = vmatpush1.bf16.msra.mxu0 %v4743
        %6088 = vmatprep.subr.bf16.mxu0 %v4748
        %6089 = vmatpush1.bf16.msra.mxu0 %v4747
        %6090 = vmatprep.mubr.bf16.mxu0 %v2621
        %6091 = vmatmul.mubr.bf16.gmra.mrb[0].mxu0 %v2620
        %v6092 = vpop.f32.mrb[0].mxu0
        %v6093 = vadd.f32 %v5721, %v6092
        %v6094 = vpop.f32.mrb[0].mxu0
        %v6095 = vadd.f32 %v5725, %v6094
        %v6096 = vpop.f32.mrb[0].mxu0
        %v6097 = vpop.f32.mrb[0].mxu0
        %6098 = vdwg.mxu0
        %6099 = vmatprep.subr.bf16.mxu0 %v4752
        %6100 = vmatpush1.bf16.msra.mxu0 %v4751
        %6101 = vmatprep.subr.bf16.mxu0 %v4756
        %6102 = vmatpush1.bf16.msra.mxu0 %v4755
        %6103 = vmatprep.subr.bf16.mxu0 %v4760
        %6104 = vmatpush1.bf16.msra.mxu0 %v4759
        %6105 = vmatprep.subr.bf16.mxu0 %v4764
        %6106 = vmatpush1.bf16.msra.mxu0 %v4763
        %6107 = vmatprep.subr.bf16.mxu0 %v4768
        %6108 = vmatpush1.bf16.msra.mxu0 %v4767
        %6109 = vmatprep.subr.bf16.mxu0 %v4772
        %6110 = vmatpush1.bf16.msra.mxu0 %v4771
        %6111 = vmatprep.subr.bf16.mxu0 %v4776
        %6112 = vmatpush1.bf16.msra.mxu0 %v4775
        %6113 = vmatprep.subr.bf16.mxu0 %v4780
        %6114 = vmatpush1.bf16.msra.mxu0 %v4779
        %6115 = vmatprep.subr.bf16.mxu0 %v4784
        %6116 = vmatpush1.bf16.msra.mxu0 %v4783
        %6117 = vmatprep.subr.bf16.mxu0 %v4788
        %6118 = vmatpush1.bf16.msra.mxu0 %v4787
        %6119 = vmatprep.subr.bf16.mxu0 %v4792
        %6120 = vmatpush1.bf16.msra.mxu0 %v4791
        %6121 = vmatprep.subr.bf16.mxu0 %v4796
        %6122 = vmatpush1.bf16.msra.mxu0 %v4795
        %6123 = vmatprep.subr.bf16.mxu0 %v4800
        %6124 = vmatpush1.bf16.msra.mxu0 %v4799
        %6125 = vmatprep.subr.bf16.mxu0 %v4804
        %6126 = vmatpush1.bf16.msra.mxu0 %v4803
        %6127 = vmatprep.subr.bf16.mxu0 %v4808
        %6128 = vmatpush1.bf16.msra.mxu0 %v4807
        %6129 = vmatprep.subr.bf16.mxu0 %v4812
        %6130 = vmatpush1.bf16.msra.mxu0 %v4811
        %6131 = vmatprep.mubr.bf16.mxu0 %v2623
        %6132 = vmatmul.mubr.bf16.gmra.mrb[0].mxu0 %v2622
        %v6133 = vpop.f32.mrb[0].mxu0
        %v6134 = vadd.f32 %v6093, %v6133
        %v6135 = vpop.f32.mrb[0].mxu0
        %v6136 = vadd.f32 %v6095, %v6135
        %v6137 = vpop.f32.mrb[0].mxu0
        %v6138 = vpop.f32.mrb[0].mxu0
        %6139 = vdwg.mxu0
        %6140 = vmatprep.subr.bf16.mxu0 %v4816
        %6141 = vmatpush1.bf16.msra.mxu0 %v4815
        %6142 = vmatprep.subr.bf16.mxu0 %v4820
        %6143 = vmatpush1.bf16.msra.mxu0 %v4819
        %6144 = vmatprep.subr.bf16.mxu0 %v4824
        %6145 = vmatpush1.bf16.msra.mxu0 %v4823
        %6146 = vmatprep.subr.bf16.mxu0 %v4828
        %6147 = vmatpush1.bf16.msra.mxu0 %v4827
        %6148 = vmatprep.subr.bf16.mxu0 %v4832
        %6149 = vmatpush1.bf16.msra.mxu0 %v4831
        %6150 = vmatprep.subr.bf16.mxu0 %v4836
        %6151 = vmatpush1.bf16.msra.mxu0 %v4835
        %6152 = vmatprep.subr.bf16.mxu0 %v4840
        %6153 = vmatpush1.bf16.msra.mxu0 %v4839
        %6154 = vmatprep.subr.bf16.mxu0 %v4844
        %6155 = vmatpush1.bf16.msra.mxu0 %v4843
        %6156 = vmatprep.subr.bf16.mxu0 %v4848
        %6157 = vmatpush1.bf16.msra.mxu0 %v4847
        %6158 = vmatprep.subr.bf16.mxu0 %v4852
        %6159 = vmatpush1.bf16.msra.mxu0 %v4851
        %6160 = vmatprep.subr.bf16.mxu0 %v4856
        %6161 = vmatpush1.bf16.msra.mxu0 %v4855
        %6162 = vmatprep.subr.bf16.mxu0 %v4860
        %6163 = vmatpush1.bf16.msra.mxu0 %v4859
        %6164 = vmatprep.subr.bf16.mxu0 %v4864
        %6165 = vmatpush1.bf16.msra.mxu0 %v4863
        %6166 = vmatprep.subr.bf16.mxu0 %v4868
        %6167 = vmatpush1.bf16.msra.mxu0 %v4867
        %6168 = vmatprep.subr.bf16.mxu0 %v4872
        %6169 = vmatpush1.bf16.msra.mxu0 %v4871
        %6170 = vmatprep.subr.bf16.mxu0 %v4876
        %6171 = vmatpush1.bf16.msra.mxu0 %v4875
        %6172 = vmatprep.mubr.bf16.mxu0 %v2625
        %6173 = vmatmul.mubr.bf16.gmra.mrb[0].mxu0 %v2624
        %v6174 = vpop.f32.mrb[0].mxu0
        %v6175 = vadd.f32 %v6134, %v6174
        %v6176 = vpop.f32.mrb[0].mxu0
        %v6177 = vadd.f32 %v6136, %v6176
        %v6178 = vpop.f32.mrb[0].mxu0
        %v6179 = vpop.f32.mrb[0].mxu0
        %6180 = vdwg.mxu0
        %6181 = vmatprep.subr.bf16.mxu0 %v4880
        %6182 = vmatpush1.bf16.msra.mxu0 %v4879
        %6183 = vmatprep.subr.bf16.mxu0 %v4884
        %6184 = vmatpush1.bf16.msra.mxu0 %v4883
        %6185 = vmatprep.subr.bf16.mxu0 %v4888
        %6186 = vmatpush1.bf16.msra.mxu0 %v4887
        %6187 = vmatprep.subr.bf16.mxu0 %v4892
        %6188 = vmatpush1.bf16.msra.mxu0 %v4891
        %6189 = vmatprep.subr.bf16.mxu0 %v4896
        %6190 = vmatpush1.bf16.msra.mxu0 %v4895
        %6191 = vmatprep.subr.bf16.mxu0 %v4900
        %6192 = vmatpush1.bf16.msra.mxu0 %v4899
        %6193 = vmatprep.subr.bf16.mxu0 %v4904
        %6194 = vmatpush1.bf16.msra.mxu0 %v4903
        %6195 = vmatprep.subr.bf16.mxu0 %v4908
        %6196 = vmatpush1.bf16.msra.mxu0 %v4907
        %6197 = vmatprep.subr.bf16.mxu0 %v4912
        %6198 = vmatpush1.bf16.msra.mxu0 %v4911
        %6199 = vmatprep.subr.bf16.mxu0 %v4916
        %6200 = vmatpush1.bf16.msra.mxu0 %v4915
        %6201 = vmatprep.subr.bf16.mxu0 %v4920
        %6202 = vmatpush1.bf16.msra.mxu0 %v4919
        %6203 = vmatprep.subr.bf16.mxu0 %v4924
        %6204 = vmatpush1.bf16.msra.mxu0 %v4923
        %6205 = vmatprep.subr.bf16.mxu0 %v4928
        %6206 = vmatpush1.bf16.msra.mxu0 %v4927
        %6207 = vmatprep.subr.bf16.mxu0 %v4932
        %6208 = vmatpush1.bf16.msra.mxu0 %v4931
        %6209 = vmatprep.subr.bf16.mxu0 %v4936
        %6210 = vmatpush1.bf16.msra.mxu0 %v4935
        %6211 = vmatprep.subr.bf16.mxu0 %v4940
        %6212 = vmatpush1.bf16.msra.mxu0 %v4939
        %6213 = vmatprep.mubr.bf16.mxu0 %v2627
        %6214 = vmatmul.mubr.bf16.gmra.mrb[0].mxu0 %v2626
        %v6215 = vpop.f32.mrb[0].mxu0
        %v6216 = vadd.f32 %v6175, %v6215
        %v6217 = vpop.f32.mrb[0].mxu0
        %v6218 = vadd.f32 %v6177, %v6217
        %v6219 = vpop.f32.mrb[0].mxu0
        %v6220 = vpop.f32.mrb[0].mxu0
        %6221 = vdwg.mxu0
        %6222 = vmatprep.subr.bf16.mxu0 %v4944
        %6223 = vmatpush1.bf16.msra.mxu0 %v4943
        %6224 = vmatprep.subr.bf16.mxu0 %v4948
        %6225 = vmatpush1.bf16.msra.mxu0 %v4947
        %6226 = vmatprep.subr.bf16.mxu0 %v4952
        %6227 = vmatpush1.bf16.msra.mxu0 %v4951
        %6228 = vmatprep.subr.bf16.mxu0 %v4956
        %6229 = vmatpush1.bf16.msra.mxu0 %v4955
        %6230 = vmatprep.subr.bf16.mxu0 %v4960
        %6231 = vmatpush1.bf16.msra.mxu0 %v4959
        %6232 = vmatprep.subr.bf16.mxu0 %v4964
        %6233 = vmatpush1.bf16.msra.mxu0 %v4963
        %6234 = vmatprep.subr.bf16.mxu0 %v4968
        %6235 = vmatpush1.bf16.msra.mxu0 %v4967
        %6236 = vmatprep.subr.bf16.mxu0 %v4972
        %6237 = vmatpush1.bf16.msra.mxu0 %v4971
        %6238 = vmatprep.subr.bf16.mxu0 %v4976
        %6239 = vmatpush1.bf16.msra.mxu0 %v4975
        %6240 = vmatprep.subr.bf16.mxu0 %v4980
        %6241 = vmatpush1.bf16.msra.mxu0 %v4979
        %6242 = vmatprep.subr.bf16.mxu0 %v4984
        %6243 = vmatpush1.bf16.msra.mxu0 %v4983
        %6244 = vmatprep.subr.bf16.mxu0 %v4988
        %6245 = vmatpush1.bf16.msra.mxu0 %v4987
        %6246 = vmatprep.subr.bf16.mxu0 %v4992
        %6247 = vmatpush1.bf16.msra.mxu0 %v4991
        %6248 = vmatprep.subr.bf16.mxu0 %v4996
        %6249 = vmatpush1.bf16.msra.mxu0 %v4995
        %6250 = vmatprep.subr.bf16.mxu0 %v5000
        %6251 = vmatpush1.bf16.msra.mxu0 %v4999
        %6252 = vmatprep.subr.bf16.mxu0 %v5004
        %6253 = vmatpush1.bf16.msra.mxu0 %v5003
        %6254 = vmatprep.mubr.bf16.mxu0 %v2629
        %6255 = vmatmul.mubr.bf16.gmra.mrb[0].mxu0 %v2628
        %v6256 = vpop.f32.mrb[0].mxu0
        %v6257 = vadd.f32 %v6216, %v6256
        %v6258 = vpop.f32.mrb[0].mxu0
        %v6259 = vadd.f32 %v6218, %v6258
        %v6260 = vpop.f32.mrb[0].mxu0
        %v6261 = vpop.f32.mrb[0].mxu0
        %6262 = vdwg.mxu0
        %6263 = vmatprep.subr.bf16.mxu0 %v5008
        %6264 = vmatpush1.bf16.msra.mxu0 %v5007
        %6265 = vmatprep.subr.bf16.mxu0 %v5012
        %6266 = vmatpush1.bf16.msra.mxu0 %v5011
        %6267 = vmatprep.subr.bf16.mxu0 %v5016
        %6268 = vmatpush1.bf16.msra.mxu0 %v5015
        %6269 = vmatprep.subr.bf16.mxu0 %v5020
        %6270 = vmatpush1.bf16.msra.mxu0 %v5019
        %6271 = vmatprep.subr.bf16.mxu0 %v5024
        %6272 = vmatpush1.bf16.msra.mxu0 %v5023
        %6273 = vmatprep.subr.bf16.mxu0 %v5028
        %6274 = vmatpush1.bf16.msra.mxu0 %v5027
        %6275 = vmatprep.subr.bf16.mxu0 %v5032
        %6276 = vmatpush1.bf16.msra.mxu0 %v5031
        %6277 = vmatprep.subr.bf16.mxu0 %v5036
        %6278 = vmatpush1.bf16.msra.mxu0 %v5035
        %6279 = vmatprep.subr.bf16.mxu0 %v5040
        %6280 = vmatpush1.bf16.msra.mxu0 %v5039
        %6281 = vmatprep.subr.bf16.mxu0 %v5044
        %6282 = vmatpush1.bf16.msra.mxu0 %v5043
        %6283 = vmatprep.subr.bf16.mxu0 %v5048
        %6284 = vmatpush1.bf16.msra.mxu0 %v5047
        %6285 = vmatprep.subr.bf16.mxu0 %v5052
        %6286 = vmatpush1.bf16.msra.mxu0 %v5051
        %6287 = vmatprep.subr.bf16.mxu0 %v5056
        %6288 = vmatpush1.bf16.msra.mxu0 %v5055
        %6289 = vmatprep.subr.bf16.mxu0 %v5060
        %6290 = vmatpush1.bf16.msra.mxu0 %v5059
        %6291 = vmatprep.subr.bf16.mxu0 %v5064
        %6292 = vmatpush1.bf16.msra.mxu0 %v5063
        %6293 = vmatprep.subr.bf16.mxu0 %v5068
        %6294 = vmatpush1.bf16.msra.mxu0 %v5067
        %6295 = vmatprep.mubr.bf16.mxu0 %v2631
        %6296 = vmatmul.mubr.bf16.gmra.mrb[0].mxu0 %v2630
        %v6297 = vpop.f32.mrb[0].mxu0
        %v6298 = vadd.f32 %v6257, %v6297
        %v6299 = vpop.f32.mrb[0].mxu0
        %v6300 = vadd.f32 %v6259, %v6299
        %v6301 = vpop.f32.mrb[0].mxu0
        %v6302 = vpop.f32.mrb[0].mxu0
        %6303 = vdwg.mxu0
        %6304 = vmatprep.subr.bf16.mxu0 %v5072
        %6305 = vmatpush1.bf16.msra.mxu0 %v5071
        %6306 = vmatprep.subr.bf16.mxu0 %v5076
        %6307 = vmatpush1.bf16.msra.mxu0 %v5075
        %6308 = vmatprep.subr.bf16.mxu0 %v5080
        %6309 = vmatpush1.bf16.msra.mxu0 %v5079
        %6310 = vmatprep.subr.bf16.mxu0 %v5084
        %6311 = vmatpush1.bf16.msra.mxu0 %v5083
        %6312 = vmatprep.subr.bf16.mxu0 %v5088
        %6313 = vmatpush1.bf16.msra.mxu0 %v5087
        %6314 = vmatprep.subr.bf16.mxu0 %v5092
        %6315 = vmatpush1.bf16.msra.mxu0 %v5091
        %6316 = vmatprep.subr.bf16.mxu0 %v5096
        %6317 = vmatpush1.bf16.msra.mxu0 %v5095
        %6318 = vmatprep.subr.bf16.mxu0 %v5100
        %6319 = vmatpush1.bf16.msra.mxu0 %v5099
        %6320 = vmatprep.subr.bf16.mxu0 %v5104
        %6321 = vmatpush1.bf16.msra.mxu0 %v5103
        %6322 = vmatprep.subr.bf16.mxu0 %v5108
        %6323 = vmatpush1.bf16.msra.mxu0 %v5107
        %6324 = vmatprep.subr.bf16.mxu0 %v5112
        %6325 = vmatpush1.bf16.msra.mxu0 %v5111
        %6326 = vmatprep.subr.bf16.mxu0 %v5116
        %6327 = vmatpush1.bf16.msra.mxu0 %v5115
        %6328 = vmatprep.subr.bf16.mxu0 %v5120
        %6329 = vmatpush1.bf16.msra.mxu0 %v5119
        %6330 = vmatprep.subr.bf16.mxu0 %v5124
        %6331 = vmatpush1.bf16.msra.mxu0 %v5123
        %6332 = vmatprep.subr.bf16.mxu0 %v5128
        %6333 = vmatpush1.bf16.msra.mxu0 %v5127
        %6334 = vmatprep.subr.bf16.mxu0 %v5132
        %6335 = vmatpush1.bf16.msra.mxu0 %v5131
        %6336 = vmatprep.mubr.bf16.mxu0 %v2633
        %6337 = vmatmul.mubr.bf16.gmra.mrb[0].mxu0 %v2632
        %v6338 = vpop.f32.mrb[0].mxu0
        %v6339 = vadd.f32 %v6298, %v6338
        %v6340 = vpop.f32.mrb[0].mxu0
        %v6341 = vadd.f32 %v6300, %v6340
        %v6342 = vpop.f32.mrb[0].mxu0
        %v6343 = vpop.f32.mrb[0].mxu0
        %6344 = vdwg.mxu0
        %6345 = vmatprep.subr.bf16.mxu0 %v5136
        %6346 = vmatpush1.bf16.msra.mxu0 %v5135
        %6347 = vmatprep.subr.bf16.mxu0 %v5140
        %6348 = vmatpush1.bf16.msra.mxu0 %v5139
        %6349 = vmatprep.subr.bf16.mxu0 %v5144
        %6350 = vmatpush1.bf16.msra.mxu0 %v5143
        %6351 = vmatprep.subr.bf16.mxu0 %v5148
        %6352 = vmatpush1.bf16.msra.mxu0 %v5147
        %6353 = vmatprep.subr.bf16.mxu0 %v5152
        %6354 = vmatpush1.bf16.msra.mxu0 %v5151
        %6355 = vmatprep.subr.bf16.mxu0 %v5156
        %6356 = vmatpush1.bf16.msra.mxu0 %v5155
        %6357 = vmatprep.subr.bf16.mxu0 %v5160
        %6358 = vmatpush1.bf16.msra.mxu0 %v5159
        %6359 = vmatprep.subr.bf16.mxu0 %v5164
        %6360 = vmatpush1.bf16.msra.mxu0 %v5163
        %6361 = vmatprep.subr.bf16.mxu0 %v5168
        %6362 = vmatpush1.bf16.msra.mxu0 %v5167
        %6363 = vmatprep.subr.bf16.mxu0 %v5172
        %6364 = vmatpush1.bf16.msra.mxu0 %v5171
        %6365 = vmatprep.subr.bf16.mxu0 %v5176
        %6366 = vmatpush1.bf16.msra.mxu0 %v5175
        %6367 = vmatprep.subr.bf16.mxu0 %v5180
        %6368 = vmatpush1.bf16.msra.mxu0 %v5179
        %6369 = vmatprep.subr.bf16.mxu0 %v5184
        %6370 = vmatpush1.bf16.msra.mxu0 %v5183
        %6371 = vmatprep.subr.bf16.mxu0 %v5188
        %6372 = vmatpush1.bf16.msra.mxu0 %v5187
        %6373 = vmatprep.subr.bf16.mxu0 %v5192
        %6374 = vmatpush1.bf16.msra.mxu0 %v5191
        %6375 = vmatprep.subr.bf16.mxu0 %v5196
        %6376 = vmatpush1.bf16.msra.mxu0 %v5195
        %6377 = vmatprep.mubr.bf16.mxu0 %v2635
        %6378 = vmatmul.mubr.bf16.gmra.mrb[0].mxu0 %v2634
        %v6379 = vpop.f32.mrb[0].mxu0
        %v6380 = vadd.f32 %v6339, %v6379
        %v6381 = vpop.f32.mrb[0].mxu0
        %v6382 = vadd.f32 %v6341, %v6381
        %v6383 = vpop.f32.mrb[0].mxu0
        %v6384 = vpop.f32.mrb[0].mxu0
        %6385 = vdwg.mxu0
        %v6386 = vmax.f32 %v6052, 0.0
        %v6387 = vmax.f32 %v6054, 0.0
        %v6388 = vmax.f32 %v6380, 0.0
        %v6389 = vmax.f32 %v6382, 0.0
        %v6390 = vpack.c.bf16 %v6386, %v6386
        %v6391 = vpack.c.bf16 %v6387, %v6387
        %v6392 = vpack.c.bf16 %v6388, %v6388
        %v6393 = vpack.c.bf16 %v6389, %v6389
        %v6394 = vld [vmem:[%s7] sm:$0xf]
        %v6395 = vld [vmem:[%s7 + $0x4] sm:$0xf]
        %v6396 = vld [vmem:[%s7 + $0x8] sm:$0xf]
        %v6397 = vld [vmem:[%s7 + $0xc] sm:$0xf]
        %v6398 = vld [vmem:[%s7 + $0x10] sm:$0xf]
        %v6399 = vld [vmem:[%s7 + $0x14] sm:$0xf]
        %v6400 = vld [vmem:[%s7 + $0x18] sm:$0xf]
        %v6401 = vld [vmem:[%s7 + $0x1c] sm:$0xf]
        %v6402 = vld [vmem:[%s7 + $0x20] sm:$0xf]
        %v6403 = vld [vmem:[%s7 + $0x24] sm:$0xf]
        %v6404 = vld [vmem:[%s7 + $0x28] sm:$0xf]
        %v6405 = vld [vmem:[%s7 + $0x2c] sm:$0xf]
        %v6406 = vld [vmem:[%s7 + $0x30] sm:$0xf]
        %v6407 = vld [vmem:[%s7 + $0x34] sm:$0xf]
        %v6408 = vld [vmem:[%s7 + $0x38] sm:$0xf]
        %v6409 = vld [vmem:[%s7 + $0x3c] sm:$0xf]
        %v6410 = vld [vmem:[%s7 + $0x40] sm:$0xf]
        %v6411 = vld [vmem:[%s7 + $0x44] sm:$0xf]
        %v6412 = vld [vmem:[%s7 + $0x48] sm:$0xf]
        %v6413 = vld [vmem:[%s7 + $0x4c] sm:$0xf]
        %v6414 = vld [vmem:[%s7 + $0x50] sm:$0xf]
        %v6415 = vld [vmem:[%s7 + $0x54] sm:$0xf]
        %v6416 = vld [vmem:[%s7 + $0x58] sm:$0xf]
        %v6417 = vld [vmem:[%s7 + $0x5c] sm:$0xf]
        %v6418 = vld [vmem:[%s7 + $0x60] sm:$0xf]
        %v6419 = vld [vmem:[%s7 + $0x64] sm:$0xf]
        %v6420 = vld [vmem:[%s7 + $0x68] sm:$0xf]
        %v6421 = vld [vmem:[%s7 + $0x6c] sm:$0xf]
        %v6422 = vld [vmem:[%s7 + $0x70] sm:$0xf]
        %v6423 = vld [vmem:[%s7 + $0x74] sm:$0xf]
        %v6424 = vld [vmem:[%s7 + $0x78] sm:$0xf]
        %v6425 = vld [vmem:[%s7 + $0x7c] sm:$0xf]
        %v6426 = vld [vmem:[%s7 + $0x80] sm:$0xf]
        %v6427 = vld [vmem:[%s7 + $0x84] sm:$0xf]
        %v6428 = vld [vmem:[%s7 + $0x88] sm:$0xf]
        %v6429 = vld [vmem:[%s7 + $0x8c] sm:$0xf]
        %v6430 = vld [vmem:[%s7 + $0x90] sm:$0xf]
        %v6431 = vld [vmem:[%s7 + $0x94] sm:$0xf]
        %v6432 = vld [vmem:[%s7 + $0x98] sm:$0xf]
        %v6433 = vld [vmem:[%s7 + $0x9c] sm:$0xf]
        %v6434 = vld [vmem:[%s7 + $0xa0] sm:$0xf]
        %v6435 = vld [vmem:[%s7 + $0xa4] sm:$0xf]
        %v6436 = vld [vmem:[%s7 + $0xa8] sm:$0xf]
        %v6437 = vld [vmem:[%s7 + $0xac] sm:$0xf]
        %v6438 = vld [vmem:[%s7 + $0xb0] sm:$0xf]
        %v6439 = vld [vmem:[%s7 + $0xb4] sm:$0xf]
        %v6440 = vld [vmem:[%s7 + $0xb8] sm:$0xf]
        %v6441 = vld [vmem:[%s7 + $0xbc] sm:$0xf]
        %v6442 = vld [vmem:[%s7 + $0xc0] sm:$0xf]
        %v6443 = vld [vmem:[%s7 + $0xc4] sm:$0xf]
        %v6444 = vld [vmem:[%s7 + $0xc8] sm:$0xf]
        %v6445 = vld [vmem:[%s7 + $0xcc] sm:$0xf]
        %v6446 = vld [vmem:[%s7 + $0xd0] sm:$0xf]
        %v6447 = vld [vmem:[%s7 + $0xd4] sm:$0xf]
        %v6448 = vld [vmem:[%s7 + $0xd8] sm:$0xf]
        %v6449 = vld [vmem:[%s7 + $0xdc] sm:$0xf]
        %v6450 = vld [vmem:[%s7 + $0xe0] sm:$0xf]
        %v6451 = vld [vmem:[%s7 + $0xe4] sm:$0xf]
        %v6452 = vld [vmem:[%s7 + $0xe8] sm:$0xf]
        %v6453 = vld [vmem:[%s7 + $0xec] sm:$0xf]
        %v6454 = vld [vmem:[%s7 + $0xf0] sm:$0xf]
        %v6455 = vld [vmem:[%s7 + $0xf4] sm:$0xf]
        %v6456 = vld [vmem:[%s7 + $0xf8] sm:$0xf]
        %v6457 = vld [vmem:[%s7 + $0xfc] sm:$0xf]
        %v6458 = vld [vmem:[#allocation17] sm:$0x1]
        %v6523 = vunpack.c.l.b16 %v6394
        %v6524 = vunpack.c.l.b16 %v6395
        %v6525 = vunpack.c.l.b16 %v6396
        %v6526 = vunpack.c.l.b16 %v6397
        %v6527 = vunpack.c.l.b16 %v6398
        %v6528 = vunpack.c.l.b16 %v6399
        %v6529 = vunpack.c.l.b16 %v6400
        %v6530 = vunpack.c.l.b16 %v6401
        %v6531 = vunpack.c.l.b16 %v6402
        %v6532 = vunpack.c.l.b16 %v6403
        %v6533 = vunpack.c.l.b16 %v6404
        %v6534 = vunpack.c.l.b16 %v6405
        %v6535 = vunpack.c.l.b16 %v6406
        %v6536 = vunpack.c.l.b16 %v6407
        %v6537 = vunpack.c.l.b16 %v6408
        %v6538 = vunpack.c.l.b16 %v6409
        %v6539 = vunpack.c.l.b16 %v6410
        %v6540 = vunpack.c.l.b16 %v6411
        %v6541 = vunpack.c.l.b16 %v6412
        %v6542 = vunpack.c.l.b16 %v6413
        %v6543 = vunpack.c.l.b16 %v6414
        %v6544 = vunpack.c.l.b16 %v6415
        %v6545 = vunpack.c.l.b16 %v6416
        %v6546 = vunpack.c.l.b16 %v6417
        %v6547 = vunpack.c.l.b16 %v6418
        %v6548 = vunpack.c.l.b16 %v6419
        %v6549 = vunpack.c.l.b16 %v6420
        %v6550 = vunpack.c.l.b16 %v6421
        %v6551 = vunpack.c.l.b16 %v6422
        %v6552 = vunpack.c.l.b16 %v6423
        %v6553 = vunpack.c.l.b16 %v6424
        %v6554 = vunpack.c.l.b16 %v6425
        %v6555 = vunpack.c.l.b16 %v6426
        %v6556 = vunpack.c.l.b16 %v6427
        %v6557 = vunpack.c.l.b16 %v6428
        %v6558 = vunpack.c.l.b16 %v6429
        %v6559 = vunpack.c.l.b16 %v6430
        %v6560 = vunpack.c.l.b16 %v6431
        %v6561 = vunpack.c.l.b16 %v6432
        %v6562 = vunpack.c.l.b16 %v6433
        %v6563 = vunpack.c.l.b16 %v6434
        %v6564 = vunpack.c.l.b16 %v6435
        %v6565 = vunpack.c.l.b16 %v6436
        %v6566 = vunpack.c.l.b16 %v6437
        %v6567 = vunpack.c.l.b16 %v6438
        %v6568 = vunpack.c.l.b16 %v6439
        %v6569 = vunpack.c.l.b16 %v6440
        %v6570 = vunpack.c.l.b16 %v6441
        %v6571 = vunpack.c.l.b16 %v6442
        %v6572 = vunpack.c.l.b16 %v6443
        %v6573 = vunpack.c.l.b16 %v6444
        %v6574 = vunpack.c.l.b16 %v6445
        %v6575 = vunpack.c.l.b16 %v6446
        %v6576 = vunpack.c.l.b16 %v6447
        %v6577 = vunpack.c.l.b16 %v6448
        %v6578 = vunpack.c.l.b16 %v6449
        %v6579 = vunpack.c.l.b16 %v6450
        %v6580 = vunpack.c.l.b16 %v6451
        %v6581 = vunpack.c.l.b16 %v6452
        %v6582 = vunpack.c.l.b16 %v6453
        %v6583 = vunpack.c.l.b16 %v6454
        %v6584 = vunpack.c.l.b16 %v6455
        %v6585 = vunpack.c.l.b16 %v6456
        %v6586 = vunpack.c.l.b16 %v6457
        %v6587 = vpack.c.b16 %v6524, %v6523
        %v6588 = vpack.c.b16 %v6526, %v6525
        %v6589 = vpack.c.b16 %v6528, %v6527
        %v6590 = vpack.c.b16 %v6530, %v6529
        %v6591 = vpack.c.b16 %v6532, %v6531
        %v6592 = vpack.c.b16 %v6534, %v6533
        %v6593 = vpack.c.b16 %v6536, %v6535
        %v6594 = vpack.c.b16 %v6538, %v6537
        %v6595 = vpack.c.b16 %v6540, %v6539
        %v6596 = vpack.c.b16 %v6542, %v6541
        %v6597 = vpack.c.b16 %v6544, %v6543
        %v6598 = vpack.c.b16 %v6546, %v6545
        %v6599 = vpack.c.b16 %v6548, %v6547
        %v6600 = vpack.c.b16 %v6550, %v6549
        %v6601 = vpack.c.b16 %v6552, %v6551
        %v6602 = vpack.c.b16 %v6554, %v6553
        %v6603 = vpack.c.b16 %v6556, %v6555
        %v6604 = vpack.c.b16 %v6558, %v6557
        %v6605 = vpack.c.b16 %v6560, %v6559
        %v6606 = vpack.c.b16 %v6562, %v6561
        %v6607 = vpack.c.b16 %v6564, %v6563
        %v6608 = vpack.c.b16 %v6566, %v6565
        %v6609 = vpack.c.b16 %v6568, %v6567
        %v6610 = vpack.c.b16 %v6570, %v6569
        %v6611 = vpack.c.b16 %v6572, %v6571
        %v6612 = vpack.c.b16 %v6574, %v6573
        %v6613 = vpack.c.b16 %v6576, %v6575
        %v6614 = vpack.c.b16 %v6578, %v6577
        %v6615 = vpack.c.b16 %v6580, %v6579
        %v6616 = vpack.c.b16 %v6582, %v6581
        %v6617 = vpack.c.b16 %v6584, %v6583
        %v6618 = vpack.c.b16 %v6586, %v6585
        %6651 = vmatprep.subr.bf16.mxu0 0
        %6652 = vmatpush1.bf16.msra.mxu0 %v6587
        %6653 = vmatprep.subr.bf16.mxu0 0
        %6654 = vmatpush1.bf16.msra.mxu0 %v6588
        %6655 = vmatprep.subr.bf16.mxu0 0
        %6656 = vmatpush1.bf16.msra.mxu0 %v6589
        %6657 = vmatprep.subr.bf16.mxu0 0
        %6658 = vmatpush1.bf16.msra.mxu0 %v6590
        %6659 = vmatprep.subr.bf16.mxu0 0
        %6660 = vmatpush1.bf16.msra.mxu0 %v6591
        %6661 = vmatprep.subr.bf16.mxu0 0
        %6662 = vmatpush1.bf16.msra.mxu0 %v6592
        %6663 = vmatprep.subr.bf16.mxu0 0
        %6664 = vmatpush1.bf16.msra.mxu0 %v6593
        %6665 = vmatprep.subr.bf16.mxu0 0
        %6666 = vmatpush1.bf16.msra.mxu0 %v6594
        %6667 = vmatprep.subr.bf16.mxu0 0
        %6668 = vmatpush1.bf16.msra.mxu0 %v6595
        %6669 = vmatprep.subr.bf16.mxu0 0
        %6670 = vmatpush1.bf16.msra.mxu0 %v6596
        %6671 = vmatprep.subr.bf16.mxu0 0
        %6672 = vmatpush1.bf16.msra.mxu0 %v6597
        %6673 = vmatprep.subr.bf16.mxu0 0
        %6674 = vmatpush1.bf16.msra.mxu0 %v6598
        %6675 = vmatprep.subr.bf16.mxu0 0
        %6676 = vmatpush1.bf16.msra.mxu0 %v6599
        %6677 = vmatprep.subr.bf16.mxu0 0
        %6678 = vmatpush1.bf16.msra.mxu0 %v6600
        %6679 = vmatprep.subr.bf16.mxu0 0
        %6680 = vmatpush1.bf16.msra.mxu0 %v6601
        %6681 = vmatprep.subr.bf16.mxu0 0
        %6682 = vmatpush1.bf16.msra.mxu0 %v6602
        %6683 = vmatprep.mubr.bf16.mxu0 %v6391
        %6684 = vmatmul.mubr.bf16.gmra.mrb[0].mxu0 %v6390
        %v6685 = vpop.f32.mrb[0].mxu0
        %v6686 = vadd.f32 %v6458, %v6685
        %v6687 = vpop.f32.mrb[0].mxu0
        %v6688 = vpop.f32.mrb[0].mxu0
        %v6689 = vpop.f32.mrb[0].mxu0
        %6690 = vdwg.mxu0
        %6691 = vmatprep.subr.bf16.mxu0 0
        %6692 = vmatpush1.bf16.msra.mxu0 %v6603
        %6693 = vmatprep.subr.bf16.mxu0 0
        %6694 = vmatpush1.bf16.msra.mxu0 %v6604
        %6695 = vmatprep.subr.bf16.mxu0 0
        %6696 = vmatpush1.bf16.msra.mxu0 %v6605
        %6697 = vmatprep.subr.bf16.mxu0 0
        %6698 = vmatpush1.bf16.msra.mxu0 %v6606
        %6699 = vmatprep.subr.bf16.mxu0 0
        %6700 = vmatpush1.bf16.msra.mxu0 %v6607
        %6701 = vmatprep.subr.bf16.mxu0 0
        %6702 = vmatpush1.bf16.msra.mxu0 %v6608
        %6703 = vmatprep.subr.bf16.mxu0 0
        %6704 = vmatpush1.bf16.msra.mxu0 %v6609
        %6705 = vmatprep.subr.bf16.mxu0 0
        %6706 = vmatpush1.bf16.msra.mxu0 %v6610
        %6707 = vmatprep.subr.bf16.mxu0 0
        %6708 = vmatpush1.bf16.msra.mxu0 %v6611
        %6709 = vmatprep.subr.bf16.mxu0 0
        %6710 = vmatpush1.bf16.msra.mxu0 %v6612
        %6711 = vmatprep.subr.bf16.mxu0 0
        %6712 = vmatpush1.bf16.msra.mxu0 %v6613
        %6713 = vmatprep.subr.bf16.mxu0 0
        %6714 = vmatpush1.bf16.msra.mxu0 %v6614
        %6715 = vmatprep.subr.bf16.mxu0 0
        %6716 = vmatpush1.bf16.msra.mxu0 %v6615
        %6717 = vmatprep.subr.bf16.mxu0 0
        %6718 = vmatpush1.bf16.msra.mxu0 %v6616
        %6719 = vmatprep.subr.bf16.mxu0 0
        %6720 = vmatpush1.bf16.msra.mxu0 %v6617
        %6721 = vmatprep.subr.bf16.mxu0 0
        %6722 = vmatpush1.bf16.msra.mxu0 %v6618
        %6723 = vmatprep.mubr.bf16.mxu0 %v6393
        %6724 = vmatmul.mubr.bf16.gmra.mrb[0].mxu0 %v6392
        %v6725 = vpop.f32.mrb[0].mxu0
        %v6726 = vadd.f32 %v6686, %v6725
        %v6727 = vpop.f32.mrb[0].mxu0
        %v6728 = vpop.f32.mrb[0].mxu0
        %v6729 = vpop.f32.mrb[0].mxu0
        %6730 = vdwg.mxu0
        %vm6731 = vcmask 8192
        %6732 = vst.msk [vmem:[%s418] sm:$0x1] %vm6731, %v6726
        %s6733 = sand.u32 %s229, 1
        %s6734 = scalar_lea.sflag [#allocation8], %s6733
        %s6735 = sand.u32 %s229, 1
        %s6736 = scalar_lea.vmem [#allocation18], %s6735
        // Predicated region
        $region85: #{alzheimer_cnn_forward.1} parent=55 // pred_check
          %p6737 = pneg %p239
        $region86: #{alzheimer_cnn_forward.1} parent=55 // pred_check_branch
          %6739 = sbr.rel (%p6737) target = $region88
        $region87: #{alzheimer_cnn_forward.1} parent=55 // pred_region
          %s6741 = ssub.s32 16, 16
          %6742 = vsyncadd %s6734, %s6741
          %s6743 = smul.addr %s27, 16
          %s6744 = scalar_lea.hbm %s9, %s6743
          %s6746 = sshll.u32 %s6736, 4
          %s6747 = int_to_ptr.vmem [resolvable:$true] %s6746
          %6749 = dma.vmem_to_hbm [thread:$0]  %s6747, 16, %s6744, %s6734
        $region88: #{alzheimer_cnn_forward.1} parent=55 // pred_fallthru
          _
      $region56: #{alzheimer_cnn_forward.1} parent=5 // pred_fallthru
        _
      %p6750 = scmp.le.s32.totalorder 2, %s22
      // Predicated region
      $region89: #{alzheimer_cnn_forward.1} parent=5 // pred_check
        %p6751 = pneg %p6750
      $region90: #{alzheimer_cnn_forward.1} parent=5 // pred_check_branch
        %6753 = sbr.rel (%p6751) target = $region92
      $region91: #{alzheimer_cnn_forward.1} parent=5 // pred_region
        %s6754 = ssub.s32 %s22, 2
        // Predicated region
        $region93: #{alzheimer_cnn_forward.1} parent=91 // pred_check
          %p6755 = pneg %p245
        $region94: #{alzheimer_cnn_forward.1} parent=91 // pred_check_branch
          %6757 = sbr.rel (%p6755) target = $region96
        $region95: #{alzheimer_cnn_forward.1} parent=91 // pred_region
          %s6758 = sand.u32 %s230, 1
          %s6759 = scalar_lea.sflag [#allocation8], %s6758
          %s6760 = sand.u32 %s230, 1
          %s6761 = scalar_lea.vmem [#allocation18], %s6760
          %6762 = dma.done %s6759, 16
        $region96: #{alzheimer_cnn_forward.1} parent=91 // pred_fallthru
          _
      $region92: #{alzheimer_cnn_forward.1} parent=5 // pred_fallthru
        _
    $region6: #{alzheimer_cnn_forward.1} parent=1 // loop_footer
      %s26 = sadd.s32 1, %s22
    $region7: #{alzheimer_cnn_forward.1} parent=1 // loop_footer_branch
      %21 = sbr.rel target = $region3
    $region8: #{alzheimer_cnn_forward.1} parent=1 // loop_exit
      _
    %6763 = vsyncpa [#allocation7], 1
    %s6764 = scalar_lea.sflag [#allocation7], 1
    %6765 = vsyncpa %s6764, 1
    %6766 = vsyncpa [#allocation10], 1
    %6767 = vsyncpa [#allocation13], 1
    %6768 = vsyncpa [#allocation16], 1
    %6769 = vsyncpa [#allocation8], 1
    %s6770 = scalar_lea.sflag [#allocation8], 1
    %6771 = vsyncpa %s6770, 1

</llo_original>
